<compile_context>
chip_gen: v7x
topology: tpu7x:2x2x1
jax: 0.10.0
libtpu: 0.0.40
codegen_flags: <defaults>
</compile_context>

<pallas_src>
import numpy as np
import jax
import jax.numpy as jnp
from jax.experimental import pallas as pl
from jax.experimental.pallas import tpu as pltpu

_VMEM = pltpu.MemorySpace.VMEM

# Reduced-width VGG19 feature config (real VGG19: 64,64,M,128,128,M,256x4,M,512x4,M,512x4,M)
CFG = [8, 8, "M", 16, 16, "M", 32, 32, 32, 32, "M",
       64, 64, 64, 64, "M", 64, 64, 64, 64, "M"]
HIDDEN = 128          # real VGG19: 4096
NUM_CLASSES = 10      # real VGG19: 1000
POOL_OUT = 7          # AdaptiveAvgPool2d((7, 7))
INPUT_HW = 32         # input spatial size (must survive 5 stride-2 pools)
IN_CH = 3
IN_CH_PAD = 8         # pad input channels 3 -> 8 (zero channels; keeps sublane slices aligned)

N_CONV = sum(1 for v in CFG if v != "M")
N_BLOCKS = CFG.count("M")
C_MAX = max(v for v in CFG if v != "M")
# Scratch: padded-flat activation (C, (H+2)*(W+2)) plus a (W_pad+1)-wide zero margin on
# each side so every 3x3 tap is a single static slice.
EXT_MAX = (INPUT_HW + 2) ** 2 + 2 * (INPUT_HW + 3)


# ----------------------------- constant tables ------------------------------

def _interior_mask(h):
    """(1, (h+2)^2): 1.0 on the h*h interior pixels, 0.0 on the zero-padding ring."""
    wp = h + 2
    m = np.zeros((1, wp * wp), np.float32)
    for y in range(h):
        m[0, (y + 1) * wp + 1:(y + 1) * wp + 1 + h] = 1.0
    return m


def _pool_select(h):
    """0/1 re-layout matrix for MaxPool2d(2,2) in the padded-flat layout.

    Row (2y+1)*(h+2)+(2x+1) carries max of the 2x2 window (y, x) after the in-kernel
    shift-max; it is routed to padded-flat output position (y+1)*(h//2+2)+(x+1).
    When the pooled map is 1x1 (last pool) a single output column is produced.
    """
    wp = h + 2
    ho = h // 2
    if ho == 1:
        s = np.zeros((wp * wp, 1), np.float32)
        s[wp + 1, 0] = 1.0
        return s
    wop = ho + 2
    s = np.zeros((wp * wp, wop * wop), np.float32)
    for yo in range(ho):
        for xo in range(ho):
            s[(2 * yo + 1) * wp + (2 * xo + 1), (yo + 1) * wop + (xo + 1)] = 1.0
    return s


# ----------------------------- parameters -----------------------------------

def init_params(key):
    """Random parameters in the PyTorch layout (Conv2d: (Cout,Cin,3,3), Linear: (Dout,Din))."""
    convs, cin = [], IN_CH
    for v in CFG:
        if v == "M":
            continue
        key, kw, kb = jax.random.split(key, 3)
        w = jax.random.normal(kw, (v, cin, 3, 3), jnp.float32) / np.sqrt(9 * cin)
        b = jax.random.normal(kb, (v,), jnp.float32) * 0.01
        convs.append((w, b))
        cin = v
    feat = cin * POOL_OUT * POOL_OUT
    fcs = []
    for dout, din in [(HIDDEN, feat), (HIDDEN, HIDDEN), (NUM_CLASSES, HIDDEN)]:
        key, kw, kb = jax.random.split(key, 3)
        w = jax.random.normal(kw, (dout, din), jnp.float32) / np.sqrt(din)
        b = jax.random.normal(kb, (dout,), jnp.float32) * 0.01
        fcs.append((w, b))
    return {"convs": convs, "fcs": fcs}


def prepare_params(params):
    """One-time repack into kernel-ready layout (hoisted out of the forward pass).

      * conv weights -> (Cout, 9*Cin) bf16 "stacked-tap" matrices, tap-major along the
        contraction dim (matches the in-kernel sublane concat of the 9 shifted slices);
        first conv Cin padded 3->8.
      * biases -> (Cout, 1) columns.
      * AdaptiveAvgPool2d(7) on the 1x1 pre-pool map + Flatten + first Linear folded
        into one (HIDDEN, C_last) matrix (exact: the pool replicates one value 49x).
      * interior masks (f32, tiny) + maxpool re-layout selection matrices (bf16, exact
        0/1; halves the largest constant's HBM footprint) precomputed.
    """
    packed = {"conv_w": [], "conv_b": []}
    for w, b in params["convs"]:
        cout, cin = int(w.shape[0]), int(w.shape[1])
        cin_pad = IN_CH_PAD if cin < IN_CH_PAD else cin
        wt = jnp.transpose(w, (0, 2, 3, 1))            # (Cout, 3, 3, Cin) tap-major
        if cin < cin_pad:
            wt = jnp.pad(wt, ((0, 0), (0, 0), (0, 0), (0, cin_pad - cin)))
        packed["conv_w"].append(wt.reshape(cout, 9 * cin_pad).astype(jnp.bfloat16))
        packed["conv_b"].append(b.reshape(cout, 1))
    (w1, b1), (w2, b2), (w3, b3) = params["fcs"]
    c_last = int(params["convs"][-1][0].shape[0])
    w1_fold = w1.reshape(HIDDEN, c_last, POOL_OUT * POOL_OUT).sum(-1)   # (HIDDEN, C_last)
    packed["fc"] = [w1_fold, b1.reshape(-1, 1), w2, b2.reshape(-1, 1),
                    w3, b3.reshape(-1, 1)]
    masks, sels = [], []
    h = INPUT_HW
    for _ in range(N_BLOCKS):
        masks.append(jnp.asarray(_interior_mask(h)))
        sels.append(jnp.asarray(_pool_select(h), jnp.bfloat16))
        h //= 2
    packed["masks"] = masks
    packed["sels"] = sels
    return packed


# ----------------------------- fused kernel ---------------------------------

def _mod_vgg_kernel(*refs):
    """features + avgpool + flatten + classifier, fused; activations stay in VMEM."""
    it = iter(refs[:-2])
    x_ref = next(it)
    conv_refs = [(next(it), next(it)) for _ in range(N_CONV)]
    mask_refs = [next(it) for _ in range(N_BLOCKS)]
    sel_refs = [next(it) for _ in range(N_BLOCKS)]
    fc_refs = [next(it) for _ in range(6)]
    out_ref, buf = refs[-2], refs[-1]

    a = x_ref[...]                       # (8, 34*34) f32, zero padding ring
    h, blk, ci = INPUT_HW, 0, 0
    for li, v in enumerate(CFG):         # statically unrolled network structure
        wp = h + 2
        lp = wp * wp
        if v == "M":
            # MaxPool2d(2,2): two shift-maxes in the padded-flat layout, then a 0/1
            # selection matmul (bf16 x bf16 -> f32) that subsamples and re-pads in one
            # shot.  Only interior taps are read, so `a`'s ring may hold garbage.
            c = a.shape[0]
            buf[0:c, 0:lp] = a
            buf[0:c, lp:lp + wp + 1] = jnp.zeros((c, wp + 1), jnp.float32)
            m1 = jnp.maximum(buf[0:c, 0:lp + wp], buf[0:c, 1:lp + wp + 1])
            buf[0:c, 0:lp + wp] = m1
            m2 = jnp.maximum(buf[0:c, 0:lp], buf[0:c, wp:lp + wp])
            a = jnp.dot(m2.astype(jnp.bfloat16), sel_refs[blk][...],
                        preferred_element_type=jnp.float32)
            blk += 1
            h //= 2
        else:
            # Conv2d(3x3, pad=1) + ReLU as ONE MXU matmul: the 9 shifted static slices
            # of the margin-extended activation are sublane-concatenated into a
            # (9*Cin, lp) stack (Cin is a multiple of 8 -> pure vreg stacking), cast to
            # bf16 once, and contracted against the prepacked (Cout, 9*Cin) weight.
            w_ref, b_ref = conv_refs[ci]
            ci += 1
            cin = a.shape[0]
            mg = wp + 1
            buf[0:cin, 0:mg] = jnp.zeros((cin, mg), jnp.float32)
            buf[0:cin, mg:mg + lp] = a
            buf[0:cin, mg + lp:mg + lp + mg] = jnp.zeros((cin, mg), jnp.float32)
            taps = []
            for ky in range(3):
                for kx in range(3):
                    s = mg + (ky - 1) * wp + (kx - 1)
                    taps.append(buf[0:cin, s:s + lp])
            stack = jnp.concatenate(taps, axis=0).astype(jnp.bfloat16)
            acc = jnp.dot(w_ref[...], stack, preferred_element_type=jnp.float32)
            acc = jnp.maximum(acc + b_ref[...], 0.0)
            if li + 1 < len(CFG) and CFG[li + 1] == "M":
                a = acc                              # pool never reads the ring: no mask
            else:
                a = acc * mask_refs[blk][...]        # re-zero the padding ring

    # `a` is now (C_last, 1): the 1x1 feature map.  AdaptiveAvgPool2d(7) + Flatten
    # (start_dim=0) are folded into fc1 (see prepare_params).  Dropout = identity (eval).
    w1, b1, w2, b2, w3, b3 = (r[...] for r in fc_refs)
    z = jnp.maximum(jnp.dot(w1, a, preferred_element_type=jnp.float32) + b1, 0.0)
    z = jnp.maximum(jnp.dot(w2, z, preferred_element_type=jnp.float32) + b2, 0.0)
    out_ref[...] = jnp.dot(w3, z, preferred_element_type=jnp.float32) + b3


# ----------------------------- forward wrapper ------------------------------

def _flops_estimate():
    flops, h, cin = 0, INPUT_HW, IN_CH_PAD
    for v in CFG:
        lp = (h + 2) ** 2
        if v == "M":
            lpo = (h // 2 + 2) ** 2 if h > 2 else 1
            flops += 2 * cin * lp * lpo
            h //= 2
        else:
            flops += 2 * 9 * cin * v * lp
            cin = v
    flops += 2 * (HIDDEN * cin + HIDDEN * HIDDEN + NUM_CLASSES * HIDDEN)
    return flops


def mod_vgg_forward(x_nchw, packed):
    if x_nchw.shape != (1, IN_CH, INPUT_HW, INPUT_HW):
        # Flatten(start_dim=0) folds the batch into the classifier features, so only
        # batch == 1 (and the 32x32 geometry baked into the tables) is valid.
        raise ValueError(f"mod_vgg expects input shape (1, {IN_CH}, {INPUT_HW}, "
                         f"{INPUT_HW}), got {x_nchw.shape}")
    # One-time glue: NCHW -> padded-flat (C_pad, (H+2)*(W+2)) with zero ring/channels.
    xp = jnp.pad(x_nchw[0], ((0, IN_CH_PAD - IN_CH), (1, 1), (1, 1)))
    x_flat = xp.reshape(IN_CH_PAD, (INPUT_HW + 2) ** 2)

    inputs = [x_flat]
    for w, b in zip(packed["conv_w"], packed["conv_b"]):
        inputs += [w, b]
    inputs += list(packed["masks"]) + list(packed["sels"]) + list(packed["fc"])

    bytes_accessed = sum(int(np.prod(t.shape)) * t.dtype.itemsize for t in inputs)
    bytes_accessed += NUM_CLASSES * 4

    out = pl.pallas_call(
        _mod_vgg_kernel,
        out_shape=jax.ShapeDtypeStruct((NUM_CLASSES, 1), jnp.float32),
        in_specs=[pl.BlockSpec(memory_space=_VMEM)] * len(inputs),
        out_specs=pl.BlockSpec(memory_space=_VMEM),
        scratch_shapes=[pltpu.VMEM((C_MAX, EXT_MAX), jnp.float32)],
        compiler_params=pltpu.CompilerParams(vmem_limit_bytes=32 * 1024 * 1024),
        cost_estimate=pl.CostEstimate(flops=_flops_estimate(), transcendentals=0,
                                      bytes_accessed=bytes_accessed),
    )(*inputs)
    # nn.Flatten(start_dim=0) output is 1-D.
    return out.reshape(-1)


if __name__ == "__main__":
    key = jax.random.PRNGKey(0)
    kp, kx = jax.random.split(key)
    params = init_params(kp)
    packed = prepare_params(params)     # one-time weight repack, hoisted out of forward
    x = jax.random.normal(kx, (1, IN_CH, INPUT_HW, INPUT_HW), jnp.float32)
    fwd = jax.jit(mod_vgg_forward)
    y = fwd(x, packed)
    jax.block_until_ready(y)
    assert y.shape == (NUM_CLASSES,) and y.dtype == jnp.float32
    print("KERNEL_OK")
</pallas_src>

<mosaic_0001>
module attributes {stable_mosaic.version = 11 : i64} {
  func.func @_mod_vgg_kernel(%arg0: memref<8x1156xf32, #tpu.memory_space<vmem>>, %arg1: memref<8x72xbf16, #tpu.memory_space<vmem>>, %arg2: memref<8x1xf32, #tpu.memory_space<vmem>>, %arg3: memref<8x72xbf16, #tpu.memory_space<vmem>>, %arg4: memref<8x1xf32, #tpu.memory_space<vmem>>, %arg5: memref<16x72xbf16, #tpu.memory_space<vmem>>, %arg6: memref<16x1xf32, #tpu.memory_space<vmem>>, %arg7: memref<16x144xbf16, #tpu.memory_space<vmem>>, %arg8: memref<16x1xf32, #tpu.memory_space<vmem>>, %arg9: memref<32x144xbf16, #tpu.memory_space<vmem>>, %arg10: memref<32x1xf32, #tpu.memory_space<vmem>>, %arg11: memref<32x288xbf16, #tpu.memory_space<vmem>>, %arg12: memref<32x1xf32, #tpu.memory_space<vmem>>, %arg13: memref<32x288xbf16, #tpu.memory_space<vmem>>, %arg14: memref<32x1xf32, #tpu.memory_space<vmem>>, %arg15: memref<32x288xbf16, #tpu.memory_space<vmem>>, %arg16: memref<32x1xf32, #tpu.memory_space<vmem>>, %arg17: memref<64x288xbf16, #tpu.memory_space<vmem>>, %arg18: memref<64x1xf32, #tpu.memory_space<vmem>>, %arg19: memref<64x576xbf16, #tpu.memory_space<vmem>>, %arg20: memref<64x1xf32, #tpu.memory_space<vmem>>, %arg21: memref<64x576xbf16, #tpu.memory_space<vmem>>, %arg22: memref<64x1xf32, #tpu.memory_space<vmem>>, %arg23: memref<64x576xbf16, #tpu.memory_space<vmem>>, %arg24: memref<64x1xf32, #tpu.memory_space<vmem>>, %arg25: memref<64x576xbf16, #tpu.memory_space<vmem>>, %arg26: memref<64x1xf32, #tpu.memory_space<vmem>>, %arg27: memref<64x576xbf16, #tpu.memory_space<vmem>>, %arg28: memref<64x1xf32, #tpu.memory_space<vmem>>, %arg29: memref<64x576xbf16, #tpu.memory_space<vmem>>, %arg30: memref<64x1xf32, #tpu.memory_space<vmem>>, %arg31: memref<64x576xbf16, #tpu.memory_space<vmem>>, %arg32: memref<64x1xf32, #tpu.memory_space<vmem>>, %arg33: memref<1x1156xf32, #tpu.memory_space<vmem>>, %arg34: memref<1x324xf32, #tpu.memory_space<vmem>>, %arg35: memref<1x100xf32, #tpu.memory_space<vmem>>, %arg36: memref<1x36xf32, #tpu.memory_space<vmem>>, %arg37: memref<1x16xf32, #tpu.memory_space<vmem>>, %arg38: memref<1156x324xbf16, #tpu.memory_space<vmem>>, %arg39: memref<324x100xbf16, #tpu.memory_space<vmem>>, %arg40: memref<100x36xbf16, #tpu.memory_space<vmem>>, %arg41: memref<36x16xbf16, #tpu.memory_space<vmem>>, %arg42: memref<16x1xbf16, #tpu.memory_space<vmem>>, %arg43: memref<128x64xf32, #tpu.memory_space<vmem>>, %arg44: memref<128x1xf32, #tpu.memory_space<vmem>>, %arg45: memref<128x128xf32, #tpu.memory_space<vmem>>, %arg46: memref<128x1xf32, #tpu.memory_space<vmem>>, %arg47: memref<10x128xf32, #tpu.memory_space<vmem>>, %arg48: memref<10x1xf32, #tpu.memory_space<vmem>>, %arg49: memref<10x1xf32, #tpu.memory_space<vmem>>, %arg50: memref<64x1226xf32, #tpu.memory_space<vmem>>) attributes {dimension_semantics = [], scalar_prefetch = 0 : i64, scratch_operands = 1 : i64, tpu.core_type = #tpu.core_type<tc>} {
    %c0 = arith.constant 0 : index
    %c0_0 = arith.constant 0 : index
    %0 = vector.load %arg0[%c0, %c0_0] : memref<8x1156xf32, #tpu.memory_space<vmem>>, vector<8x1156xf32>
    %cst = arith.constant 0.000000e+00 : f32
    %1 = vector.broadcast %cst : f32 to vector<8x35xf32>
    %c0_1 = arith.constant 0 : index
    %c0_2 = arith.constant 0 : index
    %2 = vector.load %arg50[%c0_1, %c0_2] : memref<64x1226xf32, #tpu.memory_space<vmem>>, vector<8x35xf32>
    tpu.vector_store %arg50[%c0_1, %c0_2], %1 {strides = array<i32>} : memref<64x1226xf32, #tpu.memory_space<vmem>>, vector<8x35xf32>,
    %c0_3 = arith.constant 0 : index
    %c35 = arith.constant 35 : index
    %3 = vector.load %arg50[%c0_3, %c35] : memref<64x1226xf32, #tpu.memory_space<vmem>>, vector<8x1156xf32>
    tpu.vector_store %arg50[%c0_3, %c35], %0 {strides = array<i32>} : memref<64x1226xf32, #tpu.memory_space<vmem>>, vector<8x1156xf32>,
    %cst_4 = arith.constant 0.000000e+00 : f32
    %4 = vector.broadcast %cst_4 : f32 to vector<8x35xf32>
    %c0_5 = arith.constant 0 : index
    %c1191 = arith.constant 1191 : index
    %5 = vector.load %arg50[%c0_5, %c1191] : memref<64x1226xf32, #tpu.memory_space<vmem>>, vector<8x35xf32>
    tpu.vector_store %arg50[%c0_5, %c1191], %4 {strides = array<i32>} : memref<64x1226xf32, #tpu.memory_space<vmem>>, vector<8x35xf32>,
    %c0_6 = arith.constant 0 : index
    %c0_7 = arith.constant 0 : index
    %6 = vector.load %arg50[%c0_6, %c0_7] : memref<64x1226xf32, #tpu.memory_space<vmem>>, vector<8x1156xf32>
    %c0_8 = arith.constant 0 : index
    %c1 = arith.constant 1 : index
    %7 = vector.load %arg50[%c0_8, %c1] : memref<64x1226xf32, #tpu.memory_space<vmem>>, vector<8x1156xf32>
    %c0_9 = arith.constant 0 : index
    %c2 = arith.constant 2 : index
    %8 = vector.load %arg50[%c0_9, %c2] : memref<64x1226xf32, #tpu.memory_space<vmem>>, vector<8x1156xf32>
    %c0_10 = arith.constant 0 : index
    %c34 = arith.constant 34 : index
    %9 = vector.load %arg50[%c0_10, %c34] : memref<64x1226xf32, #tpu.memory_space<vmem>>, vector<8x1156xf32>
    %c0_11 = arith.constant 0 : index
    %c35_12 = arith.constant 35 : index
    %10 = vector.load %arg50[%c0_11, %c35_12] : memref<64x1226xf32, #tpu.memory_space<vmem>>, vector<8x1156xf32>
    %c0_13 = arith.constant 0 : index
    %c36 = arith.constant 36 : index
    %11 = vector.load %arg50[%c0_13, %c36] : memref<64x1226xf32, #tpu.memory_space<vmem>>, vector<8x1156xf32>
    %c0_14 = arith.constant 0 : index
    %c68 = arith.constant 68 : index
    %12 = vector.load %arg50[%c0_14, %c68] : memref<64x1226xf32, #tpu.memory_space<vmem>>, vector<8x1156xf32>
    %c0_15 = arith.constant 0 : index
    %c69 = arith.constant 69 : index
    %13 = vector.load %arg50[%c0_15, %c69] : memref<64x1226xf32, #tpu.memory_space<vmem>>, vector<8x1156xf32>
    %c0_16 = arith.constant 0 : index
    %c70 = arith.constant 70 : index
    %14 = vector.load %arg50[%c0_16, %c70] : memref<64x1226xf32, #tpu.memory_space<vmem>>, vector<8x1156xf32>
    %15 = tpu.concatenate %6, %7, %8, %9, %10, %11, %12, %13, %14 in 0 : vector<8x1156xf32>, vector<8x1156xf32>, vector<8x1156xf32>, vector<8x1156xf32>, vector<8x1156xf32>, vector<8x1156xf32>, vector<8x1156xf32>, vector<8x1156xf32>, vector<8x1156xf32> -> vector<72x1156xf32>
    %16 = arith.truncf %15 : vector<72x1156xf32> to vector<72x1156xbf16>
    %c0_17 = arith.constant 0 : index
    %c0_18 = arith.constant 0 : index
    %17 = vector.load %arg1[%c0_17, %c0_18] : memref<8x72xbf16, #tpu.memory_space<vmem>>, vector<8x72xbf16>
    %cst_19 = arith.constant dense<0.000000e+00> : vector<8x1156xf32>
    %18 = tpu.matmul %17, %16, %cst_19 {dimension_numbers = #tpu.dot_dimension_numbers<[1], [0], [0], [1], [0, 0, 1, 1], [], []>} : vector<8x72xbf16>, vector<72x1156xbf16>, vector<8x1156xf32> -> vector<8x1156xf32>
    %c0_20 = arith.constant 0 : index
    %c0_21 = arith.constant 0 : index
    %19 = vector.load %arg2[%c0_20, %c0_21] : memref<8x1xf32, #tpu.memory_space<vmem>>, vector<8x1xf32>
    %20 = vector.broadcast %19 : vector<8x1xf32> to vector<8x1156xf32>
    %21 = arith.addf %18, %20 : vector<8x1156xf32>
    %cst_22 = arith.constant 0.000000e+00 : f32
    %22 = vector.broadcast %cst_22 : f32 to vector<8x1156xf32>
    %23 = arith.maximumf %21, %22 : vector<8x1156xf32>
    %c0_23 = arith.constant 0 : index
    %c0_24 = arith.constant 0 : index
    %24 = vector.load %arg33[%c0_23, %c0_24] : memref<1x1156xf32, #tpu.memory_space<vmem>>, vector<1x1156xf32>
    %25 = vector.broadcast %24 : vector<1x1156xf32> to vector<8x1156xf32>
    %26 = arith.mulf %23, %25 : vector<8x1156xf32>
    %cst_25 = arith.constant 0.000000e+00 : f32
    %27 = vector.broadcast %cst_25 : f32 to vector<8x35xf32>
    %c0_26 = arith.constant 0 : index
    %c0_27 = arith.constant 0 : index
    %28 = vector.load %arg50[%c0_26, %c0_27] : memref<64x1226xf32, #tpu.memory_space<vmem>>, vector<8x35xf32>
    tpu.vector_store %arg50[%c0_26, %c0_27], %27 {strides = array<i32>} : memref<64x1226xf32, #tpu.memory_space<vmem>>, vector<8x35xf32>,
    %c0_28 = arith.constant 0 : index
    %c35_29 = arith.constant 35 : index
    %29 = vector.load %arg50[%c0_28, %c35_29] : memref<64x1226xf32, #tpu.memory_space<vmem>>, vector<8x1156xf32>
    tpu.vector_store %arg50[%c0_28, %c35_29], %26 {strides = array<i32>} : memref<64x1226xf32, #tpu.memory_space<vmem>>, vector<8x1156xf32>,
    %cst_30 = arith.constant 0.000000e+00 : f32
    %30 = vector.broadcast %cst_30 : f32 to vector<8x35xf32>
    %c0_31 = arith.constant 0 : index
    %c1191_32 = arith.constant 1191 : index
    %31 = vector.load %arg50[%c0_31, %c1191_32] : memref<64x1226xf32, #tpu.memory_space<vmem>>, vector<8x35xf32>
    tpu.vector_store %arg50[%c0_31, %c1191_32], %30 {strides = array<i32>} : memref<64x1226xf32, #tpu.memory_space<vmem>>, vector<8x35xf32>,
    %c0_33 = arith.constant 0 : index
    %c0_34 = arith.constant 0 : index
    %32 = vector.load %arg50[%c0_33, %c0_34] : memref<64x1226xf32, #tpu.memory_space<vmem>>, vector<8x1156xf32>
    %c0_35 = arith.constant 0 : index
    %c1_36 = arith.constant 1 : index
    %33 = vector.load %arg50[%c0_35, %c1_36] : memref<64x1226xf32, #tpu.memory_space<vmem>>, vector<8x1156xf32>
    %c0_37 = arith.constant 0 : index
    %c2_38 = arith.constant 2 : index
    %34 = vector.load %arg50[%c0_37, %c2_38] : memref<64x1226xf32, #tpu.memory_space<vmem>>, vector<8x1156xf32>
    %c0_39 = arith.constant 0 : index
    %c34_40 = arith.constant 34 : index
    %35 = vector.load %arg50[%c0_39, %c34_40] : memref<64x1226xf32, #tpu.memory_space<vmem>>, vector<8x1156xf32>
    %c0_41 = arith.constant 0 : index
    %c35_42 = arith.constant 35 : index
    %36 = vector.load %arg50[%c0_41, %c35_42] : memref<64x1226xf32, #tpu.memory_space<vmem>>, vector<8x1156xf32>
    %c0_43 = arith.constant 0 : index
    %c36_44 = arith.constant 36 : index
    %37 = vector.load %arg50[%c0_43, %c36_44] : memref<64x1226xf32, #tpu.memory_space<vmem>>, vector<8x1156xf32>
    %c0_45 = arith.constant 0 : index
    %c68_46 = arith.constant 68 : index
    %38 = vector.load %arg50[%c0_45, %c68_46] : memref<64x1226xf32, #tpu.memory_space<vmem>>, vector<8x1156xf32>
    %c0_47 = arith.constant 0 : index
    %c69_48 = arith.constant 69 : index
    %39 = vector.load %arg50[%c0_47, %c69_48] : memref<64x1226xf32, #tpu.memory_space<vmem>>, vector<8x1156xf32>
    %c0_49 = arith.constant 0 : index
    %c70_50 = arith.constant 70 : index
    %40 = vector.load %arg50[%c0_49, %c70_50] : memref<64x1226xf32, #tpu.memory_space<vmem>>, vector<8x1156xf32>
    %41 = tpu.concatenate %32, %33, %34, %35, %36, %37, %38, %39, %40 in 0 : vector<8x1156xf32>, vector<8x1156xf32>, vector<8x1156xf32>, vector<8x1156xf32>, vector<8x1156xf32>, vector<8x1156xf32>, vector<8x1156xf32>, vector<8x1156xf32>, vector<8x1156xf32> -> vector<72x1156xf32>
    %42 = arith.truncf %41 : vector<72x1156xf32> to vector<72x1156xbf16>
    %c0_51 = arith.constant 0 : index
    %c0_52 = arith.constant 0 : index
    %43 = vector.load %arg3[%c0_51, %c0_52] : memref<8x72xbf16, #tpu.memory_space<vmem>>, vector<8x72xbf16>
    %cst_53 = arith.constant dense<0.000000e+00> : vector<8x1156xf32>
    %44 = tpu.matmul %43, %42, %cst_53 {dimension_numbers = #tpu.dot_dimension_numbers<[1], [0], [0], [1], [0, 0, 1, 1], [], []>} : vector<8x72xbf16>, vector<72x1156xbf16>, vector<8x1156xf32> -> vector<8x1156xf32>
    %c0_54 = arith.constant 0 : index
    %c0_55 = arith.constant 0 : index
    %45 = vector.load %arg4[%c0_54, %c0_55] : memref<8x1xf32, #tpu.memory_space<vmem>>, vector<8x1xf32>
    %46 = vector.broadcast %45 : vector<8x1xf32> to vector<8x1156xf32>
    %47 = arith.addf %44, %46 : vector<8x1156xf32>
    %cst_56 = arith.constant 0.000000e+00 : f32
    %48 = vector.broadcast %cst_56 : f32 to vector<8x1156xf32>
    %49 = arith.maximumf %47, %48 : vector<8x1156xf32>
    %c0_57 = arith.constant 0 : index
    %c0_58 = arith.constant 0 : index
    %50 = vector.load %arg50[%c0_57, %c0_58] : memref<64x1226xf32, #tpu.memory_space<vmem>>, vector<8x1156xf32>
    tpu.vector_store %arg50[%c0_57, %c0_58], %49 {strides = array<i32>} : memref<64x1226xf32, #tpu.memory_space<vmem>>, vector<8x1156xf32>,
    %cst_59 = arith.constant 0.000000e+00 : f32
    %51 = vector.broadcast %cst_59 : f32 to vector<8x35xf32>
    %c0_60 = arith.constant 0 : index
    %c1156 = arith.constant 1156 : index
    %52 = vector.load %arg50[%c0_60, %c1156] : memref<64x1226xf32, #tpu.memory_space<vmem>>, vector<8x35xf32>
    tpu.vector_store %arg50[%c0_60, %c1156], %51 {strides = array<i32>} : memref<64x1226xf32, #tpu.memory_space<vmem>>, vector<8x35xf32>,
    %c0_61 = arith.constant 0 : index
    %c0_62 = arith.constant 0 : index
    %53 = vector.load %arg50[%c0_61, %c0_62] : memref<64x1226xf32, #tpu.memory_space<vmem>>, vector<8x1190xf32>
    %c0_63 = arith.constant 0 : index
    %c1_64 = arith.constant 1 : index
    %54 = vector.load %arg50[%c0_63, %c1_64] : memref<64x1226xf32, #tpu.memory_space<vmem>>, vector<8x1190xf32>
    %55 = arith.maximumf %53, %54 : vector<8x1190xf32>
    %c0_65 = arith.constant 0 : index
    %c0_66 = arith.constant 0 : index
    %56 = vector.load %arg50[%c0_65, %c0_66] : memref<64x1226xf32, #tpu.memory_space<vmem>>, vector<8x1190xf32>
    tpu.vector_store %arg50[%c0_65, %c0_66], %55 {strides = array<i32>} : memref<64x1226xf32, #tpu.memory_space<vmem>>, vector<8x1190xf32>,
    %c0_67 = arith.constant 0 : index
    %c0_68 = arith.constant 0 : index
    %57 = vector.load %arg50[%c0_67, %c0_68] : memref<64x1226xf32, #tpu.memory_space<vmem>>, vector<8x1156xf32>
    %c0_69 = arith.constant 0 : index
    %c34_70 = arith.constant 34 : index
    %58 = vector.load %arg50[%c0_69, %c34_70] : memref<64x1226xf32, #tpu.memory_space<vmem>>, vector<8x1156xf32>
    %59 = arith.maximumf %57, %58 : vector<8x1156xf32>
    %60 = arith.truncf %59 : vector<8x1156xf32> to vector<8x1156xbf16>
    %c0_71 = arith.constant 0 : index
    %c0_72 = arith.constant 0 : index
    %61 = vector.load %arg38[%c0_71, %c0_72] : memref<1156x324xbf16, #tpu.memory_space<vmem>>, vector<1156x324xbf16>
    %cst_73 = arith.constant dense<0.000000e+00> : vector<8x324xf32>
    %62 = tpu.matmul %60, %61, %cst_73 {dimension_numbers = #tpu.dot_dimension_numbers<[1], [0], [0], [1], [0, 0, 1, 1], [], []>} : vector<8x1156xbf16>, vector<1156x324xbf16>, vector<8x324xf32> -> vector<8x324xf32>
    %cst_74 = arith.constant 0.000000e+00 : f32
    %63 = vector.broadcast %cst_74 : f32 to vector<8x19xf32>
    %c0_75 = arith.constant 0 : index
    %c0_76 = arith.constant 0 : index
    %64 = vector.load %arg50[%c0_75, %c0_76] : memref<64x1226xf32, #tpu.memory_space<vmem>>, vector<8x19xf32>
    tpu.vector_store %arg50[%c0_75, %c0_76], %63 {strides = array<i32>} : memref<64x1226xf32, #tpu.memory_space<vmem>>, vector<8x19xf32>,
    %c0_77 = arith.constant 0 : index
    %c19 = arith.constant 19 : index
    %65 = vector.load %arg50[%c0_77, %c19] : memref<64x1226xf32, #tpu.memory_space<vmem>>, vector<8x324xf32>
    tpu.vector_store %arg50[%c0_77, %c19], %62 {strides = array<i32>} : memref<64x1226xf32, #tpu.memory_space<vmem>>, vector<8x324xf32>,
    %cst_78 = arith.constant 0.000000e+00 : f32
    %66 = vector.broadcast %cst_78 : f32 to vector<8x19xf32>
    %c0_79 = arith.constant 0 : index
    %c343 = arith.constant 343 : index
    %67 = vector.load %arg50[%c0_79, %c343] : memref<64x1226xf32, #tpu.memory_space<vmem>>, vector<8x19xf32>
    tpu.vector_store %arg50[%c0_79, %c343], %66 {strides = array<i32>} : memref<64x1226xf32, #tpu.memory_space<vmem>>, vector<8x19xf32>,
    %c0_80 = arith.constant 0 : index
    %c0_81 = arith.constant 0 : index
    %68 = vector.load %arg50[%c0_80, %c0_81] : memref<64x1226xf32, #tpu.memory_space<vmem>>, vector<8x324xf32>
    %c0_82 = arith.constant 0 : index
    %c1_83 = arith.constant 1 : index
    %69 = vector.load %arg50[%c0_82, %c1_83] : memref<64x1226xf32, #tpu.memory_space<vmem>>, vector<8x324xf32>
    %c0_84 = arith.constant 0 : index
    %c2_85 = arith.constant 2 : index
    %70 = vector.load %arg50[%c0_84, %c2_85] : memref<64x1226xf32, #tpu.memory_space<vmem>>, vector<8x324xf32>
    %c0_86 = arith.constant 0 : index
    %c18 = arith.constant 18 : index
    %71 = vector.load %arg50[%c0_86, %c18] : memref<64x1226xf32, #tpu.memory_space<vmem>>, vector<8x324xf32>
    %c0_87 = arith.constant 0 : index
    %c19_88 = arith.constant 19 : index
    %72 = vector.load %arg50[%c0_87, %c19_88] : memref<64x1226xf32, #tpu.memory_space<vmem>>, vector<8x324xf32>
    %c0_89 = arith.constant 0 : index
    %c20 = arith.constant 20 : index
    %73 = vector.load %arg50[%c0_89, %c20] : memref<64x1226xf32, #tpu.memory_space<vmem>>, vector<8x324xf32>
    %c0_90 = arith.constant 0 : index
    %c36_91 = arith.constant 36 : index
    %74 = vector.load %arg50[%c0_90, %c36_91] : memref<64x1226xf32, #tpu.memory_space<vmem>>, vector<8x324xf32>
    %c0_92 = arith.constant 0 : index
    %c37 = arith.constant 37 : index
    %75 = vector.load %arg50[%c0_92, %c37] : memref<64x1226xf32, #tpu.memory_space<vmem>>, vector<8x324xf32>
    %c0_93 = arith.constant 0 : index
    %c38 = arith.constant 38 : index
    %76 = vector.load %arg50[%c0_93, %c38] : memref<64x1226xf32, #tpu.memory_space<vmem>>, vector<8x324xf32>
    %77 = tpu.concatenate %68, %69, %70, %71, %72, %73, %74, %75, %76 in 0 : vector<8x324xf32>, vector<8x324xf32>, vector<8x324xf32>, vector<8x324xf32>, vector<8x324xf32>, vector<8x324xf32>, vector<8x324xf32>, vector<8x324xf32>, vector<8x324xf32> -> vector<72x324xf32>
    %78 = arith.truncf %77 : vector<72x324xf32> to vector<72x324xbf16>
    %c0_94 = arith.constant 0 : index
    %c0_95 = arith.constant 0 : index
    %79 = vector.load %arg5[%c0_94, %c0_95] : memref<16x72xbf16, #tpu.memory_space<vmem>>, vector<16x72xbf16>
    %cst_96 = arith.constant dense<0.000000e+00> : vector<16x324xf32>
    %80 = tpu.matmul %79, %78, %cst_96 {dimension_numbers = #tpu.dot_dimension_numbers<[1], [0], [0], [1], [0, 0, 1, 1], [], []>} : vector<16x72xbf16>, vector<72x324xbf16>, vector<16x324xf32> -> vector<16x324xf32>
    %c0_97 = arith.constant 0 : index
    %c0_98 = arith.constant 0 : index
    %81 = vector.load %arg6[%c0_97, %c0_98] : memref<16x1xf32, #tpu.memory_space<vmem>>, vector<16x1xf32>
    %82 = vector.broadcast %81 : vector<16x1xf32> to vector<16x324xf32>
    %83 = arith.addf %80, %82 : vector<16x324xf32>
    %cst_99 = arith.constant 0.000000e+00 : f32
    %84 = vector.broadcast %cst_99 : f32 to vector<16x324xf32>
    %85 = arith.maximumf %83, %84 : vector<16x324xf32>
    %c0_100 = arith.constant 0 : index
    %c0_101 = arith.constant 0 : index
    %86 = vector.load %arg34[%c0_100, %c0_101] : memref<1x324xf32, #tpu.memory_space<vmem>>, vector<1x324xf32>
    %87 = vector.broadcast %86 : vector<1x324xf32> to vector<16x324xf32>
    %88 = arith.mulf %85, %87 : vector<16x324xf32>
    %cst_102 = arith.constant 0.000000e+00 : f32
    %89 = vector.broadcast %cst_102 : f32 to vector<16x19xf32>
    %c0_103 = arith.constant 0 : index
    %c0_104 = arith.constant 0 : index
    %90 = vector.load %arg50[%c0_103, %c0_104] : memref<64x1226xf32, #tpu.memory_space<vmem>>, vector<16x19xf32>
    tpu.vector_store %arg50[%c0_103, %c0_104], %89 {strides = array<i32>} : memref<64x1226xf32, #tpu.memory_space<vmem>>, vector<16x19xf32>,
    %c0_105 = arith.constant 0 : index
    %c19_106 = arith.constant 19 : index
    %91 = vector.load %arg50[%c0_105, %c19_106] : memref<64x1226xf32, #tpu.memory_space<vmem>>, vector<16x324xf32>
    tpu.vector_store %arg50[%c0_105, %c19_106], %88 {strides = array<i32>} : memref<64x1226xf32, #tpu.memory_space<vmem>>, vector<16x324xf32>,
    %cst_107 = arith.constant 0.000000e+00 : f32
    %92 = vector.broadcast %cst_107 : f32 to vector<16x19xf32>
    %c0_108 = arith.constant 0 : index
    %c343_109 = arith.constant 343 : index
    %93 = vector.load %arg50[%c0_108, %c343_109] : memref<64x1226xf32, #tpu.memory_space<vmem>>, vector<16x19xf32>
    tpu.vector_store %arg50[%c0_108, %c343_109], %92 {strides = array<i32>} : memref<64x1226xf32, #tpu.memory_space<vmem>>, vector<16x19xf32>,
    %c0_110 = arith.constant 0 : index
    %c0_111 = arith.constant 0 : index
    %94 = vector.load %arg50[%c0_110, %c0_111] : memref<64x1226xf32, #tpu.memory_space<vmem>>, vector<16x324xf32>
    %c0_112 = arith.constant 0 : index
    %c1_113 = arith.constant 1 : index
    %95 = vector.load %arg50[%c0_112, %c1_113] : memref<64x1226xf32, #tpu.memory_space<vmem>>, vector<16x324xf32>
    %c0_114 = arith.constant 0 : index
    %c2_115 = arith.constant 2 : index
    %96 = vector.load %arg50[%c0_114, %c2_115] : memref<64x1226xf32, #tpu.memory_space<vmem>>, vector<16x324xf32>
    %c0_116 = arith.constant 0 : index
    %c18_117 = arith.constant 18 : index
    %97 = vector.load %arg50[%c0_116, %c18_117] : memref<64x1226xf32, #tpu.memory_space<vmem>>, vector<16x324xf32>
    %c0_118 = arith.constant 0 : index
    %c19_119 = arith.constant 19 : index
    %98 = vector.load %arg50[%c0_118, %c19_119] : memref<64x1226xf32, #tpu.memory_space<vmem>>, vector<16x324xf32>
    %c0_120 = arith.constant 0 : index
    %c20_121 = arith.constant 20 : index
    %99 = vector.load %arg50[%c0_120, %c20_121] : memref<64x1226xf32, #tpu.memory_space<vmem>>, vector<16x324xf32>
    %c0_122 = arith.constant 0 : index
    %c36_123 = arith.constant 36 : index
    %100 = vector.load %arg50[%c0_122, %c36_123] : memref<64x1226xf32, #tpu.memory_space<vmem>>, vector<16x324xf32>
    %c0_124 = arith.constant 0 : index
    %c37_125 = arith.constant 37 : index
    %101 = vector.load %arg50[%c0_124, %c37_125] : memref<64x1226xf32, #tpu.memory_space<vmem>>, vector<16x324xf32>
    %c0_126 = arith.constant 0 : index
    %c38_127 = arith.constant 38 : index
    %102 = vector.load %arg50[%c0_126, %c38_127] : memref<64x1226xf32, #tpu.memory_space<vmem>>, vector<16x324xf32>
    %103 = tpu.concatenate %94, %95, %96, %97, %98, %99, %100, %101, %102 in 0 : vector<16x324xf32>, vector<16x324xf32>, vector<16x324xf32>, vector<16x324xf32>, vector<16x324xf32>, vector<16x324xf32>, vector<16x324xf32>, vector<16x324xf32>, vector<16x324xf32> -> vector<144x324xf32>
    %104 = arith.truncf %103 : vector<144x324xf32> to vector<144x324xbf16>
    %c0_128 = arith.constant 0 : index
    %c0_129 = arith.constant 0 : index
    %105 = vector.load %arg7[%c0_128, %c0_129] : memref<16x144xbf16, #tpu.memory_space<vmem>>, vector<16x144xbf16>
    %cst_130 = arith.constant dense<0.000000e+00> : vector<16x324xf32>
    %106 = tpu.matmul %105, %104, %cst_130 {dimension_numbers = #tpu.dot_dimension_numbers<[1], [0], [0], [1], [0, 0, 1, 1], [], []>} : vector<16x144xbf16>, vector<144x324xbf16>, vector<16x324xf32> -> vector<16x324xf32>
    %c0_131 = arith.constant 0 : index
    %c0_132 = arith.constant 0 : index
    %107 = vector.load %arg8[%c0_131, %c0_132] : memref<16x1xf32, #tpu.memory_space<vmem>>, vector<16x1xf32>
    %108 = vector.broadcast %107 : vector<16x1xf32> to vector<16x324xf32>
    %109 = arith.addf %106, %108 : vector<16x324xf32>
    %cst_133 = arith.constant 0.000000e+00 : f32
    %110 = vector.broadcast %cst_133 : f32 to vector<16x324xf32>
    %111 = arith.maximumf %109, %110 : vector<16x324xf32>
    %c0_134 = arith.constant 0 : index
    %c0_135 = arith.constant 0 : index
    %112 = vector.load %arg50[%c0_134, %c0_135] : memref<64x1226xf32, #tpu.memory_space<vmem>>, vector<16x324xf32>
    tpu.vector_store %arg50[%c0_134, %c0_135], %111 {strides = array<i32>} : memref<64x1226xf32, #tpu.memory_space<vmem>>, vector<16x324xf32>,
    %cst_136 = arith.constant 0.000000e+00 : f32
    %113 = vector.broadcast %cst_136 : f32 to vector<16x19xf32>
    %c0_137 = arith.constant 0 : index
    %c324 = arith.constant 324 : index
    %114 = vector.load %arg50[%c0_137, %c324] : memref<64x1226xf32, #tpu.memory_space<vmem>>, vector<16x19xf32>
    tpu.vector_store %arg50[%c0_137, %c324], %113 {strides = array<i32>} : memref<64x1226xf32, #tpu.memory_space<vmem>>, vector<16x19xf32>,
    %c0_138 = arith.constant 0 : index
    %c0_139 = arith.constant 0 : index
    %115 = vector.load %arg50[%c0_138, %c0_139] : memref<64x1226xf32, #tpu.memory_space<vmem>>, vector<16x342xf32>
    %c0_140 = arith.constant 0 : index
    %c1_141 = arith.constant 1 : index
    %116 = vector.load %arg50[%c0_140, %c1_141] : memref<64x1226xf32, #tpu.memory_space<vmem>>, vector<16x342xf32>
    %117 = arith.maximumf %115, %116 : vector<16x342xf32>
    %c0_142 = arith.constant 0 : index
    %c0_143 = arith.constant 0 : index
    %118 = vector.load %arg50[%c0_142, %c0_143] : memref<64x1226xf32, #tpu.memory_space<vmem>>, vector<16x342xf32>
    tpu.vector_store %arg50[%c0_142, %c0_143], %117 {strides = array<i32>} : memref<64x1226xf32, #tpu.memory_space<vmem>>, vector<16x342xf32>,
    %c0_144 = arith.constant 0 : index
    %c0_145 = arith.constant 0 : index
    %119 = vector.load %arg50[%c0_144, %c0_145] : memref<64x1226xf32, #tpu.memory_space<vmem>>, vector<16x324xf32>
    %c0_146 = arith.constant 0 : index
    %c18_147 = arith.constant 18 : index
    %120 = vector.load %arg50[%c0_146, %c18_147] : memref<64x1226xf32, #tpu.memory_space<vmem>>, vector<16x324xf32>
    %121 = arith.maximumf %119, %120 : vector<16x324xf32>
    %122 = arith.truncf %121 : vector<16x324xf32> to vector<16x324xbf16>
    %c0_148 = arith.constant 0 : index
    %c0_149 = arith.constant 0 : index
    %123 = vector.load %arg39[%c0_148, %c0_149] : memref<324x100xbf16, #tpu.memory_space<vmem>>, vector<324x100xbf16>
    %cst_150 = arith.constant dense<0.000000e+00> : vector<16x100xf32>
    %124 = tpu.matmul %122, %123, %cst_150 {dimension_numbers = #tpu.dot_dimension_numbers<[1], [0], [0], [1], [0, 0, 1, 1], [], []>} : vector<16x324xbf16>, vector<324x100xbf16>, vector<16x100xf32> -> vector<16x100xf32>
    %cst_151 = arith.constant 0.000000e+00 : f32
    %125 = vector.broadcast %cst_151 : f32 to vector<16x11xf32>
    %c0_152 = arith.constant 0 : index
    %c0_153 = arith.constant 0 : index
    %126 = vector.load %arg50[%c0_152, %c0_153] : memref<64x1226xf32, #tpu.memory_space<vmem>>, vector<16x11xf32>
    tpu.vector_store %arg50[%c0_152, %c0_153], %125 {strides = array<i32>} : memref<64x1226xf32, #tpu.memory_space<vmem>>, vector<16x11xf32>,
    %c0_154 = arith.constant 0 : index
    %c11 = arith.constant 11 : index
    %127 = vector.load %arg50[%c0_154, %c11] : memref<64x1226xf32, #tpu.memory_space<vmem>>, vector<16x100xf32>
    tpu.vector_store %arg50[%c0_154, %c11], %124 {strides = array<i32>} : memref<64x1226xf32, #tpu.memory_space<vmem>>, vector<16x100xf32>,
    %cst_155 = arith.constant 0.000000e+00 : f32
    %128 = vector.broadcast %cst_155 : f32 to vector<16x11xf32>
    %c0_156 = arith.constant 0 : index
    %c111 = arith.constant 111 : index
    %129 = vector.load %arg50[%c0_156, %c111] : memref<64x1226xf32, #tpu.memory_space<vmem>>, vector<16x11xf32>
    tpu.vector_store %arg50[%c0_156, %c111], %128 {strides = array<i32>} : memref<64x1226xf32, #tpu.memory_space<vmem>>, vector<16x11xf32>,
    %c0_157 = arith.constant 0 : index
    %c0_158 = arith.constant 0 : index
    %130 = vector.load %arg50[%c0_157, %c0_158] : memref<64x1226xf32, #tpu.memory_space<vmem>>, vector<16x100xf32>
    %c0_159 = arith.constant 0 : index
    %c1_160 = arith.constant 1 : index
    %131 = vector.load %arg50[%c0_159, %c1_160] : memref<64x1226xf32, #tpu.memory_space<vmem>>, vector<16x100xf32>
    %c0_161 = arith.constant 0 : index
    %c2_162 = arith.constant 2 : index
    %132 = vector.load %arg50[%c0_161, %c2_162] : memref<64x1226xf32, #tpu.memory_space<vmem>>, vector<16x100xf32>
    %c0_163 = arith.constant 0 : index
    %c10 = arith.constant 10 : index
    %133 = vector.load %arg50[%c0_163, %c10] : memref<64x1226xf32, #tpu.memory_space<vmem>>, vector<16x100xf32>
    %c0_164 = arith.constant 0 : index
    %c11_165 = arith.constant 11 : index
    %134 = vector.load %arg50[%c0_164, %c11_165] : memref<64x1226xf32, #tpu.memory_space<vmem>>, vector<16x100xf32>
    %c0_166 = arith.constant 0 : index
    %c12 = arith.constant 12 : index
    %135 = vector.load %arg50[%c0_166, %c12] : memref<64x1226xf32, #tpu.memory_space<vmem>>, vector<16x100xf32>
    %c0_167 = arith.constant 0 : index
    %c20_168 = arith.constant 20 : index
    %136 = vector.load %arg50[%c0_167, %c20_168] : memref<64x1226xf32, #tpu.memory_space<vmem>>, vector<16x100xf32>
    %c0_169 = arith.constant 0 : index
    %c21 = arith.constant 21 : index
    %137 = vector.load %arg50[%c0_169, %c21] : memref<64x1226xf32, #tpu.memory_space<vmem>>, vector<16x100xf32>
    %c0_170 = arith.constant 0 : index
    %c22 = arith.constant 22 : index
    %138 = vector.load %arg50[%c0_170, %c22] : memref<64x1226xf32, #tpu.memory_space<vmem>>, vector<16x100xf32>
    %139 = tpu.concatenate %130, %131, %132, %133, %134, %135, %136, %137, %138 in 0 : vector<16x100xf32>, vector<16x100xf32>, vector<16x100xf32>, vector<16x100xf32>, vector<16x100xf32>, vector<16x100xf32>, vector<16x100xf32>, vector<16x100xf32>, vector<16x100xf32> -> vector<144x100xf32>
    %140 = arith.truncf %139 : vector<144x100xf32> to vector<144x100xbf16>
    %c0_171 = arith.constant 0 : index
    %c0_172 = arith.constant 0 : index
    %141 = vector.load %arg9[%c0_171, %c0_172] : memref<32x144xbf16, #tpu.memory_space<vmem>>, vector<32x144xbf16>
    %cst_173 = arith.constant dense<0.000000e+00> : vector<32x100xf32>
    %142 = tpu.matmul %141, %140, %cst_173 {dimension_numbers = #tpu.dot_dimension_numbers<[1], [0], [0], [1], [0, 0, 1, 1], [], []>} : vector<32x144xbf16>, vector<144x100xbf16>, vector<32x100xf32> -> vector<32x100xf32>
    %c0_174 = arith.constant 0 : index
    %c0_175 = arith.constant 0 : index
    %143 = vector.load %arg10[%c0_174, %c0_175] : memref<32x1xf32, #tpu.memory_space<vmem>>, vector<32x1xf32>
    %144 = vector.broadcast %143 : vector<32x1xf32> to vector<32x100xf32>
    %145 = arith.addf %142, %144 : vector<32x100xf32>
    %cst_176 = arith.constant 0.000000e+00 : f32
    %146 = vector.broadcast %cst_176 : f32 to vector<32x100xf32>
    %147 = arith.maximumf %145, %146 : vector<32x100xf32>
    %c0_177 = arith.constant 0 : index
    %c0_178 = arith.constant 0 : index
    %148 = vector.load %arg35[%c0_177, %c0_178] : memref<1x100xf32, #tpu.memory_space<vmem>>, vector<1x100xf32>
    %149 = vector.broadcast %148 : vector<1x100xf32> to vector<32x100xf32>
    %150 = arith.mulf %147, %149 : vector<32x100xf32>
    %cst_179 = arith.constant 0.000000e+00 : f32
    %151 = vector.broadcast %cst_179 : f32 to vector<32x11xf32>
    %c0_180 = arith.constant 0 : index
    %c0_181 = arith.constant 0 : index
    %152 = vector.load %arg50[%c0_180, %c0_181] : memref<64x1226xf32, #tpu.memory_space<vmem>>, vector<32x11xf32>
    tpu.vector_store %arg50[%c0_180, %c0_181], %151 {strides = array<i32>} : memref<64x1226xf32, #tpu.memory_space<vmem>>, vector<32x11xf32>,
    %c0_182 = arith.constant 0 : index
    %c11_183 = arith.constant 11 : index
    %153 = vector.load %arg50[%c0_182, %c11_183] : memref<64x1226xf32, #tpu.memory_space<vmem>>, vector<32x100xf32>
    tpu.vector_store %arg50[%c0_182, %c11_183], %150 {strides = array<i32>} : memref<64x1226xf32, #tpu.memory_space<vmem>>, vector<32x100xf32>,
    %cst_184 = arith.constant 0.000000e+00 : f32
    %154 = vector.broadcast %cst_184 : f32 to vector<32x11xf32>
    %c0_185 = arith.constant 0 : index
    %c111_186 = arith.constant 111 : index
    %155 = vector.load %arg50[%c0_185, %c111_186] : memref<64x1226xf32, #tpu.memory_space<vmem>>, vector<32x11xf32>
    tpu.vector_store %arg50[%c0_185, %c111_186], %154 {strides = array<i32>} : memref<64x1226xf32, #tpu.memory_space<vmem>>, vector<32x11xf32>,
    %c0_187 = arith.constant 0 : index
    %c0_188 = arith.constant 0 : index
    %156 = vector.load %arg50[%c0_187, %c0_188] : memref<64x1226xf32, #tpu.memory_space<vmem>>, vector<32x100xf32>
    %c0_189 = arith.constant 0 : index
    %c1_190 = arith.constant 1 : index
    %157 = vector.load %arg50[%c0_189, %c1_190] : memref<64x1226xf32, #tpu.memory_space<vmem>>, vector<32x100xf32>
    %c0_191 = arith.constant 0 : index
    %c2_192 = arith.constant 2 : index
    %158 = vector.load %arg50[%c0_191, %c2_192] : memref<64x1226xf32, #tpu.memory_space<vmem>>, vector<32x100xf32>
    %c0_193 = arith.constant 0 : index
    %c10_194 = arith.constant 10 : index
    %159 = vector.load %arg50[%c0_193, %c10_194] : memref<64x1226xf32, #tpu.memory_space<vmem>>, vector<32x100xf32>
    %c0_195 = arith.constant 0 : index
    %c11_196 = arith.constant 11 : index
    %160 = vector.load %arg50[%c0_195, %c11_196] : memref<64x1226xf32, #tpu.memory_space<vmem>>, vector<32x100xf32>
    %c0_197 = arith.constant 0 : index
    %c12_198 = arith.constant 12 : index
    %161 = vector.load %arg50[%c0_197, %c12_198] : memref<64x1226xf32, #tpu.memory_space<vmem>>, vector<32x100xf32>
    %c0_199 = arith.constant 0 : index
    %c20_200 = arith.constant 20 : index
    %162 = vector.load %arg50[%c0_199, %c20_200] : memref<64x1226xf32, #tpu.memory_space<vmem>>, vector<32x100xf32>
    %c0_201 = arith.constant 0 : index
    %c21_202 = arith.constant 21 : index
    %163 = vector.load %arg50[%c0_201, %c21_202] : memref<64x1226xf32, #tpu.memory_space<vmem>>, vector<32x100xf32>
    %c0_203 = arith.constant 0 : index
    %c22_204 = arith.constant 22 : index
    %164 = vector.load %arg50[%c0_203, %c22_204] : memref<64x1226xf32, #tpu.memory_space<vmem>>, vector<32x100xf32>
    %165 = tpu.concatenate %156, %157, %158, %159, %160, %161, %162, %163, %164 in 0 : vector<32x100xf32>, vector<32x100xf32>, vector<32x100xf32>, vector<32x100xf32>, vector<32x100xf32>, vector<32x100xf32>, vector<32x100xf32>, vector<32x100xf32>, vector<32x100xf32> -> vector<288x100xf32>
    %166 = arith.truncf %165 : vector<288x100xf32> to vector<288x100xbf16>
    %c0_205 = arith.constant 0 : index
    %c0_206 = arith.constant 0 : index
    %167 = vector.load %arg11[%c0_205, %c0_206] : memref<32x288xbf16, #tpu.memory_space<vmem>>, vector<32x288xbf16>
    %cst_207 = arith.constant dense<0.000000e+00> : vector<32x100xf32>
    %168 = tpu.matmul %167, %166, %cst_207 {dimension_numbers = #tpu.dot_dimension_numbers<[1], [0], [0], [1], [0, 0, 1, 1], [], []>} : vector<32x288xbf16>, vector<288x100xbf16>, vector<32x100xf32> -> vector<32x100xf32>
    %c0_208 = arith.constant 0 : index
    %c0_209 = arith.constant 0 : index
    %169 = vector.load %arg12[%c0_208, %c0_209] : memref<32x1xf32, #tpu.memory_space<vmem>>, vector<32x1xf32>
    %170 = vector.broadcast %169 : vector<32x1xf32> to vector<32x100xf32>
    %171 = arith.addf %168, %170 : vector<32x100xf32>
    %cst_210 = arith.constant 0.000000e+00 : f32
    %172 = vector.broadcast %cst_210 : f32 to vector<32x100xf32>
    %173 = arith.maximumf %171, %172 : vector<32x100xf32>
    %c0_211 = arith.constant 0 : index
    %c0_212 = arith.constant 0 : index
    %174 = vector.load %arg35[%c0_211, %c0_212] : memref<1x100xf32, #tpu.memory_space<vmem>>, vector<1x100xf32>
    %175 = vector.broadcast %174 : vector<1x100xf32> to vector<32x100xf32>
    %176 = arith.mulf %173, %175 : vector<32x100xf32>
    %cst_213 = arith.constant 0.000000e+00 : f32
    %177 = vector.broadcast %cst_213 : f32 to vector<32x11xf32>
    %c0_214 = arith.constant 0 : index
    %c0_215 = arith.constant 0 : index
    %178 = vector.load %arg50[%c0_214, %c0_215] : memref<64x1226xf32, #tpu.memory_space<vmem>>, vector<32x11xf32>
    tpu.vector_store %arg50[%c0_214, %c0_215], %177 {strides = array<i32>} : memref<64x1226xf32, #tpu.memory_space<vmem>>, vector<32x11xf32>,
    %c0_216 = arith.constant 0 : index
    %c11_217 = arith.constant 11 : index
    %179 = vector.load %arg50[%c0_216, %c11_217] : memref<64x1226xf32, #tpu.memory_space<vmem>>, vector<32x100xf32>
    tpu.vector_store %arg50[%c0_216, %c11_217], %176 {strides = array<i32>} : memref<64x1226xf32, #tpu.memory_space<vmem>>, vector<32x100xf32>,
    %cst_218 = arith.constant 0.000000e+00 : f32
    %180 = vector.broadcast %cst_218 : f32 to vector<32x11xf32>
    %c0_219 = arith.constant 0 : index
    %c111_220 = arith.constant 111 : index
    %181 = vector.load %arg50[%c0_219, %c111_220] : memref<64x1226xf32, #tpu.memory_space<vmem>>, vector<32x11xf32>
    tpu.vector_store %arg50[%c0_219, %c111_220], %180 {strides = array<i32>} : memref<64x1226xf32, #tpu.memory_space<vmem>>, vector<32x11xf32>,
    %c0_221 = arith.constant 0 : index
    %c0_222 = arith.constant 0 : index
    %182 = vector.load %arg50[%c0_221, %c0_222] : memref<64x1226xf32, #tpu.memory_space<vmem>>, vector<32x100xf32>
    %c0_223 = arith.constant 0 : index
    %c1_224 = arith.constant 1 : index
    %183 = vector.load %arg50[%c0_223, %c1_224] : memref<64x1226xf32, #tpu.memory_space<vmem>>, vector<32x100xf32>
    %c0_225 = arith.constant 0 : index
    %c2_226 = arith.constant 2 : index
    %184 = vector.load %arg50[%c0_225, %c2_226] : memref<64x1226xf32, #tpu.memory_space<vmem>>, vector<32x100xf32>
    %c0_227 = arith.constant 0 : index
    %c10_228 = arith.constant 10 : index
    %185 = vector.load %arg50[%c0_227, %c10_228] : memref<64x1226xf32, #tpu.memory_space<vmem>>, vector<32x100xf32>
    %c0_229 = arith.constant 0 : index
    %c11_230 = arith.constant 11 : index
    %186 = vector.load %arg50[%c0_229, %c11_230] : memref<64x1226xf32, #tpu.memory_space<vmem>>, vector<32x100xf32>
    %c0_231 = arith.constant 0 : index
    %c12_232 = arith.constant 12 : index
    %187 = vector.load %arg50[%c0_231, %c12_232] : memref<64x1226xf32, #tpu.memory_space<vmem>>, vector<32x100xf32>
    %c0_233 = arith.constant 0 : index
    %c20_234 = arith.constant 20 : index
    %188 = vector.load %arg50[%c0_233, %c20_234] : memref<64x1226xf32, #tpu.memory_space<vmem>>, vector<32x100xf32>
    %c0_235 = arith.constant 0 : index
    %c21_236 = arith.constant 21 : index
    %189 = vector.load %arg50[%c0_235, %c21_236] : memref<64x1226xf32, #tpu.memory_space<vmem>>, vector<32x100xf32>
    %c0_237 = arith.constant 0 : index
    %c22_238 = arith.constant 22 : index
    %190 = vector.load %arg50[%c0_237, %c22_238] : memref<64x1226xf32, #tpu.memory_space<vmem>>, vector<32x100xf32>
    %191 = tpu.concatenate %182, %183, %184, %185, %186, %187, %188, %189, %190 in 0 : vector<32x100xf32>, vector<32x100xf32>, vector<32x100xf32>, vector<32x100xf32>, vector<32x100xf32>, vector<32x100xf32>, vector<32x100xf32>, vector<32x100xf32>, vector<32x100xf32> -> vector<288x100xf32>
    %192 = arith.truncf %191 : vector<288x100xf32> to vector<288x100xbf16>
    %c0_239 = arith.constant 0 : index
    %c0_240 = arith.constant 0 : index
    %193 = vector.load %arg13[%c0_239, %c0_240] : memref<32x288xbf16, #tpu.memory_space<vmem>>, vector<32x288xbf16>
    %cst_241 = arith.constant dense<0.000000e+00> : vector<32x100xf32>
    %194 = tpu.matmul %193, %192, %cst_241 {dimension_numbers = #tpu.dot_dimension_numbers<[1], [0], [0], [1], [0, 0, 1, 1], [], []>} : vector<32x288xbf16>, vector<288x100xbf16>, vector<32x100xf32> -> vector<32x100xf32>
    %c0_242 = arith.constant 0 : index
    %c0_243 = arith.constant 0 : index
    %195 = vector.load %arg14[%c0_242, %c0_243] : memref<32x1xf32, #tpu.memory_space<vmem>>, vector<32x1xf32>
    %196 = vector.broadcast %195 : vector<32x1xf32> to vector<32x100xf32>
    %197 = arith.addf %194, %196 : vector<32x100xf32>
    %cst_244 = arith.constant 0.000000e+00 : f32
    %198 = vector.broadcast %cst_244 : f32 to vector<32x100xf32>
    %199 = arith.maximumf %197, %198 : vector<32x100xf32>
    %c0_245 = arith.constant 0 : index
    %c0_246 = arith.constant 0 : index
    %200 = vector.load %arg35[%c0_245, %c0_246] : memref<1x100xf32, #tpu.memory_space<vmem>>, vector<1x100xf32>
    %201 = vector.broadcast %200 : vector<1x100xf32> to vector<32x100xf32>
    %202 = arith.mulf %199, %201 : vector<32x100xf32>
    %cst_247 = arith.constant 0.000000e+00 : f32
    %203 = vector.broadcast %cst_247 : f32 to vector<32x11xf32>
    %c0_248 = arith.constant 0 : index
    %c0_249 = arith.constant 0 : index
    %204 = vector.load %arg50[%c0_248, %c0_249] : memref<64x1226xf32, #tpu.memory_space<vmem>>, vector<32x11xf32>
    tpu.vector_store %arg50[%c0_248, %c0_249], %203 {strides = array<i32>} : memref<64x1226xf32, #tpu.memory_space<vmem>>, vector<32x11xf32>,
    %c0_250 = arith.constant 0 : index
    %c11_251 = arith.constant 11 : index
    %205 = vector.load %arg50[%c0_250, %c11_251] : memref<64x1226xf32, #tpu.memory_space<vmem>>, vector<32x100xf32>
    tpu.vector_store %arg50[%c0_250, %c11_251], %202 {strides = array<i32>} : memref<64x1226xf32, #tpu.memory_space<vmem>>, vector<32x100xf32>,
    %cst_252 = arith.constant 0.000000e+00 : f32
    %206 = vector.broadcast %cst_252 : f32 to vector<32x11xf32>
    %c0_253 = arith.constant 0 : index
    %c111_254 = arith.constant 111 : index
    %207 = vector.load %arg50[%c0_253, %c111_254] : memref<64x1226xf32, #tpu.memory_space<vmem>>, vector<32x11xf32>
    tpu.vector_store %arg50[%c0_253, %c111_254], %206 {strides = array<i32>} : memref<64x1226xf32, #tpu.memory_space<vmem>>, vector<32x11xf32>,
    %c0_255 = arith.constant 0 : index
    %c0_256 = arith.constant 0 : index
    %208 = vector.load %arg50[%c0_255, %c0_256] : memref<64x1226xf32, #tpu.memory_space<vmem>>, vector<32x100xf32>
    %c0_257 = arith.constant 0 : index
    %c1_258 = arith.constant 1 : index
    %209 = vector.load %arg50[%c0_257, %c1_258] : memref<64x1226xf32, #tpu.memory_space<vmem>>, vector<32x100xf32>
    %c0_259 = arith.constant 0 : index
    %c2_260 = arith.constant 2 : index
    %210 = vector.load %arg50[%c0_259, %c2_260] : memref<64x1226xf32, #tpu.memory_space<vmem>>, vector<32x100xf32>
    %c0_261 = arith.constant 0 : index
    %c10_262 = arith.constant 10 : index
    %211 = vector.load %arg50[%c0_261, %c10_262] : memref<64x1226xf32, #tpu.memory_space<vmem>>, vector<32x100xf32>
    %c0_263 = arith.constant 0 : index
    %c11_264 = arith.constant 11 : index
    %212 = vector.load %arg50[%c0_263, %c11_264] : memref<64x1226xf32, #tpu.memory_space<vmem>>, vector<32x100xf32>
    %c0_265 = arith.constant 0 : index
    %c12_266 = arith.constant 12 : index
    %213 = vector.load %arg50[%c0_265, %c12_266] : memref<64x1226xf32, #tpu.memory_space<vmem>>, vector<32x100xf32>
    %c0_267 = arith.constant 0 : index
    %c20_268 = arith.constant 20 : index
    %214 = vector.load %arg50[%c0_267, %c20_268] : memref<64x1226xf32, #tpu.memory_space<vmem>>, vector<32x100xf32>
    %c0_269 = arith.constant 0 : index
    %c21_270 = arith.constant 21 : index
    %215 = vector.load %arg50[%c0_269, %c21_270] : memref<64x1226xf32, #tpu.memory_space<vmem>>, vector<32x100xf32>
    %c0_271 = arith.constant 0 : index
    %c22_272 = arith.constant 22 : index
    %216 = vector.load %arg50[%c0_271, %c22_272] : memref<64x1226xf32, #tpu.memory_space<vmem>>, vector<32x100xf32>
    %217 = tpu.concatenate %208, %209, %210, %211, %212, %213, %214, %215, %216 in 0 : vector<32x100xf32>, vector<32x100xf32>, vector<32x100xf32>, vector<32x100xf32>, vector<32x100xf32>, vector<32x100xf32>, vector<32x100xf32>, vector<32x100xf32>, vector<32x100xf32> -> vector<288x100xf32>
    %218 = arith.truncf %217 : vector<288x100xf32> to vector<288x100xbf16>
    %c0_273 = arith.constant 0 : index
    %c0_274 = arith.constant 0 : index
    %219 = vector.load %arg15[%c0_273, %c0_274] : memref<32x288xbf16, #tpu.memory_space<vmem>>, vector<32x288xbf16>
    %cst_275 = arith.constant dense<0.000000e+00> : vector<32x100xf32>
    %220 = tpu.matmul %219, %218, %cst_275 {dimension_numbers = #tpu.dot_dimension_numbers<[1], [0], [0], [1], [0, 0, 1, 1], [], []>} : vector<32x288xbf16>, vector<288x100xbf16>, vector<32x100xf32> -> vector<32x100xf32>
    %c0_276 = arith.constant 0 : index
    %c0_277 = arith.constant 0 : index
    %221 = vector.load %arg16[%c0_276, %c0_277] : memref<32x1xf32, #tpu.memory_space<vmem>>, vector<32x1xf32>
    %222 = vector.broadcast %221 : vector<32x1xf32> to vector<32x100xf32>
    %223 = arith.addf %220, %222 : vector<32x100xf32>
    %cst_278 = arith.constant 0.000000e+00 : f32
    %224 = vector.broadcast %cst_278 : f32 to vector<32x100xf32>
    %225 = arith.maximumf %223, %224 : vector<32x100xf32>
    %c0_279 = arith.constant 0 : index
    %c0_280 = arith.constant 0 : index
    %226 = vector.load %arg50[%c0_279, %c0_280] : memref<64x1226xf32, #tpu.memory_space<vmem>>, vector<32x100xf32>
    tpu.vector_store %arg50[%c0_279, %c0_280], %225 {strides = array<i32>} : memref<64x1226xf32, #tpu.memory_space<vmem>>, vector<32x100xf32>,
    %cst_281 = arith.constant 0.000000e+00 : f32
    %227 = vector.broadcast %cst_281 : f32 to vector<32x11xf32>
    %c0_282 = arith.constant 0 : index
    %c100 = arith.constant 100 : index
    %228 = vector.load %arg50[%c0_282, %c100] : memref<64x1226xf32, #tpu.memory_space<vmem>>, vector<32x11xf32>
    tpu.vector_store %arg50[%c0_282, %c100], %227 {strides = array<i32>} : memref<64x1226xf32, #tpu.memory_space<vmem>>, vector<32x11xf32>,
    %c0_283 = arith.constant 0 : index
    %c0_284 = arith.constant 0 : index
    %229 = vector.load %arg50[%c0_283, %c0_284] : memref<64x1226xf32, #tpu.memory_space<vmem>>, vector<32x110xf32>
    %c0_285 = arith.constant 0 : index
    %c1_286 = arith.constant 1 : index
    %230 = vector.load %arg50[%c0_285, %c1_286] : memref<64x1226xf32, #tpu.memory_space<vmem>>, vector<32x110xf32>
    %231 = arith.maximumf %229, %230 : vector<32x110xf32>
    %c0_287 = arith.constant 0 : index
    %c0_288 = arith.constant 0 : index
    %232 = vector.load %arg50[%c0_287, %c0_288] : memref<64x1226xf32, #tpu.memory_space<vmem>>, vector<32x110xf32>
    tpu.vector_store %arg50[%c0_287, %c0_288], %231 {strides = array<i32>} : memref<64x1226xf32, #tpu.memory_space<vmem>>, vector<32x110xf32>,
    %c0_289 = arith.constant 0 : index
    %c0_290 = arith.constant 0 : index
    %233 = vector.load %arg50[%c0_289, %c0_290] : memref<64x1226xf32, #tpu.memory_space<vmem>>, vector<32x100xf32>
    %c0_291 = arith.constant 0 : index
    %c10_292 = arith.constant 10 : index
    %234 = vector.load %arg50[%c0_291, %c10_292] : memref<64x1226xf32, #tpu.memory_space<vmem>>, vector<32x100xf32>
    %235 = arith.maximumf %233, %234 : vector<32x100xf32>
    %236 = arith.truncf %235 : vector<32x100xf32> to vector<32x100xbf16>
    %c0_293 = arith.constant 0 : index
    %c0_294 = arith.constant 0 : index
    %237 = vector.load %arg40[%c0_293, %c0_294] : memref<100x36xbf16, #tpu.memory_space<vmem>>, vector<100x36xbf16>
    %cst_295 = arith.constant dense<0.000000e+00> : vector<32x36xf32>
    %238 = tpu.matmul %236, %237, %cst_295 {dimension_numbers = #tpu.dot_dimension_numbers<[1], [0], [0], [1], [0, 0, 1, 1], [], []>} : vector<32x100xbf16>, vector<100x36xbf16>, vector<32x36xf32> -> vector<32x36xf32>
    %cst_296 = arith.constant 0.000000e+00 : f32
    %239 = vector.broadcast %cst_296 : f32 to vector<32x7xf32>
    %c0_297 = arith.constant 0 : index
    %c0_298 = arith.constant 0 : index
    %240 = vector.load %arg50[%c0_297, %c0_298] : memref<64x1226xf32, #tpu.memory_space<vmem>>, vector<32x7xf32>
    tpu.vector_store %arg50[%c0_297, %c0_298], %239 {strides = array<i32>} : memref<64x1226xf32, #tpu.memory_space<vmem>>, vector<32x7xf32>,
    %c0_299 = arith.constant 0 : index
    %c7 = arith.constant 7 : index
    %241 = vector.load %arg50[%c0_299, %c7] : memref<64x1226xf32, #tpu.memory_space<vmem>>, vector<32x36xf32>
    tpu.vector_store %arg50[%c0_299, %c7], %238 {strides = array<i32>} : memref<64x1226xf32, #tpu.memory_space<vmem>>, vector<32x36xf32>,
    %cst_300 = arith.constant 0.000000e+00 : f32
    %242 = vector.broadcast %cst_300 : f32 to vector<32x7xf32>
    %c0_301 = arith.constant 0 : index
    %c43 = arith.constant 43 : index
    %243 = vector.load %arg50[%c0_301, %c43] : memref<64x1226xf32, #tpu.memory_space<vmem>>, vector<32x7xf32>
    tpu.vector_store %arg50[%c0_301, %c43], %242 {strides = array<i32>} : memref<64x1226xf32, #tpu.memory_space<vmem>>, vector<32x7xf32>,
    %c0_302 = arith.constant 0 : index
    %c0_303 = arith.constant 0 : index
    %244 = vector.load %arg50[%c0_302, %c0_303] : memref<64x1226xf32, #tpu.memory_space<vmem>>, vector<32x36xf32>
    %c0_304 = arith.constant 0 : index
    %c1_305 = arith.constant 1 : index
    %245 = vector.load %arg50[%c0_304, %c1_305] : memref<64x1226xf32, #tpu.memory_space<vmem>>, vector<32x36xf32>
    %c0_306 = arith.constant 0 : index
    %c2_307 = arith.constant 2 : index
    %246 = vector.load %arg50[%c0_306, %c2_307] : memref<64x1226xf32, #tpu.memory_space<vmem>>, vector<32x36xf32>
    %c0_308 = arith.constant 0 : index
    %c6 = arith.constant 6 : index
    %247 = vector.load %arg50[%c0_308, %c6] : memref<64x1226xf32, #tpu.memory_space<vmem>>, vector<32x36xf32>
    %c0_309 = arith.constant 0 : index
    %c7_310 = arith.constant 7 : index
    %248 = vector.load %arg50[%c0_309, %c7_310] : memref<64x1226xf32, #tpu.memory_space<vmem>>, vector<32x36xf32>
    %c0_311 = arith.constant 0 : index
    %c8 = arith.constant 8 : index
    %249 = vector.load %arg50[%c0_311, %c8] : memref<64x1226xf32, #tpu.memory_space<vmem>>, vector<32x36xf32>
    %c0_312 = arith.constant 0 : index
    %c12_313 = arith.constant 12 : index
    %250 = vector.load %arg50[%c0_312, %c12_313] : memref<64x1226xf32, #tpu.memory_space<vmem>>, vector<32x36xf32>
    %c0_314 = arith.constant 0 : index
    %c13 = arith.constant 13 : index
    %251 = vector.load %arg50[%c0_314, %c13] : memref<64x1226xf32, #tpu.memory_space<vmem>>, vector<32x36xf32>
    %c0_315 = arith.constant 0 : index
    %c14 = arith.constant 14 : index
    %252 = vector.load %arg50[%c0_315, %c14] : memref<64x1226xf32, #tpu.memory_space<vmem>>, vector<32x36xf32>
    %253 = tpu.concatenate %244, %245, %246, %247, %248, %249, %250, %251, %252 in 0 : vector<32x36xf32>, vector<32x36xf32>, vector<32x36xf32>, vector<32x36xf32>, vector<32x36xf32>, vector<32x36xf32>, vector<32x36xf32>, vector<32x36xf32>, vector<32x36xf32> -> vector<288x36xf32>
    %254 = arith.truncf %253 : vector<288x36xf32> to vector<288x36xbf16>
    %c0_316 = arith.constant 0 : index
    %c0_317 = arith.constant 0 : index
    %255 = vector.load %arg17[%c0_316, %c0_317] : memref<64x288xbf16, #tpu.memory_space<vmem>>, vector<64x288xbf16>
    %cst_318 = arith.constant dense<0.000000e+00> : vector<64x36xf32>
    %256 = tpu.matmul %255, %254, %cst_318 {dimension_numbers = #tpu.dot_dimension_numbers<[1], [0], [0], [1], [0, 0, 1, 1], [], []>} : vector<64x288xbf16>, vector<288x36xbf16>, vector<64x36xf32> -> vector<64x36xf32>
    %c0_319 = arith.constant 0 : index
    %c0_320 = arith.constant 0 : index
    %257 = vector.load %arg18[%c0_319, %c0_320] : memref<64x1xf32, #tpu.memory_space<vmem>>, vector<64x1xf32>
    %258 = vector.broadcast %257 : vector<64x1xf32> to vector<64x36xf32>
    %259 = arith.addf %256, %258 : vector<64x36xf32>
    %cst_321 = arith.constant 0.000000e+00 : f32
    %260 = vector.broadcast %cst_321 : f32 to vector<64x36xf32>
    %261 = arith.maximumf %259, %260 : vector<64x36xf32>
    %c0_322 = arith.constant 0 : index
    %c0_323 = arith.constant 0 : index
    %262 = vector.load %arg36[%c0_322, %c0_323] : memref<1x36xf32, #tpu.memory_space<vmem>>, vector<1x36xf32>
    %263 = vector.broadcast %262 : vector<1x36xf32> to vector<64x36xf32>
    %264 = arith.mulf %261, %263 : vector<64x36xf32>
    %cst_324 = arith.constant 0.000000e+00 : f32
    %265 = vector.broadcast %cst_324 : f32 to vector<64x7xf32>
    %c0_325 = arith.constant 0 : index
    %c0_326 = arith.constant 0 : index
    %266 = vector.load %arg50[%c0_325, %c0_326] : memref<64x1226xf32, #tpu.memory_space<vmem>>, vector<64x7xf32>
    tpu.vector_store %arg50[%c0_325, %c0_326], %265 {strides = array<i32>} : memref<64x1226xf32, #tpu.memory_space<vmem>>, vector<64x7xf32>,
    %c0_327 = arith.constant 0 : index
    %c7_328 = arith.constant 7 : index
    %267 = vector.load %arg50[%c0_327, %c7_328] : memref<64x1226xf32, #tpu.memory_space<vmem>>, vector<64x36xf32>
    tpu.vector_store %arg50[%c0_327, %c7_328], %264 {strides = array<i32>} : memref<64x1226xf32, #tpu.memory_space<vmem>>, vector<64x36xf32>,
    %cst_329 = arith.constant 0.000000e+00 : f32
    %268 = vector.broadcast %cst_329 : f32 to vector<64x7xf32>
    %c0_330 = arith.constant 0 : index
    %c43_331 = arith.constant 43 : index
    %269 = vector.load %arg50[%c0_330, %c43_331] : memref<64x1226xf32, #tpu.memory_space<vmem>>, vector<64x7xf32>
    tpu.vector_store %arg50[%c0_330, %c43_331], %268 {strides = array<i32>} : memref<64x1226xf32, #tpu.memory_space<vmem>>, vector<64x7xf32>,
    %c0_332 = arith.constant 0 : index
    %c0_333 = arith.constant 0 : index
    %270 = vector.load %arg50[%c0_332, %c0_333] : memref<64x1226xf32, #tpu.memory_space<vmem>>, vector<64x36xf32>
    %c0_334 = arith.constant 0 : index
    %c1_335 = arith.constant 1 : index
    %271 = vector.load %arg50[%c0_334, %c1_335] : memref<64x1226xf32, #tpu.memory_space<vmem>>, vector<64x36xf32>
    %c0_336 = arith.constant 0 : index
    %c2_337 = arith.constant 2 : index
    %272 = vector.load %arg50[%c0_336, %c2_337] : memref<64x1226xf32, #tpu.memory_space<vmem>>, vector<64x36xf32>
    %c0_338 = arith.constant 0 : index
    %c6_339 = arith.constant 6 : index
    %273 = vector.load %arg50[%c0_338, %c6_339] : memref<64x1226xf32, #tpu.memory_space<vmem>>, vector<64x36xf32>
    %c0_340 = arith.constant 0 : index
    %c7_341 = arith.constant 7 : index
    %274 = vector.load %arg50[%c0_340, %c7_341] : memref<64x1226xf32, #tpu.memory_space<vmem>>, vector<64x36xf32>
    %c0_342 = arith.constant 0 : index
    %c8_343 = arith.constant 8 : index
    %275 = vector.load %arg50[%c0_342, %c8_343] : memref<64x1226xf32, #tpu.memory_space<vmem>>, vector<64x36xf32>
    %c0_344 = arith.constant 0 : index
    %c12_345 = arith.constant 12 : index
    %276 = vector.load %arg50[%c0_344, %c12_345] : memref<64x1226xf32, #tpu.memory_space<vmem>>, vector<64x36xf32>
    %c0_346 = arith.constant 0 : index
    %c13_347 = arith.constant 13 : index
    %277 = vector.load %arg50[%c0_346, %c13_347] : memref<64x1226xf32, #tpu.memory_space<vmem>>, vector<64x36xf32>
    %c0_348 = arith.constant 0 : index
    %c14_349 = arith.constant 14 : index
    %278 = vector.load %arg50[%c0_348, %c14_349] : memref<64x1226xf32, #tpu.memory_space<vmem>>, vector<64x36xf32>
    %279 = tpu.concatenate %270, %271, %272, %273, %274, %275, %276, %277, %278 in 0 : vector<64x36xf32>, vector<64x36xf32>, vector<64x36xf32>, vector<64x36xf32>, vector<64x36xf32>, vector<64x36xf32>, vector<64x36xf32>, vector<64x36xf32>, vector<64x36xf32> -> vector<576x36xf32>
    %280 = arith.truncf %279 : vector<576x36xf32> to vector<576x36xbf16>
    %c0_350 = arith.constant 0 : index
    %c0_351 = arith.constant 0 : index
    %281 = vector.load %arg19[%c0_350, %c0_351] : memref<64x576xbf16, #tpu.memory_space<vmem>>, vector<64x576xbf16>
    %cst_352 = arith.constant dense<0.000000e+00> : vector<64x36xf32>
    %282 = tpu.matmul %281, %280, %cst_352 {dimension_numbers = #tpu.dot_dimension_numbers<[1], [0], [0], [1], [0, 0, 1, 1], [], []>} : vector<64x576xbf16>, vector<576x36xbf16>, vector<64x36xf32> -> vector<64x36xf32>
    %c0_353 = arith.constant 0 : index
    %c0_354 = arith.constant 0 : index
    %283 = vector.load %arg20[%c0_353, %c0_354] : memref<64x1xf32, #tpu.memory_space<vmem>>, vector<64x1xf32>
    %284 = vector.broadcast %283 : vector<64x1xf32> to vector<64x36xf32>
    %285 = arith.addf %282, %284 : vector<64x36xf32>
    %cst_355 = arith.constant 0.000000e+00 : f32
    %286 = vector.broadcast %cst_355 : f32 to vector<64x36xf32>
    %287 = arith.maximumf %285, %286 : vector<64x36xf32>
    %c0_356 = arith.constant 0 : index
    %c0_357 = arith.constant 0 : index
    %288 = vector.load %arg36[%c0_356, %c0_357] : memref<1x36xf32, #tpu.memory_space<vmem>>, vector<1x36xf32>
    %289 = vector.broadcast %288 : vector<1x36xf32> to vector<64x36xf32>
    %290 = arith.mulf %287, %289 : vector<64x36xf32>
    %cst_358 = arith.constant 0.000000e+00 : f32
    %291 = vector.broadcast %cst_358 : f32 to vector<64x7xf32>
    %c0_359 = arith.constant 0 : index
    %c0_360 = arith.constant 0 : index
    %292 = vector.load %arg50[%c0_359, %c0_360] : memref<64x1226xf32, #tpu.memory_space<vmem>>, vector<64x7xf32>
    tpu.vector_store %arg50[%c0_359, %c0_360], %291 {strides = array<i32>} : memref<64x1226xf32, #tpu.memory_space<vmem>>, vector<64x7xf32>,
    %c0_361 = arith.constant 0 : index
    %c7_362 = arith.constant 7 : index
    %293 = vector.load %arg50[%c0_361, %c7_362] : memref<64x1226xf32, #tpu.memory_space<vmem>>, vector<64x36xf32>
    tpu.vector_store %arg50[%c0_361, %c7_362], %290 {strides = array<i32>} : memref<64x1226xf32, #tpu.memory_space<vmem>>, vector<64x36xf32>,
    %cst_363 = arith.constant 0.000000e+00 : f32
    %294 = vector.broadcast %cst_363 : f32 to vector<64x7xf32>
    %c0_364 = arith.constant 0 : index
    %c43_365 = arith.constant 43 : index
    %295 = vector.load %arg50[%c0_364, %c43_365] : memref<64x1226xf32, #tpu.memory_space<vmem>>, vector<64x7xf32>
    tpu.vector_store %arg50[%c0_364, %c43_365], %294 {strides = array<i32>} : memref<64x1226xf32, #tpu.memory_space<vmem>>, vector<64x7xf32>,
    %c0_366 = arith.constant 0 : index
    %c0_367 = arith.constant 0 : index
    %296 = vector.load %arg50[%c0_366, %c0_367] : memref<64x1226xf32, #tpu.memory_space<vmem>>, vector<64x36xf32>
    %c0_368 = arith.constant 0 : index
    %c1_369 = arith.constant 1 : index
    %297 = vector.load %arg50[%c0_368, %c1_369] : memref<64x1226xf32, #tpu.memory_space<vmem>>, vector<64x36xf32>
    %c0_370 = arith.constant 0 : index
    %c2_371 = arith.constant 2 : index
    %298 = vector.load %arg50[%c0_370, %c2_371] : memref<64x1226xf32, #tpu.memory_space<vmem>>, vector<64x36xf32>
    %c0_372 = arith.constant 0 : index
    %c6_373 = arith.constant 6 : index
    %299 = vector.load %arg50[%c0_372, %c6_373] : memref<64x1226xf32, #tpu.memory_space<vmem>>, vector<64x36xf32>
    %c0_374 = arith.constant 0 : index
    %c7_375 = arith.constant 7 : index
    %300 = vector.load %arg50[%c0_374, %c7_375] : memref<64x1226xf32, #tpu.memory_space<vmem>>, vector<64x36xf32>
    %c0_376 = arith.constant 0 : index
    %c8_377 = arith.constant 8 : index
    %301 = vector.load %arg50[%c0_376, %c8_377] : memref<64x1226xf32, #tpu.memory_space<vmem>>, vector<64x36xf32>
    %c0_378 = arith.constant 0 : index
    %c12_379 = arith.constant 12 : index
    %302 = vector.load %arg50[%c0_378, %c12_379] : memref<64x1226xf32, #tpu.memory_space<vmem>>, vector<64x36xf32>
    %c0_380 = arith.constant 0 : index
    %c13_381 = arith.constant 13 : index
    %303 = vector.load %arg50[%c0_380, %c13_381] : memref<64x1226xf32, #tpu.memory_space<vmem>>, vector<64x36xf32>
    %c0_382 = arith.constant 0 : index
    %c14_383 = arith.constant 14 : index
    %304 = vector.load %arg50[%c0_382, %c14_383] : memref<64x1226xf32, #tpu.memory_space<vmem>>, vector<64x36xf32>
    %305 = tpu.concatenate %296, %297, %298, %299, %300, %301, %302, %303, %304 in 0 : vector<64x36xf32>, vector<64x36xf32>, vector<64x36xf32>, vector<64x36xf32>, vector<64x36xf32>, vector<64x36xf32>, vector<64x36xf32>, vector<64x36xf32>, vector<64x36xf32> -> vector<576x36xf32>
    %306 = arith.truncf %305 : vector<576x36xf32> to vector<576x36xbf16>
    %c0_384 = arith.constant 0 : index
    %c0_385 = arith.constant 0 : index
    %307 = vector.load %arg21[%c0_384, %c0_385] : memref<64x576xbf16, #tpu.memory_space<vmem>>, vector<64x576xbf16>
    %cst_386 = arith.constant dense<0.000000e+00> : vector<64x36xf32>
    %308 = tpu.matmul %307, %306, %cst_386 {dimension_numbers = #tpu.dot_dimension_numbers<[1], [0], [0], [1], [0, 0, 1, 1], [], []>} : vector<64x576xbf16>, vector<576x36xbf16>, vector<64x36xf32> -> vector<64x36xf32>
    %c0_387 = arith.constant 0 : index
    %c0_388 = arith.constant 0 : index
    %309 = vector.load %arg22[%c0_387, %c0_388] : memref<64x1xf32, #tpu.memory_space<vmem>>, vector<64x1xf32>
    %310 = vector.broadcast %309 : vector<64x1xf32> to vector<64x36xf32>
    %311 = arith.addf %308, %310 : vector<64x36xf32>
    %cst_389 = arith.constant 0.000000e+00 : f32
    %312 = vector.broadcast %cst_389 : f32 to vector<64x36xf32>
    %313 = arith.maximumf %311, %312 : vector<64x36xf32>
    %c0_390 = arith.constant 0 : index
    %c0_391 = arith.constant 0 : index
    %314 = vector.load %arg36[%c0_390, %c0_391] : memref<1x36xf32, #tpu.memory_space<vmem>>, vector<1x36xf32>
    %315 = vector.broadcast %314 : vector<1x36xf32> to vector<64x36xf32>
    %316 = arith.mulf %313, %315 : vector<64x36xf32>
    %cst_392 = arith.constant 0.000000e+00 : f32
    %317 = vector.broadcast %cst_392 : f32 to vector<64x7xf32>
    %c0_393 = arith.constant 0 : index
    %c0_394 = arith.constant 0 : index
    %318 = vector.load %arg50[%c0_393, %c0_394] : memref<64x1226xf32, #tpu.memory_space<vmem>>, vector<64x7xf32>
    tpu.vector_store %arg50[%c0_393, %c0_394], %317 {strides = array<i32>} : memref<64x1226xf32, #tpu.memory_space<vmem>>, vector<64x7xf32>,
    %c0_395 = arith.constant 0 : index
    %c7_396 = arith.constant 7 : index
    %319 = vector.load %arg50[%c0_395, %c7_396] : memref<64x1226xf32, #tpu.memory_space<vmem>>, vector<64x36xf32>
    tpu.vector_store %arg50[%c0_395, %c7_396], %316 {strides = array<i32>} : memref<64x1226xf32, #tpu.memory_space<vmem>>, vector<64x36xf32>,
    %cst_397 = arith.constant 0.000000e+00 : f32
    %320 = vector.broadcast %cst_397 : f32 to vector<64x7xf32>
    %c0_398 = arith.constant 0 : index
    %c43_399 = arith.constant 43 : index
    %321 = vector.load %arg50[%c0_398, %c43_399] : memref<64x1226xf32, #tpu.memory_space<vmem>>, vector<64x7xf32>
    tpu.vector_store %arg50[%c0_398, %c43_399], %320 {strides = array<i32>} : memref<64x1226xf32, #tpu.memory_space<vmem>>, vector<64x7xf32>,
    %c0_400 = arith.constant 0 : index
    %c0_401 = arith.constant 0 : index
    %322 = vector.load %arg50[%c0_400, %c0_401] : memref<64x1226xf32, #tpu.memory_space<vmem>>, vector<64x36xf32>
    %c0_402 = arith.constant 0 : index
    %c1_403 = arith.constant 1 : index
    %323 = vector.load %arg50[%c0_402, %c1_403] : memref<64x1226xf32, #tpu.memory_space<vmem>>, vector<64x36xf32>
    %c0_404 = arith.constant 0 : index
    %c2_405 = arith.constant 2 : index
    %324 = vector.load %arg50[%c0_404, %c2_405] : memref<64x1226xf32, #tpu.memory_space<vmem>>, vector<64x36xf32>
    %c0_406 = arith.constant 0 : index
    %c6_407 = arith.constant 6 : index
    %325 = vector.load %arg50[%c0_406, %c6_407] : memref<64x1226xf32, #tpu.memory_space<vmem>>, vector<64x36xf32>
    %c0_408 = arith.constant 0 : index
    %c7_409 = arith.constant 7 : index
    %326 = vector.load %arg50[%c0_408, %c7_409] : memref<64x1226xf32, #tpu.memory_space<vmem>>, vector<64x36xf32>
    %c0_410 = arith.constant 0 : index
    %c8_411 = arith.constant 8 : index
    %327 = vector.load %arg50[%c0_410, %c8_411] : memref<64x1226xf32, #tpu.memory_space<vmem>>, vector<64x36xf32>
    %c0_412 = arith.constant 0 : index
    %c12_413 = arith.constant 12 : index
    %328 = vector.load %arg50[%c0_412, %c12_413] : memref<64x1226xf32, #tpu.memory_space<vmem>>, vector<64x36xf32>
    %c0_414 = arith.constant 0 : index
    %c13_415 = arith.constant 13 : index
    %329 = vector.load %arg50[%c0_414, %c13_415] : memref<64x1226xf32, #tpu.memory_space<vmem>>, vector<64x36xf32>
    %c0_416 = arith.constant 0 : index
    %c14_417 = arith.constant 14 : index
    %330 = vector.load %arg50[%c0_416, %c14_417] : memref<64x1226xf32, #tpu.memory_space<vmem>>, vector<64x36xf32>
    %331 = tpu.concatenate %322, %323, %324, %325, %326, %327, %328, %329, %330 in 0 : vector<64x36xf32>, vector<64x36xf32>, vector<64x36xf32>, vector<64x36xf32>, vector<64x36xf32>, vector<64x36xf32>, vector<64x36xf32>, vector<64x36xf32>, vector<64x36xf32> -> vector<576x36xf32>
    %332 = arith.truncf %331 : vector<576x36xf32> to vector<576x36xbf16>
    %c0_418 = arith.constant 0 : index
    %c0_419 = arith.constant 0 : index
    %333 = vector.load %arg23[%c0_418, %c0_419] : memref<64x576xbf16, #tpu.memory_space<vmem>>, vector<64x576xbf16>
    %cst_420 = arith.constant dense<0.000000e+00> : vector<64x36xf32>
    %334 = tpu.matmul %333, %332, %cst_420 {dimension_numbers = #tpu.dot_dimension_numbers<[1], [0], [0], [1], [0, 0, 1, 1], [], []>} : vector<64x576xbf16>, vector<576x36xbf16>, vector<64x36xf32> -> vector<64x36xf32>
    %c0_421 = arith.constant 0 : index
    %c0_422 = arith.constant 0 : index
    %335 = vector.load %arg24[%c0_421, %c0_422] : memref<64x1xf32, #tpu.memory_space<vmem>>, vector<64x1xf32>
    %336 = vector.broadcast %335 : vector<64x1xf32> to vector<64x36xf32>
    %337 = arith.addf %334, %336 : vector<64x36xf32>
    %cst_423 = arith.constant 0.000000e+00 : f32
    %338 = vector.broadcast %cst_423 : f32 to vector<64x36xf32>
    %339 = arith.maximumf %337, %338 : vector<64x36xf32>
    %c0_424 = arith.constant 0 : index
    %c0_425 = arith.constant 0 : index
    %340 = vector.load %arg50[%c0_424, %c0_425] : memref<64x1226xf32, #tpu.memory_space<vmem>>, vector<64x36xf32>
    tpu.vector_store %arg50[%c0_424, %c0_425], %339 {strides = array<i32>} : memref<64x1226xf32, #tpu.memory_space<vmem>>, vector<64x36xf32>,
    %cst_426 = arith.constant 0.000000e+00 : f32
    %341 = vector.broadcast %cst_426 : f32 to vector<64x7xf32>
    %c0_427 = arith.constant 0 : index
    %c36_428 = arith.constant 36 : index
    %342 = vector.load %arg50[%c0_427, %c36_428] : memref<64x1226xf32, #tpu.memory_space<vmem>>, vector<64x7xf32>
    tpu.vector_store %arg50[%c0_427, %c36_428], %341 {strides = array<i32>} : memref<64x1226xf32, #tpu.memory_space<vmem>>, vector<64x7xf32>,
    %c0_429 = arith.constant 0 : index
    %c0_430 = arith.constant 0 : index
    %343 = vector.load %arg50[%c0_429, %c0_430] : memref<64x1226xf32, #tpu.memory_space<vmem>>, vector<64x42xf32>
    %c0_431 = arith.constant 0 : index
    %c1_432 = arith.constant 1 : index
    %344 = vector.load %arg50[%c0_431, %c1_432] : memref<64x1226xf32, #tpu.memory_space<vmem>>, vector<64x42xf32>
    %345 = arith.maximumf %343, %344 : vector<64x42xf32>
    %c0_433 = arith.constant 0 : index
    %c0_434 = arith.constant 0 : index
    %346 = vector.load %arg50[%c0_433, %c0_434] : memref<64x1226xf32, #tpu.memory_space<vmem>>, vector<64x42xf32>
    tpu.vector_store %arg50[%c0_433, %c0_434], %345 {strides = array<i32>} : memref<64x1226xf32, #tpu.memory_space<vmem>>, vector<64x42xf32>,
    %c0_435 = arith.constant 0 : index
    %c0_436 = arith.constant 0 : index
    %347 = vector.load %arg50[%c0_435, %c0_436] : memref<64x1226xf32, #tpu.memory_space<vmem>>, vector<64x36xf32>
    %c0_437 = arith.constant 0 : index
    %c6_438 = arith.constant 6 : index
    %348 = vector.load %arg50[%c0_437, %c6_438] : memref<64x1226xf32, #tpu.memory_space<vmem>>, vector<64x36xf32>
    %349 = arith.maximumf %347, %348 : vector<64x36xf32>
    %350 = arith.truncf %349 : vector<64x36xf32> to vector<64x36xbf16>
    %c0_439 = arith.constant 0 : index
    %c0_440 = arith.constant 0 : index
    %351 = vector.load %arg41[%c0_439, %c0_440] : memref<36x16xbf16, #tpu.memory_space<vmem>>, vector<36x16xbf16>
    %cst_441 = arith.constant dense<0.000000e+00> : vector<64x16xf32>
    %352 = tpu.matmul %350, %351, %cst_441 {dimension_numbers = #tpu.dot_dimension_numbers<[1], [0], [0], [1], [0, 0, 1, 1], [], []>} : vector<64x36xbf16>, vector<36x16xbf16>, vector<64x16xf32> -> vector<64x16xf32>
    %cst_442 = arith.constant 0.000000e+00 : f32
    %353 = vector.broadcast %cst_442 : f32 to vector<64x5xf32>
    %c0_443 = arith.constant 0 : index
    %c0_444 = arith.constant 0 : index
    %354 = vector.load %arg50[%c0_443, %c0_444] : memref<64x1226xf32, #tpu.memory_space<vmem>>, vector<64x5xf32>
    tpu.vector_store %arg50[%c0_443, %c0_444], %353 {strides = array<i32>} : memref<64x1226xf32, #tpu.memory_space<vmem>>, vector<64x5xf32>,
    %c0_445 = arith.constant 0 : index
    %c5 = arith.constant 5 : index
    %355 = vector.load %arg50[%c0_445, %c5] : memref<64x1226xf32, #tpu.memory_space<vmem>>, vector<64x16xf32>
    tpu.vector_store %arg50[%c0_445, %c5], %352 {strides = array<i32>} : memref<64x1226xf32, #tpu.memory_space<vmem>>, vector<64x16xf32>,
    %cst_446 = arith.constant 0.000000e+00 : f32
    %356 = vector.broadcast %cst_446 : f32 to vector<64x5xf32>
    %c0_447 = arith.constant 0 : index
    %c21_448 = arith.constant 21 : index
    %357 = vector.load %arg50[%c0_447, %c21_448] : memref<64x1226xf32, #tpu.memory_space<vmem>>, vector<64x5xf32>
    tpu.vector_store %arg50[%c0_447, %c21_448], %356 {strides = array<i32>} : memref<64x1226xf32, #tpu.memory_space<vmem>>, vector<64x5xf32>,
    %c0_449 = arith.constant 0 : index
    %c0_450 = arith.constant 0 : index
    %358 = vector.load %arg50[%c0_449, %c0_450] : memref<64x1226xf32, #tpu.memory_space<vmem>>, vector<64x16xf32>
    %c0_451 = arith.constant 0 : index
    %c1_452 = arith.constant 1 : index
    %359 = vector.load %arg50[%c0_451, %c1_452] : memref<64x1226xf32, #tpu.memory_space<vmem>>, vector<64x16xf32>
    %c0_453 = arith.constant 0 : index
    %c2_454 = arith.constant 2 : index
    %360 = vector.load %arg50[%c0_453, %c2_454] : memref<64x1226xf32, #tpu.memory_space<vmem>>, vector<64x16xf32>
    %c0_455 = arith.constant 0 : index
    %c4 = arith.constant 4 : index
    %361 = vector.load %arg50[%c0_455, %c4] : memref<64x1226xf32, #tpu.memory_space<vmem>>, vector<64x16xf32>
    %c0_456 = arith.constant 0 : index
    %c5_457 = arith.constant 5 : index
    %362 = vector.load %arg50[%c0_456, %c5_457] : memref<64x1226xf32, #tpu.memory_space<vmem>>, vector<64x16xf32>
    %c0_458 = arith.constant 0 : index
    %c6_459 = arith.constant 6 : index
    %363 = vector.load %arg50[%c0_458, %c6_459] : memref<64x1226xf32, #tpu.memory_space<vmem>>, vector<64x16xf32>
    %c0_460 = arith.constant 0 : index
    %c8_461 = arith.constant 8 : index
    %364 = vector.load %arg50[%c0_460, %c8_461] : memref<64x1226xf32, #tpu.memory_space<vmem>>, vector<64x16xf32>
    %c0_462 = arith.constant 0 : index
    %c9 = arith.constant 9 : index
    %365 = vector.load %arg50[%c0_462, %c9] : memref<64x1226xf32, #tpu.memory_space<vmem>>, vector<64x16xf32>
    %c0_463 = arith.constant 0 : index
    %c10_464 = arith.constant 10 : index
    %366 = vector.load %arg50[%c0_463, %c10_464] : memref<64x1226xf32, #tpu.memory_space<vmem>>, vector<64x16xf32>
    %367 = tpu.concatenate %358, %359, %360, %361, %362, %363, %364, %365, %366 in 0 : vector<64x16xf32>, vector<64x16xf32>, vector<64x16xf32>, vector<64x16xf32>, vector<64x16xf32>, vector<64x16xf32>, vector<64x16xf32>, vector<64x16xf32>, vector<64x16xf32> -> vector<576x16xf32>
    %368 = arith.truncf %367 : vector<576x16xf32> to vector<576x16xbf16>
    %c0_465 = arith.constant 0 : index
    %c0_466 = arith.constant 0 : index
    %369 = vector.load %arg25[%c0_465, %c0_466] : memref<64x576xbf16, #tpu.memory_space<vmem>>, vector<64x576xbf16>
    %cst_467 = arith.constant dense<0.000000e+00> : vector<64x16xf32>
    %370 = tpu.matmul %369, %368, %cst_467 {dimension_numbers = #tpu.dot_dimension_numbers<[1], [0], [0], [1], [0, 0, 1, 1], [], []>} : vector<64x576xbf16>, vector<576x16xbf16>, vector<64x16xf32> -> vector<64x16xf32>
    %c0_468 = arith.constant 0 : index
    %c0_469 = arith.constant 0 : index
    %371 = vector.load %arg26[%c0_468, %c0_469] : memref<64x1xf32, #tpu.memory_space<vmem>>, vector<64x1xf32>
    %372 = vector.broadcast %371 : vector<64x1xf32> to vector<64x16xf32>
    %373 = arith.addf %370, %372 : vector<64x16xf32>
    %cst_470 = arith.constant 0.000000e+00 : f32
    %374 = vector.broadcast %cst_470 : f32 to vector<64x16xf32>
    %375 = arith.maximumf %373, %374 : vector<64x16xf32>
    %c0_471 = arith.constant 0 : index
    %c0_472 = arith.constant 0 : index
    %376 = vector.load %arg37[%c0_471, %c0_472] : memref<1x16xf32, #tpu.memory_space<vmem>>, vector<1x16xf32>
    %377 = vector.broadcast %376 : vector<1x16xf32> to vector<64x16xf32>
    %378 = arith.mulf %375, %377 : vector<64x16xf32>
    %cst_473 = arith.constant 0.000000e+00 : f32
    %379 = vector.broadcast %cst_473 : f32 to vector<64x5xf32>
    %c0_474 = arith.constant 0 : index
    %c0_475 = arith.constant 0 : index
    %380 = vector.load %arg50[%c0_474, %c0_475] : memref<64x1226xf32, #tpu.memory_space<vmem>>, vector<64x5xf32>
    tpu.vector_store %arg50[%c0_474, %c0_475], %379 {strides = array<i32>} : memref<64x1226xf32, #tpu.memory_space<vmem>>, vector<64x5xf32>,
    %c0_476 = arith.constant 0 : index
    %c5_477 = arith.constant 5 : index
    %381 = vector.load %arg50[%c0_476, %c5_477] : memref<64x1226xf32, #tpu.memory_space<vmem>>, vector<64x16xf32>
    tpu.vector_store %arg50[%c0_476, %c5_477], %378 {strides = array<i32>} : memref<64x1226xf32, #tpu.memory_space<vmem>>, vector<64x16xf32>,
    %cst_478 = arith.constant 0.000000e+00 : f32
    %382 = vector.broadcast %cst_478 : f32 to vector<64x5xf32>
    %c0_479 = arith.constant 0 : index
    %c21_480 = arith.constant 21 : index
    %383 = vector.load %arg50[%c0_479, %c21_480] : memref<64x1226xf32, #tpu.memory_space<vmem>>, vector<64x5xf32>
    tpu.vector_store %arg50[%c0_479, %c21_480], %382 {strides = array<i32>} : memref<64x1226xf32, #tpu.memory_space<vmem>>, vector<64x5xf32>,
    %c0_481 = arith.constant 0 : index
    %c0_482 = arith.constant 0 : index
    %384 = vector.load %arg50[%c0_481, %c0_482] : memref<64x1226xf32, #tpu.memory_space<vmem>>, vector<64x16xf32>
    %c0_483 = arith.constant 0 : index
    %c1_484 = arith.constant 1 : index
    %385 = vector.load %arg50[%c0_483, %c1_484] : memref<64x1226xf32, #tpu.memory_space<vmem>>, vector<64x16xf32>
    %c0_485 = arith.constant 0 : index
    %c2_486 = arith.constant 2 : index
    %386 = vector.load %arg50[%c0_485, %c2_486] : memref<64x1226xf32, #tpu.memory_space<vmem>>, vector<64x16xf32>
    %c0_487 = arith.constant 0 : index
    %c4_488 = arith.constant 4 : index
    %387 = vector.load %arg50[%c0_487, %c4_488] : memref<64x1226xf32, #tpu.memory_space<vmem>>, vector<64x16xf32>
    %c0_489 = arith.constant 0 : index
    %c5_490 = arith.constant 5 : index
    %388 = vector.load %arg50[%c0_489, %c5_490] : memref<64x1226xf32, #tpu.memory_space<vmem>>, vector<64x16xf32>
    %c0_491 = arith.constant 0 : index
    %c6_492 = arith.constant 6 : index
    %389 = vector.load %arg50[%c0_491, %c6_492] : memref<64x1226xf32, #tpu.memory_space<vmem>>, vector<64x16xf32>
    %c0_493 = arith.constant 0 : index
    %c8_494 = arith.constant 8 : index
    %390 = vector.load %arg50[%c0_493, %c8_494] : memref<64x1226xf32, #tpu.memory_space<vmem>>, vector<64x16xf32>
    %c0_495 = arith.constant 0 : index
    %c9_496 = arith.constant 9 : index
    %391 = vector.load %arg50[%c0_495, %c9_496] : memref<64x1226xf32, #tpu.memory_space<vmem>>, vector<64x16xf32>
    %c0_497 = arith.constant 0 : index
    %c10_498 = arith.constant 10 : index
    %392 = vector.load %arg50[%c0_497, %c10_498] : memref<64x1226xf32, #tpu.memory_space<vmem>>, vector<64x16xf32>
    %393 = tpu.concatenate %384, %385, %386, %387, %388, %389, %390, %391, %392 in 0 : vector<64x16xf32>, vector<64x16xf32>, vector<64x16xf32>, vector<64x16xf32>, vector<64x16xf32>, vector<64x16xf32>, vector<64x16xf32>, vector<64x16xf32>, vector<64x16xf32> -> vector<576x16xf32>
    %394 = arith.truncf %393 : vector<576x16xf32> to vector<576x16xbf16>
    %c0_499 = arith.constant 0 : index
    %c0_500 = arith.constant 0 : index
    %395 = vector.load %arg27[%c0_499, %c0_500] : memref<64x576xbf16, #tpu.memory_space<vmem>>, vector<64x576xbf16>
    %cst_501 = arith.constant dense<0.000000e+00> : vector<64x16xf32>
    %396 = tpu.matmul %395, %394, %cst_501 {dimension_numbers = #tpu.dot_dimension_numbers<[1], [0], [0], [1], [0, 0, 1, 1], [], []>} : vector<64x576xbf16>, vector<576x16xbf16>, vector<64x16xf32> -> vector<64x16xf32>
    %c0_502 = arith.constant 0 : index
    %c0_503 = arith.constant 0 : index
    %397 = vector.load %arg28[%c0_502, %c0_503] : memref<64x1xf32, #tpu.memory_space<vmem>>, vector<64x1xf32>
    %398 = vector.broadcast %397 : vector<64x1xf32> to vector<64x16xf32>
    %399 = arith.addf %396, %398 : vector<64x16xf32>
    %cst_504 = arith.constant 0.000000e+00 : f32
    %400 = vector.broadcast %cst_504 : f32 to vector<64x16xf32>
    %401 = arith.maximumf %399, %400 : vector<64x16xf32>
    %c0_505 = arith.constant 0 : index
    %c0_506 = arith.constant 0 : index
    %402 = vector.load %arg37[%c0_505, %c0_506] : memref<1x16xf32, #tpu.memory_space<vmem>>, vector<1x16xf32>
    %403 = vector.broadcast %402 : vector<1x16xf32> to vector<64x16xf32>
    %404 = arith.mulf %401, %403 : vector<64x16xf32>
    %cst_507 = arith.constant 0.000000e+00 : f32
    %405 = vector.broadcast %cst_507 : f32 to vector<64x5xf32>
    %c0_508 = arith.constant 0 : index
    %c0_509 = arith.constant 0 : index
    %406 = vector.load %arg50[%c0_508, %c0_509] : memref<64x1226xf32, #tpu.memory_space<vmem>>, vector<64x5xf32>
    tpu.vector_store %arg50[%c0_508, %c0_509], %405 {strides = array<i32>} : memref<64x1226xf32, #tpu.memory_space<vmem>>, vector<64x5xf32>,
    %c0_510 = arith.constant 0 : index
    %c5_511 = arith.constant 5 : index
    %407 = vector.load %arg50[%c0_510, %c5_511] : memref<64x1226xf32, #tpu.memory_space<vmem>>, vector<64x16xf32>
    tpu.vector_store %arg50[%c0_510, %c5_511], %404 {strides = array<i32>} : memref<64x1226xf32, #tpu.memory_space<vmem>>, vector<64x16xf32>,
    %cst_512 = arith.constant 0.000000e+00 : f32
    %408 = vector.broadcast %cst_512 : f32 to vector<64x5xf32>
    %c0_513 = arith.constant 0 : index
    %c21_514 = arith.constant 21 : index
    %409 = vector.load %arg50[%c0_513, %c21_514] : memref<64x1226xf32, #tpu.memory_space<vmem>>, vector<64x5xf32>
    tpu.vector_store %arg50[%c0_513, %c21_514], %408 {strides = array<i32>} : memref<64x1226xf32, #tpu.memory_space<vmem>>, vector<64x5xf32>,
    %c0_515 = arith.constant 0 : index
    %c0_516 = arith.constant 0 : index
    %410 = vector.load %arg50[%c0_515, %c0_516] : memref<64x1226xf32, #tpu.memory_space<vmem>>, vector<64x16xf32>
    %c0_517 = arith.constant 0 : index
    %c1_518 = arith.constant 1 : index
    %411 = vector.load %arg50[%c0_517, %c1_518] : memref<64x1226xf32, #tpu.memory_space<vmem>>, vector<64x16xf32>
    %c0_519 = arith.constant 0 : index
    %c2_520 = arith.constant 2 : index
    %412 = vector.load %arg50[%c0_519, %c2_520] : memref<64x1226xf32, #tpu.memory_space<vmem>>, vector<64x16xf32>
    %c0_521 = arith.constant 0 : index
    %c4_522 = arith.constant 4 : index
    %413 = vector.load %arg50[%c0_521, %c4_522] : memref<64x1226xf32, #tpu.memory_space<vmem>>, vector<64x16xf32>
    %c0_523 = arith.constant 0 : index
    %c5_524 = arith.constant 5 : index
    %414 = vector.load %arg50[%c0_523, %c5_524] : memref<64x1226xf32, #tpu.memory_space<vmem>>, vector<64x16xf32>
    %c0_525 = arith.constant 0 : index
    %c6_526 = arith.constant 6 : index
    %415 = vector.load %arg50[%c0_525, %c6_526] : memref<64x1226xf32, #tpu.memory_space<vmem>>, vector<64x16xf32>
    %c0_527 = arith.constant 0 : index
    %c8_528 = arith.constant 8 : index
    %416 = vector.load %arg50[%c0_527, %c8_528] : memref<64x1226xf32, #tpu.memory_space<vmem>>, vector<64x16xf32>
    %c0_529 = arith.constant 0 : index
    %c9_530 = arith.constant 9 : index
    %417 = vector.load %arg50[%c0_529, %c9_530] : memref<64x1226xf32, #tpu.memory_space<vmem>>, vector<64x16xf32>
    %c0_531 = arith.constant 0 : index
    %c10_532 = arith.constant 10 : index
    %418 = vector.load %arg50[%c0_531, %c10_532] : memref<64x1226xf32, #tpu.memory_space<vmem>>, vector<64x16xf32>
    %419 = tpu.concatenate %410, %411, %412, %413, %414, %415, %416, %417, %418 in 0 : vector<64x16xf32>, vector<64x16xf32>, vector<64x16xf32>, vector<64x16xf32>, vector<64x16xf32>, vector<64x16xf32>, vector<64x16xf32>, vector<64x16xf32>, vector<64x16xf32> -> vector<576x16xf32>
    %420 = arith.truncf %419 : vector<576x16xf32> to vector<576x16xbf16>
    %c0_533 = arith.constant 0 : index
    %c0_534 = arith.constant 0 : index
    %421 = vector.load %arg29[%c0_533, %c0_534] : memref<64x576xbf16, #tpu.memory_space<vmem>>, vector<64x576xbf16>
    %cst_535 = arith.constant dense<0.000000e+00> : vector<64x16xf32>
    %422 = tpu.matmul %421, %420, %cst_535 {dimension_numbers = #tpu.dot_dimension_numbers<[1], [0], [0], [1], [0, 0, 1, 1], [], []>} : vector<64x576xbf16>, vector<576x16xbf16>, vector<64x16xf32> -> vector<64x16xf32>
    %c0_536 = arith.constant 0 : index
    %c0_537 = arith.constant 0 : index
    %423 = vector.load %arg30[%c0_536, %c0_537] : memref<64x1xf32, #tpu.memory_space<vmem>>, vector<64x1xf32>
    %424 = vector.broadcast %423 : vector<64x1xf32> to vector<64x16xf32>
    %425 = arith.addf %422, %424 : vector<64x16xf32>
    %cst_538 = arith.constant 0.000000e+00 : f32
    %426 = vector.broadcast %cst_538 : f32 to vector<64x16xf32>
    %427 = arith.maximumf %425, %426 : vector<64x16xf32>
    %c0_539 = arith.constant 0 : index
    %c0_540 = arith.constant 0 : index
    %428 = vector.load %arg37[%c0_539, %c0_540] : memref<1x16xf32, #tpu.memory_space<vmem>>, vector<1x16xf32>
    %429 = vector.broadcast %428 : vector<1x16xf32> to vector<64x16xf32>
    %430 = arith.mulf %427, %429 : vector<64x16xf32>
    %cst_541 = arith.constant 0.000000e+00 : f32
    %431 = vector.broadcast %cst_541 : f32 to vector<64x5xf32>
    %c0_542 = arith.constant 0 : index
    %c0_543 = arith.constant 0 : index
    %432 = vector.load %arg50[%c0_542, %c0_543] : memref<64x1226xf32, #tpu.memory_space<vmem>>, vector<64x5xf32>
    tpu.vector_store %arg50[%c0_542, %c0_543], %431 {strides = array<i32>} : memref<64x1226xf32, #tpu.memory_space<vmem>>, vector<64x5xf32>,
    %c0_544 = arith.constant 0 : index
    %c5_545 = arith.constant 5 : index
    %433 = vector.load %arg50[%c0_544, %c5_545] : memref<64x1226xf32, #tpu.memory_space<vmem>>, vector<64x16xf32>
    tpu.vector_store %arg50[%c0_544, %c5_545], %430 {strides = array<i32>} : memref<64x1226xf32, #tpu.memory_space<vmem>>, vector<64x16xf32>,
    %cst_546 = arith.constant 0.000000e+00 : f32
    %434 = vector.broadcast %cst_546 : f32 to vector<64x5xf32>
    %c0_547 = arith.constant 0 : index
    %c21_548 = arith.constant 21 : index
    %435 = vector.load %arg50[%c0_547, %c21_548] : memref<64x1226xf32, #tpu.memory_space<vmem>>, vector<64x5xf32>
    tpu.vector_store %arg50[%c0_547, %c21_548], %434 {strides = array<i32>} : memref<64x1226xf32, #tpu.memory_space<vmem>>, vector<64x5xf32>,
    %c0_549 = arith.constant 0 : index
    %c0_550 = arith.constant 0 : index
    %436 = vector.load %arg50[%c0_549, %c0_550] : memref<64x1226xf32, #tpu.memory_space<vmem>>, vector<64x16xf32>
    %c0_551 = arith.constant 0 : index
    %c1_552 = arith.constant 1 : index
    %437 = vector.load %arg50[%c0_551, %c1_552] : memref<64x1226xf32, #tpu.memory_space<vmem>>, vector<64x16xf32>
    %c0_553 = arith.constant 0 : index
    %c2_554 = arith.constant 2 : index
    %438 = vector.load %arg50[%c0_553, %c2_554] : memref<64x1226xf32, #tpu.memory_space<vmem>>, vector<64x16xf32>
    %c0_555 = arith.constant 0 : index
    %c4_556 = arith.constant 4 : index
    %439 = vector.load %arg50[%c0_555, %c4_556] : memref<64x1226xf32, #tpu.memory_space<vmem>>, vector<64x16xf32>
    %c0_557 = arith.constant 0 : index
    %c5_558 = arith.constant 5 : index
    %440 = vector.load %arg50[%c0_557, %c5_558] : memref<64x1226xf32, #tpu.memory_space<vmem>>, vector<64x16xf32>
    %c0_559 = arith.constant 0 : index
    %c6_560 = arith.constant 6 : index
    %441 = vector.load %arg50[%c0_559, %c6_560] : memref<64x1226xf32, #tpu.memory_space<vmem>>, vector<64x16xf32>
    %c0_561 = arith.constant 0 : index
    %c8_562 = arith.constant 8 : index
    %442 = vector.load %arg50[%c0_561, %c8_562] : memref<64x1226xf32, #tpu.memory_space<vmem>>, vector<64x16xf32>
    %c0_563 = arith.constant 0 : index
    %c9_564 = arith.constant 9 : index
    %443 = vector.load %arg50[%c0_563, %c9_564] : memref<64x1226xf32, #tpu.memory_space<vmem>>, vector<64x16xf32>
    %c0_565 = arith.constant 0 : index
    %c10_566 = arith.constant 10 : index
    %444 = vector.load %arg50[%c0_565, %c10_566] : memref<64x1226xf32, #tpu.memory_space<vmem>>, vector<64x16xf32>
    %445 = tpu.concatenate %436, %437, %438, %439, %440, %441, %442, %443, %444 in 0 : vector<64x16xf32>, vector<64x16xf32>, vector<64x16xf32>, vector<64x16xf32>, vector<64x16xf32>, vector<64x16xf32>, vector<64x16xf32>, vector<64x16xf32>, vector<64x16xf32> -> vector<576x16xf32>
    %446 = arith.truncf %445 : vector<576x16xf32> to vector<576x16xbf16>
    %c0_567 = arith.constant 0 : index
    %c0_568 = arith.constant 0 : index
    %447 = vector.load %arg31[%c0_567, %c0_568] : memref<64x576xbf16, #tpu.memory_space<vmem>>, vector<64x576xbf16>
    %cst_569 = arith.constant dense<0.000000e+00> : vector<64x16xf32>
    %448 = tpu.matmul %447, %446, %cst_569 {dimension_numbers = #tpu.dot_dimension_numbers<[1], [0], [0], [1], [0, 0, 1, 1], [], []>} : vector<64x576xbf16>, vector<576x16xbf16>, vector<64x16xf32> -> vector<64x16xf32>
    %c0_570 = arith.constant 0 : index
    %c0_571 = arith.constant 0 : index
    %449 = vector.load %arg32[%c0_570, %c0_571] : memref<64x1xf32, #tpu.memory_space<vmem>>, vector<64x1xf32>
    %450 = vector.broadcast %449 : vector<64x1xf32> to vector<64x16xf32>
    %451 = arith.addf %448, %450 : vector<64x16xf32>
    %cst_572 = arith.constant 0.000000e+00 : f32
    %452 = vector.broadcast %cst_572 : f32 to vector<64x16xf32>
    %453 = arith.maximumf %451, %452 : vector<64x16xf32>
    %c0_573 = arith.constant 0 : index
    %c0_574 = arith.constant 0 : index
    %454 = vector.load %arg50[%c0_573, %c0_574] : memref<64x1226xf32, #tpu.memory_space<vmem>>, vector<64x16xf32>
    tpu.vector_store %arg50[%c0_573, %c0_574], %453 {strides = array<i32>} : memref<64x1226xf32, #tpu.memory_space<vmem>>, vector<64x16xf32>,
    %cst_575 = arith.constant 0.000000e+00 : f32
    %455 = vector.broadcast %cst_575 : f32 to vector<64x5xf32>
    %c0_576 = arith.constant 0 : index
    %c16 = arith.constant 16 : index
    %456 = vector.load %arg50[%c0_576, %c16] : memref<64x1226xf32, #tpu.memory_space<vmem>>, vector<64x5xf32>
    tpu.vector_store %arg50[%c0_576, %c16], %455 {strides = array<i32>} : memref<64x1226xf32, #tpu.memory_space<vmem>>, vector<64x5xf32>,
    %c0_577 = arith.constant 0 : index
    %c0_578 = arith.constant 0 : index
    %457 = vector.load %arg50[%c0_577, %c0_578] : memref<64x1226xf32, #tpu.memory_space<vmem>>, vector<64x20xf32>
    %c0_579 = arith.constant 0 : index
    %c1_580 = arith.constant 1 : index
    %458 = vector.load %arg50[%c0_579, %c1_580] : memref<64x1226xf32, #tpu.memory_space<vmem>>, vector<64x20xf32>
    %459 = arith.maximumf %457, %458 : vector<64x20xf32>
    %c0_581 = arith.constant 0 : index
    %c0_582 = arith.constant 0 : index
    %460 = vector.load %arg50[%c0_581, %c0_582] : memref<64x1226xf32, #tpu.memory_space<vmem>>, vector<64x20xf32>
    tpu.vector_store %arg50[%c0_581, %c0_582], %459 {strides = array<i32>} : memref<64x1226xf32, #tpu.memory_space<vmem>>, vector<64x20xf32>,
    %c0_583 = arith.constant 0 : index
    %c0_584 = arith.constant 0 : index
    %461 = vector.load %arg50[%c0_583, %c0_584] : memref<64x1226xf32, #tpu.memory_space<vmem>>, vector<64x16xf32>
    %c0_585 = arith.constant 0 : index
    %c4_586 = arith.constant 4 : index
    %462 = vector.load %arg50[%c0_585, %c4_586] : memref<64x1226xf32, #tpu.memory_space<vmem>>, vector<64x16xf32>
    %463 = arith.maximumf %461, %462 : vector<64x16xf32>
    %464 = arith.truncf %463 : vector<64x16xf32> to vector<64x16xbf16>
    %c0_587 = arith.constant 0 : index
    %c0_588 = arith.constant 0 : index
    %465 = vector.load %arg42[%c0_587, %c0_588] : memref<16x1xbf16, #tpu.memory_space<vmem>>, vector<16x1xbf16>
    %cst_589 = arith.constant dense<0.000000e+00> : vector<64x1xf32>
    %466 = tpu.matmul %464, %465, %cst_589 {dimension_numbers = #tpu.dot_dimension_numbers<[1], [0], [0], [1], [0, 0, 1, 1], [], []>} : vector<64x16xbf16>, vector<16x1xbf16>, vector<64x1xf32> -> vector<64x1xf32>
    %c0_590 = arith.constant 0 : index
    %c0_591 = arith.constant 0 : index
    %467 = vector.load %arg43[%c0_590, %c0_591] : memref<128x64xf32, #tpu.memory_space<vmem>>, vector<128x64xf32>
    %c0_592 = arith.constant 0 : index
    %c0_593 = arith.constant 0 : index
    %468 = vector.load %arg44[%c0_592, %c0_593] : memref<128x1xf32, #tpu.memory_space<vmem>>, vector<128x1xf32>
    %c0_594 = arith.constant 0 : index
    %c0_595 = arith.constant 0 : index
    %469 = vector.load %arg45[%c0_594, %c0_595] : memref<128x128xf32, #tpu.memory_space<vmem>>, vector<128x128xf32>
    %c0_596 = arith.constant 0 : index
    %c0_597 = arith.constant 0 : index
    %470 = vector.load %arg46[%c0_596, %c0_597] : memref<128x1xf32, #tpu.memory_space<vmem>>, vector<128x1xf32>
    %c0_598 = arith.constant 0 : index
    %c0_599 = arith.constant 0 : index
    %471 = vector.load %arg47[%c0_598, %c0_599] : memref<10x128xf32, #tpu.memory_space<vmem>>, vector<10x128xf32>
    %c0_600 = arith.constant 0 : index
    %c0_601 = arith.constant 0 : index
    %472 = vector.load %arg48[%c0_600, %c0_601] : memref<10x1xf32, #tpu.memory_space<vmem>>, vector<10x1xf32>
    %cst_602 = arith.constant dense<0.000000e+00> : vector<128x1xf32>
    %473 = tpu.matmul %467, %466, %cst_602 {dimension_numbers = #tpu.dot_dimension_numbers<[1], [0], [0], [1], [0, 0, 1, 1], [], []>} : vector<128x64xf32>, vector<64x1xf32>, vector<128x1xf32> -> vector<128x1xf32>
    %474 = arith.addf %473, %468 : vector<128x1xf32>
    %cst_603 = arith.constant 0.000000e+00 : f32
    %475 = vector.broadcast %cst_603 : f32 to vector<128x1xf32>
    %476 = arith.maximumf %474, %475 : vector<128x1xf32>
    %cst_604 = arith.constant dense<0.000000e+00> : vector<128x1xf32>
    %477 = tpu.matmul %469, %476, %cst_604 {dimension_numbers = #tpu.dot_dimension_numbers<[1], [0], [0], [1], [0, 0, 1, 1], [], []>} : vector<128x128xf32>, vector<128x1xf32>, vector<128x1xf32> -> vector<128x1xf32>
    %478 = arith.addf %477, %470 : vector<128x1xf32>
    %cst_605 = arith.constant 0.000000e+00 : f32
    %479 = vector.broadcast %cst_605 : f32 to vector<128x1xf32>
    %480 = arith.maximumf %478, %479 : vector<128x1xf32>
    %cst_606 = arith.constant dense<0.000000e+00> : vector<10x1xf32>
    %481 = tpu.matmul %471, %480, %cst_606 {dimension_numbers = #tpu.dot_dimension_numbers<[1], [0], [0], [1], [0, 0, 1, 1], [], []>} : vector<10x128xf32>, vector<128x1xf32>, vector<10x1xf32> -> vector<10x1xf32>
    %482 = arith.addf %481, %472 : vector<10x1xf32>
    %c0_607 = arith.constant 0 : index
    %c0_608 = arith.constant 0 : index
    %483 = vector.load %arg49[%c0_607, %c0_608] : memref<10x1xf32, #tpu.memory_space<vmem>>, vector<10x1xf32>
    tpu.vector_store %arg49[%c0_607, %c0_608], %482 {strides = array<i32>} : memref<10x1xf32, #tpu.memory_space<vmem>>, vector<10x1xf32>,
    return
  }
}

</mosaic_0001>

<llo_original>
// kernel: mod_vgg_forward.1
$region0: #{mod_vgg_forward.1}
  #allocation0 [shape = 'u32[]', space=smem, size = 0x4, offset = 0x4, fixed_abs, tag = 'smem constant byte address 0x4 - core index']
  #allocation1 [shape = 'u32[144,128]{1,0:T(1,128)}', space=vmem, size = 0x12000, scoped, tag = 'internal scratch']
  #allocation2 [shape = 'f32[64,1226]{1,0:T(8,128)}', space=vmem, size = 0x50000, scoped, tag = 'scratch operand']
  %s0 = inlined_call_operand.smem [shape: u32[50], index: -1, kind: input, shape index: {}]
  %s1 = sld [smem:[%s0]]
  %s2 = scalar_lea.smem %s0, 1
  %s3 = sld [smem:[%s2]]
  %s4 = scalar_lea.smem %s0, 2
  %s5 = sld [smem:[%s4]]
  %s6 = scalar_lea.smem %s0, 3
  %s7 = sld [smem:[%s6]]
  %s8 = scalar_lea.smem %s0, 4
  %s9 = sld [smem:[%s8]]
  %s10 = scalar_lea.smem %s0, 5
  %s11 = sld [smem:[%s10]]
  %s12 = scalar_lea.smem %s0, 6
  %s13 = sld [smem:[%s12]]
  %s14 = scalar_lea.smem %s0, 7
  %s15 = sld [smem:[%s14]]
  %s16 = scalar_lea.smem %s0, 8
  %s17 = sld [smem:[%s16]]
  %s18 = scalar_lea.smem %s0, 9
  %s19 = sld [smem:[%s18]]
  %s20 = scalar_lea.smem %s0, 10
  %s21 = sld [smem:[%s20]]
  %s22 = scalar_lea.smem %s0, 11
  %s23 = sld [smem:[%s22]]
  %s24 = scalar_lea.smem %s0, 12
  %s25 = sld [smem:[%s24]]
  %s26 = scalar_lea.smem %s0, 13
  %s27 = sld [smem:[%s26]]
  %s28 = scalar_lea.smem %s0, 14
  %s29 = sld [smem:[%s28]]
  %s30 = scalar_lea.smem %s0, 15
  %s31 = sld [smem:[%s30]]
  %s32 = scalar_lea.smem %s0, 16
  %s33 = sld [smem:[%s32]]
  %s34 = scalar_lea.smem %s0, 17
  %s35 = sld [smem:[%s34]]
  %s36 = scalar_lea.smem %s0, 18
  %s37 = sld [smem:[%s36]]
  %s38 = scalar_lea.smem %s0, 19
  %s39 = sld [smem:[%s38]]
  %s40 = scalar_lea.smem %s0, 20
  %s41 = sld [smem:[%s40]]
  %s42 = scalar_lea.smem %s0, 21
  %s43 = sld [smem:[%s42]]
  %s44 = scalar_lea.smem %s0, 22
  %s45 = sld [smem:[%s44]]
  %s46 = scalar_lea.smem %s0, 23
  %s47 = sld [smem:[%s46]]
  %s48 = scalar_lea.smem %s0, 24
  %s49 = sld [smem:[%s48]]
  %s50 = scalar_lea.smem %s0, 25
  %s51 = sld [smem:[%s50]]
  %s52 = scalar_lea.smem %s0, 26
  %s53 = sld [smem:[%s52]]
  %s54 = scalar_lea.smem %s0, 27
  %s55 = sld [smem:[%s54]]
  %s56 = scalar_lea.smem %s0, 28
  %s57 = sld [smem:[%s56]]
  %s58 = scalar_lea.smem %s0, 29
  %s59 = sld [smem:[%s58]]
  %s60 = scalar_lea.smem %s0, 30
  %s61 = sld [smem:[%s60]]
  %s62 = scalar_lea.smem %s0, 31
  %s63 = sld [smem:[%s62]]
  %s64 = scalar_lea.smem %s0, 32
  %s65 = sld [smem:[%s64]]
  %s66 = scalar_lea.smem %s0, 33
  %s67 = sld [smem:[%s66]]
  %s68 = scalar_lea.smem %s0, 34
  %s69 = sld [smem:[%s68]]
  %s70 = scalar_lea.smem %s0, 35
  %s71 = sld [smem:[%s70]]
  %s72 = scalar_lea.smem %s0, 36
  %s73 = sld [smem:[%s72]]
  %s74 = scalar_lea.smem %s0, 37
  %s75 = sld [smem:[%s74]]
  %s76 = scalar_lea.smem %s0, 38
  %s77 = sld [smem:[%s76]]
  %s78 = scalar_lea.smem %s0, 39
  %s79 = sld [smem:[%s78]]
  %s80 = scalar_lea.smem %s0, 40
  %s81 = sld [smem:[%s80]]
  %s82 = scalar_lea.smem %s0, 41
  %s83 = sld [smem:[%s82]]
  %s84 = scalar_lea.smem %s0, 42
  %s85 = sld [smem:[%s84]]
  %s86 = scalar_lea.smem %s0, 43
  %s87 = sld [smem:[%s86]]
  %s88 = scalar_lea.smem %s0, 44
  %s89 = sld [smem:[%s88]]
  %s90 = scalar_lea.smem %s0, 45
  %s91 = sld [smem:[%s90]]
  %s92 = scalar_lea.smem %s0, 46
  %s93 = sld [smem:[%s92]]
  %s94 = scalar_lea.smem %s0, 47
  %s95 = sld [smem:[%s94]]
  %s96 = scalar_lea.smem %s0, 48
  %s97 = sld [smem:[%s96]]
  %s98 = scalar_lea.smem %s0, 49
  %s99 = sld [smem:[%s98]]
  %s100 = sld [smem:[#allocation0]]
  $region206: #{mod_vgg_forward.1} parent=0
    _
  %s102 = ssub.s32 1, %s100
  %s103 = scalar_select 0, %s102, %s100
  // Predicated region
  $region2: #{mod_vgg_forward.1} parent=0 // pred_check
    _
  $region3: #{mod_vgg_forward.1} parent=0 // pred_check_branch
    %105 = sbr.rel (0) target = $region5
  $region4: #{mod_vgg_forward.1} parent=0 // pred_region
    _
  $region5: #{mod_vgg_forward.1} parent=0 // pred_fallthru
    _
  // Predicated region
  $region6: #{mod_vgg_forward.1} parent=0 // pred_check
    _
  $region7: #{mod_vgg_forward.1} parent=0 // pred_check_branch
    %107 = sbr.rel (0) target = $region9
  $region8: #{mod_vgg_forward.1} parent=0 // pred_region
    _
  $region9: #{mod_vgg_forward.1} parent=0 // pred_fallthru
    _
  // Predicated region
  $region10: #{mod_vgg_forward.1} parent=0 // pred_check
    _
  $region11: #{mod_vgg_forward.1} parent=0 // pred_check_branch
    %109 = sbr.rel (0) target = $region13
  $region12: #{mod_vgg_forward.1} parent=0 // pred_region
    _
  $region13: #{mod_vgg_forward.1} parent=0 // pred_fallthru
    _
  // Predicated region
  $region14: #{mod_vgg_forward.1} parent=0 // pred_check
    _
  $region15: #{mod_vgg_forward.1} parent=0 // pred_check_branch
    %111 = sbr.rel (0) target = $region17
  $region16: #{mod_vgg_forward.1} parent=0 // pred_region
    _
  $region17: #{mod_vgg_forward.1} parent=0 // pred_fallthru
    _
  // Predicated region
  $region18: #{mod_vgg_forward.1} parent=0 // pred_check
    _
  $region19: #{mod_vgg_forward.1} parent=0 // pred_check_branch
    %113 = sbr.rel (0) target = $region21
  $region20: #{mod_vgg_forward.1} parent=0 // pred_region
    _
  $region21: #{mod_vgg_forward.1} parent=0 // pred_fallthru
    _
  // Predicated region
  $region22: #{mod_vgg_forward.1} parent=0 // pred_check
    _
  $region23: #{mod_vgg_forward.1} parent=0 // pred_check_branch
    %115 = sbr.rel (0) target = $region25
  $region24: #{mod_vgg_forward.1} parent=0 // pred_region
    _
  $region25: #{mod_vgg_forward.1} parent=0 // pred_fallthru
    _
  // Predicated region
  $region26: #{mod_vgg_forward.1} parent=0 // pred_check
    _
  $region27: #{mod_vgg_forward.1} parent=0 // pred_check_branch
    %117 = sbr.rel (0) target = $region29
  $region28: #{mod_vgg_forward.1} parent=0 // pred_region
    _
  $region29: #{mod_vgg_forward.1} parent=0 // pred_fallthru
    _
  // Predicated region
  $region30: #{mod_vgg_forward.1} parent=0 // pred_check
    _
  $region31: #{mod_vgg_forward.1} parent=0 // pred_check_branch
    %119 = sbr.rel (0) target = $region33
  $region32: #{mod_vgg_forward.1} parent=0 // pred_region
    _
  $region33: #{mod_vgg_forward.1} parent=0 // pred_fallthru
    _
  // Predicated region
  $region34: #{mod_vgg_forward.1} parent=0 // pred_check
    _
  $region35: #{mod_vgg_forward.1} parent=0 // pred_check_branch
    %121 = sbr.rel (0) target = $region37
  $region36: #{mod_vgg_forward.1} parent=0 // pred_region
    _
  $region37: #{mod_vgg_forward.1} parent=0 // pred_fallthru
    _
  // Predicated region
  $region38: #{mod_vgg_forward.1} parent=0 // pred_check
    _
  $region39: #{mod_vgg_forward.1} parent=0 // pred_check_branch
    %123 = sbr.rel (0) target = $region41
  $region40: #{mod_vgg_forward.1} parent=0 // pred_region
    _
  $region41: #{mod_vgg_forward.1} parent=0 // pred_fallthru
    _
  // Predicated region
  $region42: #{mod_vgg_forward.1} parent=0 // pred_check
    _
  $region43: #{mod_vgg_forward.1} parent=0 // pred_check_branch
    %125 = sbr.rel (0) target = $region45
  $region44: #{mod_vgg_forward.1} parent=0 // pred_region
    _
  $region45: #{mod_vgg_forward.1} parent=0 // pred_fallthru
    _
  // Predicated region
  $region46: #{mod_vgg_forward.1} parent=0 // pred_check
    _
  $region47: #{mod_vgg_forward.1} parent=0 // pred_check_branch
    %127 = sbr.rel (0) target = $region49
  $region48: #{mod_vgg_forward.1} parent=0 // pred_region
    _
  $region49: #{mod_vgg_forward.1} parent=0 // pred_fallthru
    _
  // Predicated region
  $region50: #{mod_vgg_forward.1} parent=0 // pred_check
    _
  $region51: #{mod_vgg_forward.1} parent=0 // pred_check_branch
    %129 = sbr.rel (0) target = $region53
  $region52: #{mod_vgg_forward.1} parent=0 // pred_region
    _
  $region53: #{mod_vgg_forward.1} parent=0 // pred_fallthru
    _
  // Predicated region
  $region54: #{mod_vgg_forward.1} parent=0 // pred_check
    _
  $region55: #{mod_vgg_forward.1} parent=0 // pred_check_branch
    %131 = sbr.rel (0) target = $region57
  $region56: #{mod_vgg_forward.1} parent=0 // pred_region
    _
  $region57: #{mod_vgg_forward.1} parent=0 // pred_fallthru
    _
  // Predicated region
  $region58: #{mod_vgg_forward.1} parent=0 // pred_check
    _
  $region59: #{mod_vgg_forward.1} parent=0 // pred_check_branch
    %133 = sbr.rel (0) target = $region61
  $region60: #{mod_vgg_forward.1} parent=0 // pred_region
    _
  $region61: #{mod_vgg_forward.1} parent=0 // pred_fallthru
    _
  // Predicated region
  $region62: #{mod_vgg_forward.1} parent=0 // pred_check
    _
  $region63: #{mod_vgg_forward.1} parent=0 // pred_check_branch
    %135 = sbr.rel (0) target = $region65
  $region64: #{mod_vgg_forward.1} parent=0 // pred_region
    _
  $region65: #{mod_vgg_forward.1} parent=0 // pred_fallthru
    _
  // Predicated region
  $region66: #{mod_vgg_forward.1} parent=0 // pred_check
    _
  $region67: #{mod_vgg_forward.1} parent=0 // pred_check_branch
    %137 = sbr.rel (0) target = $region69
  $region68: #{mod_vgg_forward.1} parent=0 // pred_region
    _
  $region69: #{mod_vgg_forward.1} parent=0 // pred_fallthru
    _
  // Predicated region
  $region70: #{mod_vgg_forward.1} parent=0 // pred_check
    _
  $region71: #{mod_vgg_forward.1} parent=0 // pred_check_branch
    %139 = sbr.rel (0) target = $region73
  $region72: #{mod_vgg_forward.1} parent=0 // pred_region
    _
  $region73: #{mod_vgg_forward.1} parent=0 // pred_fallthru
    _
  // Predicated region
  $region74: #{mod_vgg_forward.1} parent=0 // pred_check
    _
  $region75: #{mod_vgg_forward.1} parent=0 // pred_check_branch
    %141 = sbr.rel (0) target = $region77
  $region76: #{mod_vgg_forward.1} parent=0 // pred_region
    _
  $region77: #{mod_vgg_forward.1} parent=0 // pred_fallthru
    _
  // Predicated region
  $region78: #{mod_vgg_forward.1} parent=0 // pred_check
    _
  $region79: #{mod_vgg_forward.1} parent=0 // pred_check_branch
    %143 = sbr.rel (0) target = $region81
  $region80: #{mod_vgg_forward.1} parent=0 // pred_region
    _
  $region81: #{mod_vgg_forward.1} parent=0 // pred_fallthru
    _
  // Predicated region
  $region82: #{mod_vgg_forward.1} parent=0 // pred_check
    _
  $region83: #{mod_vgg_forward.1} parent=0 // pred_check_branch
    %145 = sbr.rel (0) target = $region85
  $region84: #{mod_vgg_forward.1} parent=0 // pred_region
    _
  $region85: #{mod_vgg_forward.1} parent=0 // pred_fallthru
    _
  // Predicated region
  $region86: #{mod_vgg_forward.1} parent=0 // pred_check
    _
  $region87: #{mod_vgg_forward.1} parent=0 // pred_check_branch
    %147 = sbr.rel (0) target = $region89
  $region88: #{mod_vgg_forward.1} parent=0 // pred_region
    _
  $region89: #{mod_vgg_forward.1} parent=0 // pred_fallthru
    _
  // Predicated region
  $region90: #{mod_vgg_forward.1} parent=0 // pred_check
    _
  $region91: #{mod_vgg_forward.1} parent=0 // pred_check_branch
    %149 = sbr.rel (0) target = $region93
  $region92: #{mod_vgg_forward.1} parent=0 // pred_region
    _
  $region93: #{mod_vgg_forward.1} parent=0 // pred_fallthru
    _
  // Predicated region
  $region94: #{mod_vgg_forward.1} parent=0 // pred_check
    _
  $region95: #{mod_vgg_forward.1} parent=0 // pred_check_branch
    %151 = sbr.rel (0) target = $region97
  $region96: #{mod_vgg_forward.1} parent=0 // pred_region
    _
  $region97: #{mod_vgg_forward.1} parent=0 // pred_fallthru
    _
  // Predicated region
  $region98: #{mod_vgg_forward.1} parent=0 // pred_check
    _
  $region99: #{mod_vgg_forward.1} parent=0 // pred_check_branch
    %153 = sbr.rel (0) target = $region101
  $region100: #{mod_vgg_forward.1} parent=0 // pred_region
    _
  $region101: #{mod_vgg_forward.1} parent=0 // pred_fallthru
    _
  // Predicated region
  $region102: #{mod_vgg_forward.1} parent=0 // pred_check
    _
  $region103: #{mod_vgg_forward.1} parent=0 // pred_check_branch
    %155 = sbr.rel (0) target = $region105
  $region104: #{mod_vgg_forward.1} parent=0 // pred_region
    _
  $region105: #{mod_vgg_forward.1} parent=0 // pred_fallthru
    _
  // Predicated region
  $region106: #{mod_vgg_forward.1} parent=0 // pred_check
    _
  $region107: #{mod_vgg_forward.1} parent=0 // pred_check_branch
    %157 = sbr.rel (0) target = $region109
  $region108: #{mod_vgg_forward.1} parent=0 // pred_region
    _
  $region109: #{mod_vgg_forward.1} parent=0 // pred_fallthru
    _
  // Predicated region
  $region110: #{mod_vgg_forward.1} parent=0 // pred_check
    _
  $region111: #{mod_vgg_forward.1} parent=0 // pred_check_branch
    %159 = sbr.rel (0) target = $region113
  $region112: #{mod_vgg_forward.1} parent=0 // pred_region
    _
  $region113: #{mod_vgg_forward.1} parent=0 // pred_fallthru
    _
  // Predicated region
  $region114: #{mod_vgg_forward.1} parent=0 // pred_check
    _
  $region115: #{mod_vgg_forward.1} parent=0 // pred_check_branch
    %161 = sbr.rel (0) target = $region117
  $region116: #{mod_vgg_forward.1} parent=0 // pred_region
    _
  $region117: #{mod_vgg_forward.1} parent=0 // pred_fallthru
    _
  // Predicated region
  $region118: #{mod_vgg_forward.1} parent=0 // pred_check
    _
  $region119: #{mod_vgg_forward.1} parent=0 // pred_check_branch
    %163 = sbr.rel (0) target = $region121
  $region120: #{mod_vgg_forward.1} parent=0 // pred_region
    _
  $region121: #{mod_vgg_forward.1} parent=0 // pred_fallthru
    _
  // Predicated region
  $region122: #{mod_vgg_forward.1} parent=0 // pred_check
    _
  $region123: #{mod_vgg_forward.1} parent=0 // pred_check_branch
    %165 = sbr.rel (0) target = $region125
  $region124: #{mod_vgg_forward.1} parent=0 // pred_region
    _
  $region125: #{mod_vgg_forward.1} parent=0 // pred_fallthru
    _
  // Predicated region
  $region126: #{mod_vgg_forward.1} parent=0 // pred_check
    _
  $region127: #{mod_vgg_forward.1} parent=0 // pred_check_branch
    %167 = sbr.rel (0) target = $region129
  $region128: #{mod_vgg_forward.1} parent=0 // pred_region
    _
  $region129: #{mod_vgg_forward.1} parent=0 // pred_fallthru
    _
  // Predicated region
  $region130: #{mod_vgg_forward.1} parent=0 // pred_check
    _
  $region131: #{mod_vgg_forward.1} parent=0 // pred_check_branch
    %169 = sbr.rel (0) target = $region133
  $region132: #{mod_vgg_forward.1} parent=0 // pred_region
    _
  $region133: #{mod_vgg_forward.1} parent=0 // pred_fallthru
    _
  // Predicated region
  $region134: #{mod_vgg_forward.1} parent=0 // pred_check
    _
  $region135: #{mod_vgg_forward.1} parent=0 // pred_check_branch
    %171 = sbr.rel (0) target = $region137
  $region136: #{mod_vgg_forward.1} parent=0 // pred_region
    _
  $region137: #{mod_vgg_forward.1} parent=0 // pred_fallthru
    _
  // Predicated region
  $region138: #{mod_vgg_forward.1} parent=0 // pred_check
    _
  $region139: #{mod_vgg_forward.1} parent=0 // pred_check_branch
    %173 = sbr.rel (0) target = $region141
  $region140: #{mod_vgg_forward.1} parent=0 // pred_region
    _
  $region141: #{mod_vgg_forward.1} parent=0 // pred_fallthru
    _
  // Predicated region
  $region142: #{mod_vgg_forward.1} parent=0 // pred_check
    _
  $region143: #{mod_vgg_forward.1} parent=0 // pred_check_branch
    %175 = sbr.rel (0) target = $region145
  $region144: #{mod_vgg_forward.1} parent=0 // pred_region
    _
  $region145: #{mod_vgg_forward.1} parent=0 // pred_fallthru
    _
  // Predicated region
  $region146: #{mod_vgg_forward.1} parent=0 // pred_check
    _
  $region147: #{mod_vgg_forward.1} parent=0 // pred_check_branch
    %177 = sbr.rel (0) target = $region149
  $region148: #{mod_vgg_forward.1} parent=0 // pred_region
    _
  $region149: #{mod_vgg_forward.1} parent=0 // pred_fallthru
    _
  // Predicated region
  $region150: #{mod_vgg_forward.1} parent=0 // pred_check
    _
  $region151: #{mod_vgg_forward.1} parent=0 // pred_check_branch
    %179 = sbr.rel (0) target = $region153
  $region152: #{mod_vgg_forward.1} parent=0 // pred_region
    _
  $region153: #{mod_vgg_forward.1} parent=0 // pred_fallthru
    _
  // Predicated region
  $region154: #{mod_vgg_forward.1} parent=0 // pred_check
    _
  $region155: #{mod_vgg_forward.1} parent=0 // pred_check_branch
    %181 = sbr.rel (0) target = $region157
  $region156: #{mod_vgg_forward.1} parent=0 // pred_region
    _
  $region157: #{mod_vgg_forward.1} parent=0 // pred_fallthru
    _
  // Predicated region
  $region158: #{mod_vgg_forward.1} parent=0 // pred_check
    _
  $region159: #{mod_vgg_forward.1} parent=0 // pred_check_branch
    %183 = sbr.rel (0) target = $region161
  $region160: #{mod_vgg_forward.1} parent=0 // pred_region
    _
  $region161: #{mod_vgg_forward.1} parent=0 // pred_fallthru
    _
  // Predicated region
  $region162: #{mod_vgg_forward.1} parent=0 // pred_check
    _
  $region163: #{mod_vgg_forward.1} parent=0 // pred_check_branch
    %185 = sbr.rel (0) target = $region165
  $region164: #{mod_vgg_forward.1} parent=0 // pred_region
    _
  $region165: #{mod_vgg_forward.1} parent=0 // pred_fallthru
    _
  // Predicated region
  $region166: #{mod_vgg_forward.1} parent=0 // pred_check
    _
  $region167: #{mod_vgg_forward.1} parent=0 // pred_check_branch
    %187 = sbr.rel (0) target = $region169
  $region168: #{mod_vgg_forward.1} parent=0 // pred_region
    _
  $region169: #{mod_vgg_forward.1} parent=0 // pred_fallthru
    _
  // Predicated region
  $region170: #{mod_vgg_forward.1} parent=0 // pred_check
    _
  $region171: #{mod_vgg_forward.1} parent=0 // pred_check_branch
    %189 = sbr.rel (0) target = $region173
  $region172: #{mod_vgg_forward.1} parent=0 // pred_region
    _
  $region173: #{mod_vgg_forward.1} parent=0 // pred_fallthru
    _
  // Predicated region
  $region174: #{mod_vgg_forward.1} parent=0 // pred_check
    _
  $region175: #{mod_vgg_forward.1} parent=0 // pred_check_branch
    %191 = sbr.rel (0) target = $region177
  $region176: #{mod_vgg_forward.1} parent=0 // pred_region
    _
  $region177: #{mod_vgg_forward.1} parent=0 // pred_fallthru
    _
  // Predicated region
  $region178: #{mod_vgg_forward.1} parent=0 // pred_check
    _
  $region179: #{mod_vgg_forward.1} parent=0 // pred_check_branch
    %193 = sbr.rel (0) target = $region181
  $region180: #{mod_vgg_forward.1} parent=0 // pred_region
    _
  $region181: #{mod_vgg_forward.1} parent=0 // pred_fallthru
    _
  // Predicated region
  $region182: #{mod_vgg_forward.1} parent=0 // pred_check
    _
  $region183: #{mod_vgg_forward.1} parent=0 // pred_check_branch
    %195 = sbr.rel (0) target = $region185
  $region184: #{mod_vgg_forward.1} parent=0 // pred_region
    _
  $region185: #{mod_vgg_forward.1} parent=0 // pred_fallthru
    _
  // Predicated region
  $region186: #{mod_vgg_forward.1} parent=0 // pred_check
    _
  $region187: #{mod_vgg_forward.1} parent=0 // pred_check_branch
    %197 = sbr.rel (0) target = $region189
  $region188: #{mod_vgg_forward.1} parent=0 // pred_region
    _
  $region189: #{mod_vgg_forward.1} parent=0 // pred_fallthru
    _
  // Predicated region
  $region190: #{mod_vgg_forward.1} parent=0 // pred_check
    _
  $region191: #{mod_vgg_forward.1} parent=0 // pred_check_branch
    %199 = sbr.rel (0) target = $region193
  $region192: #{mod_vgg_forward.1} parent=0 // pred_region
    _
  $region193: #{mod_vgg_forward.1} parent=0 // pred_fallthru
    _
  // Predicated region
  $region194: #{mod_vgg_forward.1} parent=0 // pred_check
    _
  $region195: #{mod_vgg_forward.1} parent=0 // pred_check_branch
    %201 = sbr.rel (0) target = $region197
  $region196: #{mod_vgg_forward.1} parent=0 // pred_region
    _
  $region197: #{mod_vgg_forward.1} parent=0 // pred_fallthru
    _
  %v203 = vld [vmem:[%s1] sm:$0xff]
  %v204 = vld [vmem:[%s1 + $0x8] sm:$0xff]
  %v205 = vld [vmem:[%s1 + $0x10] sm:$0xff]
  %v206 = vld [vmem:[%s1 + $0x18] sm:$0xff]
  %v207 = vld [vmem:[%s1 + $0x20] sm:$0xff]
  %v208 = vld [vmem:[%s1 + $0x28] sm:$0xff]
  %v209 = vld [vmem:[%s1 + $0x30] sm:$0xff]
  %v210 = vld [vmem:[%s1 + $0x38] sm:$0xff]
  %v211 = vld [vmem:[%s1 + $0x40] sm:$0xff]
  %v212 = vld [vmem:[%s1 + $0x48] sm:$0xff]
  %vm213 = vcmask 285696
  %214 = vst.msk [vmem:[#allocation2] sm:$0xff] %vm213, 0.0
  %225 = vrot.lane.b32.xlu0 %v203, 35
  %v226 = vpop.permute.xlu0 %225
  %227 = vrot.lane.b32.xlu0 %v204, 35
  %v228 = vpop.permute.xlu0 %227
  %229 = vrot.lane.b32.xlu0 %v205, 35
  %v230 = vpop.permute.xlu0 %229
  %231 = vrot.lane.b32.xlu0 %v206, 35
  %v232 = vpop.permute.xlu0 %231
  %233 = vrot.lane.b32.xlu0 %v207, 35
  %v234 = vpop.permute.xlu0 %233
  %235 = vrot.lane.b32.xlu0 %v208, 35
  %v236 = vpop.permute.xlu0 %235
  %237 = vrot.lane.b32.xlu0 %v209, 35
  %v238 = vpop.permute.xlu0 %237
  %239 = vrot.lane.b32.xlu0 %v210, 35
  %v240 = vpop.permute.xlu0 %239
  %241 = vrot.lane.b32.xlu0 %v211, 35
  %v242 = vpop.permute.xlu0 %241
  %243 = vrot.lane.b32.xlu0 %v212, 35
  %v244 = vpop.permute.xlu0 %243
  %v245 = vsel %vm213, %v226, %v228
  %v246 = vsel %vm213, %v228, %v230
  %v247 = vsel %vm213, %v230, %v232
  %v248 = vsel %vm213, %v232, %v234
  %v249 = vsel %vm213, %v234, %v236
  %v250 = vsel %vm213, %v236, %v238
  %v251 = vsel %vm213, %v238, %v240
  %v252 = vsel %vm213, %v240, %v242
  %v253 = vsel %vm213, %v242, %v244
  %vm264 = vcmask 1047832
  %265 = vst.msk [vmem:[#allocation2] sm:$0xff] %vm264, %v226
  %266 = vst [vmem:[#allocation2 + $0x8] sm:$0xff] %v245
  %267 = vst [vmem:[#allocation2 + $0x10] sm:$0xff] %v246
  %268 = vst [vmem:[#allocation2 + $0x18] sm:$0xff] %v247
  %269 = vst [vmem:[#allocation2 + $0x20] sm:$0xff] %v248
  %270 = vst [vmem:[#allocation2 + $0x28] sm:$0xff] %v249
  %271 = vst [vmem:[#allocation2 + $0x30] sm:$0xff] %v250
  %272 = vst [vmem:[#allocation2 + $0x38] sm:$0xff] %v251
  %273 = vst [vmem:[#allocation2 + $0x40] sm:$0xff] %v252
  %vm274 = vcmask 318464
  %275 = vst.msk [vmem:[#allocation2 + $0x48] sm:$0xff] %vm274, %v253
  %vm276 = vcmask 605496
  %277 = vst.msk [vmem:[#allocation2 + $0x48] sm:$0xff] %vm276, 0.0
  %v278 = vld [vmem:[#allocation2] sm:$0xff]
  %v279 = vld [vmem:[#allocation2 + $0x8] sm:$0xff]
  %v280 = vld [vmem:[#allocation2 + $0x10] sm:$0xff]
  %v281 = vld [vmem:[#allocation2 + $0x18] sm:$0xff]
  %v282 = vld [vmem:[#allocation2 + $0x20] sm:$0xff]
  %v283 = vld [vmem:[#allocation2 + $0x28] sm:$0xff]
  %v284 = vld [vmem:[#allocation2 + $0x30] sm:$0xff]
  %v285 = vld [vmem:[#allocation2 + $0x38] sm:$0xff]
  %v286 = vld [vmem:[#allocation2 + $0x40] sm:$0xff]
  %v287 = vld [vmem:[#allocation2 + $0x48] sm:$0xff]
  %298 = vrot.lane.b32.xlu0 %v278, 127
  %v299 = vpop.permute.xlu0 %298
  %300 = vrot.lane.b32.xlu0 %v279, 127
  %v301 = vpop.permute.xlu0 %300
  %302 = vrot.lane.b32.xlu0 %v280, 127
  %v303 = vpop.permute.xlu0 %302
  %304 = vrot.lane.b32.xlu0 %v281, 127
  %v305 = vpop.permute.xlu0 %304
  %306 = vrot.lane.b32.xlu0 %v282, 127
  %v307 = vpop.permute.xlu0 %306
  %308 = vrot.lane.b32.xlu0 %v283, 127
  %v309 = vpop.permute.xlu0 %308
  %310 = vrot.lane.b32.xlu0 %v284, 127
  %v311 = vpop.permute.xlu0 %310
  %312 = vrot.lane.b32.xlu0 %v285, 127
  %v313 = vpop.permute.xlu0 %312
  %314 = vrot.lane.b32.xlu0 %v286, 127
  %v315 = vpop.permute.xlu0 %314
  %316 = vrot.lane.b32.xlu0 %v287, 127
  %v317 = vpop.permute.xlu0 %316
  %vm318 = vcmask 1039360
  %v319 = vsel %vm318, %v299, %v301
  %v320 = vsel %vm318, %v301, %v303
  %v321 = vsel %vm318, %v303, %v305
  %v322 = vsel %vm318, %v305, %v307
  %v323 = vsel %vm318, %v307, %v309
  %v324 = vsel %vm318, %v309, %v311
  %v325 = vsel %vm318, %v311, %v313
  %v326 = vsel %vm318, %v313, %v315
  %v327 = vsel %vm318, %v315, %v317
  %338 = vrot.lane.b32.xlu0 %v278, 126
  %v339 = vpop.permute.xlu0 %338
  %340 = vrot.lane.b32.xlu0 %v279, 126
  %v341 = vpop.permute.xlu0 %340
  %342 = vrot.lane.b32.xlu0 %v280, 126
  %v343 = vpop.permute.xlu0 %342
  %344 = vrot.lane.b32.xlu0 %v281, 126
  %v345 = vpop.permute.xlu0 %344
  %346 = vrot.lane.b32.xlu0 %v282, 126
  %v347 = vpop.permute.xlu0 %346
  %348 = vrot.lane.b32.xlu0 %v283, 126
  %v349 = vpop.permute.xlu0 %348
  %350 = vrot.lane.b32.xlu0 %v284, 126
  %v351 = vpop.permute.xlu0 %350
  %352 = vrot.lane.b32.xlu0 %v285, 126
  %v353 = vpop.permute.xlu0 %352
  %354 = vrot.lane.b32.xlu0 %v286, 126
  %v355 = vpop.permute.xlu0 %354
  %356 = vrot.lane.b32.xlu0 %v287, 126
  %v357 = vpop.permute.xlu0 %356
  %vm358 = vcmask 1031168
  %v359 = vsel %vm358, %v339, %v341
  %v360 = vsel %vm358, %v341, %v343
  %v361 = vsel %vm358, %v343, %v345
  %v362 = vsel %vm358, %v345, %v347
  %v363 = vsel %vm358, %v347, %v349
  %v364 = vsel %vm358, %v349, %v351
  %v365 = vsel %vm358, %v351, %v353
  %v366 = vsel %vm358, %v353, %v355
  %v367 = vsel %vm358, %v355, %v357
  %378 = vrot.lane.b32.xlu0 %v278, 94
  %v379 = vpop.permute.xlu0 %378
  %380 = vrot.lane.b32.xlu0 %v279, 94
  %v381 = vpop.permute.xlu0 %380
  %382 = vrot.lane.b32.xlu0 %v280, 94
  %v383 = vpop.permute.xlu0 %382
  %384 = vrot.lane.b32.xlu0 %v281, 94
  %v385 = vpop.permute.xlu0 %384
  %386 = vrot.lane.b32.xlu0 %v282, 94
  %v387 = vpop.permute.xlu0 %386
  %388 = vrot.lane.b32.xlu0 %v283, 94
  %v389 = vpop.permute.xlu0 %388
  %390 = vrot.lane.b32.xlu0 %v284, 94
  %v391 = vpop.permute.xlu0 %390
  %392 = vrot.lane.b32.xlu0 %v285, 94
  %v393 = vpop.permute.xlu0 %392
  %394 = vrot.lane.b32.xlu0 %v286, 94
  %v395 = vpop.permute.xlu0 %394
  %396 = vrot.lane.b32.xlu0 %v287, 94
  %v397 = vpop.permute.xlu0 %396
  %vm398 = vcmask 769024
  %v399 = vsel %vm398, %v379, %v381
  %v400 = vsel %vm398, %v381, %v383
  %v401 = vsel %vm398, %v383, %v385
  %v402 = vsel %vm398, %v385, %v387
  %v403 = vsel %vm398, %v387, %v389
  %v404 = vsel %vm398, %v389, %v391
  %v405 = vsel %vm398, %v391, %v393
  %v406 = vsel %vm398, %v393, %v395
  %v407 = vsel %vm398, %v395, %v397
  %418 = vrot.lane.b32.xlu0 %v278, 93
  %v419 = vpop.permute.xlu0 %418
  %420 = vrot.lane.b32.xlu0 %v279, 93
  %v421 = vpop.permute.xlu0 %420
  %422 = vrot.lane.b32.xlu0 %v280, 93
  %v423 = vpop.permute.xlu0 %422
  %424 = vrot.lane.b32.xlu0 %v281, 93
  %v425 = vpop.permute.xlu0 %424
  %426 = vrot.lane.b32.xlu0 %v282, 93
  %v427 = vpop.permute.xlu0 %426
  %428 = vrot.lane.b32.xlu0 %v283, 93
  %v429 = vpop.permute.xlu0 %428
  %430 = vrot.lane.b32.xlu0 %v284, 93
  %v431 = vpop.permute.xlu0 %430
  %432 = vrot.lane.b32.xlu0 %v285, 93
  %v433 = vpop.permute.xlu0 %432
  %434 = vrot.lane.b32.xlu0 %v286, 93
  %v435 = vpop.permute.xlu0 %434
  %436 = vrot.lane.b32.xlu0 %v287, 93
  %v437 = vpop.permute.xlu0 %436
  %vm438 = vcmask 760832
  %v439 = vsel %vm438, %v419, %v421
  %v440 = vsel %vm438, %v421, %v423
  %v441 = vsel %vm438, %v423, %v425
  %v442 = vsel %vm438, %v425, %v427
  %v443 = vsel %vm438, %v427, %v429
  %v444 = vsel %vm438, %v429, %v431
  %v445 = vsel %vm438, %v431, %v433
  %v446 = vsel %vm438, %v433, %v435
  %v447 = vsel %vm438, %v435, %v437
  %458 = vrot.lane.b32.xlu0 %v278, 92
  %v459 = vpop.permute.xlu0 %458
  %460 = vrot.lane.b32.xlu0 %v279, 92
  %v461 = vpop.permute.xlu0 %460
  %462 = vrot.lane.b32.xlu0 %v280, 92
  %v463 = vpop.permute.xlu0 %462
  %464 = vrot.lane.b32.xlu0 %v281, 92
  %v465 = vpop.permute.xlu0 %464
  %466 = vrot.lane.b32.xlu0 %v282, 92
  %v467 = vpop.permute.xlu0 %466
  %468 = vrot.lane.b32.xlu0 %v283, 92
  %v469 = vpop.permute.xlu0 %468
  %470 = vrot.lane.b32.xlu0 %v284, 92
  %v471 = vpop.permute.xlu0 %470
  %472 = vrot.lane.b32.xlu0 %v285, 92
  %v473 = vpop.permute.xlu0 %472
  %474 = vrot.lane.b32.xlu0 %v286, 92
  %v475 = vpop.permute.xlu0 %474
  %476 = vrot.lane.b32.xlu0 %v287, 92
  %v477 = vpop.permute.xlu0 %476
  %vm478 = vcmask 752640
  %v479 = vsel %vm478, %v459, %v461
  %v480 = vsel %vm478, %v461, %v463
  %v481 = vsel %vm478, %v463, %v465
  %v482 = vsel %vm478, %v465, %v467
  %v483 = vsel %vm478, %v467, %v469
  %v484 = vsel %vm478, %v469, %v471
  %v485 = vsel %vm478, %v471, %v473
  %v486 = vsel %vm478, %v473, %v475
  %v487 = vsel %vm478, %v475, %v477
  %498 = vrot.lane.b32.xlu0 %v278, 60
  %v499 = vpop.permute.xlu0 %498
  %500 = vrot.lane.b32.xlu0 %v279, 60
  %v501 = vpop.permute.xlu0 %500
  %502 = vrot.lane.b32.xlu0 %v280, 60
  %v503 = vpop.permute.xlu0 %502
  %504 = vrot.lane.b32.xlu0 %v281, 60
  %v505 = vpop.permute.xlu0 %504
  %506 = vrot.lane.b32.xlu0 %v282, 60
  %v507 = vpop.permute.xlu0 %506
  %508 = vrot.lane.b32.xlu0 %v283, 60
  %v509 = vpop.permute.xlu0 %508
  %510 = vrot.lane.b32.xlu0 %v284, 60
  %v511 = vpop.permute.xlu0 %510
  %512 = vrot.lane.b32.xlu0 %v285, 60
  %v513 = vpop.permute.xlu0 %512
  %514 = vrot.lane.b32.xlu0 %v286, 60
  %v515 = vpop.permute.xlu0 %514
  %516 = vrot.lane.b32.xlu0 %v287, 60
  %v517 = vpop.permute.xlu0 %516
  %vm518 = vcmask 490496
  %v519 = vsel %vm518, %v499, %v501
  %v520 = vsel %vm518, %v501, %v503
  %v521 = vsel %vm518, %v503, %v505
  %v522 = vsel %vm518, %v505, %v507
  %v523 = vsel %vm518, %v507, %v509
  %v524 = vsel %vm518, %v509, %v511
  %v525 = vsel %vm518, %v511, %v513
  %v526 = vsel %vm518, %v513, %v515
  %v527 = vsel %vm518, %v515, %v517
  %538 = vrot.lane.b32.xlu0 %v278, 59
  %v539 = vpop.permute.xlu0 %538
  %540 = vrot.lane.b32.xlu0 %v279, 59
  %v541 = vpop.permute.xlu0 %540
  %542 = vrot.lane.b32.xlu0 %v280, 59
  %v543 = vpop.permute.xlu0 %542
  %544 = vrot.lane.b32.xlu0 %v281, 59
  %v545 = vpop.permute.xlu0 %544
  %546 = vrot.lane.b32.xlu0 %v282, 59
  %v547 = vpop.permute.xlu0 %546
  %548 = vrot.lane.b32.xlu0 %v283, 59
  %v549 = vpop.permute.xlu0 %548
  %550 = vrot.lane.b32.xlu0 %v284, 59
  %v551 = vpop.permute.xlu0 %550
  %552 = vrot.lane.b32.xlu0 %v285, 59
  %v553 = vpop.permute.xlu0 %552
  %554 = vrot.lane.b32.xlu0 %v286, 59
  %v555 = vpop.permute.xlu0 %554
  %556 = vrot.lane.b32.xlu0 %v287, 59
  %v557 = vpop.permute.xlu0 %556
  %vm558 = vcmask 482304
  %v559 = vsel %vm558, %v539, %v541
  %v560 = vsel %vm558, %v541, %v543
  %v561 = vsel %vm558, %v543, %v545
  %v562 = vsel %vm558, %v545, %v547
  %v563 = vsel %vm558, %v547, %v549
  %v564 = vsel %vm558, %v549, %v551
  %v565 = vsel %vm558, %v551, %v553
  %v566 = vsel %vm558, %v553, %v555
  %v567 = vsel %vm558, %v555, %v557
  %578 = vrot.lane.b32.xlu0 %v278, 58
  %v579 = vpop.permute.xlu0 %578
  %580 = vrot.lane.b32.xlu0 %v279, 58
  %v581 = vpop.permute.xlu0 %580
  %582 = vrot.lane.b32.xlu0 %v280, 58
  %v583 = vpop.permute.xlu0 %582
  %584 = vrot.lane.b32.xlu0 %v281, 58
  %v585 = vpop.permute.xlu0 %584
  %586 = vrot.lane.b32.xlu0 %v282, 58
  %v587 = vpop.permute.xlu0 %586
  %588 = vrot.lane.b32.xlu0 %v283, 58
  %v589 = vpop.permute.xlu0 %588
  %590 = vrot.lane.b32.xlu0 %v284, 58
  %v591 = vpop.permute.xlu0 %590
  %592 = vrot.lane.b32.xlu0 %v285, 58
  %v593 = vpop.permute.xlu0 %592
  %594 = vrot.lane.b32.xlu0 %v286, 58
  %v595 = vpop.permute.xlu0 %594
  %596 = vrot.lane.b32.xlu0 %v287, 58
  %v597 = vpop.permute.xlu0 %596
  %vm598 = vcmask 474112
  %v599 = vsel %vm598, %v579, %v581
  %v600 = vsel %vm598, %v581, %v583
  %v601 = vsel %vm598, %v583, %v585
  %v602 = vsel %vm598, %v585, %v587
  %v603 = vsel %vm598, %v587, %v589
  %v604 = vsel %vm598, %v589, %v591
  %v605 = vsel %vm598, %v591, %v593
  %v606 = vsel %vm598, %v593, %v595
  %v607 = vsel %vm598, %v595, %v597
  %v618 = vpack.c.bf16 %v319, %v278
  %v619 = vpack.c.bf16 %v320, %v279
  %v620 = vpack.c.bf16 %v321, %v280
  %v621 = vpack.c.bf16 %v322, %v281
  %v622 = vpack.c.bf16 %v323, %v282
  %v623 = vpack.c.bf16 %v324, %v283
  %v624 = vpack.c.bf16 %v325, %v284
  %v625 = vpack.c.bf16 %v326, %v285
  %v626 = vpack.c.bf16 %v327, %v286
  %v627 = vpack.c.bf16 %v317, %v287
  %v628 = vpack.c.bf16 %v399, %v359
  %v629 = vpack.c.bf16 %v400, %v360
  %v630 = vpack.c.bf16 %v401, %v361
  %v631 = vpack.c.bf16 %v402, %v362
  %v632 = vpack.c.bf16 %v403, %v363
  %v633 = vpack.c.bf16 %v404, %v364
  %v634 = vpack.c.bf16 %v405, %v365
  %v635 = vpack.c.bf16 %v406, %v366
  %v636 = vpack.c.bf16 %v407, %v367
  %v637 = vpack.c.bf16 %v397, %v357
  %v638 = vpack.c.bf16 %v479, %v439
  %v639 = vpack.c.bf16 %v480, %v440
  %v640 = vpack.c.bf16 %v481, %v441
  %v641 = vpack.c.bf16 %v482, %v442
  %v642 = vpack.c.bf16 %v483, %v443
  %v643 = vpack.c.bf16 %v484, %v444
  %v644 = vpack.c.bf16 %v485, %v445
  %v645 = vpack.c.bf16 %v486, %v446
  %v646 = vpack.c.bf16 %v487, %v447
  %v647 = vpack.c.bf16 %v477, %v437
  %v648 = vpack.c.bf16 %v559, %v519
  %v649 = vpack.c.bf16 %v560, %v520
  %v650 = vpack.c.bf16 %v561, %v521
  %v651 = vpack.c.bf16 %v562, %v522
  %v652 = vpack.c.bf16 %v563, %v523
  %v653 = vpack.c.bf16 %v564, %v524
  %v654 = vpack.c.bf16 %v565, %v525
  %v655 = vpack.c.bf16 %v566, %v526
  %v656 = vpack.c.bf16 %v567, %v527
  %v657 = vpack.c.bf16 %v557, %v517
  %v658 = vpack.c.bf16 %v599, %v599
  %v659 = vpack.c.bf16 %v600, %v600
  %v660 = vpack.c.bf16 %v601, %v601
  %v661 = vpack.c.bf16 %v602, %v602
  %v662 = vpack.c.bf16 %v603, %v603
  %v663 = vpack.c.bf16 %v604, %v604
  %v664 = vpack.c.bf16 %v605, %v605
  %v665 = vpack.c.bf16 %v606, %v606
  %v666 = vpack.c.bf16 %v607, %v607
  %v667 = vpack.c.bf16 %v597, %v597
  %v668 = vld [vmem:[%s3] sm:$0xf]
  %v669 = vld [vmem:[%s5] sm:$0xff]
  %671 = vset.pattern.permute.xlu0 0
  %672 = vperm.xlu0 %671, %v669
  %v673 = vpop.permute.xlu0 %672
  %vm675 = vcmask 588800
  %v677 = vsel %vm675, %v668, 0
  %vm679 = vcmask 1043456
  %v681 = vsel %vm679, %v658, 0
  %v684 = vsel %vm679, %v659, 0
  %v687 = vsel %vm679, %v660, 0
  %v690 = vsel %vm679, %v661, 0
  %v693 = vsel %vm679, %v662, 0
  %v696 = vsel %vm679, %v663, 0
  %v699 = vsel %vm679, %v664, 0
  %v702 = vsel %vm679, %v665, 0
  %v705 = vsel %vm679, %v666, 0
  %v708 = vsel %vm679, %v667, 0
  %710 = vmatprep.subr.bf16.mxu0 %v619
  %711 = vmatpush1.bf16.msra.mxu0 %v618
  %712 = vmatprep.subr.bf16.mxu0 %v629
  %713 = vmatpush1.bf16.msra.mxu0 %v628
  %714 = vmatprep.subr.bf16.mxu0 %v639
  %715 = vmatpush1.bf16.msra.mxu0 %v638
  %716 = vmatprep.subr.bf16.mxu0 %v649
  %717 = vmatpush1.bf16.msra.mxu0 %v648
  %718 = vmatprep.subr.bf16.mxu0 %v684
  %719 = vmatpush1.bf16.msra.mxu0 %v681
  %720 = vmatprep.subr.bf16.mxu0 0
  %721 = vmatpush1.bf16.msra.mxu0 0
  %722 = vmatprep.subr.bf16.mxu0 0
  %723 = vmatpush1.bf16.msra.mxu0 0
  %724 = vmatprep.subr.bf16.mxu0 0
  %725 = vmatpush1.bf16.msra.mxu0 0
  %726 = vmatprep.subr.bf16.mxu0 0
  %727 = vmatpush1.bf16.msra.mxu0 0
  %728 = vmatprep.subr.bf16.mxu0 0
  %729 = vmatpush1.bf16.msra.mxu0 0
  %730 = vmatprep.subr.bf16.mxu0 0
  %731 = vmatpush1.bf16.msra.mxu0 0
  %732 = vmatprep.subr.bf16.mxu0 0
  %733 = vmatpush1.bf16.msra.mxu0 0
  %734 = vmatprep.subr.bf16.mxu0 0
  %735 = vmatpush1.bf16.msra.mxu0 0
  %736 = vmatprep.subr.bf16.mxu0 0
  %737 = vmatpush1.bf16.msra.mxu0 0
  %738 = vmatprep.subr.bf16.mxu0 0
  %739 = vmatpush1.bf16.msra.mxu0 0
  %740 = vmatprep.subr.bf16.mxu0 0
  %741 = vmatpush1.bf16.msra.mxu0 0
  %742 = vmatprep.mubr.bf16.mxu0 0
  %743 = vmatmul.mubr.bf16.gmra.mrb[0].mxu0 %v677
  %v744 = vpop.f32.mrb[0].mxu0
  %v745 = vadd.f32 %v673, %v744
  %v746 = vpop.f32.mrb[0].mxu0
  %v747 = vadd.f32 %v673, %v746
  %v748 = vpop.f32.mrb[0].mxu0
  %v749 = vpop.f32.mrb[0].mxu0
  %750 = vdwg.mxu0
  %751 = vmatprep.subr.bf16.mxu0 %v621
  %752 = vmatpush1.bf16.msra.mxu0 %v620
  %753 = vmatprep.subr.bf16.mxu0 %v631
  %754 = vmatpush1.bf16.msra.mxu0 %v630
  %755 = vmatprep.subr.bf16.mxu0 %v641
  %756 = vmatpush1.bf16.msra.mxu0 %v640
  %757 = vmatprep.subr.bf16.mxu0 %v651
  %758 = vmatpush1.bf16.msra.mxu0 %v650
  %759 = vmatprep.subr.bf16.mxu0 %v690
  %760 = vmatpush1.bf16.msra.mxu0 %v687
  %761 = vmatprep.subr.bf16.mxu0 0
  %762 = vmatpush1.bf16.msra.mxu0 0
  %763 = vmatprep.subr.bf16.mxu0 0
  %764 = vmatpush1.bf16.msra.mxu0 0
  %765 = vmatprep.subr.bf16.mxu0 0
  %766 = vmatpush1.bf16.msra.mxu0 0
  %767 = vmatprep.subr.bf16.mxu0 0
  %768 = vmatpush1.bf16.msra.mxu0 0
  %769 = vmatprep.subr.bf16.mxu0 0
  %770 = vmatpush1.bf16.msra.mxu0 0
  %771 = vmatprep.subr.bf16.mxu0 0
  %772 = vmatpush1.bf16.msra.mxu0 0
  %773 = vmatprep.subr.bf16.mxu0 0
  %774 = vmatpush1.bf16.msra.mxu0 0
  %775 = vmatprep.subr.bf16.mxu0 0
  %776 = vmatpush1.bf16.msra.mxu0 0
  %777 = vmatprep.subr.bf16.mxu0 0
  %778 = vmatpush1.bf16.msra.mxu0 0
  %779 = vmatprep.subr.bf16.mxu0 0
  %780 = vmatpush1.bf16.msra.mxu0 0
  %781 = vmatprep.subr.bf16.mxu0 0
  %782 = vmatpush1.bf16.msra.mxu0 0
  %783 = vmatprep.mubr.bf16.mxu0 0
  %784 = vmatmul.mubr.bf16.gmra.mrb[0].mxu0 %v677
  %v785 = vpop.f32.mrb[0].mxu0
  %v786 = vadd.f32 %v673, %v785
  %v787 = vpop.f32.mrb[0].mxu0
  %v788 = vadd.f32 %v673, %v787
  %v789 = vpop.f32.mrb[0].mxu0
  %v790 = vpop.f32.mrb[0].mxu0
  %791 = vdwg.mxu0
  %792 = vmatprep.subr.bf16.mxu0 %v623
  %793 = vmatpush1.bf16.msra.mxu0 %v622
  %794 = vmatprep.subr.bf16.mxu0 %v633
  %795 = vmatpush1.bf16.msra.mxu0 %v632
  %796 = vmatprep.subr.bf16.mxu0 %v643
  %797 = vmatpush1.bf16.msra.mxu0 %v642
  %798 = vmatprep.subr.bf16.mxu0 %v653
  %799 = vmatpush1.bf16.msra.mxu0 %v652
  %800 = vmatprep.subr.bf16.mxu0 %v696
  %801 = vmatpush1.bf16.msra.mxu0 %v693
  %802 = vmatprep.subr.bf16.mxu0 0
  %803 = vmatpush1.bf16.msra.mxu0 0
  %804 = vmatprep.subr.bf16.mxu0 0
  %805 = vmatpush1.bf16.msra.mxu0 0
  %806 = vmatprep.subr.bf16.mxu0 0
  %807 = vmatpush1.bf16.msra.mxu0 0
  %808 = vmatprep.subr.bf16.mxu0 0
  %809 = vmatpush1.bf16.msra.mxu0 0
  %810 = vmatprep.subr.bf16.mxu0 0
  %811 = vmatpush1.bf16.msra.mxu0 0
  %812 = vmatprep.subr.bf16.mxu0 0
  %813 = vmatpush1.bf16.msra.mxu0 0
  %814 = vmatprep.subr.bf16.mxu0 0
  %815 = vmatpush1.bf16.msra.mxu0 0
  %816 = vmatprep.subr.bf16.mxu0 0
  %817 = vmatpush1.bf16.msra.mxu0 0
  %818 = vmatprep.subr.bf16.mxu0 0
  %819 = vmatpush1.bf16.msra.mxu0 0
  %820 = vmatprep.subr.bf16.mxu0 0
  %821 = vmatpush1.bf16.msra.mxu0 0
  %822 = vmatprep.subr.bf16.mxu0 0
  %823 = vmatpush1.bf16.msra.mxu0 0
  %824 = vmatprep.mubr.bf16.mxu0 0
  %825 = vmatmul.mubr.bf16.gmra.mrb[0].mxu0 %v677
  %v826 = vpop.f32.mrb[0].mxu0
  %v827 = vadd.f32 %v673, %v826
  %v828 = vpop.f32.mrb[0].mxu0
  %v829 = vadd.f32 %v673, %v828
  %v830 = vpop.f32.mrb[0].mxu0
  %v831 = vpop.f32.mrb[0].mxu0
  %832 = vdwg.mxu0
  %833 = vmatprep.subr.bf16.mxu0 %v625
  %834 = vmatpush1.bf16.msra.mxu0 %v624
  %835 = vmatprep.subr.bf16.mxu0 %v635
  %836 = vmatpush1.bf16.msra.mxu0 %v634
  %837 = vmatprep.subr.bf16.mxu0 %v645
  %838 = vmatpush1.bf16.msra.mxu0 %v644
  %839 = vmatprep.subr.bf16.mxu0 %v655
  %840 = vmatpush1.bf16.msra.mxu0 %v654
  %841 = vmatprep.subr.bf16.mxu0 %v702
  %842 = vmatpush1.bf16.msra.mxu0 %v699
  %843 = vmatprep.subr.bf16.mxu0 0
  %844 = vmatpush1.bf16.msra.mxu0 0
  %845 = vmatprep.subr.bf16.mxu0 0
  %846 = vmatpush1.bf16.msra.mxu0 0
  %847 = vmatprep.subr.bf16.mxu0 0
  %848 = vmatpush1.bf16.msra.mxu0 0
  %849 = vmatprep.subr.bf16.mxu0 0
  %850 = vmatpush1.bf16.msra.mxu0 0
  %851 = vmatprep.subr.bf16.mxu0 0
  %852 = vmatpush1.bf16.msra.mxu0 0
  %853 = vmatprep.subr.bf16.mxu0 0
  %854 = vmatpush1.bf16.msra.mxu0 0
  %855 = vmatprep.subr.bf16.mxu0 0
  %856 = vmatpush1.bf16.msra.mxu0 0
  %857 = vmatprep.subr.bf16.mxu0 0
  %858 = vmatpush1.bf16.msra.mxu0 0
  %859 = vmatprep.subr.bf16.mxu0 0
  %860 = vmatpush1.bf16.msra.mxu0 0
  %861 = vmatprep.subr.bf16.mxu0 0
  %862 = vmatpush1.bf16.msra.mxu0 0
  %863 = vmatprep.subr.bf16.mxu0 0
  %864 = vmatpush1.bf16.msra.mxu0 0
  %865 = vmatprep.mubr.bf16.mxu0 0
  %866 = vmatmul.mubr.bf16.gmra.mrb[0].mxu0 %v677
  %v867 = vpop.f32.mrb[0].mxu0
  %v868 = vadd.f32 %v673, %v867
  %v869 = vpop.f32.mrb[0].mxu0
  %v870 = vadd.f32 %v673, %v869
  %v871 = vpop.f32.mrb[0].mxu0
  %v872 = vpop.f32.mrb[0].mxu0
  %873 = vdwg.mxu0
  %874 = vmatprep.subr.bf16.mxu0 %v627
  %875 = vmatpush1.bf16.msra.mxu0 %v626
  %876 = vmatprep.subr.bf16.mxu0 %v637
  %877 = vmatpush1.bf16.msra.mxu0 %v636
  %878 = vmatprep.subr.bf16.mxu0 %v647
  %879 = vmatpush1.bf16.msra.mxu0 %v646
  %880 = vmatprep.subr.bf16.mxu0 %v657
  %881 = vmatpush1.bf16.msra.mxu0 %v656
  %882 = vmatprep.subr.bf16.mxu0 %v708
  %883 = vmatpush1.bf16.msra.mxu0 %v705
  %884 = vmatprep.subr.bf16.mxu0 0
  %885 = vmatpush1.bf16.msra.mxu0 0
  %886 = vmatprep.subr.bf16.mxu0 0
  %887 = vmatpush1.bf16.msra.mxu0 0
  %888 = vmatprep.subr.bf16.mxu0 0
  %889 = vmatpush1.bf16.msra.mxu0 0
  %890 = vmatprep.subr.bf16.mxu0 0
  %891 = vmatpush1.bf16.msra.mxu0 0
  %892 = vmatprep.subr.bf16.mxu0 0
  %893 = vmatpush1.bf16.msra.mxu0 0
  %894 = vmatprep.subr.bf16.mxu0 0
  %895 = vmatpush1.bf16.msra.mxu0 0
  %896 = vmatprep.subr.bf16.mxu0 0
  %897 = vmatpush1.bf16.msra.mxu0 0
  %898 = vmatprep.subr.bf16.mxu0 0
  %899 = vmatpush1.bf16.msra.mxu0 0
  %900 = vmatprep.subr.bf16.mxu0 0
  %901 = vmatpush1.bf16.msra.mxu0 0
  %902 = vmatprep.subr.bf16.mxu0 0
  %903 = vmatpush1.bf16.msra.mxu0 0
  %904 = vmatprep.subr.bf16.mxu0 0
  %905 = vmatpush1.bf16.msra.mxu0 0
  %906 = vmatprep.mubr.bf16.mxu0 0
  %907 = vmatmul.mubr.bf16.gmra.mrb[0].mxu0 %v677
  %v908 = vpop.f32.mrb[0].mxu0
  %v909 = vadd.f32 %v673, %v908
  %v910 = vpop.f32.mrb[0].mxu0
  %v911 = vadd.f32 %v673, %v910
  %v912 = vpop.f32.mrb[0].mxu0
  %v913 = vpop.f32.mrb[0].mxu0
  %914 = vdwg.mxu0
  %v915 = vmax.f32 %v745, 0.0
  %v916 = vmax.f32 %v747, 0.0
  %v917 = vmax.f32 %v786, 0.0
  %v918 = vmax.f32 %v788, 0.0
  %v919 = vmax.f32 %v827, 0.0
  %v920 = vmax.f32 %v829, 0.0
  %v921 = vmax.f32 %v868, 0.0
  %v922 = vmax.f32 %v870, 0.0
  %v923 = vmax.f32 %v909, 0.0
  %v924 = vmax.f32 %v911, 0.0
  %v925 = vld [vmem:[%s67] sm:$0xff]
  %v926 = vld [vmem:[%s67 + $0x8] sm:$0x3]
  %v929 = vlaneseq
  %v930 = vshrl.u32 %v929, 7
  %v931 = vsub.s32 0, %v930
  %v932 = vrot.slane %v925, %v931
  %v933 = vlaneseq
  %v934 = vshrl.u32 %v933, 7
  %v935 = vsub.s32 1, %v934
  %v936 = vrot.slane %v925, %v935
  %v937 = vlaneseq
  %v938 = vshrl.u32 %v937, 7
  %v939 = vsub.s32 2, %v938
  %v940 = vrot.slane %v925, %v939
  %v941 = vlaneseq
  %v942 = vshrl.u32 %v941, 7
  %v943 = vsub.s32 3, %v942
  %v944 = vrot.slane %v925, %v943
  %v945 = vlaneseq
  %v946 = vshrl.u32 %v945, 7
  %v947 = vsub.s32 4, %v946
  %v948 = vrot.slane %v925, %v947
  %v949 = vlaneseq
  %v950 = vshrl.u32 %v949, 7
  %v951 = vsub.s32 5, %v950
  %v952 = vrot.slane %v925, %v951
  %v953 = vlaneseq
  %v954 = vshrl.u32 %v953, 7
  %v955 = vsub.s32 6, %v954
  %v956 = vrot.slane %v925, %v955
  %v957 = vlaneseq
  %v958 = vshrl.u32 %v957, 7
  %v959 = vsub.s32 7, %v958
  %v960 = vrot.slane %v925, %v959
  %v961 = vlaneseq
  %v962 = vshrl.u32 %v961, 7
  %v963 = vsub.s32 0, %v962
  %v964 = vrot.slane %v926, %v963
  %v965 = vlaneseq
  %v966 = vshrl.u32 %v965, 7
  %v967 = vsub.s32 1, %v966
  %v968 = vrot.slane %v926, %v967
  %v979 = vmul.f32 %v915, %v932
  %v980 = vmul.f32 %v916, %v936
  %v981 = vmul.f32 %v917, %v940
  %v982 = vmul.f32 %v918, %v944
  %v983 = vmul.f32 %v919, %v948
  %v984 = vmul.f32 %v920, %v952
  %v985 = vmul.f32 %v921, %v956
  %v986 = vmul.f32 %v922, %v960
  %v987 = vmul.f32 %v923, %v964
  %v988 = vmul.f32 %v924, %v968
  %989 = vst.msk [vmem:[#allocation2] sm:$0xff] %vm213, 0.0
  %1000 = vrot.lane.b32.xlu0 %v979, 35
  %v1001 = vpop.permute.xlu0 %1000
  %1002 = vrot.lane.b32.xlu0 %v980, 35
  %v1003 = vpop.permute.xlu0 %1002
  %1004 = vrot.lane.b32.xlu0 %v981, 35
  %v1005 = vpop.permute.xlu0 %1004
  %1006 = vrot.lane.b32.xlu0 %v982, 35
  %v1007 = vpop.permute.xlu0 %1006
  %1008 = vrot.lane.b32.xlu0 %v983, 35
  %v1009 = vpop.permute.xlu0 %1008
  %1010 = vrot.lane.b32.xlu0 %v984, 35
  %v1011 = vpop.permute.xlu0 %1010
  %1012 = vrot.lane.b32.xlu0 %v985, 35
  %v1013 = vpop.permute.xlu0 %1012
  %1014 = vrot.lane.b32.xlu0 %v986, 35
  %v1015 = vpop.permute.xlu0 %1014
  %1016 = vrot.lane.b32.xlu0 %v987, 35
  %v1017 = vpop.permute.xlu0 %1016
  %1018 = vrot.lane.b32.xlu0 %v988, 35
  %v1019 = vpop.permute.xlu0 %1018
  %v1020 = vsel %vm213, %v1001, %v1003
  %v1021 = vsel %vm213, %v1003, %v1005
  %v1022 = vsel %vm213, %v1005, %v1007
  %v1023 = vsel %vm213, %v1007, %v1009
  %v1024 = vsel %vm213, %v1009, %v1011
  %v1025 = vsel %vm213, %v1011, %v1013
  %v1026 = vsel %vm213, %v1013, %v1015
  %v1027 = vsel %vm213, %v1015, %v1017
  %v1028 = vsel %vm213, %v1017, %v1019
  %1039 = vst.msk [vmem:[#allocation2] sm:$0xff] %vm264, %v1001
  %1040 = vst [vmem:[#allocation2 + $0x8] sm:$0xff] %v1020
  %1041 = vst [vmem:[#allocation2 + $0x10] sm:$0xff] %v1021
  %1042 = vst [vmem:[#allocation2 + $0x18] sm:$0xff] %v1022
  %1043 = vst [vmem:[#allocation2 + $0x20] sm:$0xff] %v1023
  %1044 = vst [vmem:[#allocation2 + $0x28] sm:$0xff] %v1024
  %1045 = vst [vmem:[#allocation2 + $0x30] sm:$0xff] %v1025
  %1046 = vst [vmem:[#allocation2 + $0x38] sm:$0xff] %v1026
  %1047 = vst [vmem:[#allocation2 + $0x40] sm:$0xff] %v1027
  %1048 = vst.msk [vmem:[#allocation2 + $0x48] sm:$0xff] %vm274, %v1028
  %1049 = vst.msk [vmem:[#allocation2 + $0x48] sm:$0xff] %vm276, 0.0
  %v1050 = vld [vmem:[#allocation2] sm:$0xff]
  %v1051 = vld [vmem:[#allocation2 + $0x8] sm:$0xff]
  %v1052 = vld [vmem:[#allocation2 + $0x10] sm:$0xff]
  %v1053 = vld [vmem:[#allocation2 + $0x18] sm:$0xff]
  %v1054 = vld [vmem:[#allocation2 + $0x20] sm:$0xff]
  %v1055 = vld [vmem:[#allocation2 + $0x28] sm:$0xff]
  %v1056 = vld [vmem:[#allocation2 + $0x30] sm:$0xff]
  %v1057 = vld [vmem:[#allocation2 + $0x38] sm:$0xff]
  %v1058 = vld [vmem:[#allocation2 + $0x40] sm:$0xff]
  %v1059 = vld [vmem:[#allocation2 + $0x48] sm:$0xff]
  %1070 = vrot.lane.b32.xlu0 %v1050, 127
  %v1071 = vpop.permute.xlu0 %1070
  %1072 = vrot.lane.b32.xlu0 %v1051, 127
  %v1073 = vpop.permute.xlu0 %1072
  %1074 = vrot.lane.b32.xlu0 %v1052, 127
  %v1075 = vpop.permute.xlu0 %1074
  %1076 = vrot.lane.b32.xlu0 %v1053, 127
  %v1077 = vpop.permute.xlu0 %1076
  %1078 = vrot.lane.b32.xlu0 %v1054, 127
  %v1079 = vpop.permute.xlu0 %1078
  %1080 = vrot.lane.b32.xlu0 %v1055, 127
  %v1081 = vpop.permute.xlu0 %1080
  %1082 = vrot.lane.b32.xlu0 %v1056, 127
  %v1083 = vpop.permute.xlu0 %1082
  %1084 = vrot.lane.b32.xlu0 %v1057, 127
  %v1085 = vpop.permute.xlu0 %1084
  %1086 = vrot.lane.b32.xlu0 %v1058, 127
  %v1087 = vpop.permute.xlu0 %1086
  %1088 = vrot.lane.b32.xlu0 %v1059, 127
  %v1089 = vpop.permute.xlu0 %1088
  %v1090 = vsel %vm318, %v1071, %v1073
  %v1091 = vsel %vm318, %v1073, %v1075
  %v1092 = vsel %vm318, %v1075, %v1077
  %v1093 = vsel %vm318, %v1077, %v1079
  %v1094 = vsel %vm318, %v1079, %v1081
  %v1095 = vsel %vm318, %v1081, %v1083
  %v1096 = vsel %vm318, %v1083, %v1085
  %v1097 = vsel %vm318, %v1085, %v1087
  %v1098 = vsel %vm318, %v1087, %v1089
  %1109 = vrot.lane.b32.xlu0 %v1050, 126
  %v1110 = vpop.permute.xlu0 %1109
  %1111 = vrot.lane.b32.xlu0 %v1051, 126
  %v1112 = vpop.permute.xlu0 %1111
  %1113 = vrot.lane.b32.xlu0 %v1052, 126
  %v1114 = vpop.permute.xlu0 %1113
  %1115 = vrot.lane.b32.xlu0 %v1053, 126
  %v1116 = vpop.permute.xlu0 %1115
  %1117 = vrot.lane.b32.xlu0 %v1054, 126
  %v1118 = vpop.permute.xlu0 %1117
  %1119 = vrot.lane.b32.xlu0 %v1055, 126
  %v1120 = vpop.permute.xlu0 %1119
  %1121 = vrot.lane.b32.xlu0 %v1056, 126
  %v1122 = vpop.permute.xlu0 %1121
  %1123 = vrot.lane.b32.xlu0 %v1057, 126
  %v1124 = vpop.permute.xlu0 %1123
  %1125 = vrot.lane.b32.xlu0 %v1058, 126
  %v1126 = vpop.permute.xlu0 %1125
  %1127 = vrot.lane.b32.xlu0 %v1059, 126
  %v1128 = vpop.permute.xlu0 %1127
  %v1129 = vsel %vm358, %v1110, %v1112
  %v1130 = vsel %vm358, %v1112, %v1114
  %v1131 = vsel %vm358, %v1114, %v1116
  %v1132 = vsel %vm358, %v1116, %v1118
  %v1133 = vsel %vm358, %v1118, %v1120
  %v1134 = vsel %vm358, %v1120, %v1122
  %v1135 = vsel %vm358, %v1122, %v1124
  %v1136 = vsel %vm358, %v1124, %v1126
  %v1137 = vsel %vm358, %v1126, %v1128
  %1148 = vrot.lane.b32.xlu0 %v1050, 94
  %v1149 = vpop.permute.xlu0 %1148
  %1150 = vrot.lane.b32.xlu0 %v1051, 94
  %v1151 = vpop.permute.xlu0 %1150
  %1152 = vrot.lane.b32.xlu0 %v1052, 94
  %v1153 = vpop.permute.xlu0 %1152
  %1154 = vrot.lane.b32.xlu0 %v1053, 94
  %v1155 = vpop.permute.xlu0 %1154
  %1156 = vrot.lane.b32.xlu0 %v1054, 94
  %v1157 = vpop.permute.xlu0 %1156
  %1158 = vrot.lane.b32.xlu0 %v1055, 94
  %v1159 = vpop.permute.xlu0 %1158
  %1160 = vrot.lane.b32.xlu0 %v1056, 94
  %v1161 = vpop.permute.xlu0 %1160
  %1162 = vrot.lane.b32.xlu0 %v1057, 94
  %v1163 = vpop.permute.xlu0 %1162
  %1164 = vrot.lane.b32.xlu0 %v1058, 94
  %v1165 = vpop.permute.xlu0 %1164
  %1166 = vrot.lane.b32.xlu0 %v1059, 94
  %v1167 = vpop.permute.xlu0 %1166
  %v1168 = vsel %vm398, %v1149, %v1151
  %v1169 = vsel %vm398, %v1151, %v1153
  %v1170 = vsel %vm398, %v1153, %v1155
  %v1171 = vsel %vm398, %v1155, %v1157
  %v1172 = vsel %vm398, %v1157, %v1159
  %v1173 = vsel %vm398, %v1159, %v1161
  %v1174 = vsel %vm398, %v1161, %v1163
  %v1175 = vsel %vm398, %v1163, %v1165
  %v1176 = vsel %vm398, %v1165, %v1167
  %1187 = vrot.lane.b32.xlu0 %v1050, 93
  %v1188 = vpop.permute.xlu0 %1187
  %1189 = vrot.lane.b32.xlu0 %v1051, 93
  %v1190 = vpop.permute.xlu0 %1189
  %1191 = vrot.lane.b32.xlu0 %v1052, 93
  %v1192 = vpop.permute.xlu0 %1191
  %1193 = vrot.lane.b32.xlu0 %v1053, 93
  %v1194 = vpop.permute.xlu0 %1193
  %1195 = vrot.lane.b32.xlu0 %v1054, 93
  %v1196 = vpop.permute.xlu0 %1195
  %1197 = vrot.lane.b32.xlu0 %v1055, 93
  %v1198 = vpop.permute.xlu0 %1197
  %1199 = vrot.lane.b32.xlu0 %v1056, 93
  %v1200 = vpop.permute.xlu0 %1199
  %1201 = vrot.lane.b32.xlu0 %v1057, 93
  %v1202 = vpop.permute.xlu0 %1201
  %1203 = vrot.lane.b32.xlu0 %v1058, 93
  %v1204 = vpop.permute.xlu0 %1203
  %1205 = vrot.lane.b32.xlu0 %v1059, 93
  %v1206 = vpop.permute.xlu0 %1205
  %v1207 = vsel %vm438, %v1188, %v1190
  %v1208 = vsel %vm438, %v1190, %v1192
  %v1209 = vsel %vm438, %v1192, %v1194
  %v1210 = vsel %vm438, %v1194, %v1196
  %v1211 = vsel %vm438, %v1196, %v1198
  %v1212 = vsel %vm438, %v1198, %v1200
  %v1213 = vsel %vm438, %v1200, %v1202
  %v1214 = vsel %vm438, %v1202, %v1204
  %v1215 = vsel %vm438, %v1204, %v1206
  %1226 = vrot.lane.b32.xlu0 %v1050, 92
  %v1227 = vpop.permute.xlu0 %1226
  %1228 = vrot.lane.b32.xlu0 %v1051, 92
  %v1229 = vpop.permute.xlu0 %1228
  %1230 = vrot.lane.b32.xlu0 %v1052, 92
  %v1231 = vpop.permute.xlu0 %1230
  %1232 = vrot.lane.b32.xlu0 %v1053, 92
  %v1233 = vpop.permute.xlu0 %1232
  %1234 = vrot.lane.b32.xlu0 %v1054, 92
  %v1235 = vpop.permute.xlu0 %1234
  %1236 = vrot.lane.b32.xlu0 %v1055, 92
  %v1237 = vpop.permute.xlu0 %1236
  %1238 = vrot.lane.b32.xlu0 %v1056, 92
  %v1239 = vpop.permute.xlu0 %1238
  %1240 = vrot.lane.b32.xlu0 %v1057, 92
  %v1241 = vpop.permute.xlu0 %1240
  %1242 = vrot.lane.b32.xlu0 %v1058, 92
  %v1243 = vpop.permute.xlu0 %1242
  %1244 = vrot.lane.b32.xlu0 %v1059, 92
  %v1245 = vpop.permute.xlu0 %1244
  %v1246 = vsel %vm478, %v1227, %v1229
  %v1247 = vsel %vm478, %v1229, %v1231
  %v1248 = vsel %vm478, %v1231, %v1233
  %v1249 = vsel %vm478, %v1233, %v1235
  %v1250 = vsel %vm478, %v1235, %v1237
  %v1251 = vsel %vm478, %v1237, %v1239
  %v1252 = vsel %vm478, %v1239, %v1241
  %v1253 = vsel %vm478, %v1241, %v1243
  %v1254 = vsel %vm478, %v1243, %v1245
  %1265 = vrot.lane.b32.xlu0 %v1050, 60
  %v1266 = vpop.permute.xlu0 %1265
  %1267 = vrot.lane.b32.xlu0 %v1051, 60
  %v1268 = vpop.permute.xlu0 %1267
  %1269 = vrot.lane.b32.xlu0 %v1052, 60
  %v1270 = vpop.permute.xlu0 %1269
  %1271 = vrot.lane.b32.xlu0 %v1053, 60
  %v1272 = vpop.permute.xlu0 %1271
  %1273 = vrot.lane.b32.xlu0 %v1054, 60
  %v1274 = vpop.permute.xlu0 %1273
  %1275 = vrot.lane.b32.xlu0 %v1055, 60
  %v1276 = vpop.permute.xlu0 %1275
  %1277 = vrot.lane.b32.xlu0 %v1056, 60
  %v1278 = vpop.permute.xlu0 %1277
  %1279 = vrot.lane.b32.xlu0 %v1057, 60
  %v1280 = vpop.permute.xlu0 %1279
  %1281 = vrot.lane.b32.xlu0 %v1058, 60
  %v1282 = vpop.permute.xlu0 %1281
  %1283 = vrot.lane.b32.xlu0 %v1059, 60
  %v1284 = vpop.permute.xlu0 %1283
  %v1285 = vsel %vm518, %v1266, %v1268
  %v1286 = vsel %vm518, %v1268, %v1270
  %v1287 = vsel %vm518, %v1270, %v1272
  %v1288 = vsel %vm518, %v1272, %v1274
  %v1289 = vsel %vm518, %v1274, %v1276
  %v1290 = vsel %vm518, %v1276, %v1278
  %v1291 = vsel %vm518, %v1278, %v1280
  %v1292 = vsel %vm518, %v1280, %v1282
  %v1293 = vsel %vm518, %v1282, %v1284
  %1304 = vrot.lane.b32.xlu0 %v1050, 59
  %v1305 = vpop.permute.xlu0 %1304
  %1306 = vrot.lane.b32.xlu0 %v1051, 59
  %v1307 = vpop.permute.xlu0 %1306
  %1308 = vrot.lane.b32.xlu0 %v1052, 59
  %v1309 = vpop.permute.xlu0 %1308
  %1310 = vrot.lane.b32.xlu0 %v1053, 59
  %v1311 = vpop.permute.xlu0 %1310
  %1312 = vrot.lane.b32.xlu0 %v1054, 59
  %v1313 = vpop.permute.xlu0 %1312
  %1314 = vrot.lane.b32.xlu0 %v1055, 59
  %v1315 = vpop.permute.xlu0 %1314
  %1316 = vrot.lane.b32.xlu0 %v1056, 59
  %v1317 = vpop.permute.xlu0 %1316
  %1318 = vrot.lane.b32.xlu0 %v1057, 59
  %v1319 = vpop.permute.xlu0 %1318
  %1320 = vrot.lane.b32.xlu0 %v1058, 59
  %v1321 = vpop.permute.xlu0 %1320
  %1322 = vrot.lane.b32.xlu0 %v1059, 59
  %v1323 = vpop.permute.xlu0 %1322
  %v1324 = vsel %vm558, %v1305, %v1307
  %v1325 = vsel %vm558, %v1307, %v1309
  %v1326 = vsel %vm558, %v1309, %v1311
  %v1327 = vsel %vm558, %v1311, %v1313
  %v1328 = vsel %vm558, %v1313, %v1315
  %v1329 = vsel %vm558, %v1315, %v1317
  %v1330 = vsel %vm558, %v1317, %v1319
  %v1331 = vsel %vm558, %v1319, %v1321
  %v1332 = vsel %vm558, %v1321, %v1323
  %1343 = vrot.lane.b32.xlu0 %v1050, 58
  %v1344 = vpop.permute.xlu0 %1343
  %1345 = vrot.lane.b32.xlu0 %v1051, 58
  %v1346 = vpop.permute.xlu0 %1345
  %1347 = vrot.lane.b32.xlu0 %v1052, 58
  %v1348 = vpop.permute.xlu0 %1347
  %1349 = vrot.lane.b32.xlu0 %v1053, 58
  %v1350 = vpop.permute.xlu0 %1349
  %1351 = vrot.lane.b32.xlu0 %v1054, 58
  %v1352 = vpop.permute.xlu0 %1351
  %1353 = vrot.lane.b32.xlu0 %v1055, 58
  %v1354 = vpop.permute.xlu0 %1353
  %1355 = vrot.lane.b32.xlu0 %v1056, 58
  %v1356 = vpop.permute.xlu0 %1355
  %1357 = vrot.lane.b32.xlu0 %v1057, 58
  %v1358 = vpop.permute.xlu0 %1357
  %1359 = vrot.lane.b32.xlu0 %v1058, 58
  %v1360 = vpop.permute.xlu0 %1359
  %1361 = vrot.lane.b32.xlu0 %v1059, 58
  %v1362 = vpop.permute.xlu0 %1361
  %v1363 = vsel %vm598, %v1344, %v1346
  %v1364 = vsel %vm598, %v1346, %v1348
  %v1365 = vsel %vm598, %v1348, %v1350
  %v1366 = vsel %vm598, %v1350, %v1352
  %v1367 = vsel %vm598, %v1352, %v1354
  %v1368 = vsel %vm598, %v1354, %v1356
  %v1369 = vsel %vm598, %v1356, %v1358
  %v1370 = vsel %vm598, %v1358, %v1360
  %v1371 = vsel %vm598, %v1360, %v1362
  %v1382 = vpack.c.bf16 %v1090, %v1050
  %v1383 = vpack.c.bf16 %v1091, %v1051
  %v1384 = vpack.c.bf16 %v1092, %v1052
  %v1385 = vpack.c.bf16 %v1093, %v1053
  %v1386 = vpack.c.bf16 %v1094, %v1054
  %v1387 = vpack.c.bf16 %v1095, %v1055
  %v1388 = vpack.c.bf16 %v1096, %v1056
  %v1389 = vpack.c.bf16 %v1097, %v1057
  %v1390 = vpack.c.bf16 %v1098, %v1058
  %v1391 = vpack.c.bf16 %v1089, %v1059
  %v1392 = vpack.c.bf16 %v1168, %v1129
  %v1393 = vpack.c.bf16 %v1169, %v1130
  %v1394 = vpack.c.bf16 %v1170, %v1131
  %v1395 = vpack.c.bf16 %v1171, %v1132
  %v1396 = vpack.c.bf16 %v1172, %v1133
  %v1397 = vpack.c.bf16 %v1173, %v1134
  %v1398 = vpack.c.bf16 %v1174, %v1135
  %v1399 = vpack.c.bf16 %v1175, %v1136
  %v1400 = vpack.c.bf16 %v1176, %v1137
  %v1401 = vpack.c.bf16 %v1167, %v1128
  %v1402 = vpack.c.bf16 %v1246, %v1207
  %v1403 = vpack.c.bf16 %v1247, %v1208
  %v1404 = vpack.c.bf16 %v1248, %v1209
  %v1405 = vpack.c.bf16 %v1249, %v1210
  %v1406 = vpack.c.bf16 %v1250, %v1211
  %v1407 = vpack.c.bf16 %v1251, %v1212
  %v1408 = vpack.c.bf16 %v1252, %v1213
  %v1409 = vpack.c.bf16 %v1253, %v1214
  %v1410 = vpack.c.bf16 %v1254, %v1215
  %v1411 = vpack.c.bf16 %v1245, %v1206
  %v1412 = vpack.c.bf16 %v1324, %v1285
  %v1413 = vpack.c.bf16 %v1325, %v1286
  %v1414 = vpack.c.bf16 %v1326, %v1287
  %v1415 = vpack.c.bf16 %v1327, %v1288
  %v1416 = vpack.c.bf16 %v1328, %v1289
  %v1417 = vpack.c.bf16 %v1329, %v1290
  %v1418 = vpack.c.bf16 %v1330, %v1291
  %v1419 = vpack.c.bf16 %v1331, %v1292
  %v1420 = vpack.c.bf16 %v1332, %v1293
  %v1421 = vpack.c.bf16 %v1323, %v1284
  %v1422 = vpack.c.bf16 %v1363, %v1363
  %v1423 = vpack.c.bf16 %v1364, %v1364
  %v1424 = vpack.c.bf16 %v1365, %v1365
  %v1425 = vpack.c.bf16 %v1366, %v1366
  %v1426 = vpack.c.bf16 %v1367, %v1367
  %v1427 = vpack.c.bf16 %v1368, %v1368
  %v1428 = vpack.c.bf16 %v1369, %v1369
  %v1429 = vpack.c.bf16 %v1370, %v1370
  %v1430 = vpack.c.bf16 %v1371, %v1371
  %v1431 = vpack.c.bf16 %v1362, %v1362
  %v1432 = vld [vmem:[%s7] sm:$0xf]
  %v1433 = vld [vmem:[%s9] sm:$0xff]
  %1435 = vset.pattern.permute.xlu0 0
  %1436 = vperm.xlu0 %1435, %v1433
  %v1437 = vpop.permute.xlu0 %1436
  %v1440 = vsel %vm675, %v1432, 0
  %v1443 = vsel %vm679, %v1422, 0
  %v1446 = vsel %vm679, %v1423, 0
  %v1449 = vsel %vm679, %v1424, 0
  %v1452 = vsel %vm679, %v1425, 0
  %v1455 = vsel %vm679, %v1426, 0
  %v1458 = vsel %vm679, %v1427, 0
  %v1461 = vsel %vm679, %v1428, 0
  %v1464 = vsel %vm679, %v1429, 0
  %v1467 = vsel %vm679, %v1430, 0
  %v1470 = vsel %vm679, %v1431, 0
  %1472 = vmatprep.subr.bf16.mxu0 %v1383
  %1473 = vmatpush1.bf16.msra.mxu0 %v1382
  %1474 = vmatprep.subr.bf16.mxu0 %v1393
  %1475 = vmatpush1.bf16.msra.mxu0 %v1392
  %1476 = vmatprep.subr.bf16.mxu0 %v1403
  %1477 = vmatpush1.bf16.msra.mxu0 %v1402
  %1478 = vmatprep.subr.bf16.mxu0 %v1413
  %1479 = vmatpush1.bf16.msra.mxu0 %v1412
  %1480 = vmatprep.subr.bf16.mxu0 %v1446
  %1481 = vmatpush1.bf16.msra.mxu0 %v1443
  %1482 = vmatprep.subr.bf16.mxu0 0
  %1483 = vmatpush1.bf16.msra.mxu0 0
  %1484 = vmatprep.subr.bf16.mxu0 0
  %1485 = vmatpush1.bf16.msra.mxu0 0
  %1486 = vmatprep.subr.bf16.mxu0 0
  %1487 = vmatpush1.bf16.msra.mxu0 0
  %1488 = vmatprep.subr.bf16.mxu0 0
  %1489 = vmatpush1.bf16.msra.mxu0 0
  %1490 = vmatprep.subr.bf16.mxu0 0
  %1491 = vmatpush1.bf16.msra.mxu0 0
  %1492 = vmatprep.subr.bf16.mxu0 0
  %1493 = vmatpush1.bf16.msra.mxu0 0
  %1494 = vmatprep.subr.bf16.mxu0 0
  %1495 = vmatpush1.bf16.msra.mxu0 0
  %1496 = vmatprep.subr.bf16.mxu0 0
  %1497 = vmatpush1.bf16.msra.mxu0 0
  %1498 = vmatprep.subr.bf16.mxu0 0
  %1499 = vmatpush1.bf16.msra.mxu0 0
  %1500 = vmatprep.subr.bf16.mxu0 0
  %1501 = vmatpush1.bf16.msra.mxu0 0
  %1502 = vmatprep.subr.bf16.mxu0 0
  %1503 = vmatpush1.bf16.msra.mxu0 0
  %1504 = vmatprep.mubr.bf16.mxu0 0
  %1505 = vmatmul.mubr.bf16.gmra.mrb[0].mxu0 %v1440
  %v1506 = vpop.f32.mrb[0].mxu0
  %v1507 = vadd.f32 %v1437, %v1506
  %v1508 = vpop.f32.mrb[0].mxu0
  %v1509 = vadd.f32 %v1437, %v1508
  %v1510 = vpop.f32.mrb[0].mxu0
  %v1511 = vpop.f32.mrb[0].mxu0
  %1512 = vdwg.mxu0
  %1513 = vmatprep.subr.bf16.mxu0 %v1385
  %1514 = vmatpush1.bf16.msra.mxu0 %v1384
  %1515 = vmatprep.subr.bf16.mxu0 %v1395
  %1516 = vmatpush1.bf16.msra.mxu0 %v1394
  %1517 = vmatprep.subr.bf16.mxu0 %v1405
  %1518 = vmatpush1.bf16.msra.mxu0 %v1404
  %1519 = vmatprep.subr.bf16.mxu0 %v1415
  %1520 = vmatpush1.bf16.msra.mxu0 %v1414
  %1521 = vmatprep.subr.bf16.mxu0 %v1452
  %1522 = vmatpush1.bf16.msra.mxu0 %v1449
  %1523 = vmatprep.subr.bf16.mxu0 0
  %1524 = vmatpush1.bf16.msra.mxu0 0
  %1525 = vmatprep.subr.bf16.mxu0 0
  %1526 = vmatpush1.bf16.msra.mxu0 0
  %1527 = vmatprep.subr.bf16.mxu0 0
  %1528 = vmatpush1.bf16.msra.mxu0 0
  %1529 = vmatprep.subr.bf16.mxu0 0
  %1530 = vmatpush1.bf16.msra.mxu0 0
  %1531 = vmatprep.subr.bf16.mxu0 0
  %1532 = vmatpush1.bf16.msra.mxu0 0
  %1533 = vmatprep.subr.bf16.mxu0 0
  %1534 = vmatpush1.bf16.msra.mxu0 0
  %1535 = vmatprep.subr.bf16.mxu0 0
  %1536 = vmatpush1.bf16.msra.mxu0 0
  %1537 = vmatprep.subr.bf16.mxu0 0
  %1538 = vmatpush1.bf16.msra.mxu0 0
  %1539 = vmatprep.subr.bf16.mxu0 0
  %1540 = vmatpush1.bf16.msra.mxu0 0
  %1541 = vmatprep.subr.bf16.mxu0 0
  %1542 = vmatpush1.bf16.msra.mxu0 0
  %1543 = vmatprep.subr.bf16.mxu0 0
  %1544 = vmatpush1.bf16.msra.mxu0 0
  %1545 = vmatprep.mubr.bf16.mxu0 0
  %1546 = vmatmul.mubr.bf16.gmra.mrb[0].mxu0 %v1440
  %v1547 = vpop.f32.mrb[0].mxu0
  %v1548 = vadd.f32 %v1437, %v1547
  %v1549 = vpop.f32.mrb[0].mxu0
  %v1550 = vadd.f32 %v1437, %v1549
  %v1551 = vpop.f32.mrb[0].mxu0
  %v1552 = vpop.f32.mrb[0].mxu0
  %1553 = vdwg.mxu0
  %1554 = vmatprep.subr.bf16.mxu0 %v1387
  %1555 = vmatpush1.bf16.msra.mxu0 %v1386
  %1556 = vmatprep.subr.bf16.mxu0 %v1397
  %1557 = vmatpush1.bf16.msra.mxu0 %v1396
  %1558 = vmatprep.subr.bf16.mxu0 %v1407
  %1559 = vmatpush1.bf16.msra.mxu0 %v1406
  %1560 = vmatprep.subr.bf16.mxu0 %v1417
  %1561 = vmatpush1.bf16.msra.mxu0 %v1416
  %1562 = vmatprep.subr.bf16.mxu0 %v1458
  %1563 = vmatpush1.bf16.msra.mxu0 %v1455
  %1564 = vmatprep.subr.bf16.mxu0 0
  %1565 = vmatpush1.bf16.msra.mxu0 0
  %1566 = vmatprep.subr.bf16.mxu0 0
  %1567 = vmatpush1.bf16.msra.mxu0 0
  %1568 = vmatprep.subr.bf16.mxu0 0
  %1569 = vmatpush1.bf16.msra.mxu0 0
  %1570 = vmatprep.subr.bf16.mxu0 0
  %1571 = vmatpush1.bf16.msra.mxu0 0
  %1572 = vmatprep.subr.bf16.mxu0 0
  %1573 = vmatpush1.bf16.msra.mxu0 0
  %1574 = vmatprep.subr.bf16.mxu0 0
  %1575 = vmatpush1.bf16.msra.mxu0 0
  %1576 = vmatprep.subr.bf16.mxu0 0
  %1577 = vmatpush1.bf16.msra.mxu0 0
  %1578 = vmatprep.subr.bf16.mxu0 0
  %1579 = vmatpush1.bf16.msra.mxu0 0
  %1580 = vmatprep.subr.bf16.mxu0 0
  %1581 = vmatpush1.bf16.msra.mxu0 0
  %1582 = vmatprep.subr.bf16.mxu0 0
  %1583 = vmatpush1.bf16.msra.mxu0 0
  %1584 = vmatprep.subr.bf16.mxu0 0
  %1585 = vmatpush1.bf16.msra.mxu0 0
  %1586 = vmatprep.mubr.bf16.mxu0 0
  %1587 = vmatmul.mubr.bf16.gmra.mrb[0].mxu0 %v1440
  %v1588 = vpop.f32.mrb[0].mxu0
  %v1589 = vadd.f32 %v1437, %v1588
  %v1590 = vpop.f32.mrb[0].mxu0
  %v1591 = vadd.f32 %v1437, %v1590
  %v1592 = vpop.f32.mrb[0].mxu0
  %v1593 = vpop.f32.mrb[0].mxu0
  %1594 = vdwg.mxu0
  %1595 = vmatprep.subr.bf16.mxu0 %v1389
  %1596 = vmatpush1.bf16.msra.mxu0 %v1388
  %1597 = vmatprep.subr.bf16.mxu0 %v1399
  %1598 = vmatpush1.bf16.msra.mxu0 %v1398
  %1599 = vmatprep.subr.bf16.mxu0 %v1409
  %1600 = vmatpush1.bf16.msra.mxu0 %v1408
  %1601 = vmatprep.subr.bf16.mxu0 %v1419
  %1602 = vmatpush1.bf16.msra.mxu0 %v1418
  %1603 = vmatprep.subr.bf16.mxu0 %v1464
  %1604 = vmatpush1.bf16.msra.mxu0 %v1461
  %1605 = vmatprep.subr.bf16.mxu0 0
  %1606 = vmatpush1.bf16.msra.mxu0 0
  %1607 = vmatprep.subr.bf16.mxu0 0
  %1608 = vmatpush1.bf16.msra.mxu0 0
  %1609 = vmatprep.subr.bf16.mxu0 0
  %1610 = vmatpush1.bf16.msra.mxu0 0
  %1611 = vmatprep.subr.bf16.mxu0 0
  %1612 = vmatpush1.bf16.msra.mxu0 0
  %1613 = vmatprep.subr.bf16.mxu0 0
  %1614 = vmatpush1.bf16.msra.mxu0 0
  %1615 = vmatprep.subr.bf16.mxu0 0
  %1616 = vmatpush1.bf16.msra.mxu0 0
  %1617 = vmatprep.subr.bf16.mxu0 0
  %1618 = vmatpush1.bf16.msra.mxu0 0
  %1619 = vmatprep.subr.bf16.mxu0 0
  %1620 = vmatpush1.bf16.msra.mxu0 0
  %1621 = vmatprep.subr.bf16.mxu0 0
  %1622 = vmatpush1.bf16.msra.mxu0 0
  %1623 = vmatprep.subr.bf16.mxu0 0
  %1624 = vmatpush1.bf16.msra.mxu0 0
  %1625 = vmatprep.subr.bf16.mxu0 0
  %1626 = vmatpush1.bf16.msra.mxu0 0
  %1627 = vmatprep.mubr.bf16.mxu0 0
  %1628 = vmatmul.mubr.bf16.gmra.mrb[0].mxu0 %v1440
  %v1629 = vpop.f32.mrb[0].mxu0
  %v1630 = vadd.f32 %v1437, %v1629
  %v1631 = vpop.f32.mrb[0].mxu0
  %v1632 = vadd.f32 %v1437, %v1631
  %v1633 = vpop.f32.mrb[0].mxu0
  %v1634 = vpop.f32.mrb[0].mxu0
  %1635 = vdwg.mxu0
  %1636 = vmatprep.subr.bf16.mxu0 %v1391
  %1637 = vmatpush1.bf16.msra.mxu0 %v1390
  %1638 = vmatprep.subr.bf16.mxu0 %v1401
  %1639 = vmatpush1.bf16.msra.mxu0 %v1400
  %1640 = vmatprep.subr.bf16.mxu0 %v1411
  %1641 = vmatpush1.bf16.msra.mxu0 %v1410
  %1642 = vmatprep.subr.bf16.mxu0 %v1421
  %1643 = vmatpush1.bf16.msra.mxu0 %v1420
  %1644 = vmatprep.subr.bf16.mxu0 %v1470
  %1645 = vmatpush1.bf16.msra.mxu0 %v1467
  %1646 = vmatprep.subr.bf16.mxu0 0
  %1647 = vmatpush1.bf16.msra.mxu0 0
  %1648 = vmatprep.subr.bf16.mxu0 0
  %1649 = vmatpush1.bf16.msra.mxu0 0
  %1650 = vmatprep.subr.bf16.mxu0 0
  %1651 = vmatpush1.bf16.msra.mxu0 0
  %1652 = vmatprep.subr.bf16.mxu0 0
  %1653 = vmatpush1.bf16.msra.mxu0 0
  %1654 = vmatprep.subr.bf16.mxu0 0
  %1655 = vmatpush1.bf16.msra.mxu0 0
  %1656 = vmatprep.subr.bf16.mxu0 0
  %1657 = vmatpush1.bf16.msra.mxu0 0
  %1658 = vmatprep.subr.bf16.mxu0 0
  %1659 = vmatpush1.bf16.msra.mxu0 0
  %1660 = vmatprep.subr.bf16.mxu0 0
  %1661 = vmatpush1.bf16.msra.mxu0 0
  %1662 = vmatprep.subr.bf16.mxu0 0
  %1663 = vmatpush1.bf16.msra.mxu0 0
  %1664 = vmatprep.subr.bf16.mxu0 0
  %1665 = vmatpush1.bf16.msra.mxu0 0
  %1666 = vmatprep.subr.bf16.mxu0 0
  %1667 = vmatpush1.bf16.msra.mxu0 0
  %1668 = vmatprep.mubr.bf16.mxu0 0
  %1669 = vmatmul.mubr.bf16.gmra.mrb[0].mxu0 %v1440
  %v1670 = vpop.f32.mrb[0].mxu0
  %v1671 = vadd.f32 %v1437, %v1670
  %v1672 = vpop.f32.mrb[0].mxu0
  %v1673 = vadd.f32 %v1437, %v1672
  %v1674 = vpop.f32.mrb[0].mxu0
  %v1675 = vpop.f32.mrb[0].mxu0
  %1676 = vdwg.mxu0
  %v1677 = vmax.f32 %v1507, 0.0
  %v1678 = vmax.f32 %v1509, 0.0
  %v1679 = vmax.f32 %v1548, 0.0
  %v1680 = vmax.f32 %v1550, 0.0
  %v1681 = vmax.f32 %v1589, 0.0
  %v1682 = vmax.f32 %v1591, 0.0
  %v1683 = vmax.f32 %v1630, 0.0
  %v1684 = vmax.f32 %v1632, 0.0
  %v1685 = vmax.f32 %v1671, 0.0
  %v1686 = vmax.f32 %v1673, 0.0
  %1687 = vst [vmem:[#allocation2] sm:$0xff] %v1677
  %1688 = vst [vmem:[#allocation2 + $0x8] sm:$0xff] %v1678
  %1689 = vst [vmem:[#allocation2 + $0x10] sm:$0xff] %v1679
  %1690 = vst [vmem:[#allocation2 + $0x18] sm:$0xff] %v1680
  %1691 = vst [vmem:[#allocation2 + $0x20] sm:$0xff] %v1681
  %1692 = vst [vmem:[#allocation2 + $0x28] sm:$0xff] %v1682
  %1693 = vst [vmem:[#allocation2 + $0x30] sm:$0xff] %v1683
  %1694 = vst [vmem:[#allocation2 + $0x38] sm:$0xff] %v1684
  %1695 = vst [vmem:[#allocation2 + $0x40] sm:$0xff] %v1685
  %vm1696 = vcmask 31744
  %1697 = vst.msk [vmem:[#allocation2 + $0x48] sm:$0xff] %vm1696, %v1686
  %vm1698 = vcmask 318496
  %1699 = vst.msk [vmem:[#allocation2 + $0x48] sm:$0xff] %vm1698, 0.0
  %v1700 = vld [vmem:[#allocation2] sm:$0xff]
  %v1701 = vld [vmem:[#allocation2 + $0x8] sm:$0xff]
  %v1702 = vld [vmem:[#allocation2 + $0x10] sm:$0xff]
  %v1703 = vld [vmem:[#allocation2 + $0x18] sm:$0xff]
  %v1704 = vld [vmem:[#allocation2 + $0x20] sm:$0xff]
  %v1705 = vld [vmem:[#allocation2 + $0x28] sm:$0xff]
  %v1706 = vld [vmem:[#allocation2 + $0x30] sm:$0xff]
  %v1707 = vld [vmem:[#allocation2 + $0x38] sm:$0xff]
  %v1708 = vld [vmem:[#allocation2 + $0x40] sm:$0xff]
  %v1709 = vld [vmem:[#allocation2 + $0x48] sm:$0xff]
  %1720 = vrot.lane.b32.xlu0 %v1700, 127
  %v1721 = vpop.permute.xlu0 %1720
  %1722 = vrot.lane.b32.xlu0 %v1701, 127
  %v1723 = vpop.permute.xlu0 %1722
  %1724 = vrot.lane.b32.xlu0 %v1702, 127
  %v1725 = vpop.permute.xlu0 %1724
  %1726 = vrot.lane.b32.xlu0 %v1703, 127
  %v1727 = vpop.permute.xlu0 %1726
  %1728 = vrot.lane.b32.xlu0 %v1704, 127
  %v1729 = vpop.permute.xlu0 %1728
  %1730 = vrot.lane.b32.xlu0 %v1705, 127
  %v1731 = vpop.permute.xlu0 %1730
  %1732 = vrot.lane.b32.xlu0 %v1706, 127
  %v1733 = vpop.permute.xlu0 %1732
  %1734 = vrot.lane.b32.xlu0 %v1707, 127
  %v1735 = vpop.permute.xlu0 %1734
  %1736 = vrot.lane.b32.xlu0 %v1708, 127
  %v1737 = vpop.permute.xlu0 %1736
  %1738 = vrot.lane.b32.xlu0 %v1709, 127
  %v1739 = vpop.permute.xlu0 %1738
  %v1740 = vsel %vm318, %v1721, %v1723
  %v1741 = vsel %vm318, %v1723, %v1725
  %v1742 = vsel %vm318, %v1725, %v1727
  %v1743 = vsel %vm318, %v1727, %v1729
  %v1744 = vsel %vm318, %v1729, %v1731
  %v1745 = vsel %vm318, %v1731, %v1733
  %v1746 = vsel %vm318, %v1733, %v1735
  %v1747 = vsel %vm318, %v1735, %v1737
  %v1748 = vsel %vm318, %v1737, %v1739
  %v1759 = vmax.f32 %v1700, %v1740
  %v1760 = vmax.f32 %v1701, %v1741
  %v1761 = vmax.f32 %v1702, %v1742
  %v1762 = vmax.f32 %v1703, %v1743
  %v1763 = vmax.f32 %v1704, %v1744
  %v1764 = vmax.f32 %v1705, %v1745
  %v1765 = vmax.f32 %v1706, %v1746
  %v1766 = vmax.f32 %v1707, %v1747
  %v1767 = vmax.f32 %v1708, %v1748
  %v1768 = vmax.f32 %v1709, %v1739
  %1769 = vst [vmem:[#allocation2] sm:$0xff] %v1759
  %1770 = vst [vmem:[#allocation2 + $0x8] sm:$0xff] %v1760
  %1771 = vst [vmem:[#allocation2 + $0x10] sm:$0xff] %v1761
  %1772 = vst [vmem:[#allocation2 + $0x18] sm:$0xff] %v1762
  %1773 = vst [vmem:[#allocation2 + $0x20] sm:$0xff] %v1763
  %1774 = vst [vmem:[#allocation2 + $0x28] sm:$0xff] %v1764
  %1775 = vst [vmem:[#allocation2 + $0x30] sm:$0xff] %v1765
  %1776 = vst [vmem:[#allocation2 + $0x38] sm:$0xff] %v1766
  %1777 = vst [vmem:[#allocation2 + $0x40] sm:$0xff] %v1767
  %vm1778 = vcmask 310272
  %1779 = vst.msk [vmem:[#allocation2 + $0x48] sm:$0xff] %vm1778, %v1768
  %v1780 = vld [vmem:[#allocation2] sm:$0xff]
  %v1781 = vld [vmem:[#allocation2 + $0x8] sm:$0xff]
  %v1782 = vld [vmem:[#allocation2 + $0x10] sm:$0xff]
  %v1783 = vld [vmem:[#allocation2 + $0x18] sm:$0xff]
  %v1784 = vld [vmem:[#allocation2 + $0x20] sm:$0xff]
  %v1785 = vld [vmem:[#allocation2 + $0x28] sm:$0xff]
  %v1786 = vld [vmem:[#allocation2 + $0x30] sm:$0xff]
  %v1787 = vld [vmem:[#allocation2 + $0x38] sm:$0xff]
  %v1788 = vld [vmem:[#allocation2 + $0x40] sm:$0xff]
  %v1789 = vld [vmem:[#allocation2 + $0x48] sm:$0xff]
  %1800 = vrot.lane.b32.xlu0 %v1780, 94
  %v1801 = vpop.permute.xlu0 %1800
  %1802 = vrot.lane.b32.xlu0 %v1781, 94
  %v1803 = vpop.permute.xlu0 %1802
  %1804 = vrot.lane.b32.xlu0 %v1782, 94
  %v1805 = vpop.permute.xlu0 %1804
  %1806 = vrot.lane.b32.xlu0 %v1783, 94
  %v1807 = vpop.permute.xlu0 %1806
  %1808 = vrot.lane.b32.xlu0 %v1784, 94
  %v1809 = vpop.permute.xlu0 %1808
  %1810 = vrot.lane.b32.xlu0 %v1785, 94
  %v1811 = vpop.permute.xlu0 %1810
  %1812 = vrot.lane.b32.xlu0 %v1786, 94
  %v1813 = vpop.permute.xlu0 %1812
  %1814 = vrot.lane.b32.xlu0 %v1787, 94
  %v1815 = vpop.permute.xlu0 %1814
  %1816 = vrot.lane.b32.xlu0 %v1788, 94
  %v1817 = vpop.permute.xlu0 %1816
  %1818 = vrot.lane.b32.xlu0 %v1789, 94
  %v1819 = vpop.permute.xlu0 %1818
  %v1820 = vsel %vm398, %v1801, %v1803
  %v1821 = vsel %vm398, %v1803, %v1805
  %v1822 = vsel %vm398, %v1805, %v1807
  %v1823 = vsel %vm398, %v1807, %v1809
  %v1824 = vsel %vm398, %v1809, %v1811
  %v1825 = vsel %vm398, %v1811, %v1813
  %v1826 = vsel %vm398, %v1813, %v1815
  %v1827 = vsel %vm398, %v1815, %v1817
  %v1828 = vsel %vm398, %v1817, %v1819
  %v1839 = vmax.f32 %v1780, %v1820
  %v1840 = vmax.f32 %v1781, %v1821
  %v1841 = vmax.f32 %v1782, %v1822
  %v1842 = vmax.f32 %v1783, %v1823
  %v1843 = vmax.f32 %v1784, %v1824
  %v1844 = vmax.f32 %v1785, %v1825
  %v1845 = vmax.f32 %v1786, %v1826
  %v1846 = vmax.f32 %v1787, %v1827
  %v1847 = vmax.f32 %v1788, %v1828
  %v1848 = vmax.f32 %v1789, %v1819
  %v1849 = vpack.c.bf16 %v1839, %v1839
  %v1850 = vpack.c.bf16 %v1840, %v1840
  %v1851 = vpack.c.bf16 %v1841, %v1841
  %v1852 = vpack.c.bf16 %v1842, %v1842
  %v1853 = vpack.c.bf16 %v1843, %v1843
  %v1854 = vpack.c.bf16 %v1844, %v1844
  %v1855 = vpack.c.bf16 %v1845, %v1845
  %v1856 = vpack.c.bf16 %v1846, %v1846
  %v1857 = vpack.c.bf16 %v1847, %v1847
  %v1858 = vpack.c.bf16 %v1848, %v1848
  %v1859 = vld [vmem:[%s77] sm:$0xff]
  %v1860 = vld [vmem:[%s77 + $0x8] sm:$0xf]
  %v1861 = vld [vmem:[%s77 + $0xc] sm:$0xff]
  %v1862 = vld [vmem:[%s77 + $0x14] sm:$0xf]
  %v1863 = vld [vmem:[%s77 + $0x18] sm:$0xff]
  %v1864 = vld [vmem:[%s77 + $0x20] sm:$0xf]
  %v1865 = vld [vmem:[%s77 + $0x24] sm:$0xff]
  %v1866 = vld [vmem:[%s77 + $0x2c] sm:$0xf]
  %v1867 = vld [vmem:[%s77 + $0x30] sm:$0xff]
  %v1868 = vld [vmem:[%s77 + $0x38] sm:$0xf]
  %v1869 = vld [vmem:[%s77 + $0x3c] sm:$0xff]
  %v1870 = vld [vmem:[%s77 + $0x44] sm:$0xf]
  %v1871 = vld [vmem:[%s77 + $0x48] sm:$0xff]
  %v1872 = vld [vmem:[%s77 + $0x50] sm:$0xf]
  %v1873 = vld [vmem:[%s77 + $0x54] sm:$0xff]
  %v1874 = vld [vmem:[%s77 + $0x5c] sm:$0xf]
  %v1875 = vld [vmem:[%s77 + $0x60] sm:$0xff]
  %v1876 = vld [vmem:[%s77 + $0x68] sm:$0xf]
  %v1877 = vld [vmem:[%s77 + $0x6c] sm:$0xff]
  %v1878 = vld [vmem:[%s77 + $0x74] sm:$0xf]
  %v1879 = vld [vmem:[%s77 + $0x78] sm:$0xff]
  %v1880 = vld [vmem:[%s77 + $0x80] sm:$0xf]
  %v1881 = vld [vmem:[%s77 + $0x84] sm:$0xff]
  %v1882 = vld [vmem:[%s77 + $0x8c] sm:$0xf]
  %v1883 = vld [vmem:[%s77 + $0x90] sm:$0xff]
  %v1884 = vld [vmem:[%s77 + $0x98] sm:$0xf]
  %v1885 = vld [vmem:[%s77 + $0x9c] sm:$0xff]
  %v1886 = vld [vmem:[%s77 + $0xa4] sm:$0xf]
  %v1887 = vld [vmem:[%s77 + $0xa8] sm:$0xff]
  %v1888 = vld [vmem:[%s77 + $0xb0] sm:$0xf]
  %v1889 = vld [vmem:[%s77 + $0xb4] sm:$0xff]
  %v1890 = vld [vmem:[%s77 + $0xbc] sm:$0xf]
  %v1891 = vld [vmem:[%s77 + $0xc0] sm:$0xff]
  %v1892 = vld [vmem:[%s77 + $0xc8] sm:$0xf]
  %v1893 = vld [vmem:[%s77 + $0xcc] sm:$0xff]
  %v1894 = vld [vmem:[%s77 + $0xd4] sm:$0xf]
  %v1895 = vld [vmem:[%s77 + $0xd8] sm:$0xff]
  %v1896 = vld [vmem:[%s77 + $0xe0] sm:$0xf]
  %v1897 = vld [vmem:[%s77 + $0xe4] sm:$0xff]
  %v1898 = vld [vmem:[%s77 + $0xec] sm:$0xf]
  %v1899 = vld [vmem:[%s77 + $0xf0] sm:$0xff]
  %v1900 = vld [vmem:[%s77 + $0xf8] sm:$0xf]
  %v1901 = vld [vmem:[%s77 + $0xfc] sm:$0xff]
  %v1902 = vld [vmem:[%s77 + $0x104] sm:$0xf]
  %v1903 = vld [vmem:[%s77 + $0x108] sm:$0xff]
  %v1904 = vld [vmem:[%s77 + $0x110] sm:$0xf]
  %v1905 = vld [vmem:[%s77 + $0x114] sm:$0xff]
  %v1906 = vld [vmem:[%s77 + $0x11c] sm:$0xf]
  %v1907 = vld [vmem:[%s77 + $0x120] sm:$0xff]
  %v1908 = vld [vmem:[%s77 + $0x128] sm:$0xf]
  %v1909 = vld [vmem:[%s77 + $0x12c] sm:$0xff]
  %v1910 = vld [vmem:[%s77 + $0x134] sm:$0xf]
  %v1911 = vld [vmem:[%s77 + $0x138] sm:$0xff]
  %v1912 = vld [vmem:[%s77 + $0x140] sm:$0xf]
  %v1913 = vld [vmem:[%s77 + $0x144] sm:$0xff]
  %v1914 = vld [vmem:[%s77 + $0x14c] sm:$0xf]
  %v1915 = vld [vmem:[%s77 + $0x150] sm:$0xff]
  %v1916 = vld [vmem:[%s77 + $0x158] sm:$0xf]
  %v1917 = vld [vmem:[%s77 + $0x15c] sm:$0xff]
  %v1918 = vld [vmem:[%s77 + $0x164] sm:$0xf]
  %v1919 = vld [vmem:[%s77 + $0x168] sm:$0xff]
  %v1920 = vld [vmem:[%s77 + $0x170] sm:$0xf]
  %v1921 = vld [vmem:[%s77 + $0x174] sm:$0xff]
  %v1922 = vld [vmem:[%s77 + $0x17c] sm:$0xf]
  %v1923 = vld [vmem:[%s77 + $0x180] sm:$0xff]
  %v1924 = vld [vmem:[%s77 + $0x188] sm:$0xf]
  %v1925 = vld [vmem:[%s77 + $0x18c] sm:$0xff]
  %v1926 = vld [vmem:[%s77 + $0x194] sm:$0xf]
  %v1927 = vld [vmem:[%s77 + $0x198] sm:$0xff]
  %v1928 = vld [vmem:[%s77 + $0x1a0] sm:$0xf]
  %v1929 = vld [vmem:[%s77 + $0x1a4] sm:$0xff]
  %v1930 = vld [vmem:[%s77 + $0x1ac] sm:$0xf]
  %v1931 = vld [vmem:[%s77 + $0x1b0] sm:$0xff]
  %v1932 = vld [vmem:[%s77 + $0x1b8] sm:$0xf]
  %v1933 = vld [vmem:[%s77 + $0x1bc] sm:$0xff]
  %v1934 = vld [vmem:[%s77 + $0x1c4] sm:$0xf]
  %v1935 = vld [vmem:[%s77 + $0x1c8] sm:$0xff]
  %v1936 = vld [vmem:[%s77 + $0x1d0] sm:$0xf]
  %v1937 = vld [vmem:[%s77 + $0x1d4] sm:$0xff]
  %v1938 = vld [vmem:[%s77 + $0x1dc] sm:$0xf]
  %v1939 = vld [vmem:[%s77 + $0x1e0] sm:$0xff]
  %v1940 = vld [vmem:[%s77 + $0x1e8] sm:$0xf]
  %v1941 = vld [vmem:[%s77 + $0x1ec] sm:$0xff]
  %v1942 = vld [vmem:[%s77 + $0x1f4] sm:$0xf]
  %v1943 = vld [vmem:[%s77 + $0x1f8] sm:$0xff]
  %v1944 = vld [vmem:[%s77 + $0x200] sm:$0xf]
  %v1945 = vld [vmem:[%s77 + $0x204] sm:$0xff]
  %v1946 = vld [vmem:[%s77 + $0x20c] sm:$0xf]
  %v1947 = vld [vmem:[%s77 + $0x210] sm:$0xff]
  %v1948 = vld [vmem:[%s77 + $0x218] sm:$0xf]
  %v1949 = vld [vmem:[%s77 + $0x21c] sm:$0xff]
  %v1950 = vld [vmem:[%s77 + $0x224] sm:$0xf]
  %v1951 = vld [vmem:[%s77 + $0x228] sm:$0xff]
  %v1952 = vld [vmem:[%s77 + $0x230] sm:$0xf]
  %v1953 = vld [vmem:[%s77 + $0x234] sm:$0xff]
  %v1954 = vld [vmem:[%s77 + $0x23c] sm:$0xf]
  %v1955 = vld [vmem:[%s77 + $0x240] sm:$0xff]
  %v1956 = vld [vmem:[%s77 + $0x248] sm:$0xf]
  %v1957 = vld [vmem:[%s77 + $0x24c] sm:$0xff]
  %v1958 = vld [vmem:[%s77 + $0x254] sm:$0xf]
  %v1959 = vld [vmem:[%s77 + $0x258] sm:$0xff]
  %v1960 = vld [vmem:[%s77 + $0x260] sm:$0xf]
  %v1961 = vld [vmem:[%s77 + $0x264] sm:$0xff]
  %v1962 = vld [vmem:[%s77 + $0x26c] sm:$0xf]
  %v1963 = vld [vmem:[%s77 + $0x270] sm:$0xff]
  %v1964 = vld [vmem:[%s77 + $0x278] sm:$0xf]
  %v1965 = vld [vmem:[%s77 + $0x27c] sm:$0xff]
  %v1966 = vld [vmem:[%s77 + $0x284] sm:$0xf]
  %v1967 = vld [vmem:[%s77 + $0x288] sm:$0xff]
  %v1968 = vld [vmem:[%s77 + $0x290] sm:$0xf]
  %v1969 = vld [vmem:[%s77 + $0x294] sm:$0xff]
  %v1970 = vld [vmem:[%s77 + $0x29c] sm:$0xf]
  %v1971 = vld [vmem:[%s77 + $0x2a0] sm:$0xff]
  %v1972 = vld [vmem:[%s77 + $0x2a8] sm:$0xf]
  %v1973 = vld [vmem:[%s77 + $0x2ac] sm:$0xff]
  %v1974 = vld [vmem:[%s77 + $0x2b4] sm:$0xf]
  %v1975 = vld [vmem:[%s77 + $0x2b8] sm:$0xff]
  %v1976 = vld [vmem:[%s77 + $0x2c0] sm:$0xf]
  %v1977 = vld [vmem:[%s77 + $0x2c4] sm:$0xff]
  %v1978 = vld [vmem:[%s77 + $0x2cc] sm:$0xf]
  %v1979 = vld [vmem:[%s77 + $0x2d0] sm:$0xff]
  %v1980 = vld [vmem:[%s77 + $0x2d8] sm:$0xf]
  %v1981 = vld [vmem:[%s77 + $0x2dc] sm:$0xff]
  %v1982 = vld [vmem:[%s77 + $0x2e4] sm:$0xf]
  %v1983 = vld [vmem:[%s77 + $0x2e8] sm:$0xff]
  %v1984 = vld [vmem:[%s77 + $0x2f0] sm:$0xf]
  %v1985 = vld [vmem:[%s77 + $0x2f4] sm:$0xff]
  %v1986 = vld [vmem:[%s77 + $0x2fc] sm:$0xf]
  %v1987 = vld [vmem:[%s77 + $0x300] sm:$0xff]
  %v1988 = vld [vmem:[%s77 + $0x308] sm:$0xf]
  %v1989 = vld [vmem:[%s77 + $0x30c] sm:$0xff]
  %v1990 = vld [vmem:[%s77 + $0x314] sm:$0xf]
  %v1991 = vld [vmem:[%s77 + $0x318] sm:$0xff]
  %v1992 = vld [vmem:[%s77 + $0x320] sm:$0xf]
  %v1993 = vld [vmem:[%s77 + $0x324] sm:$0xff]
  %v1994 = vld [vmem:[%s77 + $0x32c] sm:$0xf]
  %v1995 = vld [vmem:[%s77 + $0x330] sm:$0xff]
  %v1996 = vld [vmem:[%s77 + $0x338] sm:$0xf]
  %v1997 = vld [vmem:[%s77 + $0x33c] sm:$0xff]
  %v1998 = vld [vmem:[%s77 + $0x344] sm:$0xf]
  %v1999 = vld [vmem:[%s77 + $0x348] sm:$0xff]
  %v2000 = vld [vmem:[%s77 + $0x350] sm:$0xf]
  %v2001 = vld [vmem:[%s77 + $0x354] sm:$0xff]
  %v2002 = vld [vmem:[%s77 + $0x35c] sm:$0xf]
  %v2003 = vld [vmem:[%s77 + $0x360] sm:$0xff]
  %v2004 = vld [vmem:[%s77 + $0x368] sm:$0xf]
  %v2005 = vld [vmem:[%s77 + $0x36c] sm:$0xff]
  %v2006 = vld [vmem:[%s77 + $0x374] sm:$0xf]
  %v2007 = vld [vmem:[%s77 + $0x378] sm:$0xff]
  %v2008 = vld [vmem:[%s77 + $0x380] sm:$0xf]
  %v2009 = vld [vmem:[%s77 + $0x384] sm:$0xff]
  %v2010 = vld [vmem:[%s77 + $0x38c] sm:$0xf]
  %v2011 = vld [vmem:[%s77 + $0x390] sm:$0xff]
  %v2012 = vld [vmem:[%s77 + $0x398] sm:$0xf]
  %v2013 = vld [vmem:[%s77 + $0x39c] sm:$0xff]
  %v2014 = vld [vmem:[%s77 + $0x3a4] sm:$0xf]
  %v2015 = vld [vmem:[%s77 + $0x3a8] sm:$0xff]
  %v2016 = vld [vmem:[%s77 + $0x3b0] sm:$0xf]
  %v2017 = vld [vmem:[%s77 + $0x3b4] sm:$0xff]
  %v2018 = vld [vmem:[%s77 + $0x3bc] sm:$0xf]
  %v2019 = vld [vmem:[%s77 + $0x3c0] sm:$0xff]
  %v2020 = vld [vmem:[%s77 + $0x3c8] sm:$0xf]
  %v2021 = vld [vmem:[%s77 + $0x3cc] sm:$0xff]
  %v2022 = vld [vmem:[%s77 + $0x3d4] sm:$0xf]
  %v2023 = vld [vmem:[%s77 + $0x3d8] sm:$0xff]
  %v2024 = vld [vmem:[%s77 + $0x3e0] sm:$0xf]
  %v2025 = vld [vmem:[%s77 + $0x3e4] sm:$0xff]
  %v2026 = vld [vmem:[%s77 + $0x3ec] sm:$0xf]
  %v2027 = vld [vmem:[%s77 + $0x3f0] sm:$0xff]
  %v2028 = vld [vmem:[%s77 + $0x3f8] sm:$0xf]
  %v2029 = vld [vmem:[%s77 + $0x3fc] sm:$0xff]
  %v2030 = vld [vmem:[%s77 + $0x404] sm:$0xf]
  %v2031 = vld [vmem:[%s77 + $0x408] sm:$0xff]
  %v2032 = vld [vmem:[%s77 + $0x410] sm:$0xf]
  %v2033 = vld [vmem:[%s77 + $0x414] sm:$0xff]
  %v2034 = vld [vmem:[%s77 + $0x41c] sm:$0xf]
  %v2035 = vld [vmem:[%s77 + $0x420] sm:$0xff]
  %v2036 = vld [vmem:[%s77 + $0x428] sm:$0xf]
  %v2037 = vld [vmem:[%s77 + $0x42c] sm:$0xff]
  %v2038 = vld [vmem:[%s77 + $0x434] sm:$0xf]
  %v2039 = vld [vmem:[%s77 + $0x438] sm:$0xff]
  %v2040 = vld [vmem:[%s77 + $0x440] sm:$0xf]
  %v2041 = vld [vmem:[%s77 + $0x444] sm:$0xff]
  %v2042 = vld [vmem:[%s77 + $0x44c] sm:$0xf]
  %v2043 = vld [vmem:[%s77 + $0x450] sm:$0xff]
  %v2044 = vld [vmem:[%s77 + $0x458] sm:$0xf]
  %v2045 = vld [vmem:[%s77 + $0x45c] sm:$0xff]
  %v2046 = vld [vmem:[%s77 + $0x464] sm:$0xf]
  %v2047 = vld [vmem:[%s77 + $0x468] sm:$0xff]
  %v2048 = vld [vmem:[%s77 + $0x470] sm:$0xf]
  %v2049 = vld [vmem:[%s77 + $0x474] sm:$0xff]
  %v2050 = vld [vmem:[%s77 + $0x47c] sm:$0xf]
  %v2051 = vld [vmem:[%s77 + $0x480] sm:$0xff]
  %v2052 = vld [vmem:[%s77 + $0x488] sm:$0xf]
  %v2053 = vld [vmem:[%s77 + $0x48c] sm:$0xff]
  %v2054 = vld [vmem:[%s77 + $0x494] sm:$0xf]
  %v2055 = vld [vmem:[%s77 + $0x498] sm:$0xff]
  %v2056 = vld [vmem:[%s77 + $0x4a0] sm:$0xf]
  %v2057 = vld [vmem:[%s77 + $0x4a4] sm:$0xff]
  %v2058 = vld [vmem:[%s77 + $0x4ac] sm:$0xf]
  %v2059 = vld [vmem:[%s77 + $0x4b0] sm:$0xff]
  %v2060 = vld [vmem:[%s77 + $0x4b8] sm:$0xf]
  %v2061 = vld [vmem:[%s77 + $0x4bc] sm:$0xff]
  %v2062 = vld [vmem:[%s77 + $0x4c4] sm:$0xf]
  %v2063 = vld [vmem:[%s77 + $0x4c8] sm:$0xff]
  %v2064 = vld [vmem:[%s77 + $0x4d0] sm:$0xf]
  %v2065 = vld [vmem:[%s77 + $0x4d4] sm:$0xff]
  %v2066 = vld [vmem:[%s77 + $0x4dc] sm:$0xf]
  %v2067 = vld [vmem:[%s77 + $0x4e0] sm:$0xff]
  %v2068 = vld [vmem:[%s77 + $0x4e8] sm:$0xf]
  %v2069 = vld [vmem:[%s77 + $0x4ec] sm:$0xff]
  %v2070 = vld [vmem:[%s77 + $0x4f4] sm:$0xf]
  %v2071 = vld [vmem:[%s77 + $0x4f8] sm:$0xff]
  %v2072 = vld [vmem:[%s77 + $0x500] sm:$0xf]
  %v2073 = vld [vmem:[%s77 + $0x504] sm:$0xff]
  %v2074 = vld [vmem:[%s77 + $0x50c] sm:$0xf]
  %v2075 = vld [vmem:[%s77 + $0x510] sm:$0xff]
  %v2076 = vld [vmem:[%s77 + $0x518] sm:$0xf]
  %v2077 = vld [vmem:[%s77 + $0x51c] sm:$0xff]
  %v2078 = vld [vmem:[%s77 + $0x524] sm:$0xf]
  %v2079 = vld [vmem:[%s77 + $0x528] sm:$0xff]
  %v2080 = vld [vmem:[%s77 + $0x530] sm:$0xf]
  %v2081 = vld [vmem:[%s77 + $0x534] sm:$0xff]
  %v2082 = vld [vmem:[%s77 + $0x53c] sm:$0xf]
  %v2083 = vld [vmem:[%s77 + $0x540] sm:$0xff]
  %v2084 = vld [vmem:[%s77 + $0x548] sm:$0xf]
  %v2085 = vld [vmem:[%s77 + $0x54c] sm:$0xff]
  %v2086 = vld [vmem:[%s77 + $0x554] sm:$0xf]
  %v2087 = vld [vmem:[%s77 + $0x558] sm:$0xff]
  %v2088 = vld [vmem:[%s77 + $0x560] sm:$0xf]
  %v2089 = vld [vmem:[%s77 + $0x564] sm:$0xff]
  %v2090 = vld [vmem:[%s77 + $0x56c] sm:$0xf]
  %v2091 = vld [vmem:[%s77 + $0x570] sm:$0xff]
  %v2092 = vld [vmem:[%s77 + $0x578] sm:$0xf]
  %v2093 = vld [vmem:[%s77 + $0x57c] sm:$0xff]
  %v2094 = vld [vmem:[%s77 + $0x584] sm:$0xf]
  %v2095 = vld [vmem:[%s77 + $0x588] sm:$0xff]
  %v2096 = vld [vmem:[%s77 + $0x590] sm:$0xf]
  %v2097 = vld [vmem:[%s77 + $0x594] sm:$0xff]
  %v2098 = vld [vmem:[%s77 + $0x59c] sm:$0xf]
  %v2099 = vld [vmem:[%s77 + $0x5a0] sm:$0xff]
  %v2100 = vld [vmem:[%s77 + $0x5a8] sm:$0xf]
  %v2101 = vld [vmem:[%s77 + $0x5ac] sm:$0xff]
  %v2102 = vld [vmem:[%s77 + $0x5b4] sm:$0xf]
  %v2103 = vld [vmem:[%s77 + $0x5b8] sm:$0xff]
  %v2104 = vld [vmem:[%s77 + $0x5c0] sm:$0xf]
  %v2105 = vld [vmem:[%s77 + $0x5c4] sm:$0xff]
  %v2106 = vld [vmem:[%s77 + $0x5cc] sm:$0xf]
  %v2107 = vld [vmem:[%s77 + $0x5d0] sm:$0xff]
  %v2108 = vld [vmem:[%s77 + $0x5d8] sm:$0xf]
  %v2109 = vld [vmem:[%s77 + $0x5dc] sm:$0xff]
  %v2110 = vld [vmem:[%s77 + $0x5e4] sm:$0xf]
  %v2111 = vld [vmem:[%s77 + $0x5e8] sm:$0xff]
  %v2112 = vld [vmem:[%s77 + $0x5f0] sm:$0xf]
  %v2113 = vld [vmem:[%s77 + $0x5f4] sm:$0xff]
  %v2114 = vld [vmem:[%s77 + $0x5fc] sm:$0xf]
  %v2115 = vld [vmem:[%s77 + $0x600] sm:$0xff]
  %v2116 = vld [vmem:[%s77 + $0x608] sm:$0xf]
  %v2117 = vld [vmem:[%s77 + $0x60c] sm:$0xff]
  %v2118 = vld [vmem:[%s77 + $0x614] sm:$0xf]
  %v2119 = vld [vmem:[%s77 + $0x618] sm:$0xff]
  %v2120 = vld [vmem:[%s77 + $0x620] sm:$0xf]
  %v2121 = vld [vmem:[%s77 + $0x624] sm:$0xff]
  %v2122 = vld [vmem:[%s77 + $0x62c] sm:$0xf]
  %v2123 = vld [vmem:[%s77 + $0x630] sm:$0xff]
  %v2124 = vld [vmem:[%s77 + $0x638] sm:$0xf]
  %v2125 = vld [vmem:[%s77 + $0x63c] sm:$0xff]
  %v2126 = vld [vmem:[%s77 + $0x644] sm:$0xf]
  %v2127 = vld [vmem:[%s77 + $0x648] sm:$0xff]
  %v2128 = vld [vmem:[%s77 + $0x650] sm:$0xf]
  %v2129 = vld [vmem:[%s77 + $0x654] sm:$0xff]
  %v2130 = vld [vmem:[%s77 + $0x65c] sm:$0xf]
  %v2131 = vld [vmem:[%s77 + $0x660] sm:$0xff]
  %v2132 = vld [vmem:[%s77 + $0x668] sm:$0xf]
  %v2133 = vld [vmem:[%s77 + $0x66c] sm:$0xff]
  %v2134 = vld [vmem:[%s77 + $0x674] sm:$0xf]
  %v2135 = vld [vmem:[%s77 + $0x678] sm:$0xff]
  %v2136 = vld [vmem:[%s77 + $0x680] sm:$0xf]
  %v2137 = vld [vmem:[%s77 + $0x684] sm:$0xff]
  %v2138 = vld [vmem:[%s77 + $0x68c] sm:$0xf]
  %v2139 = vld [vmem:[%s77 + $0x690] sm:$0xff]
  %v2140 = vld [vmem:[%s77 + $0x698] sm:$0xf]
  %v2141 = vld [vmem:[%s77 + $0x69c] sm:$0xff]
  %v2142 = vld [vmem:[%s77 + $0x6a4] sm:$0xf]
  %v2143 = vld [vmem:[%s77 + $0x6a8] sm:$0xff]
  %v2144 = vld [vmem:[%s77 + $0x6b0] sm:$0xf]
  %v2145 = vld [vmem:[%s77 + $0x6b4] sm:$0xff]
  %v2146 = vld [vmem:[%s77 + $0x6bc] sm:$0xf]
  %v2147 = vld [vmem:[%s77 + $0x6c0] sm:$0x33]
  %v2148 = vld [vmem:[%s77 + $0x6c8] sm:$0x3]
  %v2439 = vunpack.c.l.b16 %v1859
  %v2440 = vunpack.c.h.b16 %v1859
  %v2441 = vunpack.c.l.b16 %v1860
  %v2442 = vunpack.c.l.b16 %v1861
  %v2443 = vunpack.c.h.b16 %v1861
  %v2444 = vunpack.c.l.b16 %v1862
  %v2445 = vunpack.c.l.b16 %v1863
  %v2446 = vunpack.c.h.b16 %v1863
  %v2447 = vunpack.c.l.b16 %v1864
  %v2448 = vunpack.c.l.b16 %v1865
  %v2449 = vunpack.c.h.b16 %v1865
  %v2450 = vunpack.c.l.b16 %v1866
  %v2451 = vunpack.c.l.b16 %v1867
  %v2452 = vunpack.c.h.b16 %v1867
  %v2453 = vunpack.c.l.b16 %v1868
  %v2454 = vunpack.c.l.b16 %v1869
  %v2455 = vunpack.c.h.b16 %v1869
  %v2456 = vunpack.c.l.b16 %v1870
  %v2457 = vunpack.c.l.b16 %v1871
  %v2458 = vunpack.c.h.b16 %v1871
  %v2459 = vunpack.c.l.b16 %v1872
  %v2460 = vunpack.c.l.b16 %v1873
  %v2461 = vunpack.c.h.b16 %v1873
  %v2462 = vunpack.c.l.b16 %v1874
  %v2463 = vunpack.c.l.b16 %v1875
  %v2464 = vunpack.c.h.b16 %v1875
  %v2465 = vunpack.c.l.b16 %v1876
  %v2466 = vunpack.c.l.b16 %v1877
  %v2467 = vunpack.c.h.b16 %v1877
  %v2468 = vunpack.c.l.b16 %v1878
  %v2469 = vunpack.c.l.b16 %v1879
  %v2470 = vunpack.c.h.b16 %v1879
  %v2471 = vunpack.c.l.b16 %v1880
  %v2472 = vunpack.c.l.b16 %v1881
  %v2473 = vunpack.c.h.b16 %v1881
  %v2474 = vunpack.c.l.b16 %v1882
  %v2475 = vunpack.c.l.b16 %v1883
  %v2476 = vunpack.c.h.b16 %v1883
  %v2477 = vunpack.c.l.b16 %v1884
  %v2478 = vunpack.c.l.b16 %v1885
  %v2479 = vunpack.c.h.b16 %v1885
  %v2480 = vunpack.c.l.b16 %v1886
  %v2481 = vunpack.c.l.b16 %v1887
  %v2482 = vunpack.c.h.b16 %v1887
  %v2483 = vunpack.c.l.b16 %v1888
  %v2484 = vunpack.c.l.b16 %v1889
  %v2485 = vunpack.c.h.b16 %v1889
  %v2486 = vunpack.c.l.b16 %v1890
  %v2487 = vunpack.c.l.b16 %v1891
  %v2488 = vunpack.c.h.b16 %v1891
  %v2489 = vunpack.c.l.b16 %v1892
  %v2490 = vunpack.c.l.b16 %v1893
  %v2491 = vunpack.c.h.b16 %v1893
  %v2492 = vunpack.c.l.b16 %v1894
  %v2493 = vunpack.c.l.b16 %v1895
  %v2494 = vunpack.c.h.b16 %v1895
  %v2495 = vunpack.c.l.b16 %v1896
  %v2496 = vunpack.c.l.b16 %v1897
  %v2497 = vunpack.c.h.b16 %v1897
  %v2498 = vunpack.c.l.b16 %v1898
  %v2499 = vunpack.c.l.b16 %v1899
  %v2500 = vunpack.c.h.b16 %v1899
  %v2501 = vunpack.c.l.b16 %v1900
  %v2502 = vunpack.c.l.b16 %v1901
  %v2503 = vunpack.c.h.b16 %v1901
  %v2504 = vunpack.c.l.b16 %v1902
  %v2505 = vunpack.c.l.b16 %v1903
  %v2506 = vunpack.c.h.b16 %v1903
  %v2507 = vunpack.c.l.b16 %v1904
  %v2508 = vunpack.c.l.b16 %v1905
  %v2509 = vunpack.c.h.b16 %v1905
  %v2510 = vunpack.c.l.b16 %v1906
  %v2511 = vunpack.c.l.b16 %v1907
  %v2512 = vunpack.c.h.b16 %v1907
  %v2513 = vunpack.c.l.b16 %v1908
  %v2514 = vunpack.c.l.b16 %v1909
  %v2515 = vunpack.c.h.b16 %v1909
  %v2516 = vunpack.c.l.b16 %v1910
  %v2517 = vunpack.c.l.b16 %v1911
  %v2518 = vunpack.c.h.b16 %v1911
  %v2519 = vunpack.c.l.b16 %v1912
  %v2520 = vunpack.c.l.b16 %v1913
  %v2521 = vunpack.c.h.b16 %v1913
  %v2522 = vunpack.c.l.b16 %v1914
  %v2523 = vunpack.c.l.b16 %v1915
  %v2524 = vunpack.c.h.b16 %v1915
  %v2525 = vunpack.c.l.b16 %v1916
  %v2526 = vunpack.c.l.b16 %v1917
  %v2527 = vunpack.c.h.b16 %v1917
  %v2528 = vunpack.c.l.b16 %v1918
  %v2529 = vunpack.c.l.b16 %v1919
  %v2530 = vunpack.c.h.b16 %v1919
  %v2531 = vunpack.c.l.b16 %v1920
  %v2532 = vunpack.c.l.b16 %v1921
  %v2533 = vunpack.c.h.b16 %v1921
  %v2534 = vunpack.c.l.b16 %v1922
  %v2535 = vunpack.c.l.b16 %v1923
  %v2536 = vunpack.c.h.b16 %v1923
  %v2537 = vunpack.c.l.b16 %v1924
  %v2538 = vunpack.c.l.b16 %v1925
  %v2539 = vunpack.c.h.b16 %v1925
  %v2540 = vunpack.c.l.b16 %v1926
  %v2541 = vunpack.c.l.b16 %v1927
  %v2542 = vunpack.c.h.b16 %v1927
  %v2543 = vunpack.c.l.b16 %v1928
  %v2544 = vunpack.c.l.b16 %v1929
  %v2545 = vunpack.c.h.b16 %v1929
  %v2546 = vunpack.c.l.b16 %v1930
  %v2547 = vunpack.c.l.b16 %v1931
  %v2548 = vunpack.c.h.b16 %v1931
  %v2549 = vunpack.c.l.b16 %v1932
  %v2550 = vunpack.c.l.b16 %v1933
  %v2551 = vunpack.c.h.b16 %v1933
  %v2552 = vunpack.c.l.b16 %v1934
  %v2553 = vunpack.c.l.b16 %v1935
  %v2554 = vunpack.c.h.b16 %v1935
  %v2555 = vunpack.c.l.b16 %v1936
  %v2556 = vunpack.c.l.b16 %v1937
  %v2557 = vunpack.c.h.b16 %v1937
  %v2558 = vunpack.c.l.b16 %v1938
  %v2559 = vunpack.c.l.b16 %v1939
  %v2560 = vunpack.c.h.b16 %v1939
  %v2561 = vunpack.c.l.b16 %v1940
  %v2562 = vunpack.c.l.b16 %v1941
  %v2563 = vunpack.c.h.b16 %v1941
  %v2564 = vunpack.c.l.b16 %v1942
  %v2565 = vunpack.c.l.b16 %v1943
  %v2566 = vunpack.c.h.b16 %v1943
  %v2567 = vunpack.c.l.b16 %v1944
  %v2568 = vunpack.c.l.b16 %v1945
  %v2569 = vunpack.c.h.b16 %v1945
  %v2570 = vunpack.c.l.b16 %v1946
  %v2571 = vunpack.c.l.b16 %v1947
  %v2572 = vunpack.c.h.b16 %v1947
  %v2573 = vunpack.c.l.b16 %v1948
  %v2574 = vunpack.c.l.b16 %v1949
  %v2575 = vunpack.c.h.b16 %v1949
  %v2576 = vunpack.c.l.b16 %v1950
  %v2577 = vunpack.c.l.b16 %v1951
  %v2578 = vunpack.c.h.b16 %v1951
  %v2579 = vunpack.c.l.b16 %v1952
  %v2580 = vunpack.c.l.b16 %v1953
  %v2581 = vunpack.c.h.b16 %v1953
  %v2582 = vunpack.c.l.b16 %v1954
  %v2583 = vunpack.c.l.b16 %v1955
  %v2584 = vunpack.c.h.b16 %v1955
  %v2585 = vunpack.c.l.b16 %v1956
  %v2586 = vunpack.c.l.b16 %v1957
  %v2587 = vunpack.c.h.b16 %v1957
  %v2588 = vunpack.c.l.b16 %v1958
  %v2589 = vunpack.c.l.b16 %v1959
  %v2590 = vunpack.c.h.b16 %v1959
  %v2591 = vunpack.c.l.b16 %v1960
  %v2592 = vunpack.c.l.b16 %v1961
  %v2593 = vunpack.c.h.b16 %v1961
  %v2594 = vunpack.c.l.b16 %v1962
  %v2595 = vunpack.c.l.b16 %v1963
  %v2596 = vunpack.c.h.b16 %v1963
  %v2597 = vunpack.c.l.b16 %v1964
  %v2598 = vunpack.c.l.b16 %v1965
  %v2599 = vunpack.c.h.b16 %v1965
  %v2600 = vunpack.c.l.b16 %v1966
  %v2601 = vunpack.c.l.b16 %v1967
  %v2602 = vunpack.c.h.b16 %v1967
  %v2603 = vunpack.c.l.b16 %v1968
  %v2604 = vunpack.c.l.b16 %v1969
  %v2605 = vunpack.c.h.b16 %v1969
  %v2606 = vunpack.c.l.b16 %v1970
  %v2607 = vunpack.c.l.b16 %v1971
  %v2608 = vunpack.c.h.b16 %v1971
  %v2609 = vunpack.c.l.b16 %v1972
  %v2610 = vunpack.c.l.b16 %v1973
  %v2611 = vunpack.c.h.b16 %v1973
  %v2612 = vunpack.c.l.b16 %v1974
  %v2613 = vunpack.c.l.b16 %v1975
  %v2614 = vunpack.c.h.b16 %v1975
  %v2615 = vunpack.c.l.b16 %v1976
  %v2616 = vunpack.c.l.b16 %v1977
  %v2617 = vunpack.c.h.b16 %v1977
  %v2618 = vunpack.c.l.b16 %v1978
  %v2619 = vunpack.c.l.b16 %v1979
  %v2620 = vunpack.c.h.b16 %v1979
  %v2621 = vunpack.c.l.b16 %v1980
  %v2622 = vunpack.c.l.b16 %v1981
  %v2623 = vunpack.c.h.b16 %v1981
  %v2624 = vunpack.c.l.b16 %v1982
  %v2625 = vunpack.c.l.b16 %v1983
  %v2626 = vunpack.c.h.b16 %v1983
  %v2627 = vunpack.c.l.b16 %v1984
  %v2628 = vunpack.c.l.b16 %v1985
  %v2629 = vunpack.c.h.b16 %v1985
  %v2630 = vunpack.c.l.b16 %v1986
  %v2631 = vunpack.c.l.b16 %v1987
  %v2632 = vunpack.c.h.b16 %v1987
  %v2633 = vunpack.c.l.b16 %v1988
  %v2634 = vunpack.c.l.b16 %v1989
  %v2635 = vunpack.c.h.b16 %v1989
  %v2636 = vunpack.c.l.b16 %v1990
  %v2637 = vunpack.c.l.b16 %v1991
  %v2638 = vunpack.c.h.b16 %v1991
  %v2639 = vunpack.c.l.b16 %v1992
  %v2640 = vunpack.c.l.b16 %v1993
  %v2641 = vunpack.c.h.b16 %v1993
  %v2642 = vunpack.c.l.b16 %v1994
  %v2643 = vunpack.c.l.b16 %v1995
  %v2644 = vunpack.c.h.b16 %v1995
  %v2645 = vunpack.c.l.b16 %v1996
  %v2646 = vunpack.c.l.b16 %v1997
  %v2647 = vunpack.c.h.b16 %v1997
  %v2648 = vunpack.c.l.b16 %v1998
  %v2649 = vunpack.c.l.b16 %v1999
  %v2650 = vunpack.c.h.b16 %v1999
  %v2651 = vunpack.c.l.b16 %v2000
  %v2652 = vunpack.c.l.b16 %v2001
  %v2653 = vunpack.c.h.b16 %v2001
  %v2654 = vunpack.c.l.b16 %v2002
  %v2655 = vunpack.c.l.b16 %v2003
  %v2656 = vunpack.c.h.b16 %v2003
  %v2657 = vunpack.c.l.b16 %v2004
  %v2658 = vunpack.c.l.b16 %v2005
  %v2659 = vunpack.c.h.b16 %v2005
  %v2660 = vunpack.c.l.b16 %v2006
  %v2661 = vunpack.c.l.b16 %v2007
  %v2662 = vunpack.c.h.b16 %v2007
  %v2663 = vunpack.c.l.b16 %v2008
  %v2664 = vunpack.c.l.b16 %v2009
  %v2665 = vunpack.c.h.b16 %v2009
  %v2666 = vunpack.c.l.b16 %v2010
  %v2667 = vunpack.c.l.b16 %v2011
  %v2668 = vunpack.c.h.b16 %v2011
  %v2669 = vunpack.c.l.b16 %v2012
  %v2670 = vunpack.c.l.b16 %v2013
  %v2671 = vunpack.c.h.b16 %v2013
  %v2672 = vunpack.c.l.b16 %v2014
  %v2673 = vunpack.c.l.b16 %v2015
  %v2674 = vunpack.c.h.b16 %v2015
  %v2675 = vunpack.c.l.b16 %v2016
  %v2676 = vunpack.c.l.b16 %v2017
  %v2677 = vunpack.c.h.b16 %v2017
  %v2678 = vunpack.c.l.b16 %v2018
  %v2679 = vunpack.c.l.b16 %v2019
  %v2680 = vunpack.c.h.b16 %v2019
  %v2681 = vunpack.c.l.b16 %v2020
  %v2682 = vunpack.c.l.b16 %v2021
  %v2683 = vunpack.c.h.b16 %v2021
  %v2684 = vunpack.c.l.b16 %v2022
  %v2685 = vunpack.c.l.b16 %v2023
  %v2686 = vunpack.c.h.b16 %v2023
  %v2687 = vunpack.c.l.b16 %v2024
  %v2688 = vunpack.c.l.b16 %v2025
  %v2689 = vunpack.c.h.b16 %v2025
  %v2690 = vunpack.c.l.b16 %v2026
  %v2691 = vunpack.c.l.b16 %v2027
  %v2692 = vunpack.c.h.b16 %v2027
  %v2693 = vunpack.c.l.b16 %v2028
  %v2694 = vunpack.c.l.b16 %v2029
  %v2695 = vunpack.c.h.b16 %v2029
  %v2696 = vunpack.c.l.b16 %v2030
  %v2697 = vunpack.c.l.b16 %v2031
  %v2698 = vunpack.c.h.b16 %v2031
  %v2699 = vunpack.c.l.b16 %v2032
  %v2700 = vunpack.c.l.b16 %v2033
  %v2701 = vunpack.c.h.b16 %v2033
  %v2702 = vunpack.c.l.b16 %v2034
  %v2703 = vunpack.c.l.b16 %v2035
  %v2704 = vunpack.c.h.b16 %v2035
  %v2705 = vunpack.c.l.b16 %v2036
  %v2706 = vunpack.c.l.b16 %v2037
  %v2707 = vunpack.c.h.b16 %v2037
  %v2708 = vunpack.c.l.b16 %v2038
  %v2709 = vunpack.c.l.b16 %v2039
  %v2710 = vunpack.c.h.b16 %v2039
  %v2711 = vunpack.c.l.b16 %v2040
  %v2712 = vunpack.c.l.b16 %v2041
  %v2713 = vunpack.c.h.b16 %v2041
  %v2714 = vunpack.c.l.b16 %v2042
  %v2715 = vunpack.c.l.b16 %v2043
  %v2716 = vunpack.c.h.b16 %v2043
  %v2717 = vunpack.c.l.b16 %v2044
  %v2718 = vunpack.c.l.b16 %v2045
  %v2719 = vunpack.c.h.b16 %v2045
  %v2720 = vunpack.c.l.b16 %v2046
  %v2721 = vunpack.c.l.b16 %v2047
  %v2722 = vunpack.c.h.b16 %v2047
  %v2723 = vunpack.c.l.b16 %v2048
  %v2724 = vunpack.c.l.b16 %v2049
  %v2725 = vunpack.c.h.b16 %v2049
  %v2726 = vunpack.c.l.b16 %v2050
  %v2727 = vunpack.c.l.b16 %v2051
  %v2728 = vunpack.c.h.b16 %v2051
  %v2729 = vunpack.c.l.b16 %v2052
  %v2730 = vunpack.c.l.b16 %v2053
  %v2731 = vunpack.c.h.b16 %v2053
  %v2732 = vunpack.c.l.b16 %v2054
  %v2733 = vunpack.c.l.b16 %v2055
  %v2734 = vunpack.c.h.b16 %v2055
  %v2735 = vunpack.c.l.b16 %v2056
  %v2736 = vunpack.c.l.b16 %v2057
  %v2737 = vunpack.c.h.b16 %v2057
  %v2738 = vunpack.c.l.b16 %v2058
  %v2739 = vunpack.c.l.b16 %v2059
  %v2740 = vunpack.c.h.b16 %v2059
  %v2741 = vunpack.c.l.b16 %v2060
  %v2742 = vunpack.c.l.b16 %v2061
  %v2743 = vunpack.c.h.b16 %v2061
  %v2744 = vunpack.c.l.b16 %v2062
  %v2745 = vunpack.c.l.b16 %v2063
  %v2746 = vunpack.c.h.b16 %v2063
  %v2747 = vunpack.c.l.b16 %v2064
  %v2748 = vunpack.c.l.b16 %v2065
  %v2749 = vunpack.c.h.b16 %v2065
  %v2750 = vunpack.c.l.b16 %v2066
  %v2751 = vunpack.c.l.b16 %v2067
  %v2752 = vunpack.c.h.b16 %v2067
  %v2753 = vunpack.c.l.b16 %v2068
  %v2754 = vunpack.c.l.b16 %v2069
  %v2755 = vunpack.c.h.b16 %v2069
  %v2756 = vunpack.c.l.b16 %v2070
  %v2757 = vunpack.c.l.b16 %v2071
  %v2758 = vunpack.c.h.b16 %v2071
  %v2759 = vunpack.c.l.b16 %v2072
  %v2760 = vunpack.c.l.b16 %v2073
  %v2761 = vunpack.c.h.b16 %v2073
  %v2762 = vunpack.c.l.b16 %v2074
  %v2763 = vunpack.c.l.b16 %v2075
  %v2764 = vunpack.c.h.b16 %v2075
  %v2765 = vunpack.c.l.b16 %v2076
  %v2766 = vunpack.c.l.b16 %v2077
  %v2767 = vunpack.c.h.b16 %v2077
  %v2768 = vunpack.c.l.b16 %v2078
  %v2769 = vunpack.c.l.b16 %v2079
  %v2770 = vunpack.c.h.b16 %v2079
  %v2771 = vunpack.c.l.b16 %v2080
  %v2772 = vunpack.c.l.b16 %v2081
  %v2773 = vunpack.c.h.b16 %v2081
  %v2774 = vunpack.c.l.b16 %v2082
  %v2775 = vunpack.c.l.b16 %v2083
  %v2776 = vunpack.c.h.b16 %v2083
  %v2777 = vunpack.c.l.b16 %v2084
  %v2778 = vunpack.c.l.b16 %v2085
  %v2779 = vunpack.c.h.b16 %v2085
  %v2780 = vunpack.c.l.b16 %v2086
  %v2781 = vunpack.c.l.b16 %v2087
  %v2782 = vunpack.c.h.b16 %v2087
  %v2783 = vunpack.c.l.b16 %v2088
  %v2784 = vunpack.c.l.b16 %v2089
  %v2785 = vunpack.c.h.b16 %v2089
  %v2786 = vunpack.c.l.b16 %v2090
  %v2787 = vunpack.c.l.b16 %v2091
  %v2788 = vunpack.c.h.b16 %v2091
  %v2789 = vunpack.c.l.b16 %v2092
  %v2790 = vunpack.c.l.b16 %v2093
  %v2791 = vunpack.c.h.b16 %v2093
  %v2792 = vunpack.c.l.b16 %v2094
  %v2793 = vunpack.c.l.b16 %v2095
  %v2794 = vunpack.c.h.b16 %v2095
  %v2795 = vunpack.c.l.b16 %v2096
  %v2796 = vunpack.c.l.b16 %v2097
  %v2797 = vunpack.c.h.b16 %v2097
  %v2798 = vunpack.c.l.b16 %v2098
  %v2799 = vunpack.c.l.b16 %v2099
  %v2800 = vunpack.c.h.b16 %v2099
  %v2801 = vunpack.c.l.b16 %v2100
  %v2802 = vunpack.c.l.b16 %v2101
  %v2803 = vunpack.c.h.b16 %v2101
  %v2804 = vunpack.c.l.b16 %v2102
  %v2805 = vunpack.c.l.b16 %v2103
  %v2806 = vunpack.c.h.b16 %v2103
  %v2807 = vunpack.c.l.b16 %v2104
  %v2808 = vunpack.c.l.b16 %v2105
  %v2809 = vunpack.c.h.b16 %v2105
  %v2810 = vunpack.c.l.b16 %v2106
  %v2811 = vunpack.c.l.b16 %v2107
  %v2812 = vunpack.c.h.b16 %v2107
  %v2813 = vunpack.c.l.b16 %v2108
  %v2814 = vunpack.c.l.b16 %v2109
  %v2815 = vunpack.c.h.b16 %v2109
  %v2816 = vunpack.c.l.b16 %v2110
  %v2817 = vunpack.c.l.b16 %v2111
  %v2818 = vunpack.c.h.b16 %v2111
  %v2819 = vunpack.c.l.b16 %v2112
  %v2820 = vunpack.c.l.b16 %v2113
  %v2821 = vunpack.c.h.b16 %v2113
  %v2822 = vunpack.c.l.b16 %v2114
  %v2823 = vunpack.c.l.b16 %v2115
  %v2824 = vunpack.c.h.b16 %v2115
  %v2825 = vunpack.c.l.b16 %v2116
  %v2826 = vunpack.c.l.b16 %v2117
  %v2827 = vunpack.c.h.b16 %v2117
  %v2828 = vunpack.c.l.b16 %v2118
  %v2829 = vunpack.c.l.b16 %v2119
  %v2830 = vunpack.c.h.b16 %v2119
  %v2831 = vunpack.c.l.b16 %v2120
  %v2832 = vunpack.c.l.b16 %v2121
  %v2833 = vunpack.c.h.b16 %v2121
  %v2834 = vunpack.c.l.b16 %v2122
  %v2835 = vunpack.c.l.b16 %v2123
  %v2836 = vunpack.c.h.b16 %v2123
  %v2837 = vunpack.c.l.b16 %v2124
  %v2838 = vunpack.c.l.b16 %v2125
  %v2839 = vunpack.c.h.b16 %v2125
  %v2840 = vunpack.c.l.b16 %v2126
  %v2841 = vunpack.c.l.b16 %v2127
  %v2842 = vunpack.c.h.b16 %v2127
  %v2843 = vunpack.c.l.b16 %v2128
  %v2844 = vunpack.c.l.b16 %v2129
  %v2845 = vunpack.c.h.b16 %v2129
  %v2846 = vunpack.c.l.b16 %v2130
  %v2847 = vunpack.c.l.b16 %v2131
  %v2848 = vunpack.c.h.b16 %v2131
  %v2849 = vunpack.c.l.b16 %v2132
  %v2850 = vunpack.c.l.b16 %v2133
  %v2851 = vunpack.c.h.b16 %v2133
  %v2852 = vunpack.c.l.b16 %v2134
  %v2853 = vunpack.c.l.b16 %v2135
  %v2854 = vunpack.c.h.b16 %v2135
  %v2855 = vunpack.c.l.b16 %v2136
  %v2856 = vunpack.c.l.b16 %v2137
  %v2857 = vunpack.c.h.b16 %v2137
  %v2858 = vunpack.c.l.b16 %v2138
  %v2859 = vunpack.c.l.b16 %v2139
  %v2860 = vunpack.c.h.b16 %v2139
  %v2861 = vunpack.c.l.b16 %v2140
  %v2862 = vunpack.c.l.b16 %v2141
  %v2863 = vunpack.c.h.b16 %v2141
  %v2864 = vunpack.c.l.b16 %v2142
  %v2865 = vunpack.c.l.b16 %v2143
  %v2866 = vunpack.c.h.b16 %v2143
  %v2867 = vunpack.c.l.b16 %v2144
  %v2868 = vunpack.c.l.b16 %v2145
  %v2869 = vunpack.c.h.b16 %v2145
  %v2870 = vunpack.c.l.b16 %v2146
  %v2871 = vunpack.c.l.b16 %v2147
  %v2872 = vunpack.c.h.b16 %v2147
  %v2873 = vunpack.c.l.b16 %v2148
  %v2874 = vpack.c.b16 %v2442, %v2439
  %v2875 = vpack.c.b16 %v2443, %v2440
  %v2876 = vpack.c.b16 %v2444, %v2441
  %v2877 = vpack.c.b16 %v2448, %v2445
  %v2878 = vpack.c.b16 %v2449, %v2446
  %v2879 = vpack.c.b16 %v2450, %v2447
  %v2880 = vpack.c.b16 %v2454, %v2451
  %v2881 = vpack.c.b16 %v2455, %v2452
  %v2882 = vpack.c.b16 %v2456, %v2453
  %v2883 = vpack.c.b16 %v2460, %v2457
  %v2884 = vpack.c.b16 %v2461, %v2458
  %v2885 = vpack.c.b16 %v2462, %v2459
  %v2886 = vpack.c.b16 %v2466, %v2463
  %v2887 = vpack.c.b16 %v2467, %v2464
  %v2888 = vpack.c.b16 %v2468, %v2465
  %v2889 = vpack.c.b16 %v2472, %v2469
  %v2890 = vpack.c.b16 %v2473, %v2470
  %v2891 = vpack.c.b16 %v2474, %v2471
  %v2892 = vpack.c.b16 %v2478, %v2475
  %v2893 = vpack.c.b16 %v2479, %v2476
  %v2894 = vpack.c.b16 %v2480, %v2477
  %v2895 = vpack.c.b16 %v2484, %v2481
  %v2896 = vpack.c.b16 %v2485, %v2482
  %v2897 = vpack.c.b16 %v2486, %v2483
  %v2898 = vpack.c.b16 %v2490, %v2487
  %v2899 = vpack.c.b16 %v2491, %v2488
  %v2900 = vpack.c.b16 %v2492, %v2489
  %v2901 = vpack.c.b16 %v2496, %v2493
  %v2902 = vpack.c.b16 %v2497, %v2494
  %v2903 = vpack.c.b16 %v2498, %v2495
  %v2904 = vpack.c.b16 %v2502, %v2499
  %v2905 = vpack.c.b16 %v2503, %v2500
  %v2906 = vpack.c.b16 %v2504, %v2501
  %v2907 = vpack.c.b16 %v2508, %v2505
  %v2908 = vpack.c.b16 %v2509, %v2506
  %v2909 = vpack.c.b16 %v2510, %v2507
  %v2910 = vpack.c.b16 %v2514, %v2511
  %v2911 = vpack.c.b16 %v2515, %v2512
  %v2912 = vpack.c.b16 %v2516, %v2513
  %v2913 = vpack.c.b16 %v2520, %v2517
  %v2914 = vpack.c.b16 %v2521, %v2518
  %v2915 = vpack.c.b16 %v2522, %v2519
  %v2916 = vpack.c.b16 %v2526, %v2523
  %v2917 = vpack.c.b16 %v2527, %v2524
  %v2918 = vpack.c.b16 %v2528, %v2525
  %v2919 = vpack.c.b16 %v2532, %v2529
  %v2920 = vpack.c.b16 %v2533, %v2530
  %v2921 = vpack.c.b16 %v2534, %v2531
  %v2922 = vpack.c.b16 %v2538, %v2535
  %v2923 = vpack.c.b16 %v2539, %v2536
  %v2924 = vpack.c.b16 %v2540, %v2537
  %v2925 = vpack.c.b16 %v2544, %v2541
  %v2926 = vpack.c.b16 %v2545, %v2542
  %v2927 = vpack.c.b16 %v2546, %v2543
  %v2928 = vpack.c.b16 %v2550, %v2547
  %v2929 = vpack.c.b16 %v2551, %v2548
  %v2930 = vpack.c.b16 %v2552, %v2549
  %v2931 = vpack.c.b16 %v2556, %v2553
  %v2932 = vpack.c.b16 %v2557, %v2554
  %v2933 = vpack.c.b16 %v2558, %v2555
  %v2934 = vpack.c.b16 %v2562, %v2559
  %v2935 = vpack.c.b16 %v2563, %v2560
  %v2936 = vpack.c.b16 %v2564, %v2561
  %v2937 = vpack.c.b16 %v2568, %v2565
  %v2938 = vpack.c.b16 %v2569, %v2566
  %v2939 = vpack.c.b16 %v2570, %v2567
  %v2940 = vpack.c.b16 %v2574, %v2571
  %v2941 = vpack.c.b16 %v2575, %v2572
  %v2942 = vpack.c.b16 %v2576, %v2573
  %v2943 = vpack.c.b16 %v2580, %v2577
  %v2944 = vpack.c.b16 %v2581, %v2578
  %v2945 = vpack.c.b16 %v2582, %v2579
  %v2946 = vpack.c.b16 %v2586, %v2583
  %v2947 = vpack.c.b16 %v2587, %v2584
  %v2948 = vpack.c.b16 %v2588, %v2585
  %v2949 = vpack.c.b16 %v2592, %v2589
  %v2950 = vpack.c.b16 %v2593, %v2590
  %v2951 = vpack.c.b16 %v2594, %v2591
  %v2952 = vpack.c.b16 %v2598, %v2595
  %v2953 = vpack.c.b16 %v2599, %v2596
  %v2954 = vpack.c.b16 %v2600, %v2597
  %v2955 = vpack.c.b16 %v2604, %v2601
  %v2956 = vpack.c.b16 %v2605, %v2602
  %v2957 = vpack.c.b16 %v2606, %v2603
  %v2958 = vpack.c.b16 %v2610, %v2607
  %v2959 = vpack.c.b16 %v2611, %v2608
  %v2960 = vpack.c.b16 %v2612, %v2609
  %v2961 = vpack.c.b16 %v2616, %v2613
  %v2962 = vpack.c.b16 %v2617, %v2614
  %v2963 = vpack.c.b16 %v2618, %v2615
  %v2964 = vpack.c.b16 %v2622, %v2619
  %v2965 = vpack.c.b16 %v2623, %v2620
  %v2966 = vpack.c.b16 %v2624, %v2621
  %v2967 = vpack.c.b16 %v2628, %v2625
  %v2968 = vpack.c.b16 %v2629, %v2626
  %v2969 = vpack.c.b16 %v2630, %v2627
  %v2970 = vpack.c.b16 %v2634, %v2631
  %v2971 = vpack.c.b16 %v2635, %v2632
  %v2972 = vpack.c.b16 %v2636, %v2633
  %v2973 = vpack.c.b16 %v2640, %v2637
  %v2974 = vpack.c.b16 %v2641, %v2638
  %v2975 = vpack.c.b16 %v2642, %v2639
  %v2976 = vpack.c.b16 %v2646, %v2643
  %v2977 = vpack.c.b16 %v2647, %v2644
  %v2978 = vpack.c.b16 %v2648, %v2645
  %v2979 = vpack.c.b16 %v2652, %v2649
  %v2980 = vpack.c.b16 %v2653, %v2650
  %v2981 = vpack.c.b16 %v2654, %v2651
  %v2982 = vpack.c.b16 %v2658, %v2655
  %v2983 = vpack.c.b16 %v2659, %v2656
  %v2984 = vpack.c.b16 %v2660, %v2657
  %v2985 = vpack.c.b16 %v2664, %v2661
  %v2986 = vpack.c.b16 %v2665, %v2662
  %v2987 = vpack.c.b16 %v2666, %v2663
  %v2988 = vpack.c.b16 %v2670, %v2667
  %v2989 = vpack.c.b16 %v2671, %v2668
  %v2990 = vpack.c.b16 %v2672, %v2669
  %v2991 = vpack.c.b16 %v2676, %v2673
  %v2992 = vpack.c.b16 %v2677, %v2674
  %v2993 = vpack.c.b16 %v2678, %v2675
  %v2994 = vpack.c.b16 %v2682, %v2679
  %v2995 = vpack.c.b16 %v2683, %v2680
  %v2996 = vpack.c.b16 %v2684, %v2681
  %v2997 = vpack.c.b16 %v2688, %v2685
  %v2998 = vpack.c.b16 %v2689, %v2686
  %v2999 = vpack.c.b16 %v2690, %v2687
  %v3000 = vpack.c.b16 %v2694, %v2691
  %v3001 = vpack.c.b16 %v2695, %v2692
  %v3002 = vpack.c.b16 %v2696, %v2693
  %v3003 = vpack.c.b16 %v2700, %v2697
  %v3004 = vpack.c.b16 %v2701, %v2698
  %v3005 = vpack.c.b16 %v2702, %v2699
  %v3006 = vpack.c.b16 %v2706, %v2703
  %v3007 = vpack.c.b16 %v2707, %v2704
  %v3008 = vpack.c.b16 %v2708, %v2705
  %v3009 = vpack.c.b16 %v2712, %v2709
  %v3010 = vpack.c.b16 %v2713, %v2710
  %v3011 = vpack.c.b16 %v2714, %v2711
  %v3012 = vpack.c.b16 %v2718, %v2715
  %v3013 = vpack.c.b16 %v2719, %v2716
  %v3014 = vpack.c.b16 %v2720, %v2717
  %v3015 = vpack.c.b16 %v2724, %v2721
  %v3016 = vpack.c.b16 %v2725, %v2722
  %v3017 = vpack.c.b16 %v2726, %v2723
  %v3018 = vpack.c.b16 %v2730, %v2727
  %v3019 = vpack.c.b16 %v2731, %v2728
  %v3020 = vpack.c.b16 %v2732, %v2729
  %v3021 = vpack.c.b16 %v2736, %v2733
  %v3022 = vpack.c.b16 %v2737, %v2734
  %v3023 = vpack.c.b16 %v2738, %v2735
  %v3024 = vpack.c.b16 %v2742, %v2739
  %v3025 = vpack.c.b16 %v2743, %v2740
  %v3026 = vpack.c.b16 %v2744, %v2741
  %v3027 = vpack.c.b16 %v2748, %v2745
  %v3028 = vpack.c.b16 %v2749, %v2746
  %v3029 = vpack.c.b16 %v2750, %v2747
  %v3030 = vpack.c.b16 %v2754, %v2751
  %v3031 = vpack.c.b16 %v2755, %v2752
  %v3032 = vpack.c.b16 %v2756, %v2753
  %v3033 = vpack.c.b16 %v2760, %v2757
  %v3034 = vpack.c.b16 %v2761, %v2758
  %v3035 = vpack.c.b16 %v2762, %v2759
  %v3036 = vpack.c.b16 %v2766, %v2763
  %v3037 = vpack.c.b16 %v2767, %v2764
  %v3038 = vpack.c.b16 %v2768, %v2765
  %v3039 = vpack.c.b16 %v2772, %v2769
  %v3040 = vpack.c.b16 %v2773, %v2770
  %v3041 = vpack.c.b16 %v2774, %v2771
  %v3042 = vpack.c.b16 %v2778, %v2775
  %v3043 = vpack.c.b16 %v2779, %v2776
  %v3044 = vpack.c.b16 %v2780, %v2777
  %v3045 = vpack.c.b16 %v2784, %v2781
  %v3046 = vpack.c.b16 %v2785, %v2782
  %v3047 = vpack.c.b16 %v2786, %v2783
  %v3048 = vpack.c.b16 %v2790, %v2787
  %v3049 = vpack.c.b16 %v2791, %v2788
  %v3050 = vpack.c.b16 %v2792, %v2789
  %v3051 = vpack.c.b16 %v2796, %v2793
  %v3052 = vpack.c.b16 %v2797, %v2794
  %v3053 = vpack.c.b16 %v2798, %v2795
  %v3054 = vpack.c.b16 %v2802, %v2799
  %v3055 = vpack.c.b16 %v2803, %v2800
  %v3056 = vpack.c.b16 %v2804, %v2801
  %v3057 = vpack.c.b16 %v2808, %v2805
  %v3058 = vpack.c.b16 %v2809, %v2806
  %v3059 = vpack.c.b16 %v2810, %v2807
  %v3060 = vpack.c.b16 %v2814, %v2811
  %v3061 = vpack.c.b16 %v2815, %v2812
  %v3062 = vpack.c.b16 %v2816, %v2813
  %v3063 = vpack.c.b16 %v2820, %v2817
  %v3064 = vpack.c.b16 %v2821, %v2818
  %v3065 = vpack.c.b16 %v2822, %v2819
  %v3066 = vpack.c.b16 %v2826, %v2823
  %v3067 = vpack.c.b16 %v2827, %v2824
  %v3068 = vpack.c.b16 %v2828, %v2825
  %v3069 = vpack.c.b16 %v2832, %v2829
  %v3070 = vpack.c.b16 %v2833, %v2830
  %v3071 = vpack.c.b16 %v2834, %v2831
  %v3072 = vpack.c.b16 %v2838, %v2835
  %v3073 = vpack.c.b16 %v2839, %v2836
  %v3074 = vpack.c.b16 %v2840, %v2837
  %v3075 = vpack.c.b16 %v2844, %v2841
  %v3076 = vpack.c.b16 %v2845, %v2842
  %v3077 = vpack.c.b16 %v2846, %v2843
  %v3078 = vpack.c.b16 %v2850, %v2847
  %v3079 = vpack.c.b16 %v2851, %v2848
  %v3080 = vpack.c.b16 %v2852, %v2849
  %v3081 = vpack.c.b16 %v2856, %v2853
  %v3082 = vpack.c.b16 %v2857, %v2854
  %v3083 = vpack.c.b16 %v2858, %v2855
  %v3084 = vpack.c.b16 %v2862, %v2859
  %v3085 = vpack.c.b16 %v2863, %v2860
  %v3086 = vpack.c.b16 %v2864, %v2861
  %v3087 = vpack.c.b16 %v2868, %v2865
  %v3088 = vpack.c.b16 %v2869, %v2866
  %v3089 = vpack.c.b16 %v2870, %v2867
  %v3090 = vpack.c.b16 %v2871, %v2871
  %v3091 = vpack.c.b16 %v2872, %v2872
  %v3092 = vpack.c.b16 %v2873, %v2873
  %v3310 = vsel %vm1696, %v1858, 0
  %vm3312 = vcmask 1041408
  %v3314 = vsel %vm3312, %v3090, 0
  %v3317 = vsel %vm3312, %v3091, 0
  %v3320 = vsel %vm3312, %v3092, 0
  %3322 = vmatprep.subr.bf16.mxu0 %v2875
  %3323 = vmatpush1.bf16.msra.mxu0 %v2874
  %3324 = vmatprep.subr.bf16.mxu0 %v2878
  %3325 = vmatpush1.bf16.msra.mxu0 %v2877
  %3326 = vmatprep.subr.bf16.mxu0 %v2881
  %3327 = vmatpush1.bf16.msra.mxu0 %v2880
  %3328 = vmatprep.subr.bf16.mxu0 %v2884
  %3329 = vmatpush1.bf16.msra.mxu0 %v2883
  %3330 = vmatprep.subr.bf16.mxu0 %v2887
  %3331 = vmatpush1.bf16.msra.mxu0 %v2886
  %3332 = vmatprep.subr.bf16.mxu0 %v2890
  %3333 = vmatpush1.bf16.msra.mxu0 %v2889
  %3334 = vmatprep.subr.bf16.mxu0 %v2893
  %3335 = vmatpush1.bf16.msra.mxu0 %v2892
  %3336 = vmatprep.subr.bf16.mxu0 %v2896
  %3337 = vmatpush1.bf16.msra.mxu0 %v2895
  %3338 = vmatprep.subr.bf16.mxu0 %v2899
  %3339 = vmatpush1.bf16.msra.mxu0 %v2898
  %3340 = vmatprep.subr.bf16.mxu0 %v2902
  %3341 = vmatpush1.bf16.msra.mxu0 %v2901
  %3342 = vmatprep.subr.bf16.mxu0 %v2905
  %3343 = vmatpush1.bf16.msra.mxu0 %v2904
  %3344 = vmatprep.subr.bf16.mxu0 %v2908
  %3345 = vmatpush1.bf16.msra.mxu0 %v2907
  %3346 = vmatprep.subr.bf16.mxu0 %v2911
  %3347 = vmatpush1.bf16.msra.mxu0 %v2910
  %3348 = vmatprep.subr.bf16.mxu0 %v2914
  %3349 = vmatpush1.bf16.msra.mxu0 %v2913
  %3350 = vmatprep.subr.bf16.mxu0 %v2917
  %3351 = vmatpush1.bf16.msra.mxu0 %v2916
  %3352 = vmatprep.subr.bf16.mxu0 %v2920
  %3353 = vmatpush1.bf16.msra.mxu0 %v2919
  %3354 = vmatprep.mubr.bf16.mxu0 %v1850
  %3355 = vmatmul.mubr.bf16.gmra.mrb[0].mxu0 %v1849
  %v3356 = vpop.f32.mrb[0].mxu0
  %v3357 = vadd.f32 0.0, %v3356
  %v3358 = vpop.f32.mrb[0].mxu0
  %v3359 = vadd.f32 0.0, %v3358
  %v3360 = vpop.f32.mrb[0].mxu0
  %v3361 = vpop.f32.mrb[0].mxu0
  %3362 = vdwg.mxu0
  %3363 = vmatprep.subr.bf16.mxu0 %v2923
  %3364 = vmatpush1.bf16.msra.mxu0 %v2922
  %3365 = vmatprep.subr.bf16.mxu0 %v2926
  %3366 = vmatpush1.bf16.msra.mxu0 %v2925
  %3367 = vmatprep.subr.bf16.mxu0 %v2929
  %3368 = vmatpush1.bf16.msra.mxu0 %v2928
  %3369 = vmatprep.subr.bf16.mxu0 %v2932
  %3370 = vmatpush1.bf16.msra.mxu0 %v2931
  %3371 = vmatprep.subr.bf16.mxu0 %v2935
  %3372 = vmatpush1.bf16.msra.mxu0 %v2934
  %3373 = vmatprep.subr.bf16.mxu0 %v2938
  %3374 = vmatpush1.bf16.msra.mxu0 %v2937
  %3375 = vmatprep.subr.bf16.mxu0 %v2941
  %3376 = vmatpush1.bf16.msra.mxu0 %v2940
  %3377 = vmatprep.subr.bf16.mxu0 %v2944
  %3378 = vmatpush1.bf16.msra.mxu0 %v2943
  %3379 = vmatprep.subr.bf16.mxu0 %v2947
  %3380 = vmatpush1.bf16.msra.mxu0 %v2946
  %3381 = vmatprep.subr.bf16.mxu0 %v2950
  %3382 = vmatpush1.bf16.msra.mxu0 %v2949
  %3383 = vmatprep.subr.bf16.mxu0 %v2953
  %3384 = vmatpush1.bf16.msra.mxu0 %v2952
  %3385 = vmatprep.subr.bf16.mxu0 %v2956
  %3386 = vmatpush1.bf16.msra.mxu0 %v2955
  %3387 = vmatprep.subr.bf16.mxu0 %v2959
  %3388 = vmatpush1.bf16.msra.mxu0 %v2958
  %3389 = vmatprep.subr.bf16.mxu0 %v2962
  %3390 = vmatpush1.bf16.msra.mxu0 %v2961
  %3391 = vmatprep.subr.bf16.mxu0 %v2965
  %3392 = vmatpush1.bf16.msra.mxu0 %v2964
  %3393 = vmatprep.subr.bf16.mxu0 %v2968
  %3394 = vmatpush1.bf16.msra.mxu0 %v2967
  %3395 = vmatprep.mubr.bf16.mxu0 %v1852
  %3396 = vmatmul.mubr.bf16.gmra.mrb[0].mxu0 %v1851
  %v3397 = vpop.f32.mrb[0].mxu0
  %v3398 = vadd.f32 %v3357, %v3397
  %v3399 = vpop.f32.mrb[0].mxu0
  %v3400 = vadd.f32 %v3359, %v3399
  %v3401 = vpop.f32.mrb[0].mxu0
  %v3402 = vpop.f32.mrb[0].mxu0
  %3403 = vdwg.mxu0
  %3404 = vmatprep.subr.bf16.mxu0 %v2971
  %3405 = vmatpush1.bf16.msra.mxu0 %v2970
  %3406 = vmatprep.subr.bf16.mxu0 %v2974
  %3407 = vmatpush1.bf16.msra.mxu0 %v2973
  %3408 = vmatprep.subr.bf16.mxu0 %v2977
  %3409 = vmatpush1.bf16.msra.mxu0 %v2976
  %3410 = vmatprep.subr.bf16.mxu0 %v2980
  %3411 = vmatpush1.bf16.msra.mxu0 %v2979
  %3412 = vmatprep.subr.bf16.mxu0 %v2983
  %3413 = vmatpush1.bf16.msra.mxu0 %v2982
  %3414 = vmatprep.subr.bf16.mxu0 %v2986
  %3415 = vmatpush1.bf16.msra.mxu0 %v2985
  %3416 = vmatprep.subr.bf16.mxu0 %v2989
  %3417 = vmatpush1.bf16.msra.mxu0 %v2988
  %3418 = vmatprep.subr.bf16.mxu0 %v2992
  %3419 = vmatpush1.bf16.msra.mxu0 %v2991
  %3420 = vmatprep.subr.bf16.mxu0 %v2995
  %3421 = vmatpush1.bf16.msra.mxu0 %v2994
  %3422 = vmatprep.subr.bf16.mxu0 %v2998
  %3423 = vmatpush1.bf16.msra.mxu0 %v2997
  %3424 = vmatprep.subr.bf16.mxu0 %v3001
  %3425 = vmatpush1.bf16.msra.mxu0 %v3000
  %3426 = vmatprep.subr.bf16.mxu0 %v3004
  %3427 = vmatpush1.bf16.msra.mxu0 %v3003
  %3428 = vmatprep.subr.bf16.mxu0 %v3007
  %3429 = vmatpush1.bf16.msra.mxu0 %v3006
  %3430 = vmatprep.subr.bf16.mxu0 %v3010
  %3431 = vmatpush1.bf16.msra.mxu0 %v3009
  %3432 = vmatprep.subr.bf16.mxu0 %v3013
  %3433 = vmatpush1.bf16.msra.mxu0 %v3012
  %3434 = vmatprep.subr.bf16.mxu0 %v3016
  %3435 = vmatpush1.bf16.msra.mxu0 %v3015
  %3436 = vmatprep.mubr.bf16.mxu0 %v1854
  %3437 = vmatmul.mubr.bf16.gmra.mrb[0].mxu0 %v1853
  %v3438 = vpop.f32.mrb[0].mxu0
  %v3439 = vadd.f32 %v3398, %v3438
  %v3440 = vpop.f32.mrb[0].mxu0
  %v3441 = vadd.f32 %v3400, %v3440
  %v3442 = vpop.f32.mrb[0].mxu0
  %v3443 = vpop.f32.mrb[0].mxu0
  %3444 = vdwg.mxu0
  %3445 = vmatprep.subr.bf16.mxu0 %v3019
  %3446 = vmatpush1.bf16.msra.mxu0 %v3018
  %3447 = vmatprep.subr.bf16.mxu0 %v3022
  %3448 = vmatpush1.bf16.msra.mxu0 %v3021
  %3449 = vmatprep.subr.bf16.mxu0 %v3025
  %3450 = vmatpush1.bf16.msra.mxu0 %v3024
  %3451 = vmatprep.subr.bf16.mxu0 %v3028
  %3452 = vmatpush1.bf16.msra.mxu0 %v3027
  %3453 = vmatprep.subr.bf16.mxu0 %v3031
  %3454 = vmatpush1.bf16.msra.mxu0 %v3030
  %3455 = vmatprep.subr.bf16.mxu0 %v3034
  %3456 = vmatpush1.bf16.msra.mxu0 %v3033
  %3457 = vmatprep.subr.bf16.mxu0 %v3037
  %3458 = vmatpush1.bf16.msra.mxu0 %v3036
  %3459 = vmatprep.subr.bf16.mxu0 %v3040
  %3460 = vmatpush1.bf16.msra.mxu0 %v3039
  %3461 = vmatprep.subr.bf16.mxu0 %v3043
  %3462 = vmatpush1.bf16.msra.mxu0 %v3042
  %3463 = vmatprep.subr.bf16.mxu0 %v3046
  %3464 = vmatpush1.bf16.msra.mxu0 %v3045
  %3465 = vmatprep.subr.bf16.mxu0 %v3049
  %3466 = vmatpush1.bf16.msra.mxu0 %v3048
  %3467 = vmatprep.subr.bf16.mxu0 %v3052
  %3468 = vmatpush1.bf16.msra.mxu0 %v3051
  %3469 = vmatprep.subr.bf16.mxu0 %v3055
  %3470 = vmatpush1.bf16.msra.mxu0 %v3054
  %3471 = vmatprep.subr.bf16.mxu0 %v3058
  %3472 = vmatpush1.bf16.msra.mxu0 %v3057
  %3473 = vmatprep.subr.bf16.mxu0 %v3061
  %3474 = vmatpush1.bf16.msra.mxu0 %v3060
  %3475 = vmatprep.subr.bf16.mxu0 %v3064
  %3476 = vmatpush1.bf16.msra.mxu0 %v3063
  %3477 = vmatprep.mubr.bf16.mxu0 %v1856
  %3478 = vmatmul.mubr.bf16.gmra.mrb[0].mxu0 %v1855
  %v3479 = vpop.f32.mrb[0].mxu0
  %v3480 = vadd.f32 %v3439, %v3479
  %v3481 = vpop.f32.mrb[0].mxu0
  %v3482 = vadd.f32 %v3441, %v3481
  %v3483 = vpop.f32.mrb[0].mxu0
  %v3484 = vpop.f32.mrb[0].mxu0
  %3485 = vdwg.mxu0
  %3486 = vmatprep.subr.bf16.mxu0 %v3067
  %3487 = vmatpush1.bf16.msra.mxu0 %v3066
  %3488 = vmatprep.subr.bf16.mxu0 %v3070
  %3489 = vmatpush1.bf16.msra.mxu0 %v3069
  %3490 = vmatprep.subr.bf16.mxu0 %v3073
  %3491 = vmatpush1.bf16.msra.mxu0 %v3072
  %3492 = vmatprep.subr.bf16.mxu0 %v3076
  %3493 = vmatpush1.bf16.msra.mxu0 %v3075
  %3494 = vmatprep.subr.bf16.mxu0 %v3079
  %3495 = vmatpush1.bf16.msra.mxu0 %v3078
  %3496 = vmatprep.subr.bf16.mxu0 %v3082
  %3497 = vmatpush1.bf16.msra.mxu0 %v3081
  %3498 = vmatprep.subr.bf16.mxu0 %v3085
  %3499 = vmatpush1.bf16.msra.mxu0 %v3084
  %3500 = vmatprep.subr.bf16.mxu0 %v3088
  %3501 = vmatpush1.bf16.msra.mxu0 %v3087
  %3502 = vmatprep.subr.bf16.mxu0 %v3317
  %3503 = vmatpush1.bf16.msra.mxu0 %v3314
  %3504 = vmatprep.subr.bf16.mxu0 0
  %3505 = vmatpush1.bf16.msra.mxu0 0
  %3506 = vmatprep.subr.bf16.mxu0 0
  %3507 = vmatpush1.bf16.msra.mxu0 0
  %3508 = vmatprep.subr.bf16.mxu0 0
  %3509 = vmatpush1.bf16.msra.mxu0 0
  %3510 = vmatprep.subr.bf16.mxu0 0
  %3511 = vmatpush1.bf16.msra.mxu0 0
  %3512 = vmatprep.subr.bf16.mxu0 0
  %3513 = vmatpush1.bf16.msra.mxu0 0
  %3514 = vmatprep.subr.bf16.mxu0 0
  %3515 = vmatpush1.bf16.msra.mxu0 0
  %3516 = vmatprep.subr.bf16.mxu0 0
  %3517 = vmatpush1.bf16.msra.mxu0 0
  %3518 = vmatprep.mubr.bf16.mxu0 %v3310
  %3519 = vmatmul.mubr.bf16.gmra.mrb[0].mxu0 %v1857
  %v3520 = vpop.f32.mrb[0].mxu0
  %v3521 = vadd.f32 %v3480, %v3520
  %v3522 = vpop.f32.mrb[0].mxu0
  %v3523 = vadd.f32 %v3482, %v3522
  %v3524 = vpop.f32.mrb[0].mxu0
  %v3525 = vpop.f32.mrb[0].mxu0
  %3526 = vdwg.mxu0
  %3527 = vmatprep.subr.bf16.mxu0 0
  %3528 = vmatpush1.bf16.msra.mxu0 %v2876
  %3529 = vmatprep.subr.bf16.mxu0 0
  %3530 = vmatpush1.bf16.msra.mxu0 %v2879
  %3531 = vmatprep.subr.bf16.mxu0 0
  %3532 = vmatpush1.bf16.msra.mxu0 %v2882
  %3533 = vmatprep.subr.bf16.mxu0 0
  %3534 = vmatpush1.bf16.msra.mxu0 %v2885
  %3535 = vmatprep.subr.bf16.mxu0 0
  %3536 = vmatpush1.bf16.msra.mxu0 %v2888
  %3537 = vmatprep.subr.bf16.mxu0 0
  %3538 = vmatpush1.bf16.msra.mxu0 %v2891
  %3539 = vmatprep.subr.bf16.mxu0 0
  %3540 = vmatpush1.bf16.msra.mxu0 %v2894
  %3541 = vmatprep.subr.bf16.mxu0 0
  %3542 = vmatpush1.bf16.msra.mxu0 %v2897
  %3543 = vmatprep.subr.bf16.mxu0 0
  %3544 = vmatpush1.bf16.msra.mxu0 %v2900
  %3545 = vmatprep.subr.bf16.mxu0 0
  %3546 = vmatpush1.bf16.msra.mxu0 %v2903
  %3547 = vmatprep.subr.bf16.mxu0 0
  %3548 = vmatpush1.bf16.msra.mxu0 %v2906
  %3549 = vmatprep.subr.bf16.mxu0 0
  %3550 = vmatpush1.bf16.msra.mxu0 %v2909
  %3551 = vmatprep.subr.bf16.mxu0 0
  %3552 = vmatpush1.bf16.msra.mxu0 %v2912
  %3553 = vmatprep.subr.bf16.mxu0 0
  %3554 = vmatpush1.bf16.msra.mxu0 %v2915
  %3555 = vmatprep.subr.bf16.mxu0 0
  %3556 = vmatpush1.bf16.msra.mxu0 %v2918
  %3557 = vmatprep.subr.bf16.mxu0 0
  %3558 = vmatpush1.bf16.msra.mxu0 %v2921
  %3559 = vmatprep.mubr.bf16.mxu0 %v1850
  %3560 = vmatmul.mubr.bf16.gmra.mrb[0].mxu0 %v1849
  %v3561 = vpop.f32.mrb[0].mxu0
  %v3562 = vadd.f32 0.0, %v3561
  %v3563 = vpop.f32.mrb[0].mxu0
  %v3564 = vpop.f32.mrb[0].mxu0
  %v3565 = vpop.f32.mrb[0].mxu0
  %3566 = vdwg.mxu0
  %3567 = vmatprep.subr.bf16.mxu0 0
  %3568 = vmatpush1.bf16.msra.mxu0 %v2924
  %3569 = vmatprep.subr.bf16.mxu0 0
  %3570 = vmatpush1.bf16.msra.mxu0 %v2927
  %3571 = vmatprep.subr.bf16.mxu0 0
  %3572 = vmatpush1.bf16.msra.mxu0 %v2930
  %3573 = vmatprep.subr.bf16.mxu0 0
  %3574 = vmatpush1.bf16.msra.mxu0 %v2933
  %3575 = vmatprep.subr.bf16.mxu0 0
  %3576 = vmatpush1.bf16.msra.mxu0 %v2936
  %3577 = vmatprep.subr.bf16.mxu0 0
  %3578 = vmatpush1.bf16.msra.mxu0 %v2939
  %3579 = vmatprep.subr.bf16.mxu0 0
  %3580 = vmatpush1.bf16.msra.mxu0 %v2942
  %3581 = vmatprep.subr.bf16.mxu0 0
  %3582 = vmatpush1.bf16.msra.mxu0 %v2945
  %3583 = vmatprep.subr.bf16.mxu0 0
  %3584 = vmatpush1.bf16.msra.mxu0 %v2948
  %3585 = vmatprep.subr.bf16.mxu0 0
  %3586 = vmatpush1.bf16.msra.mxu0 %v2951
  %3587 = vmatprep.subr.bf16.mxu0 0
  %3588 = vmatpush1.bf16.msra.mxu0 %v2954
  %3589 = vmatprep.subr.bf16.mxu0 0
  %3590 = vmatpush1.bf16.msra.mxu0 %v2957
  %3591 = vmatprep.subr.bf16.mxu0 0
  %3592 = vmatpush1.bf16.msra.mxu0 %v2960
  %3593 = vmatprep.subr.bf16.mxu0 0
  %3594 = vmatpush1.bf16.msra.mxu0 %v2963
  %3595 = vmatprep.subr.bf16.mxu0 0
  %3596 = vmatpush1.bf16.msra.mxu0 %v2966
  %3597 = vmatprep.subr.bf16.mxu0 0
  %3598 = vmatpush1.bf16.msra.mxu0 %v2969
  %3599 = vmatprep.mubr.bf16.mxu0 %v1852
  %3600 = vmatmul.mubr.bf16.gmra.mrb[0].mxu0 %v1851
  %v3601 = vpop.f32.mrb[0].mxu0
  %v3602 = vadd.f32 %v3562, %v3601
  %v3603 = vpop.f32.mrb[0].mxu0
  %v3604 = vpop.f32.mrb[0].mxu0
  %v3605 = vpop.f32.mrb[0].mxu0
  %3606 = vdwg.mxu0
  %3607 = vmatprep.subr.bf16.mxu0 0
  %3608 = vmatpush1.bf16.msra.mxu0 %v2972
  %3609 = vmatprep.subr.bf16.mxu0 0
  %3610 = vmatpush1.bf16.msra.mxu0 %v2975
  %3611 = vmatprep.subr.bf16.mxu0 0
  %3612 = vmatpush1.bf16.msra.mxu0 %v2978
  %3613 = vmatprep.subr.bf16.mxu0 0
  %3614 = vmatpush1.bf16.msra.mxu0 %v2981
  %3615 = vmatprep.subr.bf16.mxu0 0
  %3616 = vmatpush1.bf16.msra.mxu0 %v2984
  %3617 = vmatprep.subr.bf16.mxu0 0
  %3618 = vmatpush1.bf16.msra.mxu0 %v2987
  %3619 = vmatprep.subr.bf16.mxu0 0
  %3620 = vmatpush1.bf16.msra.mxu0 %v2990
  %3621 = vmatprep.subr.bf16.mxu0 0
  %3622 = vmatpush1.bf16.msra.mxu0 %v2993
  %3623 = vmatprep.subr.bf16.mxu0 0
  %3624 = vmatpush1.bf16.msra.mxu0 %v2996
  %3625 = vmatprep.subr.bf16.mxu0 0
  %3626 = vmatpush1.bf16.msra.mxu0 %v2999
  %3627 = vmatprep.subr.bf16.mxu0 0
  %3628 = vmatpush1.bf16.msra.mxu0 %v3002
  %3629 = vmatprep.subr.bf16.mxu0 0
  %3630 = vmatpush1.bf16.msra.mxu0 %v3005
  %3631 = vmatprep.subr.bf16.mxu0 0
  %3632 = vmatpush1.bf16.msra.mxu0 %v3008
  %3633 = vmatprep.subr.bf16.mxu0 0
  %3634 = vmatpush1.bf16.msra.mxu0 %v3011
  %3635 = vmatprep.subr.bf16.mxu0 0
  %3636 = vmatpush1.bf16.msra.mxu0 %v3014
  %3637 = vmatprep.subr.bf16.mxu0 0
  %3638 = vmatpush1.bf16.msra.mxu0 %v3017
  %3639 = vmatprep.mubr.bf16.mxu0 %v1854
  %3640 = vmatmul.mubr.bf16.gmra.mrb[0].mxu0 %v1853
  %v3641 = vpop.f32.mrb[0].mxu0
  %v3642 = vadd.f32 %v3602, %v3641
  %v3643 = vpop.f32.mrb[0].mxu0
  %v3644 = vpop.f32.mrb[0].mxu0
  %v3645 = vpop.f32.mrb[0].mxu0
  %3646 = vdwg.mxu0
  %3647 = vmatprep.subr.bf16.mxu0 0
  %3648 = vmatpush1.bf16.msra.mxu0 %v3020
  %3649 = vmatprep.subr.bf16.mxu0 0
  %3650 = vmatpush1.bf16.msra.mxu0 %v3023
  %3651 = vmatprep.subr.bf16.mxu0 0
  %3652 = vmatpush1.bf16.msra.mxu0 %v3026
  %3653 = vmatprep.subr.bf16.mxu0 0
  %3654 = vmatpush1.bf16.msra.mxu0 %v3029
  %3655 = vmatprep.subr.bf16.mxu0 0
  %3656 = vmatpush1.bf16.msra.mxu0 %v3032
  %3657 = vmatprep.subr.bf16.mxu0 0
  %3658 = vmatpush1.bf16.msra.mxu0 %v3035
  %3659 = vmatprep.subr.bf16.mxu0 0
  %3660 = vmatpush1.bf16.msra.mxu0 %v3038
  %3661 = vmatprep.subr.bf16.mxu0 0
  %3662 = vmatpush1.bf16.msra.mxu0 %v3041
  %3663 = vmatprep.subr.bf16.mxu0 0
  %3664 = vmatpush1.bf16.msra.mxu0 %v3044
  %3665 = vmatprep.subr.bf16.mxu0 0
  %3666 = vmatpush1.bf16.msra.mxu0 %v3047
  %3667 = vmatprep.subr.bf16.mxu0 0
  %3668 = vmatpush1.bf16.msra.mxu0 %v3050
  %3669 = vmatprep.subr.bf16.mxu0 0
  %3670 = vmatpush1.bf16.msra.mxu0 %v3053
  %3671 = vmatprep.subr.bf16.mxu0 0
  %3672 = vmatpush1.bf16.msra.mxu0 %v3056
  %3673 = vmatprep.subr.bf16.mxu0 0
  %3674 = vmatpush1.bf16.msra.mxu0 %v3059
  %3675 = vmatprep.subr.bf16.mxu0 0
  %3676 = vmatpush1.bf16.msra.mxu0 %v3062
  %3677 = vmatprep.subr.bf16.mxu0 0
  %3678 = vmatpush1.bf16.msra.mxu0 %v3065
  %3679 = vmatprep.mubr.bf16.mxu0 %v1856
  %3680 = vmatmul.mubr.bf16.gmra.mrb[0].mxu0 %v1855
  %v3681 = vpop.f32.mrb[0].mxu0
  %v3682 = vadd.f32 %v3642, %v3681
  %v3683 = vpop.f32.mrb[0].mxu0
  %v3684 = vpop.f32.mrb[0].mxu0
  %v3685 = vpop.f32.mrb[0].mxu0
  %3686 = vdwg.mxu0
  %3687 = vmatprep.subr.bf16.mxu0 0
  %3688 = vmatpush1.bf16.msra.mxu0 %v3068
  %3689 = vmatprep.subr.bf16.mxu0 0
  %3690 = vmatpush1.bf16.msra.mxu0 %v3071
  %3691 = vmatprep.subr.bf16.mxu0 0
  %3692 = vmatpush1.bf16.msra.mxu0 %v3074
  %3693 = vmatprep.subr.bf16.mxu0 0
  %3694 = vmatpush1.bf16.msra.mxu0 %v3077
  %3695 = vmatprep.subr.bf16.mxu0 0
  %3696 = vmatpush1.bf16.msra.mxu0 %v3080
  %3697 = vmatprep.subr.bf16.mxu0 0
  %3698 = vmatpush1.bf16.msra.mxu0 %v3083
  %3699 = vmatprep.subr.bf16.mxu0 0
  %3700 = vmatpush1.bf16.msra.mxu0 %v3086
  %3701 = vmatprep.subr.bf16.mxu0 0
  %3702 = vmatpush1.bf16.msra.mxu0 %v3089
  %3703 = vmatprep.subr.bf16.mxu0 0
  %3704 = vmatpush1.bf16.msra.mxu0 %v3320
  %3705 = vmatprep.subr.bf16.mxu0 0
  %3706 = vmatpush1.bf16.msra.mxu0 0
  %3707 = vmatprep.subr.bf16.mxu0 0
  %3708 = vmatpush1.bf16.msra.mxu0 0
  %3709 = vmatprep.subr.bf16.mxu0 0
  %3710 = vmatpush1.bf16.msra.mxu0 0
  %3711 = vmatprep.subr.bf16.mxu0 0
  %3712 = vmatpush1.bf16.msra.mxu0 0
  %3713 = vmatprep.subr.bf16.mxu0 0
  %3714 = vmatpush1.bf16.msra.mxu0 0
  %3715 = vmatprep.subr.bf16.mxu0 0
  %3716 = vmatpush1.bf16.msra.mxu0 0
  %3717 = vmatprep.subr.bf16.mxu0 0
  %3718 = vmatpush1.bf16.msra.mxu0 0
  %3719 = vmatprep.mubr.bf16.mxu0 %v3310
  %3720 = vmatmul.mubr.bf16.gmra.mrb[0].mxu0 %v1857
  %v3721 = vpop.f32.mrb[0].mxu0
  %v3722 = vadd.f32 %v3682, %v3721
  %v3723 = vpop.f32.mrb[0].mxu0
  %v3724 = vpop.f32.mrb[0].mxu0
  %v3725 = vpop.f32.mrb[0].mxu0
  %3726 = vdwg.mxu0
  %vm3727 = vcmask 154624
  %3728 = vst.msk [vmem:[#allocation2] sm:$0xff] %vm3727, 0.0
  %3732 = vrot.lane.b32.xlu0 %v3521, 19
  %v3733 = vpop.permute.xlu0 %3732
  %3734 = vrot.lane.b32.xlu0 %v3523, 19
  %v3735 = vpop.permute.xlu0 %3734
  %3736 = vrot.lane.b32.xlu0 %v3722, 19
  %v3737 = vpop.permute.xlu0 %3736
  %v3738 = vsel %vm3727, %v3733, %v3735
  %v3739 = vsel %vm3727, %v3735, %v3737
  %vm3743 = vcmask 1047704
  %3744 = vst.msk [vmem:[#allocation2] sm:$0xff] %vm3743, %v3733
  %3745 = vst [vmem:[#allocation2 + $0x8] sm:$0xff] %v3738
  %vm3746 = vcmask 711680
  %3747 = vst.msk [vmem:[#allocation2 + $0x10] sm:$0xff] %vm3746, %v3739
  %vm3748 = vcmask 868024
  %3749 = vst.msk [vmem:[#allocation2 + $0x10] sm:$0xff] %vm3748, 0.0
  %v3750 = vld [vmem:[#allocation2] sm:$0xff]
  %v3751 = vld [vmem:[#allocation2 + $0x8] sm:$0xff]
  %v3752 = vld [vmem:[#allocation2 + $0x10] sm:$0xff]
  %3756 = vrot.lane.b32.xlu0 %v3750, 127
  %v3757 = vpop.permute.xlu0 %3756
  %3758 = vrot.lane.b32.xlu0 %v3751, 127
  %v3759 = vpop.permute.xlu0 %3758
  %3760 = vrot.lane.b32.xlu0 %v3752, 127
  %v3761 = vpop.permute.xlu0 %3760
  %v3762 = vsel %vm318, %v3757, %v3759
  %v3763 = vsel %vm318, %v3759, %v3761
  %3767 = vrot.lane.b32.xlu0 %v3750, 126
  %v3768 = vpop.permute.xlu0 %3767
  %3769 = vrot.lane.b32.xlu0 %v3751, 126
  %v3770 = vpop.permute.xlu0 %3769
  %3771 = vrot.lane.b32.xlu0 %v3752, 126
  %v3772 = vpop.permute.xlu0 %3771
  %v3773 = vsel %vm358, %v3768, %v3770
  %v3774 = vsel %vm358, %v3770, %v3772
  %3778 = vrot.lane.b32.xlu0 %v3750, 110
  %v3779 = vpop.permute.xlu0 %3778
  %3780 = vrot.lane.b32.xlu0 %v3751, 110
  %v3781 = vpop.permute.xlu0 %3780
  %3782 = vrot.lane.b32.xlu0 %v3752, 110
  %v3783 = vpop.permute.xlu0 %3782
  %vm3784 = vcmask 900096
  %v3785 = vsel %vm3784, %v3779, %v3781
  %v3786 = vsel %vm3784, %v3781, %v3783
  %3790 = vrot.lane.b32.xlu0 %v3750, 109
  %v3791 = vpop.permute.xlu0 %3790
  %3792 = vrot.lane.b32.xlu0 %v3751, 109
  %v3793 = vpop.permute.xlu0 %3792
  %3794 = vrot.lane.b32.xlu0 %v3752, 109
  %v3795 = vpop.permute.xlu0 %3794
  %vm3796 = vcmask 891904
  %v3797 = vsel %vm3796, %v3791, %v3793
  %v3798 = vsel %vm3796, %v3793, %v3795
  %3802 = vrot.lane.b32.xlu0 %v3750, 108
  %v3803 = vpop.permute.xlu0 %3802
  %3804 = vrot.lane.b32.xlu0 %v3751, 108
  %v3805 = vpop.permute.xlu0 %3804
  %3806 = vrot.lane.b32.xlu0 %v3752, 108
  %v3807 = vpop.permute.xlu0 %3806
  %vm3808 = vcmask 883712
  %v3809 = vsel %vm3808, %v3803, %v3805
  %v3810 = vsel %vm3808, %v3805, %v3807
  %3814 = vrot.lane.b32.xlu0 %v3750, 92
  %v3815 = vpop.permute.xlu0 %3814
  %3816 = vrot.lane.b32.xlu0 %v3751, 92
  %v3817 = vpop.permute.xlu0 %3816
  %3818 = vrot.lane.b32.xlu0 %v3752, 92
  %v3819 = vpop.permute.xlu0 %3818
  %v3820 = vsel %vm478, %v3815, %v3817
  %v3821 = vsel %vm478, %v3817, %v3819
  %3825 = vrot.lane.b32.xlu0 %v3750, 91
  %v3826 = vpop.permute.xlu0 %3825
  %3827 = vrot.lane.b32.xlu0 %v3751, 91
  %v3828 = vpop.permute.xlu0 %3827
  %3829 = vrot.lane.b32.xlu0 %v3752, 91
  %v3830 = vpop.permute.xlu0 %3829
  %vm3831 = vcmask 744448
  %v3832 = vsel %vm3831, %v3826, %v3828
  %v3833 = vsel %vm3831, %v3828, %v3830
  %3837 = vrot.lane.b32.xlu0 %v3750, 90
  %v3838 = vpop.permute.xlu0 %3837
  %3839 = vrot.lane.b32.xlu0 %v3751, 90
  %v3840 = vpop.permute.xlu0 %3839
  %3841 = vrot.lane.b32.xlu0 %v3752, 90
  %v3842 = vpop.permute.xlu0 %3841
  %vm3843 = vcmask 736256
  %v3844 = vsel %vm3843, %v3838, %v3840
  %v3845 = vsel %vm3843, %v3840, %v3842
  %v3849 = vpack.c.bf16 %v3762, %v3750
  %v3850 = vpack.c.bf16 %v3763, %v3751
  %v3851 = vpack.c.bf16 %v3761, %v3752
  %v3852 = vpack.c.bf16 %v3785, %v3773
  %v3853 = vpack.c.bf16 %v3786, %v3774
  %v3854 = vpack.c.bf16 %v3783, %v3772
  %v3855 = vpack.c.bf16 %v3809, %v3797
  %v3856 = vpack.c.bf16 %v3810, %v3798
  %v3857 = vpack.c.bf16 %v3807, %v3795
  %v3858 = vpack.c.bf16 %v3832, %v3820
  %v3859 = vpack.c.bf16 %v3833, %v3821
  %v3860 = vpack.c.bf16 %v3830, %v3819
  %v3861 = vpack.c.bf16 %v3844, %v3844
  %v3862 = vpack.c.bf16 %v3845, %v3845
  %v3863 = vpack.c.bf16 %v3842, %v3842
  %v3864 = vld [vmem:[%s11] sm:$0xf]
  %v3865 = vld [vmem:[%s11 + $0x4] sm:$0xf]
  %v3866 = vld [vmem:[%s13] sm:$0xff]
  %v3867 = vld [vmem:[%s13 + $0x8] sm:$0xff]
  %3869 = vset.pattern.permute.xlu0 0
  %3870 = vperm.xlu0 %3869, %v3866
  %v3871 = vpop.permute.xlu0 %3870
  %3874 = vset.pattern.permute.xlu0 0
  %3875 = vperm.xlu0 %3874, %v3867
  %v3876 = vpop.permute.xlu0 %3875
  %v3880 = vunpack.c.l.b16 %v3864
  %v3881 = vunpack.c.l.b16 %v3865
  %v3882 = vpack.c.b16 %v3881, %v3880
  %v3884 = vsel %vm675, %v3882, 0
  %v3887 = vsel %vm679, %v3861, 0
  %v3890 = vsel %vm679, %v3862, 0
  %v3893 = vsel %vm679, %v3863, 0
  %3895 = vmatprep.subr.bf16.mxu0 %v3850
  %3896 = vmatpush1.bf16.msra.mxu0 %v3849
  %3897 = vmatprep.subr.bf16.mxu0 %v3853
  %3898 = vmatpush1.bf16.msra.mxu0 %v3852
  %3899 = vmatprep.subr.bf16.mxu0 %v3856
  %3900 = vmatpush1.bf16.msra.mxu0 %v3855
  %3901 = vmatprep.subr.bf16.mxu0 %v3859
  %3902 = vmatpush1.bf16.msra.mxu0 %v3858
  %3903 = vmatprep.subr.bf16.mxu0 %v3890
  %3904 = vmatpush1.bf16.msra.mxu0 %v3887
  %3905 = vmatprep.subr.bf16.mxu0 0
  %3906 = vmatpush1.bf16.msra.mxu0 0
  %3907 = vmatprep.subr.bf16.mxu0 0
  %3908 = vmatpush1.bf16.msra.mxu0 0
  %3909 = vmatprep.subr.bf16.mxu0 0
  %3910 = vmatpush1.bf16.msra.mxu0 0
  %3911 = vmatprep.subr.bf16.mxu0 0
  %3912 = vmatpush1.bf16.msra.mxu0 0
  %3913 = vmatprep.subr.bf16.mxu0 0
  %3914 = vmatpush1.bf16.msra.mxu0 0
  %3915 = vmatprep.subr.bf16.mxu0 0
  %3916 = vmatpush1.bf16.msra.mxu0 0
  %3917 = vmatprep.subr.bf16.mxu0 0
  %3918 = vmatpush1.bf16.msra.mxu0 0
  %3919 = vmatprep.subr.bf16.mxu0 0
  %3920 = vmatpush1.bf16.msra.mxu0 0
  %3921 = vmatprep.subr.bf16.mxu0 0
  %3922 = vmatpush1.bf16.msra.mxu0 0
  %3923 = vmatprep.subr.bf16.mxu0 0
  %3924 = vmatpush1.bf16.msra.mxu0 0
  %3925 = vmatprep.subr.bf16.mxu0 0
  %3926 = vmatpush1.bf16.msra.mxu0 0
  %3927 = vmatprep.mubr.bf16.mxu0 0
  %3928 = vmatmul.mubr.bf16.gmra.mrb[0].mxu0 %v3884
  %v3929 = vpop.f32.mrb[0].mxu0
  %v3930 = vadd.f32 %v3871, %v3929
  %v3931 = vpop.f32.mrb[0].mxu0
  %v3932 = vadd.f32 %v3871, %v3931
  %v3933 = vpop.f32.mrb[0].mxu0
  %v3934 = vadd.f32 %v3876, %v3933
  %v3935 = vpop.f32.mrb[0].mxu0
  %v3936 = vadd.f32 %v3876, %v3935
  %3937 = vdwg.mxu0
  %3938 = vmatprep.subr.bf16.mxu0 0
  %3939 = vmatpush1.bf16.msra.mxu0 %v3851
  %3940 = vmatprep.subr.bf16.mxu0 0
  %3941 = vmatpush1.bf16.msra.mxu0 %v3854
  %3942 = vmatprep.subr.bf16.mxu0 0
  %3943 = vmatpush1.bf16.msra.mxu0 %v3857
  %3944 = vmatprep.subr.bf16.mxu0 0
  %3945 = vmatpush1.bf16.msra.mxu0 %v3860
  %3946 = vmatprep.subr.bf16.mxu0 0
  %3947 = vmatpush1.bf16.msra.mxu0 %v3893
  %3948 = vmatprep.subr.bf16.mxu0 0
  %3949 = vmatpush1.bf16.msra.mxu0 0
  %3950 = vmatprep.subr.bf16.mxu0 0
  %3951 = vmatpush1.bf16.msra.mxu0 0
  %3952 = vmatprep.subr.bf16.mxu0 0
  %3953 = vmatpush1.bf16.msra.mxu0 0
  %3954 = vmatprep.subr.bf16.mxu0 0
  %3955 = vmatpush1.bf16.msra.mxu0 0
  %3956 = vmatprep.subr.bf16.mxu0 0
  %3957 = vmatpush1.bf16.msra.mxu0 0
  %3958 = vmatprep.subr.bf16.mxu0 0
  %3959 = vmatpush1.bf16.msra.mxu0 0
  %3960 = vmatprep.subr.bf16.mxu0 0
  %3961 = vmatpush1.bf16.msra.mxu0 0
  %3962 = vmatprep.subr.bf16.mxu0 0
  %3963 = vmatpush1.bf16.msra.mxu0 0
  %3964 = vmatprep.subr.bf16.mxu0 0
  %3965 = vmatpush1.bf16.msra.mxu0 0
  %3966 = vmatprep.subr.bf16.mxu0 0
  %3967 = vmatpush1.bf16.msra.mxu0 0
  %3968 = vmatprep.subr.bf16.mxu0 0
  %3969 = vmatpush1.bf16.msra.mxu0 0
  %3970 = vmatprep.mubr.bf16.mxu0 0
  %3971 = vmatmul.mubr.bf16.gmra.mrb[0].mxu0 %v3884
  %v3972 = vpop.f32.mrb[0].mxu0
  %v3973 = vadd.f32 %v3871, %v3972
  %v3974 = vpop.f32.mrb[0].mxu0
  %v3975 = vpop.f32.mrb[0].mxu0
  %v3976 = vadd.f32 %v3876, %v3975
  %v3977 = vpop.f32.mrb[0].mxu0
  %3978 = vdwg.mxu0
  %v3979 = vmax.f32 %v3930, 0.0
  %v3980 = vmax.f32 %v3932, 0.0
  %v3981 = vmax.f32 %v3973, 0.0
  %v3982 = vmax.f32 %v3934, 0.0
  %v3983 = vmax.f32 %v3936, 0.0
  %v3984 = vmax.f32 %v3976, 0.0
  %v3985 = vld [vmem:[%s69] sm:$0x7]
  %v3987 = vlaneseq
  %v3988 = vshrl.u32 %v3987, 7
  %v3989 = vsub.s32 0, %v3988
  %v3990 = vrot.slane %v3985, %v3989
  %v3991 = vlaneseq
  %v3992 = vshrl.u32 %v3991, 7
  %v3993 = vsub.s32 1, %v3992
  %v3994 = vrot.slane %v3985, %v3993
  %v3995 = vlaneseq
  %v3996 = vshrl.u32 %v3995, 7
  %v3997 = vsub.s32 2, %v3996
  %v3998 = vrot.slane %v3985, %v3997
  %v4002 = vmul.f32 %v3979, %v3990
  %v4003 = vmul.f32 %v3980, %v3994
  %v4004 = vmul.f32 %v3981, %v3998
  %v4005 = vmul.f32 %v3982, %v3990
  %v4006 = vmul.f32 %v3983, %v3994
  %v4007 = vmul.f32 %v3984, %v3998
  %4008 = vst.msk [vmem:[#allocation2] sm:$0xff] %vm3727, 0.0
  %4009 = vst.msk [vmem:[#allocation2 + $0x50] sm:$0xff] %vm3727, 0.0
  %4016 = vrot.lane.b32.xlu0 %v4002, 19
  %v4017 = vpop.permute.xlu0 %4016
  %4018 = vrot.lane.b32.xlu0 %v4003, 19
  %v4019 = vpop.permute.xlu0 %4018
  %4020 = vrot.lane.b32.xlu0 %v4004, 19
  %v4021 = vpop.permute.xlu0 %4020
  %4022 = vrot.lane.b32.xlu0 %v4005, 19
  %v4023 = vpop.permute.xlu0 %4022
  %4024 = vrot.lane.b32.xlu0 %v4006, 19
  %v4025 = vpop.permute.xlu0 %4024
  %4026 = vrot.lane.b32.xlu0 %v4007, 19
  %v4027 = vpop.permute.xlu0 %4026
  %v4028 = vsel %vm3727, %v4017, %v4019
  %v4029 = vsel %vm3727, %v4019, %v4021
  %v4030 = vsel %vm3727, %v4023, %v4025
  %v4031 = vsel %vm3727, %v4025, %v4027
  %4038 = vst.msk [vmem:[#allocation2] sm:$0xff] %vm3743, %v4017
  %4039 = vst [vmem:[#allocation2 + $0x8] sm:$0xff] %v4028
  %4040 = vst.msk [vmem:[#allocation2 + $0x10] sm:$0xff] %vm3746, %v4029
  %4041 = vst.msk [vmem:[#allocation2 + $0x50] sm:$0xff] %vm3743, %v4023
  %4042 = vst [vmem:[#allocation2 + $0x58] sm:$0xff] %v4030
  %4043 = vst.msk [vmem:[#allocation2 + $0x60] sm:$0xff] %vm3746, %v4031
  %4044 = vst.msk [vmem:[#allocation2 + $0x10] sm:$0xff] %vm3748, 0.0
  %4045 = vst.msk [vmem:[#allocation2 + $0x60] sm:$0xff] %vm3748, 0.0
  %v4046 = vld [vmem:[#allocation2] sm:$0xff]
  %v4047 = vld [vmem:[#allocation2 + $0x8] sm:$0xff]
  %v4048 = vld [vmem:[#allocation2 + $0x10] sm:$0xff]
  %v4049 = vld [vmem:[#allocation2 + $0x50] sm:$0xff]
  %v4050 = vld [vmem:[#allocation2 + $0x58] sm:$0xff]
  %v4051 = vld [vmem:[#allocation2 + $0x60] sm:$0xff]
  %4058 = vrot.lane.b32.xlu0 %v4046, 127
  %v4059 = vpop.permute.xlu0 %4058
  %4060 = vrot.lane.b32.xlu0 %v4047, 127
  %v4061 = vpop.permute.xlu0 %4060
  %4062 = vrot.lane.b32.xlu0 %v4048, 127
  %v4063 = vpop.permute.xlu0 %4062
  %4064 = vrot.lane.b32.xlu0 %v4049, 127
  %v4065 = vpop.permute.xlu0 %4064
  %4066 = vrot.lane.b32.xlu0 %v4050, 127
  %v4067 = vpop.permute.xlu0 %4066
  %4068 = vrot.lane.b32.xlu0 %v4051, 127
  %v4069 = vpop.permute.xlu0 %4068
  %v4070 = vsel %vm318, %v4059, %v4061
  %v4071 = vsel %vm318, %v4061, %v4063
  %v4072 = vsel %vm318, %v4065, %v4067
  %v4073 = vsel %vm318, %v4067, %v4069
  %4080 = vrot.lane.b32.xlu0 %v4046, 126
  %v4081 = vpop.permute.xlu0 %4080
  %4082 = vrot.lane.b32.xlu0 %v4047, 126
  %v4083 = vpop.permute.xlu0 %4082
  %4084 = vrot.lane.b32.xlu0 %v4048, 126
  %v4085 = vpop.permute.xlu0 %4084
  %4086 = vrot.lane.b32.xlu0 %v4049, 126
  %v4087 = vpop.permute.xlu0 %4086
  %4088 = vrot.lane.b32.xlu0 %v4050, 126
  %v4089 = vpop.permute.xlu0 %4088
  %4090 = vrot.lane.b32.xlu0 %v4051, 126
  %v4091 = vpop.permute.xlu0 %4090
  %v4092 = vsel %vm358, %v4081, %v4083
  %v4093 = vsel %vm358, %v4083, %v4085
  %v4094 = vsel %vm358, %v4087, %v4089
  %v4095 = vsel %vm358, %v4089, %v4091
  %4102 = vrot.lane.b32.xlu0 %v4046, 110
  %v4103 = vpop.permute.xlu0 %4102
  %4104 = vrot.lane.b32.xlu0 %v4047, 110
  %v4105 = vpop.permute.xlu0 %4104
  %4106 = vrot.lane.b32.xlu0 %v4048, 110
  %v4107 = vpop.permute.xlu0 %4106
  %4108 = vrot.lane.b32.xlu0 %v4049, 110
  %v4109 = vpop.permute.xlu0 %4108
  %4110 = vrot.lane.b32.xlu0 %v4050, 110
  %v4111 = vpop.permute.xlu0 %4110
  %4112 = vrot.lane.b32.xlu0 %v4051, 110
  %v4113 = vpop.permute.xlu0 %4112
  %v4114 = vsel %vm3784, %v4103, %v4105
  %v4115 = vsel %vm3784, %v4105, %v4107
  %v4116 = vsel %vm3784, %v4109, %v4111
  %v4117 = vsel %vm3784, %v4111, %v4113
  %4124 = vrot.lane.b32.xlu0 %v4046, 109
  %v4125 = vpop.permute.xlu0 %4124
  %4126 = vrot.lane.b32.xlu0 %v4047, 109
  %v4127 = vpop.permute.xlu0 %4126
  %4128 = vrot.lane.b32.xlu0 %v4048, 109
  %v4129 = vpop.permute.xlu0 %4128
  %4130 = vrot.lane.b32.xlu0 %v4049, 109
  %v4131 = vpop.permute.xlu0 %4130
  %4132 = vrot.lane.b32.xlu0 %v4050, 109
  %v4133 = vpop.permute.xlu0 %4132
  %4134 = vrot.lane.b32.xlu0 %v4051, 109
  %v4135 = vpop.permute.xlu0 %4134
  %v4136 = vsel %vm3796, %v4125, %v4127
  %v4137 = vsel %vm3796, %v4127, %v4129
  %v4138 = vsel %vm3796, %v4131, %v4133
  %v4139 = vsel %vm3796, %v4133, %v4135
  %4146 = vrot.lane.b32.xlu0 %v4046, 108
  %v4147 = vpop.permute.xlu0 %4146
  %4148 = vrot.lane.b32.xlu0 %v4047, 108
  %v4149 = vpop.permute.xlu0 %4148
  %4150 = vrot.lane.b32.xlu0 %v4048, 108
  %v4151 = vpop.permute.xlu0 %4150
  %4152 = vrot.lane.b32.xlu0 %v4049, 108
  %v4153 = vpop.permute.xlu0 %4152
  %4154 = vrot.lane.b32.xlu0 %v4050, 108
  %v4155 = vpop.permute.xlu0 %4154
  %4156 = vrot.lane.b32.xlu0 %v4051, 108
  %v4157 = vpop.permute.xlu0 %4156
  %v4158 = vsel %vm3808, %v4147, %v4149
  %v4159 = vsel %vm3808, %v4149, %v4151
  %v4160 = vsel %vm3808, %v4153, %v4155
  %v4161 = vsel %vm3808, %v4155, %v4157
  %4168 = vrot.lane.b32.xlu0 %v4046, 92
  %v4169 = vpop.permute.xlu0 %4168
  %4170 = vrot.lane.b32.xlu0 %v4047, 92
  %v4171 = vpop.permute.xlu0 %4170
  %4172 = vrot.lane.b32.xlu0 %v4048, 92
  %v4173 = vpop.permute.xlu0 %4172
  %4174 = vrot.lane.b32.xlu0 %v4049, 92
  %v4175 = vpop.permute.xlu0 %4174
  %4176 = vrot.lane.b32.xlu0 %v4050, 92
  %v4177 = vpop.permute.xlu0 %4176
  %4178 = vrot.lane.b32.xlu0 %v4051, 92
  %v4179 = vpop.permute.xlu0 %4178
  %v4180 = vsel %vm478, %v4169, %v4171
  %v4181 = vsel %vm478, %v4171, %v4173
  %v4182 = vsel %vm478, %v4175, %v4177
  %v4183 = vsel %vm478, %v4177, %v4179
  %4190 = vrot.lane.b32.xlu0 %v4046, 91
  %v4191 = vpop.permute.xlu0 %4190
  %4192 = vrot.lane.b32.xlu0 %v4047, 91
  %v4193 = vpop.permute.xlu0 %4192
  %4194 = vrot.lane.b32.xlu0 %v4048, 91
  %v4195 = vpop.permute.xlu0 %4194
  %4196 = vrot.lane.b32.xlu0 %v4049, 91
  %v4197 = vpop.permute.xlu0 %4196
  %4198 = vrot.lane.b32.xlu0 %v4050, 91
  %v4199 = vpop.permute.xlu0 %4198
  %4200 = vrot.lane.b32.xlu0 %v4051, 91
  %v4201 = vpop.permute.xlu0 %4200
  %v4202 = vsel %vm3831, %v4191, %v4193
  %v4203 = vsel %vm3831, %v4193, %v4195
  %v4204 = vsel %vm3831, %v4197, %v4199
  %v4205 = vsel %vm3831, %v4199, %v4201
  %4212 = vrot.lane.b32.xlu0 %v4046, 90
  %v4213 = vpop.permute.xlu0 %4212
  %4214 = vrot.lane.b32.xlu0 %v4047, 90
  %v4215 = vpop.permute.xlu0 %4214
  %4216 = vrot.lane.b32.xlu0 %v4048, 90
  %v4217 = vpop.permute.xlu0 %4216
  %4218 = vrot.lane.b32.xlu0 %v4049, 90
  %v4219 = vpop.permute.xlu0 %4218
  %4220 = vrot.lane.b32.xlu0 %v4050, 90
  %v4221 = vpop.permute.xlu0 %4220
  %4222 = vrot.lane.b32.xlu0 %v4051, 90
  %v4223 = vpop.permute.xlu0 %4222
  %v4224 = vsel %vm3843, %v4213, %v4215
  %v4225 = vsel %vm3843, %v4215, %v4217
  %v4226 = vsel %vm3843, %v4219, %v4221
  %v4227 = vsel %vm3843, %v4221, %v4223
  %v4234 = vpack.c.bf16 %v4049, %v4046
  %v4235 = vpack.c.bf16 %v4050, %v4047
  %v4236 = vpack.c.bf16 %v4051, %v4048
  %v4237 = vpack.c.bf16 %v4072, %v4070
  %v4238 = vpack.c.bf16 %v4073, %v4071
  %v4239 = vpack.c.bf16 %v4069, %v4063
  %v4240 = vpack.c.bf16 %v4094, %v4092
  %v4241 = vpack.c.bf16 %v4095, %v4093
  %v4242 = vpack.c.bf16 %v4091, %v4085
  %v4243 = vpack.c.bf16 %v4116, %v4114
  %v4244 = vpack.c.bf16 %v4117, %v4115
  %v4245 = vpack.c.bf16 %v4113, %v4107
  %v4246 = vpack.c.bf16 %v4138, %v4136
  %v4247 = vpack.c.bf16 %v4139, %v4137
  %v4248 = vpack.c.bf16 %v4135, %v4129
  %v4249 = vpack.c.bf16 %v4160, %v4158
  %v4250 = vpack.c.bf16 %v4161, %v4159
  %v4251 = vpack.c.bf16 %v4157, %v4151
  %v4252 = vpack.c.bf16 %v4182, %v4180
  %v4253 = vpack.c.bf16 %v4183, %v4181
  %v4254 = vpack.c.bf16 %v4179, %v4173
  %v4255 = vpack.c.bf16 %v4204, %v4202
  %v4256 = vpack.c.bf16 %v4205, %v4203
  %v4257 = vpack.c.bf16 %v4201, %v4195
  %v4258 = vpack.c.bf16 %v4226, %v4224
  %v4259 = vpack.c.bf16 %v4227, %v4225
  %v4260 = vpack.c.bf16 %v4223, %v4217
  %v4261 = vld [vmem:[%s15] sm:$0xff]
  %v4262 = vld [vmem:[%s15 + $0x8] sm:$0xff]
  %v4263 = vld [vmem:[%s17] sm:$0xff]
  %v4264 = vld [vmem:[%s17 + $0x8] sm:$0xff]
  %4266 = vset.pattern.permute.xlu0 0
  %4267 = vperm.xlu0 %4266, %v4263
  %v4268 = vpop.permute.xlu0 %4267
  %4271 = vset.pattern.permute.xlu0 0
  %4272 = vperm.xlu0 %4271, %v4264
  %v4273 = vpop.permute.xlu0 %4272
  %v4277 = vunpack.c.l.b16 %v4261
  %v4278 = vunpack.c.h.b16 %v4261
  %v4279 = vunpack.c.l.b16 %v4262
  %v4280 = vunpack.c.h.b16 %v4262
  %v4281 = vpack.c.b16 %v4279, %v4277
  %v4282 = vpack.c.b16 %v4280, %v4278
  %vm4284 = vcmask 130048
  %v4286 = vsel %vm4284, %v4282, 0
  %4288 = vmatprep.subr.bf16.mxu0 %v4235
  %4289 = vmatpush1.bf16.msra.mxu0 %v4234
  %4290 = vmatprep.subr.bf16.mxu0 %v4238
  %4291 = vmatpush1.bf16.msra.mxu0 %v4237
  %4292 = vmatprep.subr.bf16.mxu0 %v4241
  %4293 = vmatpush1.bf16.msra.mxu0 %v4240
  %4294 = vmatprep.subr.bf16.mxu0 %v4244
  %4295 = vmatpush1.bf16.msra.mxu0 %v4243
  %4296 = vmatprep.subr.bf16.mxu0 %v4247
  %4297 = vmatpush1.bf16.msra.mxu0 %v4246
  %4298 = vmatprep.subr.bf16.mxu0 %v4250
  %4299 = vmatpush1.bf16.msra.mxu0 %v4249
  %4300 = vmatprep.subr.bf16.mxu0 %v4253
  %4301 = vmatpush1.bf16.msra.mxu0 %v4252
  %4302 = vmatprep.subr.bf16.mxu0 %v4256
  %4303 = vmatpush1.bf16.msra.mxu0 %v4255
  %4304 = vmatprep.subr.bf16.mxu0 %v4259
  %4305 = vmatpush1.bf16.msra.mxu0 %v4258
  %4306 = vmatprep.subr.bf16.mxu0 0
  %4307 = vmatpush1.bf16.msra.mxu0 0
  %4308 = vmatprep.subr.bf16.mxu0 0
  %4309 = vmatpush1.bf16.msra.mxu0 0
  %4310 = vmatprep.subr.bf16.mxu0 0
  %4311 = vmatpush1.bf16.msra.mxu0 0
  %4312 = vmatprep.subr.bf16.mxu0 0
  %4313 = vmatpush1.bf16.msra.mxu0 0
  %4314 = vmatprep.subr.bf16.mxu0 0
  %4315 = vmatpush1.bf16.msra.mxu0 0
  %4316 = vmatprep.subr.bf16.mxu0 0
  %4317 = vmatpush1.bf16.msra.mxu0 0
  %4318 = vmatprep.subr.bf16.mxu0 0
  %4319 = vmatpush1.bf16.msra.mxu0 0
  %4320 = vmatprep.mubr.bf16.mxu0 %v4286
  %4321 = vmatmul.mubr.bf16.gmra.mrb[0].mxu0 %v4281
  %v4322 = vpop.f32.mrb[0].mxu0
  %v4323 = vadd.f32 %v4268, %v4322
  %v4324 = vpop.f32.mrb[0].mxu0
  %v4325 = vadd.f32 %v4268, %v4324
  %v4326 = vpop.f32.mrb[0].mxu0
  %v4327 = vadd.f32 %v4273, %v4326
  %v4328 = vpop.f32.mrb[0].mxu0
  %v4329 = vadd.f32 %v4273, %v4328
  %4330 = vdwg.mxu0
  %4331 = vmatprep.subr.bf16.mxu0 0
  %4332 = vmatpush1.bf16.msra.mxu0 %v4236
  %4333 = vmatprep.subr.bf16.mxu0 0
  %4334 = vmatpush1.bf16.msra.mxu0 %v4239
  %4335 = vmatprep.subr.bf16.mxu0 0
  %4336 = vmatpush1.bf16.msra.mxu0 %v4242
  %4337 = vmatprep.subr.bf16.mxu0 0
  %4338 = vmatpush1.bf16.msra.mxu0 %v4245
  %4339 = vmatprep.subr.bf16.mxu0 0
  %4340 = vmatpush1.bf16.msra.mxu0 %v4248
  %4341 = vmatprep.subr.bf16.mxu0 0
  %4342 = vmatpush1.bf16.msra.mxu0 %v4251
  %4343 = vmatprep.subr.bf16.mxu0 0
  %4344 = vmatpush1.bf16.msra.mxu0 %v4254
  %4345 = vmatprep.subr.bf16.mxu0 0
  %4346 = vmatpush1.bf16.msra.mxu0 %v4257
  %4347 = vmatprep.subr.bf16.mxu0 0
  %4348 = vmatpush1.bf16.msra.mxu0 %v4260
  %4349 = vmatprep.subr.bf16.mxu0 0
  %4350 = vmatpush1.bf16.msra.mxu0 0
  %4351 = vmatprep.subr.bf16.mxu0 0
  %4352 = vmatpush1.bf16.msra.mxu0 0
  %4353 = vmatprep.subr.bf16.mxu0 0
  %4354 = vmatpush1.bf16.msra.mxu0 0
  %4355 = vmatprep.subr.bf16.mxu0 0
  %4356 = vmatpush1.bf16.msra.mxu0 0
  %4357 = vmatprep.subr.bf16.mxu0 0
  %4358 = vmatpush1.bf16.msra.mxu0 0
  %4359 = vmatprep.subr.bf16.mxu0 0
  %4360 = vmatpush1.bf16.msra.mxu0 0
  %4361 = vmatprep.subr.bf16.mxu0 0
  %4362 = vmatpush1.bf16.msra.mxu0 0
  %4363 = vmatprep.mubr.bf16.mxu0 %v4286
  %4364 = vmatmul.mubr.bf16.gmra.mrb[0].mxu0 %v4281
  %v4365 = vpop.f32.mrb[0].mxu0
  %v4366 = vadd.f32 %v4268, %v4365
  %v4367 = vpop.f32.mrb[0].mxu0
  %v4368 = vpop.f32.mrb[0].mxu0
  %v4369 = vadd.f32 %v4273, %v4368
  %v4370 = vpop.f32.mrb[0].mxu0
  %4371 = vdwg.mxu0
  %v4372 = vmax.f32 %v4323, 0.0
  %v4373 = vmax.f32 %v4325, 0.0
  %v4374 = vmax.f32 %v4366, 0.0
  %v4375 = vmax.f32 %v4327, 0.0
  %v4376 = vmax.f32 %v4329, 0.0
  %v4377 = vmax.f32 %v4369, 0.0
  %4378 = vst [vmem:[#allocation2] sm:$0xff] %v4372
  %4379 = vst [vmem:[#allocation2 + $0x8] sm:$0xff] %v4373
  %vm4380 = vcmask 556032
  %4381 = vst.msk [vmem:[#allocation2 + $0x10] sm:$0xff] %vm4380, %v4374
  %4382 = vst [vmem:[#allocation2 + $0x50] sm:$0xff] %v4375
  %4383 = vst [vmem:[#allocation2 + $0x58] sm:$0xff] %v4376
  %4384 = vst.msk [vmem:[#allocation2 + $0x60] sm:$0xff] %vm4380, %v4377
  %vm4385 = vcmask 712224
  %4386 = vst.msk [vmem:[#allocation2 + $0x10] sm:$0xff] %vm4385, 0.0
  %4387 = vst.msk [vmem:[#allocation2 + $0x60] sm:$0xff] %vm4385, 0.0
  %v4388 = vld [vmem:[#allocation2] sm:$0xff]
  %v4389 = vld [vmem:[#allocation2 + $0x8] sm:$0xff]
  %v4390 = vld [vmem:[#allocation2 + $0x10] sm:$0xff]
  %v4391 = vld [vmem:[#allocation2 + $0x50] sm:$0xff]
  %v4392 = vld [vmem:[#allocation2 + $0x58] sm:$0xff]
  %v4393 = vld [vmem:[#allocation2 + $0x60] sm:$0xff]
  %4400 = vrot.lane.b32.xlu0 %v4388, 127
  %v4401 = vpop.permute.xlu0 %4400
  %4402 = vrot.lane.b32.xlu0 %v4389, 127
  %v4403 = vpop.permute.xlu0 %4402
  %4404 = vrot.lane.b32.xlu0 %v4390, 127
  %v4405 = vpop.permute.xlu0 %4404
  %4406 = vrot.lane.b32.xlu0 %v4391, 127
  %v4407 = vpop.permute.xlu0 %4406
  %4408 = vrot.lane.b32.xlu0 %v4392, 127
  %v4409 = vpop.permute.xlu0 %4408
  %4410 = vrot.lane.b32.xlu0 %v4393, 127
  %v4411 = vpop.permute.xlu0 %4410
  %v4412 = vsel %vm318, %v4401, %v4403
  %v4413 = vsel %vm318, %v4403, %v4405
  %v4414 = vsel %vm318, %v4407, %v4409
  %v4415 = vsel %vm318, %v4409, %v4411
  %v4422 = vmax.f32 %v4388, %v4412
  %v4423 = vmax.f32 %v4389, %v4413
  %v4424 = vmax.f32 %v4390, %v4405
  %v4425 = vmax.f32 %v4391, %v4414
  %v4426 = vmax.f32 %v4392, %v4415
  %v4427 = vmax.f32 %v4393, %v4411
  %4428 = vst [vmem:[#allocation2] sm:$0xff] %v4422
  %4429 = vst [vmem:[#allocation2 + $0x8] sm:$0xff] %v4423
  %vm4430 = vcmask 703488
  %4431 = vst.msk [vmem:[#allocation2 + $0x10] sm:$0xff] %vm4430, %v4424
  %4432 = vst [vmem:[#allocation2 + $0x50] sm:$0xff] %v4425
  %4433 = vst [vmem:[#allocation2 + $0x58] sm:$0xff] %v4426
  %4434 = vst.msk [vmem:[#allocation2 + $0x60] sm:$0xff] %vm4430, %v4427
  %v4435 = vld [vmem:[#allocation2] sm:$0xff]
  %v4436 = vld [vmem:[#allocation2 + $0x8] sm:$0xff]
  %v4437 = vld [vmem:[#allocation2 + $0x10] sm:$0xff]
  %v4438 = vld [vmem:[#allocation2 + $0x50] sm:$0xff]
  %v4439 = vld [vmem:[#allocation2 + $0x58] sm:$0xff]
  %v4440 = vld [vmem:[#allocation2 + $0x60] sm:$0xff]
  %4447 = vrot.lane.b32.xlu0 %v4435, 110
  %v4448 = vpop.permute.xlu0 %4447
  %4449 = vrot.lane.b32.xlu0 %v4436, 110
  %v4450 = vpop.permute.xlu0 %4449
  %4451 = vrot.lane.b32.xlu0 %v4437, 110
  %v4452 = vpop.permute.xlu0 %4451
  %4453 = vrot.lane.b32.xlu0 %v4438, 110
  %v4454 = vpop.permute.xlu0 %4453
  %4455 = vrot.lane.b32.xlu0 %v4439, 110
  %v4456 = vpop.permute.xlu0 %4455
  %4457 = vrot.lane.b32.xlu0 %v4440, 110
  %v4458 = vpop.permute.xlu0 %4457
  %v4459 = vsel %vm3784, %v4448, %v4450
  %v4460 = vsel %vm3784, %v4450, %v4452
  %v4461 = vsel %vm3784, %v4454, %v4456
  %v4462 = vsel %vm3784, %v4456, %v4458
  %v4469 = vmax.f32 %v4435, %v4459
  %v4470 = vmax.f32 %v4436, %v4460
  %v4471 = vmax.f32 %v4437, %v4452
  %v4472 = vmax.f32 %v4438, %v4461
  %v4473 = vmax.f32 %v4439, %v4462
  %v4474 = vmax.f32 %v4440, %v4458
  %v4475 = vpack.c.bf16 %v4472, %v4469
  %v4476 = vpack.c.bf16 %v4473, %v4470
  %v4477 = vpack.c.bf16 %v4474, %v4471
  %v4478 = vld [vmem:[%s79] sm:$0xf]
  %v4479 = vld [vmem:[%s79 + $0x4] sm:$0xf]
  %v4480 = vld [vmem:[%s79 + $0x8] sm:$0xf]
  %v4481 = vld [vmem:[%s79 + $0xc] sm:$0xf]
  %v4482 = vld [vmem:[%s79 + $0x10] sm:$0xf]
  %v4483 = vld [vmem:[%s79 + $0x14] sm:$0xf]
  %v4484 = vld [vmem:[%s79 + $0x18] sm:$0xf]
  %v4485 = vld [vmem:[%s79 + $0x1c] sm:$0xf]
  %v4486 = vld [vmem:[%s79 + $0x20] sm:$0xf]
  %v4487 = vld [vmem:[%s79 + $0x24] sm:$0xf]
  %v4488 = vld [vmem:[%s79 + $0x28] sm:$0xf]
  %v4489 = vld [vmem:[%s79 + $0x2c] sm:$0xf]
  %v4490 = vld [vmem:[%s79 + $0x30] sm:$0xf]
  %v4491 = vld [vmem:[%s79 + $0x34] sm:$0xf]
  %v4492 = vld [vmem:[%s79 + $0x38] sm:$0xf]
  %v4493 = vld [vmem:[%s79 + $0x3c] sm:$0xf]
  %v4494 = vld [vmem:[%s79 + $0x40] sm:$0xf]
  %v4495 = vld [vmem:[%s79 + $0x44] sm:$0xf]
  %v4496 = vld [vmem:[%s79 + $0x48] sm:$0xf]
  %v4497 = vld [vmem:[%s79 + $0x4c] sm:$0xf]
  %v4498 = vld [vmem:[%s79 + $0x50] sm:$0xf]
  %v4499 = vld [vmem:[%s79 + $0x54] sm:$0xf]
  %v4500 = vld [vmem:[%s79 + $0x58] sm:$0xf]
  %v4501 = vld [vmem:[%s79 + $0x5c] sm:$0xf]
  %v4502 = vld [vmem:[%s79 + $0x60] sm:$0xf]
  %v4503 = vld [vmem:[%s79 + $0x64] sm:$0xf]
  %v4504 = vld [vmem:[%s79 + $0x68] sm:$0xf]
  %v4505 = vld [vmem:[%s79 + $0x6c] sm:$0xf]
  %v4506 = vld [vmem:[%s79 + $0x70] sm:$0xf]
  %v4507 = vld [vmem:[%s79 + $0x74] sm:$0xf]
  %v4508 = vld [vmem:[%s79 + $0x78] sm:$0xf]
  %v4509 = vld [vmem:[%s79 + $0x7c] sm:$0xf]
  %v4510 = vld [vmem:[%s79 + $0x80] sm:$0xf]
  %v4511 = vld [vmem:[%s79 + $0x84] sm:$0xf]
  %v4512 = vld [vmem:[%s79 + $0x88] sm:$0xf]
  %v4513 = vld [vmem:[%s79 + $0x8c] sm:$0xf]
  %v4514 = vld [vmem:[%s79 + $0x90] sm:$0xf]
  %v4515 = vld [vmem:[%s79 + $0x94] sm:$0xf]
  %v4516 = vld [vmem:[%s79 + $0x98] sm:$0xf]
  %v4517 = vld [vmem:[%s79 + $0x9c] sm:$0xf]
  %v4518 = vld [vmem:[%s79 + $0xa0] sm:$0x3]
  %v4560 = vunpack.c.l.b16 %v4478
  %v4561 = vunpack.c.l.b16 %v4479
  %v4562 = vunpack.c.l.b16 %v4480
  %v4563 = vunpack.c.l.b16 %v4481
  %v4564 = vunpack.c.l.b16 %v4482
  %v4565 = vunpack.c.l.b16 %v4483
  %v4566 = vunpack.c.l.b16 %v4484
  %v4567 = vunpack.c.l.b16 %v4485
  %v4568 = vunpack.c.l.b16 %v4486
  %v4569 = vunpack.c.l.b16 %v4487
  %v4570 = vunpack.c.l.b16 %v4488
  %v4571 = vunpack.c.l.b16 %v4489
  %v4572 = vunpack.c.l.b16 %v4490
  %v4573 = vunpack.c.l.b16 %v4491
  %v4574 = vunpack.c.l.b16 %v4492
  %v4575 = vunpack.c.l.b16 %v4493
  %v4576 = vunpack.c.l.b16 %v4494
  %v4577 = vunpack.c.l.b16 %v4495
  %v4578 = vunpack.c.l.b16 %v4496
  %v4579 = vunpack.c.l.b16 %v4497
  %v4580 = vunpack.c.l.b16 %v4498
  %v4581 = vunpack.c.l.b16 %v4499
  %v4582 = vunpack.c.l.b16 %v4500
  %v4583 = vunpack.c.l.b16 %v4501
  %v4584 = vunpack.c.l.b16 %v4502
  %v4585 = vunpack.c.l.b16 %v4503
  %v4586 = vunpack.c.l.b16 %v4504
  %v4587 = vunpack.c.l.b16 %v4505
  %v4588 = vunpack.c.l.b16 %v4506
  %v4589 = vunpack.c.l.b16 %v4507
  %v4590 = vunpack.c.l.b16 %v4508
  %v4591 = vunpack.c.l.b16 %v4509
  %v4592 = vunpack.c.l.b16 %v4510
  %v4593 = vunpack.c.l.b16 %v4511
  %v4594 = vunpack.c.l.b16 %v4512
  %v4595 = vunpack.c.l.b16 %v4513
  %v4596 = vunpack.c.l.b16 %v4514
  %v4597 = vunpack.c.l.b16 %v4515
  %v4598 = vunpack.c.l.b16 %v4516
  %v4599 = vunpack.c.l.b16 %v4517
  %v4600 = vunpack.c.l.b16 %v4518
  %v4601 = vpack.c.b16 %v4561, %v4560
  %v4602 = vpack.c.b16 %v4563, %v4562
  %v4603 = vpack.c.b16 %v4565, %v4564
  %v4604 = vpack.c.b16 %v4567, %v4566
  %v4605 = vpack.c.b16 %v4569, %v4568
  %v4606 = vpack.c.b16 %v4571, %v4570
  %v4607 = vpack.c.b16 %v4573, %v4572
  %v4608 = vpack.c.b16 %v4575, %v4574
  %v4609 = vpack.c.b16 %v4577, %v4576
  %v4610 = vpack.c.b16 %v4579, %v4578
  %v4611 = vpack.c.b16 %v4581, %v4580
  %v4612 = vpack.c.b16 %v4583, %v4582
  %v4613 = vpack.c.b16 %v4585, %v4584
  %v4614 = vpack.c.b16 %v4587, %v4586
  %v4615 = vpack.c.b16 %v4589, %v4588
  %v4616 = vpack.c.b16 %v4591, %v4590
  %v4617 = vpack.c.b16 %v4593, %v4592
  %v4618 = vpack.c.b16 %v4595, %v4594
  %v4619 = vpack.c.b16 %v4597, %v4596
  %v4620 = vpack.c.b16 %v4599, %v4598
  %v4621 = vpack.c.b16 %v4600, %v4600
  %v4643 = vsel %vm4380, %v4477, 0
  %v4646 = vsel %vm3312, %v4621, 0
  %4648 = vmatprep.subr.bf16.mxu0 0
  %4649 = vmatpush1.bf16.msra.mxu0 %v4601
  %4650 = vmatprep.subr.bf16.mxu0 0
  %4651 = vmatpush1.bf16.msra.mxu0 %v4602
  %4652 = vmatprep.subr.bf16.mxu0 0
  %4653 = vmatpush1.bf16.msra.mxu0 %v4603
  %4654 = vmatprep.subr.bf16.mxu0 0
  %4655 = vmatpush1.bf16.msra.mxu0 %v4604
  %4656 = vmatprep.subr.bf16.mxu0 0
  %4657 = vmatpush1.bf16.msra.mxu0 %v4605
  %4658 = vmatprep.subr.bf16.mxu0 0
  %4659 = vmatpush1.bf16.msra.mxu0 %v4606
  %4660 = vmatprep.subr.bf16.mxu0 0
  %4661 = vmatpush1.bf16.msra.mxu0 %v4607
  %4662 = vmatprep.subr.bf16.mxu0 0
  %4663 = vmatpush1.bf16.msra.mxu0 %v4608
  %4664 = vmatprep.subr.bf16.mxu0 0
  %4665 = vmatpush1.bf16.msra.mxu0 %v4609
  %4666 = vmatprep.subr.bf16.mxu0 0
  %4667 = vmatpush1.bf16.msra.mxu0 %v4610
  %4668 = vmatprep.subr.bf16.mxu0 0
  %4669 = vmatpush1.bf16.msra.mxu0 %v4611
  %4670 = vmatprep.subr.bf16.mxu0 0
  %4671 = vmatpush1.bf16.msra.mxu0 %v4612
  %4672 = vmatprep.subr.bf16.mxu0 0
  %4673 = vmatpush1.bf16.msra.mxu0 %v4613
  %4674 = vmatprep.subr.bf16.mxu0 0
  %4675 = vmatpush1.bf16.msra.mxu0 %v4614
  %4676 = vmatprep.subr.bf16.mxu0 0
  %4677 = vmatpush1.bf16.msra.mxu0 %v4615
  %4678 = vmatprep.subr.bf16.mxu0 0
  %4679 = vmatpush1.bf16.msra.mxu0 %v4616
  %4680 = vmatprep.mubr.bf16.mxu0 %v4476
  %4681 = vmatmul.mubr.bf16.gmra.mrb[0].mxu0 %v4475
  %v4682 = vpop.f32.mrb[0].mxu0
  %v4683 = vadd.f32 0.0, %v4682
  %v4684 = vpop.f32.mrb[0].mxu0
  %v4685 = vpop.f32.mrb[0].mxu0
  %v4686 = vadd.f32 0.0, %v4685
  %v4687 = vpop.f32.mrb[0].mxu0
  %4688 = vdwg.mxu0
  %4689 = vmatprep.subr.bf16.mxu0 0
  %4690 = vmatpush1.bf16.msra.mxu0 %v4617
  %4691 = vmatprep.subr.bf16.mxu0 0
  %4692 = vmatpush1.bf16.msra.mxu0 %v4618
  %4693 = vmatprep.subr.bf16.mxu0 0
  %4694 = vmatpush1.bf16.msra.mxu0 %v4619
  %4695 = vmatprep.subr.bf16.mxu0 0
  %4696 = vmatpush1.bf16.msra.mxu0 %v4620
  %4697 = vmatprep.subr.bf16.mxu0 0
  %4698 = vmatpush1.bf16.msra.mxu0 %v4646
  %4699 = vmatprep.subr.bf16.mxu0 0
  %4700 = vmatpush1.bf16.msra.mxu0 0
  %4701 = vmatprep.subr.bf16.mxu0 0
  %4702 = vmatpush1.bf16.msra.mxu0 0
  %4703 = vmatprep.subr.bf16.mxu0 0
  %4704 = vmatpush1.bf16.msra.mxu0 0
  %4705 = vmatprep.subr.bf16.mxu0 0
  %4706 = vmatpush1.bf16.msra.mxu0 0
  %4707 = vmatprep.subr.bf16.mxu0 0
  %4708 = vmatpush1.bf16.msra.mxu0 0
  %4709 = vmatprep.subr.bf16.mxu0 0
  %4710 = vmatpush1.bf16.msra.mxu0 0
  %4711 = vmatprep.subr.bf16.mxu0 0
  %4712 = vmatpush1.bf16.msra.mxu0 0
  %4713 = vmatprep.subr.bf16.mxu0 0
  %4714 = vmatpush1.bf16.msra.mxu0 0
  %4715 = vmatprep.subr.bf16.mxu0 0
  %4716 = vmatpush1.bf16.msra.mxu0 0
  %4717 = vmatprep.subr.bf16.mxu0 0
  %4718 = vmatpush1.bf16.msra.mxu0 0
  %4719 = vmatprep.subr.bf16.mxu0 0
  %4720 = vmatpush1.bf16.msra.mxu0 0
  %4721 = vmatprep.mubr.bf16.mxu0 0
  %4722 = vmatmul.mubr.bf16.gmra.mrb[0].mxu0 %v4643
  %v4723 = vpop.f32.mrb[0].mxu0
  %v4724 = vadd.f32 %v4683, %v4723
  %v4725 = vpop.f32.mrb[0].mxu0
  %v4726 = vpop.f32.mrb[0].mxu0
  %v4727 = vadd.f32 %v4686, %v4726
  %v4728 = vpop.f32.mrb[0].mxu0
  %4729 = vdwg.mxu0
  %vm4730 = vcmask 89088
  %4731 = vst.msk [vmem:[#allocation2] sm:$0xff] %vm4730, 0.0
  %4732 = vst.msk [vmem:[#allocation2 + $0x50] sm:$0xff] %vm4730, 0.0
  %4735 = vrot.lane.b32.xlu0 %v4724, 11
  %v4736 = vpop.permute.xlu0 %4735
  %4737 = vrot.lane.b32.xlu0 %v4727, 11
  %v4738 = vpop.permute.xlu0 %4737
  %vm4741 = vcmask 908376
  %4742 = vst.msk [vmem:[#allocation2] sm:$0xff] %vm4741, %v4736
  %4743 = vst.msk [vmem:[#allocation2 + $0x50] sm:$0xff] %vm4741, %v4738
  %vm4744 = vcmask 999288
  %4745 = vst.msk [vmem:[#allocation2] sm:$0xff] %vm4744, 0.0
  %4746 = vst.msk [vmem:[#allocation2 + $0x50] sm:$0xff] %vm4744, 0.0
  %v4747 = vld [vmem:[#allocation2] sm:$0xff]
  %v4748 = vld [vmem:[#allocation2 + $0x50] sm:$0xff]
  %4751 = vrot.lane.b32.xlu0 %v4747, 127
  %v4752 = vpop.permute.xlu0 %4751
  %4753 = vrot.lane.b32.xlu0 %v4748, 127
  %v4754 = vpop.permute.xlu0 %4753
  %4757 = vrot.lane.b32.xlu0 %v4747, 126
  %v4758 = vpop.permute.xlu0 %4757
  %4759 = vrot.lane.b32.xlu0 %v4748, 126
  %v4760 = vpop.permute.xlu0 %4759
  %4763 = vrot.lane.b32.xlu0 %v4747, 118
  %v4764 = vpop.permute.xlu0 %4763
  %4765 = vrot.lane.b32.xlu0 %v4748, 118
  %v4766 = vpop.permute.xlu0 %4765
  %4769 = vrot.lane.b32.xlu0 %v4747, 117
  %v4770 = vpop.permute.xlu0 %4769
  %4771 = vrot.lane.b32.xlu0 %v4748, 117
  %v4772 = vpop.permute.xlu0 %4771
  %4775 = vrot.lane.b32.xlu0 %v4747, 116
  %v4776 = vpop.permute.xlu0 %4775
  %4777 = vrot.lane.b32.xlu0 %v4748, 116
  %v4778 = vpop.permute.xlu0 %4777
  %4781 = vrot.lane.b32.xlu0 %v4747, 108
  %v4782 = vpop.permute.xlu0 %4781
  %4783 = vrot.lane.b32.xlu0 %v4748, 108
  %v4784 = vpop.permute.xlu0 %4783
  %4787 = vrot.lane.b32.xlu0 %v4747, 107
  %v4788 = vpop.permute.xlu0 %4787
  %4789 = vrot.lane.b32.xlu0 %v4748, 107
  %v4790 = vpop.permute.xlu0 %4789
  %4793 = vrot.lane.b32.xlu0 %v4747, 106
  %v4794 = vpop.permute.xlu0 %4793
  %4795 = vrot.lane.b32.xlu0 %v4748, 106
  %v4796 = vpop.permute.xlu0 %4795
  %v4799 = vpack.c.bf16 %v4748, %v4747
  %v4800 = vpack.c.bf16 %v4754, %v4752
  %v4801 = vpack.c.bf16 %v4760, %v4758
  %v4802 = vpack.c.bf16 %v4766, %v4764
  %v4803 = vpack.c.bf16 %v4772, %v4770
  %v4804 = vpack.c.bf16 %v4778, %v4776
  %v4805 = vpack.c.bf16 %v4784, %v4782
  %v4806 = vpack.c.bf16 %v4790, %v4788
  %v4807 = vpack.c.bf16 %v4796, %v4794
  %v4808 = vld [vmem:[%s19] sm:$0xff]
  %v4809 = vld [vmem:[%s19 + $0x8] sm:$0xff]
  %v4810 = vld [vmem:[%s19 + $0x10] sm:$0xff]
  %v4811 = vld [vmem:[%s19 + $0x18] sm:$0xff]
  %v4812 = vld [vmem:[%s21] sm:$0xff]
  %v4813 = vld [vmem:[%s21 + $0x8] sm:$0xff]
  %v4814 = vld [vmem:[%s21 + $0x10] sm:$0xff]
  %v4815 = vld [vmem:[%s21 + $0x18] sm:$0xff]
  %4817 = vset.pattern.permute.xlu0 0
  %4818 = vperm.xlu0 %4817, %v4812
  %v4819 = vpop.permute.xlu0 %4818
  %4822 = vset.pattern.permute.xlu0 0
  %4823 = vperm.xlu0 %4822, %v4813
  %v4824 = vpop.permute.xlu0 %4823
  %4827 = vset.pattern.permute.xlu0 0
  %4828 = vperm.xlu0 %4827, %v4814
  %v4829 = vpop.permute.xlu0 %4828
  %4832 = vset.pattern.permute.xlu0 0
  %4833 = vperm.xlu0 %4832, %v4815
  %v4834 = vpop.permute.xlu0 %4833
  %v4840 = vunpack.c.l.b16 %v4808
  %v4841 = vunpack.c.h.b16 %v4808
  %v4842 = vunpack.c.l.b16 %v4809
  %v4843 = vunpack.c.h.b16 %v4809
  %v4844 = vunpack.c.l.b16 %v4810
  %v4845 = vunpack.c.h.b16 %v4810
  %v4846 = vunpack.c.l.b16 %v4811
  %v4847 = vunpack.c.h.b16 %v4811
  %v4848 = vpack.c.b16 %v4842, %v4840
  %v4849 = vpack.c.b16 %v4843, %v4841
  %v4850 = vpack.c.b16 %v4846, %v4844
  %v4851 = vpack.c.b16 %v4847, %v4845
  %v4855 = vsel %vm4284, %v4849, 0
  %v4858 = vsel %vm4284, %v4851, 0
  %4860 = vmatprep.subr.bf16.mxu0 0
  %4861 = vmatpush1.bf16.msra.mxu0 %v4799
  %4862 = vmatprep.subr.bf16.mxu0 0
  %4863 = vmatpush1.bf16.msra.mxu0 %v4800
  %4864 = vmatprep.subr.bf16.mxu0 0
  %4865 = vmatpush1.bf16.msra.mxu0 %v4801
  %4866 = vmatprep.subr.bf16.mxu0 0
  %4867 = vmatpush1.bf16.msra.mxu0 %v4802
  %4868 = vmatprep.subr.bf16.mxu0 0
  %4869 = vmatpush1.bf16.msra.mxu0 %v4803
  %4870 = vmatprep.subr.bf16.mxu0 0
  %4871 = vmatpush1.bf16.msra.mxu0 %v4804
  %4872 = vmatprep.subr.bf16.mxu0 0
  %4873 = vmatpush1.bf16.msra.mxu0 %v4805
  %4874 = vmatprep.subr.bf16.mxu0 0
  %4875 = vmatpush1.bf16.msra.mxu0 %v4806
  %4876 = vmatprep.subr.bf16.mxu0 0
  %4877 = vmatpush1.bf16.msra.mxu0 %v4807
  %4878 = vmatprep.subr.bf16.mxu0 0
  %4879 = vmatpush1.bf16.msra.mxu0 0
  %4880 = vmatprep.subr.bf16.mxu0 0
  %4881 = vmatpush1.bf16.msra.mxu0 0
  %4882 = vmatprep.subr.bf16.mxu0 0
  %4883 = vmatpush1.bf16.msra.mxu0 0
  %4884 = vmatprep.subr.bf16.mxu0 0
  %4885 = vmatpush1.bf16.msra.mxu0 0
  %4886 = vmatprep.subr.bf16.mxu0 0
  %4887 = vmatpush1.bf16.msra.mxu0 0
  %4888 = vmatprep.subr.bf16.mxu0 0
  %4889 = vmatpush1.bf16.msra.mxu0 0
  %4890 = vmatprep.subr.bf16.mxu0 0
  %4891 = vmatpush1.bf16.msra.mxu0 0
  %4892 = vmatprep.mubr.bf16.mxu0 %v4855
  %4893 = vmatmul.mubr.bf16.gmra.mrb[0].mxu0 %v4848
  %v4894 = vpop.f32.mrb[0].mxu0
  %v4895 = vadd.f32 %v4819, %v4894
  %v4896 = vpop.f32.mrb[0].mxu0
  %v4897 = vpop.f32.mrb[0].mxu0
  %v4898 = vadd.f32 %v4824, %v4897
  %v4899 = vpop.f32.mrb[0].mxu0
  %4900 = vmatprep.mubr.bf16.mxu0 %v4858
  %4901 = vmatmul.mubr.bf16.gmra.mrb[0].mxu0 %v4850
  %v4902 = vpop.f32.mrb[0].mxu0
  %v4903 = vadd.f32 %v4829, %v4902
  %v4904 = vpop.f32.mrb[0].mxu0
  %v4905 = vpop.f32.mrb[0].mxu0
  %v4906 = vadd.f32 %v4834, %v4905
  %v4907 = vpop.f32.mrb[0].mxu0
  %4908 = vdwg.mxu0
  %v4909 = vmax.f32 %v4895, 0.0
  %v4910 = vmax.f32 %v4898, 0.0
  %v4911 = vmax.f32 %v4903, 0.0
  %v4912 = vmax.f32 %v4906, 0.0
  %v4913 = vld [vmem:[%s71] sm:$0x1]
  %v4915 = vlaneseq
  %v4916 = vshrl.u32 %v4915, 7
  %v4917 = vsub.s32 0, %v4916
  %v4918 = vrot.slane %v4913, %v4917
  %v4920 = vmul.f32 %v4909, %v4918
  %v4921 = vmul.f32 %v4910, %v4918
  %v4922 = vmul.f32 %v4911, %v4918
  %v4923 = vmul.f32 %v4912, %v4918
  %4924 = vst.msk [vmem:[#allocation2] sm:$0xff] %vm4730, 0.0
  %4925 = vst.msk [vmem:[#allocation2 + $0x50] sm:$0xff] %vm4730, 0.0
  %4926 = vst.msk [vmem:[#allocation2 + $0xa0] sm:$0xff] %vm4730, 0.0
  %4927 = vst.msk [vmem:[#allocation2 + $0xf0] sm:$0xff] %vm4730, 0.0
  %4932 = vrot.lane.b32.xlu0 %v4920, 11
  %v4933 = vpop.permute.xlu0 %4932
  %4934 = vrot.lane.b32.xlu0 %v4921, 11
  %v4935 = vpop.permute.xlu0 %4934
  %4936 = vrot.lane.b32.xlu0 %v4922, 11
  %v4937 = vpop.permute.xlu0 %4936
  %4938 = vrot.lane.b32.xlu0 %v4923, 11
  %v4939 = vpop.permute.xlu0 %4938
  %4944 = vst.msk [vmem:[#allocation2] sm:$0xff] %vm4741, %v4933
  %4945 = vst.msk [vmem:[#allocation2 + $0x50] sm:$0xff] %vm4741, %v4935
  %4946 = vst.msk [vmem:[#allocation2 + $0xa0] sm:$0xff] %vm4741, %v4937
  %4947 = vst.msk [vmem:[#allocation2 + $0xf0] sm:$0xff] %vm4741, %v4939
  %4948 = vst.msk [vmem:[#allocation2] sm:$0xff] %vm4744, 0.0
  %4949 = vst.msk [vmem:[#allocation2 + $0x50] sm:$0xff] %vm4744, 0.0
  %4950 = vst.msk [vmem:[#allocation2 + $0xa0] sm:$0xff] %vm4744, 0.0
  %4951 = vst.msk [vmem:[#allocation2 + $0xf0] sm:$0xff] %vm4744, 0.0
  %v4952 = vld [vmem:[#allocation2] sm:$0xff]
  %v4953 = vld [vmem:[#allocation2 + $0x50] sm:$0xff]
  %v4954 = vld [vmem:[#allocation2 + $0xa0] sm:$0xff]
  %v4955 = vld [vmem:[#allocation2 + $0xf0] sm:$0xff]
  %4960 = vrot.lane.b32.xlu0 %v4952, 127
  %v4961 = vpop.permute.xlu0 %4960
  %4962 = vrot.lane.b32.xlu0 %v4953, 127
  %v4963 = vpop.permute.xlu0 %4962
  %4964 = vrot.lane.b32.xlu0 %v4954, 127
  %v4965 = vpop.permute.xlu0 %4964
  %4966 = vrot.lane.b32.xlu0 %v4955, 127
  %v4967 = vpop.permute.xlu0 %4966
  %4972 = vrot.lane.b32.xlu0 %v4952, 126
  %v4973 = vpop.permute.xlu0 %4972
  %4974 = vrot.lane.b32.xlu0 %v4953, 126
  %v4975 = vpop.permute.xlu0 %4974
  %4976 = vrot.lane.b32.xlu0 %v4954, 126
  %v4977 = vpop.permute.xlu0 %4976
  %4978 = vrot.lane.b32.xlu0 %v4955, 126
  %v4979 = vpop.permute.xlu0 %4978
  %4984 = vrot.lane.b32.xlu0 %v4952, 118
  %v4985 = vpop.permute.xlu0 %4984
  %4986 = vrot.lane.b32.xlu0 %v4953, 118
  %v4987 = vpop.permute.xlu0 %4986
  %4988 = vrot.lane.b32.xlu0 %v4954, 118
  %v4989 = vpop.permute.xlu0 %4988
  %4990 = vrot.lane.b32.xlu0 %v4955, 118
  %v4991 = vpop.permute.xlu0 %4990
  %4996 = vrot.lane.b32.xlu0 %v4952, 117
  %v4997 = vpop.permute.xlu0 %4996
  %4998 = vrot.lane.b32.xlu0 %v4953, 117
  %v4999 = vpop.permute.xlu0 %4998
  %5000 = vrot.lane.b32.xlu0 %v4954, 117
  %v5001 = vpop.permute.xlu0 %5000
  %5002 = vrot.lane.b32.xlu0 %v4955, 117
  %v5003 = vpop.permute.xlu0 %5002
  %5008 = vrot.lane.b32.xlu0 %v4952, 116
  %v5009 = vpop.permute.xlu0 %5008
  %5010 = vrot.lane.b32.xlu0 %v4953, 116
  %v5011 = vpop.permute.xlu0 %5010
  %5012 = vrot.lane.b32.xlu0 %v4954, 116
  %v5013 = vpop.permute.xlu0 %5012
  %5014 = vrot.lane.b32.xlu0 %v4955, 116
  %v5015 = vpop.permute.xlu0 %5014
  %5020 = vrot.lane.b32.xlu0 %v4952, 108
  %v5021 = vpop.permute.xlu0 %5020
  %5022 = vrot.lane.b32.xlu0 %v4953, 108
  %v5023 = vpop.permute.xlu0 %5022
  %5024 = vrot.lane.b32.xlu0 %v4954, 108
  %v5025 = vpop.permute.xlu0 %5024
  %5026 = vrot.lane.b32.xlu0 %v4955, 108
  %v5027 = vpop.permute.xlu0 %5026
  %5032 = vrot.lane.b32.xlu0 %v4952, 107
  %v5033 = vpop.permute.xlu0 %5032
  %5034 = vrot.lane.b32.xlu0 %v4953, 107
  %v5035 = vpop.permute.xlu0 %5034
  %5036 = vrot.lane.b32.xlu0 %v4954, 107
  %v5037 = vpop.permute.xlu0 %5036
  %5038 = vrot.lane.b32.xlu0 %v4955, 107
  %v5039 = vpop.permute.xlu0 %5038
  %5044 = vrot.lane.b32.xlu0 %v4952, 106
  %v5045 = vpop.permute.xlu0 %5044
  %5046 = vrot.lane.b32.xlu0 %v4953, 106
  %v5047 = vpop.permute.xlu0 %5046
  %5048 = vrot.lane.b32.xlu0 %v4954, 106
  %v5049 = vpop.permute.xlu0 %5048
  %5050 = vrot.lane.b32.xlu0 %v4955, 106
  %v5051 = vpop.permute.xlu0 %5050
  %v5056 = vpack.c.bf16 %v4953, %v4952
  %v5057 = vpack.c.bf16 %v4955, %v4954
  %v5058 = vpack.c.bf16 %v4963, %v4961
  %v5059 = vpack.c.bf16 %v4967, %v4965
  %v5060 = vpack.c.bf16 %v4975, %v4973
  %v5061 = vpack.c.bf16 %v4979, %v4977
  %v5062 = vpack.c.bf16 %v4987, %v4985
  %v5063 = vpack.c.bf16 %v4991, %v4989
  %v5064 = vpack.c.bf16 %v4999, %v4997
  %v5065 = vpack.c.bf16 %v5003, %v5001
  %v5066 = vpack.c.bf16 %v5011, %v5009
  %v5067 = vpack.c.bf16 %v5015, %v5013
  %v5068 = vpack.c.bf16 %v5023, %v5021
  %v5069 = vpack.c.bf16 %v5027, %v5025
  %v5070 = vpack.c.bf16 %v5035, %v5033
  %v5071 = vpack.c.bf16 %v5039, %v5037
  %v5072 = vpack.c.bf16 %v5047, %v5045
  %v5073 = vpack.c.bf16 %v5051, %v5049
  %v5074 = vld [vmem:[%s23] sm:$0xff]
  %v5075 = vld [vmem:[%s23 + $0x8] sm:$0xf]
  %v5076 = vld [vmem:[%s23 + $0xc] sm:$0xff]
  %v5077 = vld [vmem:[%s23 + $0x14] sm:$0xf]
  %v5078 = vld [vmem:[%s23 + $0x18] sm:$0xff]
  %v5079 = vld [vmem:[%s23 + $0x20] sm:$0xf]
  %v5080 = vld [vmem:[%s23 + $0x24] sm:$0xff]
  %v5081 = vld [vmem:[%s23 + $0x2c] sm:$0xf]
  %v5082 = vld [vmem:[%s25] sm:$0xff]
  %v5083 = vld [vmem:[%s25 + $0x8] sm:$0xff]
  %v5084 = vld [vmem:[%s25 + $0x10] sm:$0xff]
  %v5085 = vld [vmem:[%s25 + $0x18] sm:$0xff]
  %5087 = vset.pattern.permute.xlu0 0
  %5088 = vperm.xlu0 %5087, %v5082
  %v5089 = vpop.permute.xlu0 %5088
  %5092 = vset.pattern.permute.xlu0 0
  %5093 = vperm.xlu0 %5092, %v5083
  %v5094 = vpop.permute.xlu0 %5093
  %5097 = vset.pattern.permute.xlu0 0
  %5098 = vperm.xlu0 %5097, %v5084
  %v5099 = vpop.permute.xlu0 %5098
  %5102 = vset.pattern.permute.xlu0 0
  %5103 = vperm.xlu0 %5102, %v5085
  %v5104 = vpop.permute.xlu0 %5103
  %v5114 = vunpack.c.l.b16 %v5074
  %v5115 = vunpack.c.h.b16 %v5074
  %v5116 = vunpack.c.l.b16 %v5075
  %v5117 = vunpack.c.l.b16 %v5076
  %v5118 = vunpack.c.h.b16 %v5076
  %v5119 = vunpack.c.l.b16 %v5077
  %v5120 = vunpack.c.l.b16 %v5078
  %v5121 = vunpack.c.h.b16 %v5078
  %v5122 = vunpack.c.l.b16 %v5079
  %v5123 = vunpack.c.l.b16 %v5080
  %v5124 = vunpack.c.h.b16 %v5080
  %v5125 = vunpack.c.l.b16 %v5081
  %v5126 = vpack.c.b16 %v5117, %v5114
  %v5127 = vpack.c.b16 %v5118, %v5115
  %v5128 = vpack.c.b16 %v5119, %v5116
  %v5129 = vpack.c.b16 %v5123, %v5120
  %v5130 = vpack.c.b16 %v5124, %v5121
  %v5131 = vpack.c.b16 %v5125, %v5122
  %vm5136 = vcmask 261120
  %v5138 = vsel %vm5136, %v5128, 0
  %v5141 = vsel %vm5136, %v5131, 0
  %5143 = vmatprep.subr.bf16.mxu0 0
  %5144 = vmatpush1.bf16.msra.mxu0 %v5056
  %5145 = vmatprep.subr.bf16.mxu0 0
  %5146 = vmatpush1.bf16.msra.mxu0 %v5057
  %5147 = vmatprep.subr.bf16.mxu0 0
  %5148 = vmatpush1.bf16.msra.mxu0 %v5058
  %5149 = vmatprep.subr.bf16.mxu0 0
  %5150 = vmatpush1.bf16.msra.mxu0 %v5059
  %5151 = vmatprep.subr.bf16.mxu0 0
  %5152 = vmatpush1.bf16.msra.mxu0 %v5060
  %5153 = vmatprep.subr.bf16.mxu0 0
  %5154 = vmatpush1.bf16.msra.mxu0 %v5061
  %5155 = vmatprep.subr.bf16.mxu0 0
  %5156 = vmatpush1.bf16.msra.mxu0 %v5062
  %5157 = vmatprep.subr.bf16.mxu0 0
  %5158 = vmatpush1.bf16.msra.mxu0 %v5063
  %5159 = vmatprep.subr.bf16.mxu0 0
  %5160 = vmatpush1.bf16.msra.mxu0 %v5064
  %5161 = vmatprep.subr.bf16.mxu0 0
  %5162 = vmatpush1.bf16.msra.mxu0 %v5065
  %5163 = vmatprep.subr.bf16.mxu0 0
  %5164 = vmatpush1.bf16.msra.mxu0 %v5066
  %5165 = vmatprep.subr.bf16.mxu0 0
  %5166 = vmatpush1.bf16.msra.mxu0 %v5067
  %5167 = vmatprep.subr.bf16.mxu0 0
  %5168 = vmatpush1.bf16.msra.mxu0 %v5068
  %5169 = vmatprep.subr.bf16.mxu0 0
  %5170 = vmatpush1.bf16.msra.mxu0 %v5069
  %5171 = vmatprep.subr.bf16.mxu0 0
  %5172 = vmatpush1.bf16.msra.mxu0 %v5070
  %5173 = vmatprep.subr.bf16.mxu0 0
  %5174 = vmatpush1.bf16.msra.mxu0 %v5071
  %5175 = vmatprep.mubr.bf16.mxu0 %v5127
  %5176 = vmatmul.mubr.bf16.gmra.mrb[0].mxu0 %v5126
  %v5177 = vpop.f32.mrb[0].mxu0
  %v5178 = vadd.f32 %v5089, %v5177
  %v5179 = vpop.f32.mrb[0].mxu0
  %v5180 = vpop.f32.mrb[0].mxu0
  %v5181 = vadd.f32 %v5094, %v5180
  %v5182 = vpop.f32.mrb[0].mxu0
  %5183 = vmatprep.mubr.bf16.mxu0 %v5130
  %5184 = vmatmul.mubr.bf16.gmra.mrb[0].mxu0 %v5129
  %v5185 = vpop.f32.mrb[0].mxu0
  %v5186 = vadd.f32 %v5099, %v5185
  %v5187 = vpop.f32.mrb[0].mxu0
  %v5188 = vpop.f32.mrb[0].mxu0
  %v5189 = vadd.f32 %v5104, %v5188
  %v5190 = vpop.f32.mrb[0].mxu0
  %5191 = vdwg.mxu0
  %5192 = vmatprep.subr.bf16.mxu0 0
  %5193 = vmatpush1.bf16.msra.mxu0 %v5072
  %5194 = vmatprep.subr.bf16.mxu0 0
  %5195 = vmatpush1.bf16.msra.mxu0 %v5073
  %5196 = vmatprep.subr.bf16.mxu0 0
  %5197 = vmatpush1.bf16.msra.mxu0 0
  %5198 = vmatprep.subr.bf16.mxu0 0
  %5199 = vmatpush1.bf16.msra.mxu0 0
  %5200 = vmatprep.subr.bf16.mxu0 0
  %5201 = vmatpush1.bf16.msra.mxu0 0
  %5202 = vmatprep.subr.bf16.mxu0 0
  %5203 = vmatpush1.bf16.msra.mxu0 0
  %5204 = vmatprep.subr.bf16.mxu0 0
  %5205 = vmatpush1.bf16.msra.mxu0 0
  %5206 = vmatprep.subr.bf16.mxu0 0
  %5207 = vmatpush1.bf16.msra.mxu0 0
  %5208 = vmatprep.subr.bf16.mxu0 0
  %5209 = vmatpush1.bf16.msra.mxu0 0
  %5210 = vmatprep.subr.bf16.mxu0 0
  %5211 = vmatpush1.bf16.msra.mxu0 0
  %5212 = vmatprep.subr.bf16.mxu0 0
  %5213 = vmatpush1.bf16.msra.mxu0 0
  %5214 = vmatprep.subr.bf16.mxu0 0
  %5215 = vmatpush1.bf16.msra.mxu0 0
  %5216 = vmatprep.subr.bf16.mxu0 0
  %5217 = vmatpush1.bf16.msra.mxu0 0
  %5218 = vmatprep.subr.bf16.mxu0 0
  %5219 = vmatpush1.bf16.msra.mxu0 0
  %5220 = vmatprep.subr.bf16.mxu0 0
  %5221 = vmatpush1.bf16.msra.mxu0 0
  %5222 = vmatprep.subr.bf16.mxu0 0
  %5223 = vmatpush1.bf16.msra.mxu0 0
  %5224 = vmatprep.mubr.bf16.mxu0 0
  %5225 = vmatmul.mubr.bf16.gmra.mrb[0].mxu0 %v5138
  %v5226 = vpop.f32.mrb[0].mxu0
  %v5227 = vadd.f32 %v5178, %v5226
  %v5228 = vpop.f32.mrb[0].mxu0
  %v5229 = vpop.f32.mrb[0].mxu0
  %v5230 = vadd.f32 %v5181, %v5229
  %v5231 = vpop.f32.mrb[0].mxu0
  %5232 = vmatprep.mubr.bf16.mxu0 0
  %5233 = vmatmul.mubr.bf16.gmra.mrb[0].mxu0 %v5141
  %v5234 = vpop.f32.mrb[0].mxu0
  %v5235 = vadd.f32 %v5186, %v5234
  %v5236 = vpop.f32.mrb[0].mxu0
  %v5237 = vpop.f32.mrb[0].mxu0
  %v5238 = vadd.f32 %v5189, %v5237
  %v5239 = vpop.f32.mrb[0].mxu0
  %5240 = vdwg.mxu0
  %v5241 = vmax.f32 %v5227, 0.0
  %v5242 = vmax.f32 %v5230, 0.0
  %v5243 = vmax.f32 %v5235, 0.0
  %v5244 = vmax.f32 %v5238, 0.0
  %v5245 = vld [vmem:[%s71] sm:$0x1]
  %v5247 = vlaneseq
  %v5248 = vshrl.u32 %v5247, 7
  %v5249 = vsub.s32 0, %v5248
  %v5250 = vrot.slane %v5245, %v5249
  %v5252 = vmul.f32 %v5241, %v5250
  %v5253 = vmul.f32 %v5242, %v5250
  %v5254 = vmul.f32 %v5243, %v5250
  %v5255 = vmul.f32 %v5244, %v5250
  %5256 = vst.msk [vmem:[#allocation2] sm:$0xff] %vm4730, 0.0
  %5257 = vst.msk [vmem:[#allocation2 + $0x50] sm:$0xff] %vm4730, 0.0
  %5258 = vst.msk [vmem:[#allocation2 + $0xa0] sm:$0xff] %vm4730, 0.0
  %5259 = vst.msk [vmem:[#allocation2 + $0xf0] sm:$0xff] %vm4730, 0.0
  %5264 = vrot.lane.b32.xlu0 %v5252, 11
  %v5265 = vpop.permute.xlu0 %5264
  %5266 = vrot.lane.b32.xlu0 %v5253, 11
  %v5267 = vpop.permute.xlu0 %5266
  %5268 = vrot.lane.b32.xlu0 %v5254, 11
  %v5269 = vpop.permute.xlu0 %5268
  %5270 = vrot.lane.b32.xlu0 %v5255, 11
  %v5271 = vpop.permute.xlu0 %5270
  %5276 = vst.msk [vmem:[#allocation2] sm:$0xff] %vm4741, %v5265
  %5277 = vst.msk [vmem:[#allocation2 + $0x50] sm:$0xff] %vm4741, %v5267
  %5278 = vst.msk [vmem:[#allocation2 + $0xa0] sm:$0xff] %vm4741, %v5269
  %5279 = vst.msk [vmem:[#allocation2 + $0xf0] sm:$0xff] %vm4741, %v5271
  %5280 = vst.msk [vmem:[#allocation2] sm:$0xff] %vm4744, 0.0
  %5281 = vst.msk [vmem:[#allocation2 + $0x50] sm:$0xff] %vm4744, 0.0
  %5282 = vst.msk [vmem:[#allocation2 + $0xa0] sm:$0xff] %vm4744, 0.0
  %5283 = vst.msk [vmem:[#allocation2 + $0xf0] sm:$0xff] %vm4744, 0.0
  %v5284 = vld [vmem:[#allocation2] sm:$0xff]
  %v5285 = vld [vmem:[#allocation2 + $0x50] sm:$0xff]
  %v5286 = vld [vmem:[#allocation2 + $0xa0] sm:$0xff]
  %v5287 = vld [vmem:[#allocation2 + $0xf0] sm:$0xff]
  %5292 = vrot.lane.b32.xlu0 %v5284, 127
  %v5293 = vpop.permute.xlu0 %5292
  %5294 = vrot.lane.b32.xlu0 %v5285, 127
  %v5295 = vpop.permute.xlu0 %5294
  %5296 = vrot.lane.b32.xlu0 %v5286, 127
  %v5297 = vpop.permute.xlu0 %5296
  %5298 = vrot.lane.b32.xlu0 %v5287, 127
  %v5299 = vpop.permute.xlu0 %5298
  %5304 = vrot.lane.b32.xlu0 %v5284, 126
  %v5305 = vpop.permute.xlu0 %5304
  %5306 = vrot.lane.b32.xlu0 %v5285, 126
  %v5307 = vpop.permute.xlu0 %5306
  %5308 = vrot.lane.b32.xlu0 %v5286, 126
  %v5309 = vpop.permute.xlu0 %5308
  %5310 = vrot.lane.b32.xlu0 %v5287, 126
  %v5311 = vpop.permute.xlu0 %5310
  %5316 = vrot.lane.b32.xlu0 %v5284, 118
  %v5317 = vpop.permute.xlu0 %5316
  %5318 = vrot.lane.b32.xlu0 %v5285, 118
  %v5319 = vpop.permute.xlu0 %5318
  %5320 = vrot.lane.b32.xlu0 %v5286, 118
  %v5321 = vpop.permute.xlu0 %5320
  %5322 = vrot.lane.b32.xlu0 %v5287, 118
  %v5323 = vpop.permute.xlu0 %5322
  %5328 = vrot.lane.b32.xlu0 %v5284, 117
  %v5329 = vpop.permute.xlu0 %5328
  %5330 = vrot.lane.b32.xlu0 %v5285, 117
  %v5331 = vpop.permute.xlu0 %5330
  %5332 = vrot.lane.b32.xlu0 %v5286, 117
  %v5333 = vpop.permute.xlu0 %5332
  %5334 = vrot.lane.b32.xlu0 %v5287, 117
  %v5335 = vpop.permute.xlu0 %5334
  %5340 = vrot.lane.b32.xlu0 %v5284, 116
  %v5341 = vpop.permute.xlu0 %5340
  %5342 = vrot.lane.b32.xlu0 %v5285, 116
  %v5343 = vpop.permute.xlu0 %5342
  %5344 = vrot.lane.b32.xlu0 %v5286, 116
  %v5345 = vpop.permute.xlu0 %5344
  %5346 = vrot.lane.b32.xlu0 %v5287, 116
  %v5347 = vpop.permute.xlu0 %5346
  %5352 = vrot.lane.b32.xlu0 %v5284, 108
  %v5353 = vpop.permute.xlu0 %5352
  %5354 = vrot.lane.b32.xlu0 %v5285, 108
  %v5355 = vpop.permute.xlu0 %5354
  %5356 = vrot.lane.b32.xlu0 %v5286, 108
  %v5357 = vpop.permute.xlu0 %5356
  %5358 = vrot.lane.b32.xlu0 %v5287, 108
  %v5359 = vpop.permute.xlu0 %5358
  %5364 = vrot.lane.b32.xlu0 %v5284, 107
  %v5365 = vpop.permute.xlu0 %5364
  %5366 = vrot.lane.b32.xlu0 %v5285, 107
  %v5367 = vpop.permute.xlu0 %5366
  %5368 = vrot.lane.b32.xlu0 %v5286, 107
  %v5369 = vpop.permute.xlu0 %5368
  %5370 = vrot.lane.b32.xlu0 %v5287, 107
  %v5371 = vpop.permute.xlu0 %5370
  %5376 = vrot.lane.b32.xlu0 %v5284, 106
  %v5377 = vpop.permute.xlu0 %5376
  %5378 = vrot.lane.b32.xlu0 %v5285, 106
  %v5379 = vpop.permute.xlu0 %5378
  %5380 = vrot.lane.b32.xlu0 %v5286, 106
  %v5381 = vpop.permute.xlu0 %5380
  %5382 = vrot.lane.b32.xlu0 %v5287, 106
  %v5383 = vpop.permute.xlu0 %5382
  %v5388 = vpack.c.bf16 %v5285, %v5284
  %v5389 = vpack.c.bf16 %v5287, %v5286
  %v5390 = vpack.c.bf16 %v5295, %v5293
  %v5391 = vpack.c.bf16 %v5299, %v5297
  %v5392 = vpack.c.bf16 %v5307, %v5305
  %v5393 = vpack.c.bf16 %v5311, %v5309
  %v5394 = vpack.c.bf16 %v5319, %v5317
  %v5395 = vpack.c.bf16 %v5323, %v5321
  %v5396 = vpack.c.bf16 %v5331, %v5329
  %v5397 = vpack.c.bf16 %v5335, %v5333
  %v5398 = vpack.c.bf16 %v5343, %v5341
  %v5399 = vpack.c.bf16 %v5347, %v5345
  %v5400 = vpack.c.bf16 %v5355, %v5353
  %v5401 = vpack.c.bf16 %v5359, %v5357
  %v5402 = vpack.c.bf16 %v5367, %v5365
  %v5403 = vpack.c.bf16 %v5371, %v5369
  %v5404 = vpack.c.bf16 %v5379, %v5377
  %v5405 = vpack.c.bf16 %v5383, %v5381
  %v5406 = vld [vmem:[%s27] sm:$0xff]
  %v5407 = vld [vmem:[%s27 + $0x8] sm:$0xf]
  %v5408 = vld [vmem:[%s27 + $0xc] sm:$0xff]
  %v5409 = vld [vmem:[%s27 + $0x14] sm:$0xf]
  %v5410 = vld [vmem:[%s27 + $0x18] sm:$0xff]
  %v5411 = vld [vmem:[%s27 + $0x20] sm:$0xf]
  %v5412 = vld [vmem:[%s27 + $0x24] sm:$0xff]
  %v5413 = vld [vmem:[%s27 + $0x2c] sm:$0xf]
  %v5414 = vld [vmem:[%s29] sm:$0xff]
  %v5415 = vld [vmem:[%s29 + $0x8] sm:$0xff]
  %v5416 = vld [vmem:[%s29 + $0x10] sm:$0xff]
  %v5417 = vld [vmem:[%s29 + $0x18] sm:$0xff]
  %5419 = vset.pattern.permute.xlu0 0
  %5420 = vperm.xlu0 %5419, %v5414
  %v5421 = vpop.permute.xlu0 %5420
  %5424 = vset.pattern.permute.xlu0 0
  %5425 = vperm.xlu0 %5424, %v5415
  %v5426 = vpop.permute.xlu0 %5425
  %5429 = vset.pattern.permute.xlu0 0
  %5430 = vperm.xlu0 %5429, %v5416
  %v5431 = vpop.permute.xlu0 %5430
  %5434 = vset.pattern.permute.xlu0 0
  %5435 = vperm.xlu0 %5434, %v5417
  %v5436 = vpop.permute.xlu0 %5435
  %v5446 = vunpack.c.l.b16 %v5406
  %v5447 = vunpack.c.h.b16 %v5406
  %v5448 = vunpack.c.l.b16 %v5407
  %v5449 = vunpack.c.l.b16 %v5408
  %v5450 = vunpack.c.h.b16 %v5408
  %v5451 = vunpack.c.l.b16 %v5409
  %v5452 = vunpack.c.l.b16 %v5410
  %v5453 = vunpack.c.h.b16 %v5410
  %v5454 = vunpack.c.l.b16 %v5411
  %v5455 = vunpack.c.l.b16 %v5412
  %v5456 = vunpack.c.h.b16 %v5412
  %v5457 = vunpack.c.l.b16 %v5413
  %v5458 = vpack.c.b16 %v5449, %v5446
  %v5459 = vpack.c.b16 %v5450, %v5447
  %v5460 = vpack.c.b16 %v5451, %v5448
  %v5461 = vpack.c.b16 %v5455, %v5452
  %v5462 = vpack.c.b16 %v5456, %v5453
  %v5463 = vpack.c.b16 %v5457, %v5454
  %v5469 = vsel %vm5136, %v5460, 0
  %v5472 = vsel %vm5136, %v5463, 0
  %5474 = vmatprep.subr.bf16.mxu0 0
  %5475 = vmatpush1.bf16.msra.mxu0 %v5388
  %5476 = vmatprep.subr.bf16.mxu0 0
  %5477 = vmatpush1.bf16.msra.mxu0 %v5389
  %5478 = vmatprep.subr.bf16.mxu0 0
  %5479 = vmatpush1.bf16.msra.mxu0 %v5390
  %5480 = vmatprep.subr.bf16.mxu0 0
  %5481 = vmatpush1.bf16.msra.mxu0 %v5391
  %5482 = vmatprep.subr.bf16.mxu0 0
  %5483 = vmatpush1.bf16.msra.mxu0 %v5392
  %5484 = vmatprep.subr.bf16.mxu0 0
  %5485 = vmatpush1.bf16.msra.mxu0 %v5393
  %5486 = vmatprep.subr.bf16.mxu0 0
  %5487 = vmatpush1.bf16.msra.mxu0 %v5394
  %5488 = vmatprep.subr.bf16.mxu0 0
  %5489 = vmatpush1.bf16.msra.mxu0 %v5395
  %5490 = vmatprep.subr.bf16.mxu0 0
  %5491 = vmatpush1.bf16.msra.mxu0 %v5396
  %5492 = vmatprep.subr.bf16.mxu0 0
  %5493 = vmatpush1.bf16.msra.mxu0 %v5397
  %5494 = vmatprep.subr.bf16.mxu0 0
  %5495 = vmatpush1.bf16.msra.mxu0 %v5398
  %5496 = vmatprep.subr.bf16.mxu0 0
  %5497 = vmatpush1.bf16.msra.mxu0 %v5399
  %5498 = vmatprep.subr.bf16.mxu0 0
  %5499 = vmatpush1.bf16.msra.mxu0 %v5400
  %5500 = vmatprep.subr.bf16.mxu0 0
  %5501 = vmatpush1.bf16.msra.mxu0 %v5401
  %5502 = vmatprep.subr.bf16.mxu0 0
  %5503 = vmatpush1.bf16.msra.mxu0 %v5402
  %5504 = vmatprep.subr.bf16.mxu0 0
  %5505 = vmatpush1.bf16.msra.mxu0 %v5403
  %5506 = vmatprep.mubr.bf16.mxu0 %v5459
  %5507 = vmatmul.mubr.bf16.gmra.mrb[0].mxu0 %v5458
  %v5508 = vpop.f32.mrb[0].mxu0
  %v5509 = vadd.f32 %v5421, %v5508
  %v5510 = vpop.f32.mrb[0].mxu0
  %v5511 = vpop.f32.mrb[0].mxu0
  %v5512 = vadd.f32 %v5426, %v5511
  %v5513 = vpop.f32.mrb[0].mxu0
  %5514 = vmatprep.mubr.bf16.mxu0 %v5462
  %5515 = vmatmul.mubr.bf16.gmra.mrb[0].mxu0 %v5461
  %v5516 = vpop.f32.mrb[0].mxu0
  %v5517 = vadd.f32 %v5431, %v5516
  %v5518 = vpop.f32.mrb[0].mxu0
  %v5519 = vpop.f32.mrb[0].mxu0
  %v5520 = vadd.f32 %v5436, %v5519
  %v5521 = vpop.f32.mrb[0].mxu0
  %5522 = vdwg.mxu0
  %5523 = vmatprep.subr.bf16.mxu0 0
  %5524 = vmatpush1.bf16.msra.mxu0 %v5404
  %5525 = vmatprep.subr.bf16.mxu0 0
  %5526 = vmatpush1.bf16.msra.mxu0 %v5405
  %5527 = vmatprep.subr.bf16.mxu0 0
  %5528 = vmatpush1.bf16.msra.mxu0 0
  %5529 = vmatprep.subr.bf16.mxu0 0
  %5530 = vmatpush1.bf16.msra.mxu0 0
  %5531 = vmatprep.subr.bf16.mxu0 0
  %5532 = vmatpush1.bf16.msra.mxu0 0
  %5533 = vmatprep.subr.bf16.mxu0 0
  %5534 = vmatpush1.bf16.msra.mxu0 0
  %5535 = vmatprep.subr.bf16.mxu0 0
  %5536 = vmatpush1.bf16.msra.mxu0 0
  %5537 = vmatprep.subr.bf16.mxu0 0
  %5538 = vmatpush1.bf16.msra.mxu0 0
  %5539 = vmatprep.subr.bf16.mxu0 0
  %5540 = vmatpush1.bf16.msra.mxu0 0
  %5541 = vmatprep.subr.bf16.mxu0 0
  %5542 = vmatpush1.bf16.msra.mxu0 0
  %5543 = vmatprep.subr.bf16.mxu0 0
  %5544 = vmatpush1.bf16.msra.mxu0 0
  %5545 = vmatprep.subr.bf16.mxu0 0
  %5546 = vmatpush1.bf16.msra.mxu0 0
  %5547 = vmatprep.subr.bf16.mxu0 0
  %5548 = vmatpush1.bf16.msra.mxu0 0
  %5549 = vmatprep.subr.bf16.mxu0 0
  %5550 = vmatpush1.bf16.msra.mxu0 0
  %5551 = vmatprep.subr.bf16.mxu0 0
  %5552 = vmatpush1.bf16.msra.mxu0 0
  %5553 = vmatprep.subr.bf16.mxu0 0
  %5554 = vmatpush1.bf16.msra.mxu0 0
  %5555 = vmatprep.mubr.bf16.mxu0 0
  %5556 = vmatmul.mubr.bf16.gmra.mrb[0].mxu0 %v5469
  %v5557 = vpop.f32.mrb[0].mxu0
  %v5558 = vadd.f32 %v5509, %v5557
  %v5559 = vpop.f32.mrb[0].mxu0
  %v5560 = vpop.f32.mrb[0].mxu0
  %v5561 = vadd.f32 %v5512, %v5560
  %v5562 = vpop.f32.mrb[0].mxu0
  %5563 = vmatprep.mubr.bf16.mxu0 0
  %5564 = vmatmul.mubr.bf16.gmra.mrb[0].mxu0 %v5472
  %v5565 = vpop.f32.mrb[0].mxu0
  %v5566 = vadd.f32 %v5517, %v5565
  %v5567 = vpop.f32.mrb[0].mxu0
  %v5568 = vpop.f32.mrb[0].mxu0
  %v5569 = vadd.f32 %v5520, %v5568
  %v5570 = vpop.f32.mrb[0].mxu0
  %5571 = vdwg.mxu0
  %v5572 = vmax.f32 %v5558, 0.0
  %v5573 = vmax.f32 %v5561, 0.0
  %v5574 = vmax.f32 %v5566, 0.0
  %v5575 = vmax.f32 %v5569, 0.0
  %v5576 = vld [vmem:[%s71] sm:$0x1]
  %v5578 = vlaneseq
  %v5579 = vshrl.u32 %v5578, 7
  %v5580 = vsub.s32 0, %v5579
  %v5581 = vrot.slane %v5576, %v5580
  %v5583 = vmul.f32 %v5572, %v5581
  %v5584 = vmul.f32 %v5573, %v5581
  %v5585 = vmul.f32 %v5574, %v5581
  %v5586 = vmul.f32 %v5575, %v5581
  %5587 = vst.msk [vmem:[#allocation2] sm:$0xff] %vm4730, 0.0
  %5588 = vst.msk [vmem:[#allocation2 + $0x50] sm:$0xff] %vm4730, 0.0
  %5589 = vst.msk [vmem:[#allocation2 + $0xa0] sm:$0xff] %vm4730, 0.0
  %5590 = vst.msk [vmem:[#allocation2 + $0xf0] sm:$0xff] %vm4730, 0.0
  %5595 = vrot.lane.b32.xlu0 %v5583, 11
  %v5596 = vpop.permute.xlu0 %5595
  %5597 = vrot.lane.b32.xlu0 %v5584, 11
  %v5598 = vpop.permute.xlu0 %5597
  %5599 = vrot.lane.b32.xlu0 %v5585, 11
  %v5600 = vpop.permute.xlu0 %5599
  %5601 = vrot.lane.b32.xlu0 %v5586, 11
  %v5602 = vpop.permute.xlu0 %5601
  %5607 = vst.msk [vmem:[#allocation2] sm:$0xff] %vm4741, %v5596
  %5608 = vst.msk [vmem:[#allocation2 + $0x50] sm:$0xff] %vm4741, %v5598
  %5609 = vst.msk [vmem:[#allocation2 + $0xa0] sm:$0xff] %vm4741, %v5600
  %5610 = vst.msk [vmem:[#allocation2 + $0xf0] sm:$0xff] %vm4741, %v5602
  %5611 = vst.msk [vmem:[#allocation2] sm:$0xff] %vm4744, 0.0
  %5612 = vst.msk [vmem:[#allocation2 + $0x50] sm:$0xff] %vm4744, 0.0
  %5613 = vst.msk [vmem:[#allocation2 + $0xa0] sm:$0xff] %vm4744, 0.0
  %5614 = vst.msk [vmem:[#allocation2 + $0xf0] sm:$0xff] %vm4744, 0.0
  %v5615 = vld [vmem:[#allocation2] sm:$0xff]
  %v5616 = vld [vmem:[#allocation2 + $0x50] sm:$0xff]
  %v5617 = vld [vmem:[#allocation2 + $0xa0] sm:$0xff]
  %v5618 = vld [vmem:[#allocation2 + $0xf0] sm:$0xff]
  %5623 = vrot.lane.b32.xlu0 %v5615, 127
  %v5624 = vpop.permute.xlu0 %5623
  %5625 = vrot.lane.b32.xlu0 %v5616, 127
  %v5626 = vpop.permute.xlu0 %5625
  %5627 = vrot.lane.b32.xlu0 %v5617, 127
  %v5628 = vpop.permute.xlu0 %5627
  %5629 = vrot.lane.b32.xlu0 %v5618, 127
  %v5630 = vpop.permute.xlu0 %5629
  %5635 = vrot.lane.b32.xlu0 %v5615, 126
  %v5636 = vpop.permute.xlu0 %5635
  %5637 = vrot.lane.b32.xlu0 %v5616, 126
  %v5638 = vpop.permute.xlu0 %5637
  %5639 = vrot.lane.b32.xlu0 %v5617, 126
  %v5640 = vpop.permute.xlu0 %5639
  %5641 = vrot.lane.b32.xlu0 %v5618, 126
  %v5642 = vpop.permute.xlu0 %5641
  %5647 = vrot.lane.b32.xlu0 %v5615, 118
  %v5648 = vpop.permute.xlu0 %5647
  %5649 = vrot.lane.b32.xlu0 %v5616, 118
  %v5650 = vpop.permute.xlu0 %5649
  %5651 = vrot.lane.b32.xlu0 %v5617, 118
  %v5652 = vpop.permute.xlu0 %5651
  %5653 = vrot.lane.b32.xlu0 %v5618, 118
  %v5654 = vpop.permute.xlu0 %5653
  %5659 = vrot.lane.b32.xlu0 %v5615, 117
  %v5660 = vpop.permute.xlu0 %5659
  %5661 = vrot.lane.b32.xlu0 %v5616, 117
  %v5662 = vpop.permute.xlu0 %5661
  %5663 = vrot.lane.b32.xlu0 %v5617, 117
  %v5664 = vpop.permute.xlu0 %5663
  %5665 = vrot.lane.b32.xlu0 %v5618, 117
  %v5666 = vpop.permute.xlu0 %5665
  %5671 = vrot.lane.b32.xlu0 %v5615, 116
  %v5672 = vpop.permute.xlu0 %5671
  %5673 = vrot.lane.b32.xlu0 %v5616, 116
  %v5674 = vpop.permute.xlu0 %5673
  %5675 = vrot.lane.b32.xlu0 %v5617, 116
  %v5676 = vpop.permute.xlu0 %5675
  %5677 = vrot.lane.b32.xlu0 %v5618, 116
  %v5678 = vpop.permute.xlu0 %5677
  %5683 = vrot.lane.b32.xlu0 %v5615, 108
  %v5684 = vpop.permute.xlu0 %5683
  %5685 = vrot.lane.b32.xlu0 %v5616, 108
  %v5686 = vpop.permute.xlu0 %5685
  %5687 = vrot.lane.b32.xlu0 %v5617, 108
  %v5688 = vpop.permute.xlu0 %5687
  %5689 = vrot.lane.b32.xlu0 %v5618, 108
  %v5690 = vpop.permute.xlu0 %5689
  %5695 = vrot.lane.b32.xlu0 %v5615, 107
  %v5696 = vpop.permute.xlu0 %5695
  %5697 = vrot.lane.b32.xlu0 %v5616, 107
  %v5698 = vpop.permute.xlu0 %5697
  %5699 = vrot.lane.b32.xlu0 %v5617, 107
  %v5700 = vpop.permute.xlu0 %5699
  %5701 = vrot.lane.b32.xlu0 %v5618, 107
  %v5702 = vpop.permute.xlu0 %5701
  %5707 = vrot.lane.b32.xlu0 %v5615, 106
  %v5708 = vpop.permute.xlu0 %5707
  %5709 = vrot.lane.b32.xlu0 %v5616, 106
  %v5710 = vpop.permute.xlu0 %5709
  %5711 = vrot.lane.b32.xlu0 %v5617, 106
  %v5712 = vpop.permute.xlu0 %5711
  %5713 = vrot.lane.b32.xlu0 %v5618, 106
  %v5714 = vpop.permute.xlu0 %5713
  %v5719 = vpack.c.bf16 %v5616, %v5615
  %v5720 = vpack.c.bf16 %v5618, %v5617
  %v5721 = vpack.c.bf16 %v5626, %v5624
  %v5722 = vpack.c.bf16 %v5630, %v5628
  %v5723 = vpack.c.bf16 %v5638, %v5636
  %v5724 = vpack.c.bf16 %v5642, %v5640
  %v5725 = vpack.c.bf16 %v5650, %v5648
  %v5726 = vpack.c.bf16 %v5654, %v5652
  %v5727 = vpack.c.bf16 %v5662, %v5660
  %v5728 = vpack.c.bf16 %v5666, %v5664
  %v5729 = vpack.c.bf16 %v5674, %v5672
  %v5730 = vpack.c.bf16 %v5678, %v5676
  %v5731 = vpack.c.bf16 %v5686, %v5684
  %v5732 = vpack.c.bf16 %v5690, %v5688
  %v5733 = vpack.c.bf16 %v5698, %v5696
  %v5734 = vpack.c.bf16 %v5702, %v5700
  %v5735 = vpack.c.bf16 %v5710, %v5708
  %v5736 = vpack.c.bf16 %v5714, %v5712
  %v5737 = vld [vmem:[%s31] sm:$0xff]
  %v5738 = vld [vmem:[%s31 + $0x8] sm:$0xf]
  %v5739 = vld [vmem:[%s31 + $0xc] sm:$0xff]
  %v5740 = vld [vmem:[%s31 + $0x14] sm:$0xf]
  %v5741 = vld [vmem:[%s31 + $0x18] sm:$0xff]
  %v5742 = vld [vmem:[%s31 + $0x20] sm:$0xf]
  %v5743 = vld [vmem:[%s31 + $0x24] sm:$0xff]
  %v5744 = vld [vmem:[%s31 + $0x2c] sm:$0xf]
  %v5745 = vld [vmem:[%s33] sm:$0xff]
  %v5746 = vld [vmem:[%s33 + $0x8] sm:$0xff]
  %v5747 = vld [vmem:[%s33 + $0x10] sm:$0xff]
  %v5748 = vld [vmem:[%s33 + $0x18] sm:$0xff]
  %5750 = vset.pattern.permute.xlu0 0
  %5751 = vperm.xlu0 %5750, %v5745
  %v5752 = vpop.permute.xlu0 %5751
  %5755 = vset.pattern.permute.xlu0 0
  %5756 = vperm.xlu0 %5755, %v5746
  %v5757 = vpop.permute.xlu0 %5756
  %5760 = vset.pattern.permute.xlu0 0
  %5761 = vperm.xlu0 %5760, %v5747
  %v5762 = vpop.permute.xlu0 %5761
  %5765 = vset.pattern.permute.xlu0 0
  %5766 = vperm.xlu0 %5765, %v5748
  %v5767 = vpop.permute.xlu0 %5766
  %v5777 = vunpack.c.l.b16 %v5737
  %v5778 = vunpack.c.h.b16 %v5737
  %v5779 = vunpack.c.l.b16 %v5738
  %v5780 = vunpack.c.l.b16 %v5739
  %v5781 = vunpack.c.h.b16 %v5739
  %v5782 = vunpack.c.l.b16 %v5740
  %v5783 = vunpack.c.l.b16 %v5741
  %v5784 = vunpack.c.h.b16 %v5741
  %v5785 = vunpack.c.l.b16 %v5742
  %v5786 = vunpack.c.l.b16 %v5743
  %v5787 = vunpack.c.h.b16 %v5743
  %v5788 = vunpack.c.l.b16 %v5744
  %v5789 = vpack.c.b16 %v5780, %v5777
  %v5790 = vpack.c.b16 %v5781, %v5778
  %v5791 = vpack.c.b16 %v5782, %v5779
  %v5792 = vpack.c.b16 %v5786, %v5783
  %v5793 = vpack.c.b16 %v5787, %v5784
  %v5794 = vpack.c.b16 %v5788, %v5785
  %v5800 = vsel %vm5136, %v5791, 0
  %v5803 = vsel %vm5136, %v5794, 0
  %5805 = vmatprep.subr.bf16.mxu0 0
  %5806 = vmatpush1.bf16.msra.mxu0 %v5719
  %5807 = vmatprep.subr.bf16.mxu0 0
  %5808 = vmatpush1.bf16.msra.mxu0 %v5720
  %5809 = vmatprep.subr.bf16.mxu0 0
  %5810 = vmatpush1.bf16.msra.mxu0 %v5721
  %5811 = vmatprep.subr.bf16.mxu0 0
  %5812 = vmatpush1.bf16.msra.mxu0 %v5722
  %5813 = vmatprep.subr.bf16.mxu0 0
  %5814 = vmatpush1.bf16.msra.mxu0 %v5723
  %5815 = vmatprep.subr.bf16.mxu0 0
  %5816 = vmatpush1.bf16.msra.mxu0 %v5724
  %5817 = vmatprep.subr.bf16.mxu0 0
  %5818 = vmatpush1.bf16.msra.mxu0 %v5725
  %5819 = vmatprep.subr.bf16.mxu0 0
  %5820 = vmatpush1.bf16.msra.mxu0 %v5726
  %5821 = vmatprep.subr.bf16.mxu0 0
  %5822 = vmatpush1.bf16.msra.mxu0 %v5727
  %5823 = vmatprep.subr.bf16.mxu0 0
  %5824 = vmatpush1.bf16.msra.mxu0 %v5728
  %5825 = vmatprep.subr.bf16.mxu0 0
  %5826 = vmatpush1.bf16.msra.mxu0 %v5729
  %5827 = vmatprep.subr.bf16.mxu0 0
  %5828 = vmatpush1.bf16.msra.mxu0 %v5730
  %5829 = vmatprep.subr.bf16.mxu0 0
  %5830 = vmatpush1.bf16.msra.mxu0 %v5731
  %5831 = vmatprep.subr.bf16.mxu0 0
  %5832 = vmatpush1.bf16.msra.mxu0 %v5732
  %5833 = vmatprep.subr.bf16.mxu0 0
  %5834 = vmatpush1.bf16.msra.mxu0 %v5733
  %5835 = vmatprep.subr.bf16.mxu0 0
  %5836 = vmatpush1.bf16.msra.mxu0 %v5734
  %5837 = vmatprep.mubr.bf16.mxu0 %v5790
  %5838 = vmatmul.mubr.bf16.gmra.mrb[0].mxu0 %v5789
  %v5839 = vpop.f32.mrb[0].mxu0
  %v5840 = vadd.f32 %v5752, %v5839
  %v5841 = vpop.f32.mrb[0].mxu0
  %v5842 = vpop.f32.mrb[0].mxu0
  %v5843 = vadd.f32 %v5757, %v5842
  %v5844 = vpop.f32.mrb[0].mxu0
  %5845 = vmatprep.mubr.bf16.mxu0 %v5793
  %5846 = vmatmul.mubr.bf16.gmra.mrb[0].mxu0 %v5792
  %v5847 = vpop.f32.mrb[0].mxu0
  %v5848 = vadd.f32 %v5762, %v5847
  %v5849 = vpop.f32.mrb[0].mxu0
  %v5850 = vpop.f32.mrb[0].mxu0
  %v5851 = vadd.f32 %v5767, %v5850
  %v5852 = vpop.f32.mrb[0].mxu0
  %5853 = vdwg.mxu0
  %5854 = vmatprep.subr.bf16.mxu0 0
  %5855 = vmatpush1.bf16.msra.mxu0 %v5735
  %5856 = vmatprep.subr.bf16.mxu0 0
  %5857 = vmatpush1.bf16.msra.mxu0 %v5736
  %5858 = vmatprep.subr.bf16.mxu0 0
  %5859 = vmatpush1.bf16.msra.mxu0 0
  %5860 = vmatprep.subr.bf16.mxu0 0
  %5861 = vmatpush1.bf16.msra.mxu0 0
  %5862 = vmatprep.subr.bf16.mxu0 0
  %5863 = vmatpush1.bf16.msra.mxu0 0
  %5864 = vmatprep.subr.bf16.mxu0 0
  %5865 = vmatpush1.bf16.msra.mxu0 0
  %5866 = vmatprep.subr.bf16.mxu0 0
  %5867 = vmatpush1.bf16.msra.mxu0 0
  %5868 = vmatprep.subr.bf16.mxu0 0
  %5869 = vmatpush1.bf16.msra.mxu0 0
  %5870 = vmatprep.subr.bf16.mxu0 0
  %5871 = vmatpush1.bf16.msra.mxu0 0
  %5872 = vmatprep.subr.bf16.mxu0 0
  %5873 = vmatpush1.bf16.msra.mxu0 0
  %5874 = vmatprep.subr.bf16.mxu0 0
  %5875 = vmatpush1.bf16.msra.mxu0 0
  %5876 = vmatprep.subr.bf16.mxu0 0
  %5877 = vmatpush1.bf16.msra.mxu0 0
  %5878 = vmatprep.subr.bf16.mxu0 0
  %5879 = vmatpush1.bf16.msra.mxu0 0
  %5880 = vmatprep.subr.bf16.mxu0 0
  %5881 = vmatpush1.bf16.msra.mxu0 0
  %5882 = vmatprep.subr.bf16.mxu0 0
  %5883 = vmatpush1.bf16.msra.mxu0 0
  %5884 = vmatprep.subr.bf16.mxu0 0
  %5885 = vmatpush1.bf16.msra.mxu0 0
  %5886 = vmatprep.mubr.bf16.mxu0 0
  %5887 = vmatmul.mubr.bf16.gmra.mrb[0].mxu0 %v5800
  %v5888 = vpop.f32.mrb[0].mxu0
  %v5889 = vadd.f32 %v5840, %v5888
  %v5890 = vpop.f32.mrb[0].mxu0
  %v5891 = vpop.f32.mrb[0].mxu0
  %v5892 = vadd.f32 %v5843, %v5891
  %v5893 = vpop.f32.mrb[0].mxu0
  %5894 = vmatprep.mubr.bf16.mxu0 0
  %5895 = vmatmul.mubr.bf16.gmra.mrb[0].mxu0 %v5803
  %v5896 = vpop.f32.mrb[0].mxu0
  %v5897 = vadd.f32 %v5848, %v5896
  %v5898 = vpop.f32.mrb[0].mxu0
  %v5899 = vpop.f32.mrb[0].mxu0
  %v5900 = vadd.f32 %v5851, %v5899
  %v5901 = vpop.f32.mrb[0].mxu0
  %5902 = vdwg.mxu0
  %v5903 = vmax.f32 %v5889, 0.0
  %v5904 = vmax.f32 %v5892, 0.0
  %v5905 = vmax.f32 %v5897, 0.0
  %v5906 = vmax.f32 %v5900, 0.0
  %vm5907 = vcmask 818176
  %5908 = vst.msk [vmem:[#allocation2] sm:$0xff] %vm5907, %v5903
  %5909 = vst.msk [vmem:[#allocation2 + $0x50] sm:$0xff] %vm5907, %v5904
  %5910 = vst.msk [vmem:[#allocation2 + $0xa0] sm:$0xff] %vm5907, %v5905
  %5911 = vst.msk [vmem:[#allocation2 + $0xf0] sm:$0xff] %vm5907, %v5906
  %vm5912 = vcmask 909088
  %5913 = vst.msk [vmem:[#allocation2] sm:$0xff] %vm5912, 0.0
  %5914 = vst.msk [vmem:[#allocation2 + $0x50] sm:$0xff] %vm5912, 0.0
  %5915 = vst.msk [vmem:[#allocation2 + $0xa0] sm:$0xff] %vm5912, 0.0
  %5916 = vst.msk [vmem:[#allocation2 + $0xf0] sm:$0xff] %vm5912, 0.0
  %v5917 = vld [vmem:[#allocation2] sm:$0xff]
  %v5918 = vld [vmem:[#allocation2 + $0x50] sm:$0xff]
  %v5919 = vld [vmem:[#allocation2 + $0xa0] sm:$0xff]
  %v5920 = vld [vmem:[#allocation2 + $0xf0] sm:$0xff]
  %5925 = vrot.lane.b32.xlu0 %v5917, 127
  %v5926 = vpop.permute.xlu0 %5925
  %5927 = vrot.lane.b32.xlu0 %v5918, 127
  %v5928 = vpop.permute.xlu0 %5927
  %5929 = vrot.lane.b32.xlu0 %v5919, 127
  %v5930 = vpop.permute.xlu0 %5929
  %5931 = vrot.lane.b32.xlu0 %v5920, 127
  %v5932 = vpop.permute.xlu0 %5931
  %v5937 = vmax.f32 %v5917, %v5926
  %v5938 = vmax.f32 %v5918, %v5928
  %v5939 = vmax.f32 %v5919, %v5930
  %v5940 = vmax.f32 %v5920, %v5932
  %5941 = vst.msk [vmem:[#allocation2] sm:$0xff] %vm3784, %v5937
  %5942 = vst.msk [vmem:[#allocation2 + $0x50] sm:$0xff] %vm3784, %v5938
  %5943 = vst.msk [vmem:[#allocation2 + $0xa0] sm:$0xff] %vm3784, %v5939
  %5944 = vst.msk [vmem:[#allocation2 + $0xf0] sm:$0xff] %vm3784, %v5940
  %v5945 = vld [vmem:[#allocation2] sm:$0xff]
  %v5946 = vld [vmem:[#allocation2 + $0x50] sm:$0xff]
  %v5947 = vld [vmem:[#allocation2 + $0xa0] sm:$0xff]
  %v5948 = vld [vmem:[#allocation2 + $0xf0] sm:$0xff]
  %5953 = vrot.lane.b32.xlu0 %v5945, 118
  %v5954 = vpop.permute.xlu0 %5953
  %5955 = vrot.lane.b32.xlu0 %v5946, 118
  %v5956 = vpop.permute.xlu0 %5955
  %5957 = vrot.lane.b32.xlu0 %v5947, 118
  %v5958 = vpop.permute.xlu0 %5957
  %5959 = vrot.lane.b32.xlu0 %v5948, 118
  %v5960 = vpop.permute.xlu0 %5959
  %v5965 = vmax.f32 %v5945, %v5954
  %v5966 = vmax.f32 %v5946, %v5956
  %v5967 = vmax.f32 %v5947, %v5958
  %v5968 = vmax.f32 %v5948, %v5960
  %v5969 = vpack.c.bf16 %v5966, %v5965
  %v5970 = vpack.c.bf16 %v5968, %v5967
  %v5971 = vld [vmem:[%s81] sm:$0xf]
  %v5972 = vld [vmem:[%s81 + $0x4] sm:$0xf]
  %v5973 = vld [vmem:[%s81 + $0x8] sm:$0xf]
  %v5974 = vld [vmem:[%s81 + $0xc] sm:$0xf]
  %v5975 = vld [vmem:[%s81 + $0x10] sm:$0xf]
  %v5976 = vld [vmem:[%s81 + $0x14] sm:$0xf]
  %v5977 = vld [vmem:[%s81 + $0x18] sm:$0xf]
  %v5978 = vld [vmem:[%s81 + $0x1c] sm:$0xf]
  %v5979 = vld [vmem:[%s81 + $0x20] sm:$0xf]
  %v5980 = vld [vmem:[%s81 + $0x24] sm:$0xf]
  %v5981 = vld [vmem:[%s81 + $0x28] sm:$0xf]
  %v5982 = vld [vmem:[%s81 + $0x2c] sm:$0xf]
  %v5983 = vld [vmem:[%s81 + $0x30] sm:$0x3]
  %v5997 = vunpack.c.l.b16 %v5971
  %v5998 = vunpack.c.l.b16 %v5972
  %v5999 = vunpack.c.l.b16 %v5973
  %v6000 = vunpack.c.l.b16 %v5974
  %v6001 = vunpack.c.l.b16 %v5975
  %v6002 = vunpack.c.l.b16 %v5976
  %v6003 = vunpack.c.l.b16 %v5977
  %v6004 = vunpack.c.l.b16 %v5978
  %v6005 = vunpack.c.l.b16 %v5979
  %v6006 = vunpack.c.l.b16 %v5980
  %v6007 = vunpack.c.l.b16 %v5981
  %v6008 = vunpack.c.l.b16 %v5982
  %v6009 = vunpack.c.l.b16 %v5983
  %v6010 = vpack.c.b16 %v5998, %v5997
  %v6011 = vpack.c.b16 %v6000, %v5999
  %v6012 = vpack.c.b16 %v6002, %v6001
  %v6013 = vpack.c.b16 %v6004, %v6003
  %v6014 = vpack.c.b16 %v6006, %v6005
  %v6015 = vpack.c.b16 %v6008, %v6007
  %v6016 = vpack.c.b16 %v6009, %v6009
  %v6024 = vsel %vm5907, %v5969, 0
  %v6027 = vsel %vm5907, %v5970, 0
  %v6030 = vsel %vm3312, %v6016, 0
  %6032 = vmatprep.subr.bf16.mxu0 0
  %6033 = vmatpush1.bf16.msra.mxu0 %v6010
  %6034 = vmatprep.subr.bf16.mxu0 0
  %6035 = vmatpush1.bf16.msra.mxu0 %v6011
  %6036 = vmatprep.subr.bf16.mxu0 0
  %6037 = vmatpush1.bf16.msra.mxu0 %v6012
  %6038 = vmatprep.subr.bf16.mxu0 0
  %6039 = vmatpush1.bf16.msra.mxu0 %v6013
  %6040 = vmatprep.subr.bf16.mxu0 0
  %6041 = vmatpush1.bf16.msra.mxu0 %v6014
  %6042 = vmatprep.subr.bf16.mxu0 0
  %6043 = vmatpush1.bf16.msra.mxu0 %v6015
  %6044 = vmatprep.subr.bf16.mxu0 0
  %6045 = vmatpush1.bf16.msra.mxu0 %v6030
  %6046 = vmatprep.subr.bf16.mxu0 0
  %6047 = vmatpush1.bf16.msra.mxu0 0
  %6048 = vmatprep.subr.bf16.mxu0 0
  %6049 = vmatpush1.bf16.msra.mxu0 0
  %6050 = vmatprep.subr.bf16.mxu0 0
  %6051 = vmatpush1.bf16.msra.mxu0 0
  %6052 = vmatprep.subr.bf16.mxu0 0
  %6053 = vmatpush1.bf16.msra.mxu0 0
  %6054 = vmatprep.subr.bf16.mxu0 0
  %6055 = vmatpush1.bf16.msra.mxu0 0
  %6056 = vmatprep.subr.bf16.mxu0 0
  %6057 = vmatpush1.bf16.msra.mxu0 0
  %6058 = vmatprep.subr.bf16.mxu0 0
  %6059 = vmatpush1.bf16.msra.mxu0 0
  %6060 = vmatprep.subr.bf16.mxu0 0
  %6061 = vmatpush1.bf16.msra.mxu0 0
  %6062 = vmatprep.subr.bf16.mxu0 0
  %6063 = vmatpush1.bf16.msra.mxu0 0
  %6064 = vmatprep.mubr.bf16.mxu0 0
  %6065 = vmatmul.mubr.bf16.gmra.mrb[0].mxu0 %v6024
  %v6066 = vpop.f32.mrb[0].mxu0
  %v6067 = vadd.f32 0.0, %v6066
  %v6068 = vpop.f32.mrb[0].mxu0
  %v6069 = vpop.f32.mrb[0].mxu0
  %v6070 = vadd.f32 0.0, %v6069
  %v6071 = vpop.f32.mrb[0].mxu0
  %6072 = vmatprep.mubr.bf16.mxu0 0
  %6073 = vmatmul.mubr.bf16.gmra.mrb[0].mxu0 %v6027
  %v6074 = vpop.f32.mrb[0].mxu0
  %v6075 = vadd.f32 0.0, %v6074
  %v6076 = vpop.f32.mrb[0].mxu0
  %v6077 = vpop.f32.mrb[0].mxu0
  %v6078 = vadd.f32 0.0, %v6077
  %v6079 = vpop.f32.mrb[0].mxu0
  %6080 = vdwg.mxu0
  %vm6081 = vcmask 56320
  %6082 = vst.msk [vmem:[#allocation2] sm:$0xff] %vm6081, 0.0
  %6083 = vst.msk [vmem:[#allocation2 + $0x50] sm:$0xff] %vm6081, 0.0
  %6084 = vst.msk [vmem:[#allocation2 + $0xa0] sm:$0xff] %vm6081, 0.0
  %6085 = vst.msk [vmem:[#allocation2 + $0xf0] sm:$0xff] %vm6081, 0.0
  %6090 = vrot.lane.b32.xlu0 %v6067, 7
  %v6091 = vpop.permute.xlu0 %6090
  %6092 = vrot.lane.b32.xlu0 %v6070, 7
  %v6093 = vpop.permute.xlu0 %6092
  %6094 = vrot.lane.b32.xlu0 %v6075, 7
  %v6095 = vpop.permute.xlu0 %6094
  %6096 = vrot.lane.b32.xlu0 %v6078, 7
  %v6097 = vpop.permute.xlu0 %6096
  %vm6102 = vcmask 351288
  %6103 = vst.msk [vmem:[#allocation2] sm:$0xff] %vm6102, %v6091
  %6104 = vst.msk [vmem:[#allocation2 + $0x50] sm:$0xff] %vm6102, %v6093
  %6105 = vst.msk [vmem:[#allocation2 + $0xa0] sm:$0xff] %vm6102, %v6095
  %6106 = vst.msk [vmem:[#allocation2 + $0xf0] sm:$0xff] %vm6102, %v6097
  %vm6107 = vcmask 408920
  %6108 = vst.msk [vmem:[#allocation2] sm:$0xff] %vm6107, 0.0
  %6109 = vst.msk [vmem:[#allocation2 + $0x50] sm:$0xff] %vm6107, 0.0
  %6110 = vst.msk [vmem:[#allocation2 + $0xa0] sm:$0xff] %vm6107, 0.0
  %6111 = vst.msk [vmem:[#allocation2 + $0xf0] sm:$0xff] %vm6107, 0.0
  %v6112 = vld [vmem:[#allocation2] sm:$0xff]
  %v6113 = vld [vmem:[#allocation2 + $0x50] sm:$0xff]
  %v6114 = vld [vmem:[#allocation2 + $0xa0] sm:$0xff]
  %v6115 = vld [vmem:[#allocation2 + $0xf0] sm:$0xff]
  %6120 = vrot.lane.b32.xlu0 %v6112, 127
  %v6121 = vpop.permute.xlu0 %6120
  %6122 = vrot.lane.b32.xlu0 %v6113, 127
  %v6123 = vpop.permute.xlu0 %6122
  %6124 = vrot.lane.b32.xlu0 %v6114, 127
  %v6125 = vpop.permute.xlu0 %6124
  %6126 = vrot.lane.b32.xlu0 %v6115, 127
  %v6127 = vpop.permute.xlu0 %6126
  %6132 = vrot.lane.b32.xlu0 %v6112, 126
  %v6133 = vpop.permute.xlu0 %6132
  %6134 = vrot.lane.b32.xlu0 %v6113, 126
  %v6135 = vpop.permute.xlu0 %6134
  %6136 = vrot.lane.b32.xlu0 %v6114, 126
  %v6137 = vpop.permute.xlu0 %6136
  %6138 = vrot.lane.b32.xlu0 %v6115, 126
  %v6139 = vpop.permute.xlu0 %6138
  %6144 = vrot.lane.b32.xlu0 %v6112, 122
  %v6145 = vpop.permute.xlu0 %6144
  %6146 = vrot.lane.b32.xlu0 %v6113, 122
  %v6147 = vpop.permute.xlu0 %6146
  %6148 = vrot.lane.b32.xlu0 %v6114, 122
  %v6149 = vpop.permute.xlu0 %6148
  %6150 = vrot.lane.b32.xlu0 %v6115, 122
  %v6151 = vpop.permute.xlu0 %6150
  %6156 = vrot.lane.b32.xlu0 %v6112, 121
  %v6157 = vpop.permute.xlu0 %6156
  %6158 = vrot.lane.b32.xlu0 %v6113, 121
  %v6159 = vpop.permute.xlu0 %6158
  %6160 = vrot.lane.b32.xlu0 %v6114, 121
  %v6161 = vpop.permute.xlu0 %6160
  %6162 = vrot.lane.b32.xlu0 %v6115, 121
  %v6163 = vpop.permute.xlu0 %6162
  %6168 = vrot.lane.b32.xlu0 %v6112, 120
  %v6169 = vpop.permute.xlu0 %6168
  %6170 = vrot.lane.b32.xlu0 %v6113, 120
  %v6171 = vpop.permute.xlu0 %6170
  %6172 = vrot.lane.b32.xlu0 %v6114, 120
  %v6173 = vpop.permute.xlu0 %6172
  %6174 = vrot.lane.b32.xlu0 %v6115, 120
  %v6175 = vpop.permute.xlu0 %6174
  %6180 = vrot.lane.b32.xlu0 %v6112, 116
  %v6181 = vpop.permute.xlu0 %6180
  %6182 = vrot.lane.b32.xlu0 %v6113, 116
  %v6183 = vpop.permute.xlu0 %6182
  %6184 = vrot.lane.b32.xlu0 %v6114, 116
  %v6185 = vpop.permute.xlu0 %6184
  %6186 = vrot.lane.b32.xlu0 %v6115, 116
  %v6187 = vpop.permute.xlu0 %6186
  %6192 = vrot.lane.b32.xlu0 %v6112, 115
  %v6193 = vpop.permute.xlu0 %6192
  %6194 = vrot.lane.b32.xlu0 %v6113, 115
  %v6195 = vpop.permute.xlu0 %6194
  %6196 = vrot.lane.b32.xlu0 %v6114, 115
  %v6197 = vpop.permute.xlu0 %6196
  %6198 = vrot.lane.b32.xlu0 %v6115, 115
  %v6199 = vpop.permute.xlu0 %6198
  %6204 = vrot.lane.b32.xlu0 %v6112, 114
  %v6205 = vpop.permute.xlu0 %6204
  %6206 = vrot.lane.b32.xlu0 %v6113, 114
  %v6207 = vpop.permute.xlu0 %6206
  %6208 = vrot.lane.b32.xlu0 %v6114, 114
  %v6209 = vpop.permute.xlu0 %6208
  %6210 = vrot.lane.b32.xlu0 %v6115, 114
  %v6211 = vpop.permute.xlu0 %6210
  %v6216 = vpack.c.bf16 %v6113, %v6112
  %v6217 = vpack.c.bf16 %v6115, %v6114
  %v6218 = vpack.c.bf16 %v6123, %v6121
  %v6219 = vpack.c.bf16 %v6127, %v6125
  %v6220 = vpack.c.bf16 %v6135, %v6133
  %v6221 = vpack.c.bf16 %v6139, %v6137
  %v6222 = vpack.c.bf16 %v6147, %v6145
  %v6223 = vpack.c.bf16 %v6151, %v6149
  %v6224 = vpack.c.bf16 %v6159, %v6157
  %v6225 = vpack.c.bf16 %v6163, %v6161
  %v6226 = vpack.c.bf16 %v6171, %v6169
  %v6227 = vpack.c.bf16 %v6175, %v6173
  %v6228 = vpack.c.bf16 %v6183, %v6181
  %v6229 = vpack.c.bf16 %v6187, %v6185
  %v6230 = vpack.c.bf16 %v6195, %v6193
  %v6231 = vpack.c.bf16 %v6199, %v6197
  %v6232 = vpack.c.bf16 %v6207, %v6205
  %v6233 = vpack.c.bf16 %v6211, %v6209
  %v6234 = vld [vmem:[%s35] sm:$0xff]
  %v6235 = vld [vmem:[%s35 + $0x8] sm:$0xf]
  %v6236 = vld [vmem:[%s35 + $0xc] sm:$0xff]
  %v6237 = vld [vmem:[%s35 + $0x14] sm:$0xf]
  %v6238 = vld [vmem:[%s35 + $0x18] sm:$0xff]
  %v6239 = vld [vmem:[%s35 + $0x20] sm:$0xf]
  %v6240 = vld [vmem:[%s35 + $0x24] sm:$0xff]
  %v6241 = vld [vmem:[%s35 + $0x2c] sm:$0xf]
  %v6242 = vld [vmem:[%s35 + $0x30] sm:$0xff]
  %v6243 = vld [vmem:[%s35 + $0x38] sm:$0xf]
  %v6244 = vld [vmem:[%s35 + $0x3c] sm:$0xff]
  %v6245 = vld [vmem:[%s35 + $0x44] sm:$0xf]
  %v6246 = vld [vmem:[%s35 + $0x48] sm:$0xff]
  %v6247 = vld [vmem:[%s35 + $0x50] sm:$0xf]
  %v6248 = vld [vmem:[%s35 + $0x54] sm:$0xff]
  %v6249 = vld [vmem:[%s35 + $0x5c] sm:$0xf]
  %v6250 = vld [vmem:[%s37] sm:$0xff]
  %v6251 = vld [vmem:[%s37 + $0x8] sm:$0xff]
  %v6252 = vld [vmem:[%s37 + $0x10] sm:$0xff]
  %v6253 = vld [vmem:[%s37 + $0x18] sm:$0xff]
  %v6254 = vld [vmem:[%s37 + $0x20] sm:$0xff]
  %v6255 = vld [vmem:[%s37 + $0x28] sm:$0xff]
  %v6256 = vld [vmem:[%s37 + $0x30] sm:$0xff]
  %v6257 = vld [vmem:[%s37 + $0x38] sm:$0xff]
  %6259 = vset.pattern.permute.xlu0 0
  %6260 = vperm.xlu0 %6259, %v6250
  %v6261 = vpop.permute.xlu0 %6260
  %6264 = vset.pattern.permute.xlu0 0
  %6265 = vperm.xlu0 %6264, %v6251
  %v6266 = vpop.permute.xlu0 %6265
  %6269 = vset.pattern.permute.xlu0 0
  %6270 = vperm.xlu0 %6269, %v6252
  %v6271 = vpop.permute.xlu0 %6270
  %6274 = vset.pattern.permute.xlu0 0
  %6275 = vperm.xlu0 %6274, %v6253
  %v6276 = vpop.permute.xlu0 %6275
  %6279 = vset.pattern.permute.xlu0 0
  %6280 = vperm.xlu0 %6279, %v6254
  %v6281 = vpop.permute.xlu0 %6280
  %6284 = vset.pattern.permute.xlu0 0
  %6285 = vperm.xlu0 %6284, %v6255
  %v6286 = vpop.permute.xlu0 %6285
  %6289 = vset.pattern.permute.xlu0 0
  %6290 = vperm.xlu0 %6289, %v6256
  %v6291 = vpop.permute.xlu0 %6290
  %6294 = vset.pattern.permute.xlu0 0
  %6295 = vperm.xlu0 %6294, %v6257
  %v6296 = vpop.permute.xlu0 %6295
  %v6314 = vunpack.c.l.b16 %v6234
  %v6315 = vunpack.c.h.b16 %v6234
  %v6316 = vunpack.c.l.b16 %v6235
  %v6317 = vunpack.c.l.b16 %v6236
  %v6318 = vunpack.c.h.b16 %v6236
  %v6319 = vunpack.c.l.b16 %v6237
  %v6320 = vunpack.c.l.b16 %v6238
  %v6321 = vunpack.c.h.b16 %v6238
  %v6322 = vunpack.c.l.b16 %v6239
  %v6323 = vunpack.c.l.b16 %v6240
  %v6324 = vunpack.c.h.b16 %v6240
  %v6325 = vunpack.c.l.b16 %v6241
  %v6326 = vunpack.c.l.b16 %v6242
  %v6327 = vunpack.c.h.b16 %v6242
  %v6328 = vunpack.c.l.b16 %v6243
  %v6329 = vunpack.c.l.b16 %v6244
  %v6330 = vunpack.c.h.b16 %v6244
  %v6331 = vunpack.c.l.b16 %v6245
  %v6332 = vunpack.c.l.b16 %v6246
  %v6333 = vunpack.c.h.b16 %v6246
  %v6334 = vunpack.c.l.b16 %v6247
  %v6335 = vunpack.c.l.b16 %v6248
  %v6336 = vunpack.c.h.b16 %v6248
  %v6337 = vunpack.c.l.b16 %v6249
  %v6338 = vpack.c.b16 %v6317, %v6314
  %v6339 = vpack.c.b16 %v6318, %v6315
  %v6340 = vpack.c.b16 %v6319, %v6316
  %v6341 = vpack.c.b16 %v6323, %v6320
  %v6342 = vpack.c.b16 %v6324, %v6321
  %v6343 = vpack.c.b16 %v6325, %v6322
  %v6344 = vpack.c.b16 %v6329, %v6326
  %v6345 = vpack.c.b16 %v6330, %v6327
  %v6346 = vpack.c.b16 %v6331, %v6328
  %v6347 = vpack.c.b16 %v6335, %v6332
  %v6348 = vpack.c.b16 %v6336, %v6333
  %v6349 = vpack.c.b16 %v6337, %v6334
  %v6359 = vsel %vm5136, %v6340, 0
  %v6362 = vsel %vm5136, %v6343, 0
  %v6365 = vsel %vm5136, %v6346, 0
  %v6368 = vsel %vm5136, %v6349, 0
  %6370 = vmatprep.subr.bf16.mxu0 0
  %6371 = vmatpush1.bf16.msra.mxu0 %v6216
  %6372 = vmatprep.subr.bf16.mxu0 0
  %6373 = vmatpush1.bf16.msra.mxu0 %v6217
  %6374 = vmatprep.subr.bf16.mxu0 0
  %6375 = vmatpush1.bf16.msra.mxu0 %v6218
  %6376 = vmatprep.subr.bf16.mxu0 0
  %6377 = vmatpush1.bf16.msra.mxu0 %v6219
  %6378 = vmatprep.subr.bf16.mxu0 0
  %6379 = vmatpush1.bf16.msra.mxu0 %v6220
  %6380 = vmatprep.subr.bf16.mxu0 0
  %6381 = vmatpush1.bf16.msra.mxu0 %v6221
  %6382 = vmatprep.subr.bf16.mxu0 0
  %6383 = vmatpush1.bf16.msra.mxu0 %v6222
  %6384 = vmatprep.subr.bf16.mxu0 0
  %6385 = vmatpush1.bf16.msra.mxu0 %v6223
  %6386 = vmatprep.subr.bf16.mxu0 0
  %6387 = vmatpush1.bf16.msra.mxu0 %v6224
  %6388 = vmatprep.subr.bf16.mxu0 0
  %6389 = vmatpush1.bf16.msra.mxu0 %v6225
  %6390 = vmatprep.subr.bf16.mxu0 0
  %6391 = vmatpush1.bf16.msra.mxu0 %v6226
  %6392 = vmatprep.subr.bf16.mxu0 0
  %6393 = vmatpush1.bf16.msra.mxu0 %v6227
  %6394 = vmatprep.subr.bf16.mxu0 0
  %6395 = vmatpush1.bf16.msra.mxu0 %v6228
  %6396 = vmatprep.subr.bf16.mxu0 0
  %6397 = vmatpush1.bf16.msra.mxu0 %v6229
  %6398 = vmatprep.subr.bf16.mxu0 0
  %6399 = vmatpush1.bf16.msra.mxu0 %v6230
  %6400 = vmatprep.subr.bf16.mxu0 0
  %6401 = vmatpush1.bf16.msra.mxu0 %v6231
  %6402 = vmatprep.mubr.bf16.mxu0 %v6339
  %6403 = vmatmul.mubr.bf16.gmra.mrb[0].mxu0 %v6338
  %v6404 = vpop.f32.mrb[0].mxu0
  %v6405 = vadd.f32 %v6261, %v6404
  %v6406 = vpop.f32.mrb[0].mxu0
  %v6407 = vpop.f32.mrb[0].mxu0
  %v6408 = vadd.f32 %v6266, %v6407
  %v6409 = vpop.f32.mrb[0].mxu0
  %6410 = vmatprep.mubr.bf16.mxu0 %v6342
  %6411 = vmatmul.mubr.bf16.gmra.mrb[0].mxu0 %v6341
  %v6412 = vpop.f32.mrb[0].mxu0
  %v6413 = vadd.f32 %v6271, %v6412
  %v6414 = vpop.f32.mrb[0].mxu0
  %v6415 = vpop.f32.mrb[0].mxu0
  %v6416 = vadd.f32 %v6276, %v6415
  %v6417 = vpop.f32.mrb[0].mxu0
  %6418 = vmatprep.mubr.bf16.mxu0 %v6345
  %6419 = vmatmul.mubr.bf16.gmra.mrb[0].mxu0 %v6344
  %v6420 = vpop.f32.mrb[0].mxu0
  %v6421 = vadd.f32 %v6281, %v6420
  %v6422 = vpop.f32.mrb[0].mxu0
  %v6423 = vpop.f32.mrb[0].mxu0
  %v6424 = vadd.f32 %v6286, %v6423
  %v6425 = vpop.f32.mrb[0].mxu0
  %6426 = vmatprep.mubr.bf16.mxu0 %v6348
  %6427 = vmatmul.mubr.bf16.gmra.mrb[0].mxu0 %v6347
  %v6428 = vpop.f32.mrb[0].mxu0
  %v6429 = vadd.f32 %v6291, %v6428
  %v6430 = vpop.f32.mrb[0].mxu0
  %v6431 = vpop.f32.mrb[0].mxu0
  %v6432 = vadd.f32 %v6296, %v6431
  %v6433 = vpop.f32.mrb[0].mxu0
  %6434 = vdwg.mxu0
  %6435 = vmatprep.subr.bf16.mxu0 0
  %6436 = vmatpush1.bf16.msra.mxu0 %v6232
  %6437 = vmatprep.subr.bf16.mxu0 0
  %6438 = vmatpush1.bf16.msra.mxu0 %v6233
  %6439 = vmatprep.subr.bf16.mxu0 0
  %6440 = vmatpush1.bf16.msra.mxu0 0
  %6441 = vmatprep.subr.bf16.mxu0 0
  %6442 = vmatpush1.bf16.msra.mxu0 0
  %6443 = vmatprep.subr.bf16.mxu0 0
  %6444 = vmatpush1.bf16.msra.mxu0 0
  %6445 = vmatprep.subr.bf16.mxu0 0
  %6446 = vmatpush1.bf16.msra.mxu0 0
  %6447 = vmatprep.subr.bf16.mxu0 0
  %6448 = vmatpush1.bf16.msra.mxu0 0
  %6449 = vmatprep.subr.bf16.mxu0 0
  %6450 = vmatpush1.bf16.msra.mxu0 0
  %6451 = vmatprep.subr.bf16.mxu0 0
  %6452 = vmatpush1.bf16.msra.mxu0 0
  %6453 = vmatprep.subr.bf16.mxu0 0
  %6454 = vmatpush1.bf16.msra.mxu0 0
  %6455 = vmatprep.subr.bf16.mxu0 0
  %6456 = vmatpush1.bf16.msra.mxu0 0
  %6457 = vmatprep.subr.bf16.mxu0 0
  %6458 = vmatpush1.bf16.msra.mxu0 0
  %6459 = vmatprep.subr.bf16.mxu0 0
  %6460 = vmatpush1.bf16.msra.mxu0 0
  %6461 = vmatprep.subr.bf16.mxu0 0
  %6462 = vmatpush1.bf16.msra.mxu0 0
  %6463 = vmatprep.subr.bf16.mxu0 0
  %6464 = vmatpush1.bf16.msra.mxu0 0
  %6465 = vmatprep.subr.bf16.mxu0 0
  %6466 = vmatpush1.bf16.msra.mxu0 0
  %6467 = vmatprep.mubr.bf16.mxu0 0
  %6468 = vmatmul.mubr.bf16.gmra.mrb[0].mxu0 %v6359
  %v6469 = vpop.f32.mrb[0].mxu0
  %v6470 = vadd.f32 %v6405, %v6469
  %v6471 = vpop.f32.mrb[0].mxu0
  %v6472 = vpop.f32.mrb[0].mxu0
  %v6473 = vadd.f32 %v6408, %v6472
  %v6474 = vpop.f32.mrb[0].mxu0
  %6475 = vmatprep.mubr.bf16.mxu0 0
  %6476 = vmatmul.mubr.bf16.gmra.mrb[0].mxu0 %v6362
  %v6477 = vpop.f32.mrb[0].mxu0
  %v6478 = vadd.f32 %v6413, %v6477
  %v6479 = vpop.f32.mrb[0].mxu0
  %v6480 = vpop.f32.mrb[0].mxu0
  %v6481 = vadd.f32 %v6416, %v6480
  %v6482 = vpop.f32.mrb[0].mxu0
  %6483 = vmatprep.mubr.bf16.mxu0 0
  %6484 = vmatmul.mubr.bf16.gmra.mrb[0].mxu0 %v6365
  %v6485 = vpop.f32.mrb[0].mxu0
  %v6486 = vadd.f32 %v6421, %v6485
  %v6487 = vpop.f32.mrb[0].mxu0
  %v6488 = vpop.f32.mrb[0].mxu0
  %v6489 = vadd.f32 %v6424, %v6488
  %v6490 = vpop.f32.mrb[0].mxu0
  %6491 = vmatprep.mubr.bf16.mxu0 0
  %6492 = vmatmul.mubr.bf16.gmra.mrb[0].mxu0 %v6368
  %v6493 = vpop.f32.mrb[0].mxu0
  %v6494 = vadd.f32 %v6429, %v6493
  %v6495 = vpop.f32.mrb[0].mxu0
  %v6496 = vpop.f32.mrb[0].mxu0
  %v6497 = vadd.f32 %v6432, %v6496
  %v6498 = vpop.f32.mrb[0].mxu0
  %6499 = vdwg.mxu0
  %v6500 = vmax.f32 %v6470, 0.0
  %v6501 = vmax.f32 %v6473, 0.0
  %v6502 = vmax.f32 %v6478, 0.0
  %v6503 = vmax.f32 %v6481, 0.0
  %v6504 = vmax.f32 %v6486, 0.0
  %v6505 = vmax.f32 %v6489, 0.0
  %v6506 = vmax.f32 %v6494, 0.0
  %v6507 = vmax.f32 %v6497, 0.0
  %v6508 = vld [vmem:[%s73] sm:$0x1]
  %v6510 = vlaneseq
  %v6511 = vshrl.u32 %v6510, 7
  %v6512 = vsub.s32 0, %v6511
  %v6513 = vrot.slane %v6508, %v6512
  %v6515 = vmul.f32 %v6500, %v6513
  %v6516 = vmul.f32 %v6501, %v6513
  %v6517 = vmul.f32 %v6502, %v6513
  %v6518 = vmul.f32 %v6503, %v6513
  %v6519 = vmul.f32 %v6504, %v6513
  %v6520 = vmul.f32 %v6505, %v6513
  %v6521 = vmul.f32 %v6506, %v6513
  %v6522 = vmul.f32 %v6507, %v6513
  %6523 = vst.msk [vmem:[#allocation2] sm:$0xff] %vm6081, 0.0
  %6524 = vst.msk [vmem:[#allocation2 + $0x50] sm:$0xff] %vm6081, 0.0
  %6525 = vst.msk [vmem:[#allocation2 + $0xa0] sm:$0xff] %vm6081, 0.0
  %6526 = vst.msk [vmem:[#allocation2 + $0xf0] sm:$0xff] %vm6081, 0.0
  %6527 = vst.msk [vmem:[#allocation2 + $0x140] sm:$0xff] %vm6081, 0.0
  %6528 = vst.msk [vmem:[#allocation2 + $0x190] sm:$0xff] %vm6081, 0.0
  %6529 = vst.msk [vmem:[#allocation2 + $0x1e0] sm:$0xff] %vm6081, 0.0
  %6530 = vst.msk [vmem:[#allocation2 + $0x230] sm:$0xff] %vm6081, 0.0
  %6539 = vrot.lane.b32.xlu0 %v6515, 7
  %v6540 = vpop.permute.xlu0 %6539
  %6541 = vrot.lane.b32.xlu0 %v6516, 7
  %v6542 = vpop.permute.xlu0 %6541
  %6543 = vrot.lane.b32.xlu0 %v6517, 7
  %v6544 = vpop.permute.xlu0 %6543
  %6545 = vrot.lane.b32.xlu0 %v6518, 7
  %v6546 = vpop.permute.xlu0 %6545
  %6547 = vrot.lane.b32.xlu0 %v6519, 7
  %v6548 = vpop.permute.xlu0 %6547
  %6549 = vrot.lane.b32.xlu0 %v6520, 7
  %v6550 = vpop.permute.xlu0 %6549
  %6551 = vrot.lane.b32.xlu0 %v6521, 7
  %v6552 = vpop.permute.xlu0 %6551
  %6553 = vrot.lane.b32.xlu0 %v6522, 7
  %v6554 = vpop.permute.xlu0 %6553
  %6563 = vst.msk [vmem:[#allocation2] sm:$0xff] %vm6102, %v6540
  %6564 = vst.msk [vmem:[#allocation2 + $0x50] sm:$0xff] %vm6102, %v6542
  %6565 = vst.msk [vmem:[#allocation2 + $0xa0] sm:$0xff] %vm6102, %v6544
  %6566 = vst.msk [vmem:[#allocation2 + $0xf0] sm:$0xff] %vm6102, %v6546
  %6567 = vst.msk [vmem:[#allocation2 + $0x140] sm:$0xff] %vm6102, %v6548
  %6568 = vst.msk [vmem:[#allocation2 + $0x190] sm:$0xff] %vm6102, %v6550
  %6569 = vst.msk [vmem:[#allocation2 + $0x1e0] sm:$0xff] %vm6102, %v6552
  %6570 = vst.msk [vmem:[#allocation2 + $0x230] sm:$0xff] %vm6102, %v6554
  %6571 = vst.msk [vmem:[#allocation2] sm:$0xff] %vm6107, 0.0
  %6572 = vst.msk [vmem:[#allocation2 + $0x50] sm:$0xff] %vm6107, 0.0
  %6573 = vst.msk [vmem:[#allocation2 + $0xa0] sm:$0xff] %vm6107, 0.0
  %6574 = vst.msk [vmem:[#allocation2 + $0xf0] sm:$0xff] %vm6107, 0.0
  %6575 = vst.msk [vmem:[#allocation2 + $0x140] sm:$0xff] %vm6107, 0.0
  %6576 = vst.msk [vmem:[#allocation2 + $0x190] sm:$0xff] %vm6107, 0.0
  %6577 = vst.msk [vmem:[#allocation2 + $0x1e0] sm:$0xff] %vm6107, 0.0
  %6578 = vst.msk [vmem:[#allocation2 + $0x230] sm:$0xff] %vm6107, 0.0
  %v6579 = vld [vmem:[#allocation2] sm:$0xff]
  %v6580 = vld [vmem:[#allocation2 + $0x50] sm:$0xff]
  %v6581 = vld [vmem:[#allocation2 + $0xa0] sm:$0xff]
  %v6582 = vld [vmem:[#allocation2 + $0xf0] sm:$0xff]
  %v6583 = vld [vmem:[#allocation2 + $0x140] sm:$0xff]
  %v6584 = vld [vmem:[#allocation2 + $0x190] sm:$0xff]
  %v6585 = vld [vmem:[#allocation2 + $0x1e0] sm:$0xff]
  %v6586 = vld [vmem:[#allocation2 + $0x230] sm:$0xff]
  %6595 = vrot.lane.b32.xlu0 %v6579, 127
  %v6596 = vpop.permute.xlu0 %6595
  %6597 = vrot.lane.b32.xlu0 %v6580, 127
  %v6598 = vpop.permute.xlu0 %6597
  %6599 = vrot.lane.b32.xlu0 %v6581, 127
  %v6600 = vpop.permute.xlu0 %6599
  %6601 = vrot.lane.b32.xlu0 %v6582, 127
  %v6602 = vpop.permute.xlu0 %6601
  %6603 = vrot.lane.b32.xlu0 %v6583, 127
  %v6604 = vpop.permute.xlu0 %6603
  %6605 = vrot.lane.b32.xlu0 %v6584, 127
  %v6606 = vpop.permute.xlu0 %6605
  %6607 = vrot.lane.b32.xlu0 %v6585, 127
  %v6608 = vpop.permute.xlu0 %6607
  %6609 = vrot.lane.b32.xlu0 %v6586, 127
  %v6610 = vpop.permute.xlu0 %6609
  %6619 = vrot.lane.b32.xlu0 %v6579, 126
  %v6620 = vpop.permute.xlu0 %6619
  %6621 = vrot.lane.b32.xlu0 %v6580, 126
  %v6622 = vpop.permute.xlu0 %6621
  %6623 = vrot.lane.b32.xlu0 %v6581, 126
  %v6624 = vpop.permute.xlu0 %6623
  %6625 = vrot.lane.b32.xlu0 %v6582, 126
  %v6626 = vpop.permute.xlu0 %6625
  %6627 = vrot.lane.b32.xlu0 %v6583, 126
  %v6628 = vpop.permute.xlu0 %6627
  %6629 = vrot.lane.b32.xlu0 %v6584, 126
  %v6630 = vpop.permute.xlu0 %6629
  %6631 = vrot.lane.b32.xlu0 %v6585, 126
  %v6632 = vpop.permute.xlu0 %6631
  %6633 = vrot.lane.b32.xlu0 %v6586, 126
  %v6634 = vpop.permute.xlu0 %6633
  %6643 = vrot.lane.b32.xlu0 %v6579, 122
  %v6644 = vpop.permute.xlu0 %6643
  %6645 = vrot.lane.b32.xlu0 %v6580, 122
  %v6646 = vpop.permute.xlu0 %6645
  %6647 = vrot.lane.b32.xlu0 %v6581, 122
  %v6648 = vpop.permute.xlu0 %6647
  %6649 = vrot.lane.b32.xlu0 %v6582, 122
  %v6650 = vpop.permute.xlu0 %6649
  %6651 = vrot.lane.b32.xlu0 %v6583, 122
  %v6652 = vpop.permute.xlu0 %6651
  %6653 = vrot.lane.b32.xlu0 %v6584, 122
  %v6654 = vpop.permute.xlu0 %6653
  %6655 = vrot.lane.b32.xlu0 %v6585, 122
  %v6656 = vpop.permute.xlu0 %6655
  %6657 = vrot.lane.b32.xlu0 %v6586, 122
  %v6658 = vpop.permute.xlu0 %6657
  %6667 = vrot.lane.b32.xlu0 %v6579, 121
  %v6668 = vpop.permute.xlu0 %6667
  %6669 = vrot.lane.b32.xlu0 %v6580, 121
  %v6670 = vpop.permute.xlu0 %6669
  %6671 = vrot.lane.b32.xlu0 %v6581, 121
  %v6672 = vpop.permute.xlu0 %6671
  %6673 = vrot.lane.b32.xlu0 %v6582, 121
  %v6674 = vpop.permute.xlu0 %6673
  %6675 = vrot.lane.b32.xlu0 %v6583, 121
  %v6676 = vpop.permute.xlu0 %6675
  %6677 = vrot.lane.b32.xlu0 %v6584, 121
  %v6678 = vpop.permute.xlu0 %6677
  %6679 = vrot.lane.b32.xlu0 %v6585, 121
  %v6680 = vpop.permute.xlu0 %6679
  %6681 = vrot.lane.b32.xlu0 %v6586, 121
  %v6682 = vpop.permute.xlu0 %6681
  %6691 = vrot.lane.b32.xlu0 %v6579, 120
  %v6692 = vpop.permute.xlu0 %6691
  %6693 = vrot.lane.b32.xlu0 %v6580, 120
  %v6694 = vpop.permute.xlu0 %6693
  %6695 = vrot.lane.b32.xlu0 %v6581, 120
  %v6696 = vpop.permute.xlu0 %6695
  %6697 = vrot.lane.b32.xlu0 %v6582, 120
  %v6698 = vpop.permute.xlu0 %6697
  %6699 = vrot.lane.b32.xlu0 %v6583, 120
  %v6700 = vpop.permute.xlu0 %6699
  %6701 = vrot.lane.b32.xlu0 %v6584, 120
  %v6702 = vpop.permute.xlu0 %6701
  %6703 = vrot.lane.b32.xlu0 %v6585, 120
  %v6704 = vpop.permute.xlu0 %6703
  %6705 = vrot.lane.b32.xlu0 %v6586, 120
  %v6706 = vpop.permute.xlu0 %6705
  %6715 = vrot.lane.b32.xlu0 %v6579, 116
  %v6716 = vpop.permute.xlu0 %6715
  %6717 = vrot.lane.b32.xlu0 %v6580, 116
  %v6718 = vpop.permute.xlu0 %6717
  %6719 = vrot.lane.b32.xlu0 %v6581, 116
  %v6720 = vpop.permute.xlu0 %6719
  %6721 = vrot.lane.b32.xlu0 %v6582, 116
  %v6722 = vpop.permute.xlu0 %6721
  %6723 = vrot.lane.b32.xlu0 %v6583, 116
  %v6724 = vpop.permute.xlu0 %6723
  %6725 = vrot.lane.b32.xlu0 %v6584, 116
  %v6726 = vpop.permute.xlu0 %6725
  %6727 = vrot.lane.b32.xlu0 %v6585, 116
  %v6728 = vpop.permute.xlu0 %6727
  %6729 = vrot.lane.b32.xlu0 %v6586, 116
  %v6730 = vpop.permute.xlu0 %6729
  %6739 = vrot.lane.b32.xlu0 %v6579, 115
  %v6740 = vpop.permute.xlu0 %6739
  %6741 = vrot.lane.b32.xlu0 %v6580, 115
  %v6742 = vpop.permute.xlu0 %6741
  %6743 = vrot.lane.b32.xlu0 %v6581, 115
  %v6744 = vpop.permute.xlu0 %6743
  %6745 = vrot.lane.b32.xlu0 %v6582, 115
  %v6746 = vpop.permute.xlu0 %6745
  %6747 = vrot.lane.b32.xlu0 %v6583, 115
  %v6748 = vpop.permute.xlu0 %6747
  %6749 = vrot.lane.b32.xlu0 %v6584, 115
  %v6750 = vpop.permute.xlu0 %6749
  %6751 = vrot.lane.b32.xlu0 %v6585, 115
  %v6752 = vpop.permute.xlu0 %6751
  %6753 = vrot.lane.b32.xlu0 %v6586, 115
  %v6754 = vpop.permute.xlu0 %6753
  %6763 = vrot.lane.b32.xlu0 %v6579, 114
  %v6764 = vpop.permute.xlu0 %6763
  %6765 = vrot.lane.b32.xlu0 %v6580, 114
  %v6766 = vpop.permute.xlu0 %6765
  %6767 = vrot.lane.b32.xlu0 %v6581, 114
  %v6768 = vpop.permute.xlu0 %6767
  %6769 = vrot.lane.b32.xlu0 %v6582, 114
  %v6770 = vpop.permute.xlu0 %6769
  %6771 = vrot.lane.b32.xlu0 %v6583, 114
  %v6772 = vpop.permute.xlu0 %6771
  %6773 = vrot.lane.b32.xlu0 %v6584, 114
  %v6774 = vpop.permute.xlu0 %6773
  %6775 = vrot.lane.b32.xlu0 %v6585, 114
  %v6776 = vpop.permute.xlu0 %6775
  %6777 = vrot.lane.b32.xlu0 %v6586, 114
  %v6778 = vpop.permute.xlu0 %6777
  %v6787 = vpack.c.bf16 %v6580, %v6579
  %v6788 = vpack.c.bf16 %v6582, %v6581
  %v6789 = vpack.c.bf16 %v6584, %v6583
  %v6790 = vpack.c.bf16 %v6586, %v6585
  %v6791 = vpack.c.bf16 %v6598, %v6596
  %v6792 = vpack.c.bf16 %v6602, %v6600
  %v6793 = vpack.c.bf16 %v6606, %v6604
  %v6794 = vpack.c.bf16 %v6610, %v6608
  %v6795 = vpack.c.bf16 %v6622, %v6620
  %v6796 = vpack.c.bf16 %v6626, %v6624
  %v6797 = vpack.c.bf16 %v6630, %v6628
  %v6798 = vpack.c.bf16 %v6634, %v6632
  %v6799 = vpack.c.bf16 %v6646, %v6644
  %v6800 = vpack.c.bf16 %v6650, %v6648
  %v6801 = vpack.c.bf16 %v6654, %v6652
  %v6802 = vpack.c.bf16 %v6658, %v6656
  %v6803 = vpack.c.bf16 %v6670, %v6668
  %v6804 = vpack.c.bf16 %v6674, %v6672
  %v6805 = vpack.c.bf16 %v6678, %v6676
  %v6806 = vpack.c.bf16 %v6682, %v6680
  %v6807 = vpack.c.bf16 %v6694, %v6692
  %v6808 = vpack.c.bf16 %v6698, %v6696
  %v6809 = vpack.c.bf16 %v6702, %v6700
  %v6810 = vpack.c.bf16 %v6706, %v6704
  %v6811 = vpack.c.bf16 %v6718, %v6716
  %v6812 = vpack.c.bf16 %v6722, %v6720
  %v6813 = vpack.c.bf16 %v6726, %v6724
  %v6814 = vpack.c.bf16 %v6730, %v6728
  %v6815 = vpack.c.bf16 %v6742, %v6740
  %v6816 = vpack.c.bf16 %v6746, %v6744
  %v6817 = vpack.c.bf16 %v6750, %v6748
  %v6818 = vpack.c.bf16 %v6754, %v6752
  %v6819 = vpack.c.bf16 %v6766, %v6764
  %v6820 = vpack.c.bf16 %v6770, %v6768
  %v6821 = vpack.c.bf16 %v6774, %v6772
  %v6822 = vpack.c.bf16 %v6778, %v6776
  %v6823 = vld [vmem:[%s39] sm:$0xff]
  %v6824 = vld [vmem:[%s39 + $0x8] sm:$0xff]
  %v6825 = vld [vmem:[%s39 + $0x10] sm:$0xf]
  %v6826 = vld [vmem:[%s39 + $0x14] sm:$0xff]
  %v6827 = vld [vmem:[%s39 + $0x1c] sm:$0xff]
  %v6828 = vld [vmem:[%s39 + $0x24] sm:$0xf]
  %v6829 = vld [vmem:[%s39 + $0x28] sm:$0xff]
  %v6830 = vld [vmem:[%s39 + $0x30] sm:$0xff]
  %v6831 = vld [vmem:[%s39 + $0x38] sm:$0xf]
  %v6832 = vld [vmem:[%s39 + $0x3c] sm:$0xff]
  %v6833 = vld [vmem:[%s39 + $0x44] sm:$0xff]
  %v6834 = vld [vmem:[%s39 + $0x4c] sm:$0xf]
  %v6835 = vld [vmem:[%s39 + $0x50] sm:$0xff]
  %v6836 = vld [vmem:[%s39 + $0x58] sm:$0xff]
  %v6837 = vld [vmem:[%s39 + $0x60] sm:$0xf]
  %v6838 = vld [vmem:[%s39 + $0x64] sm:$0xff]
  %v6839 = vld [vmem:[%s39 + $0x6c] sm:$0xff]
  %v6840 = vld [vmem:[%s39 + $0x74] sm:$0xf]
  %v6841 = vld [vmem:[%s39 + $0x78] sm:$0xff]
  %v6842 = vld [vmem:[%s39 + $0x80] sm:$0xff]
  %v6843 = vld [vmem:[%s39 + $0x88] sm:$0xf]
  %v6844 = vld [vmem:[%s39 + $0x8c] sm:$0xff]
  %v6845 = vld [vmem:[%s39 + $0x94] sm:$0xff]
  %v6846 = vld [vmem:[%s39 + $0x9c] sm:$0xf]
  %v6847 = vld [vmem:[%s41] sm:$0xff]
  %v6848 = vld [vmem:[%s41 + $0x8] sm:$0xff]
  %v6849 = vld [vmem:[%s41 + $0x10] sm:$0xff]
  %v6850 = vld [vmem:[%s41 + $0x18] sm:$0xff]
  %v6851 = vld [vmem:[%s41 + $0x20] sm:$0xff]
  %v6852 = vld [vmem:[%s41 + $0x28] sm:$0xff]
  %v6853 = vld [vmem:[%s41 + $0x30] sm:$0xff]
  %v6854 = vld [vmem:[%s41 + $0x38] sm:$0xff]
  %6856 = vset.pattern.permute.xlu0 0
  %6857 = vperm.xlu0 %6856, %v6847
  %v6858 = vpop.permute.xlu0 %6857
  %6861 = vset.pattern.permute.xlu0 0
  %6862 = vperm.xlu0 %6861, %v6848
  %v6863 = vpop.permute.xlu0 %6862
  %6866 = vset.pattern.permute.xlu0 0
  %6867 = vperm.xlu0 %6866, %v6849
  %v6868 = vpop.permute.xlu0 %6867
  %6871 = vset.pattern.permute.xlu0 0
  %6872 = vperm.xlu0 %6871, %v6850
  %v6873 = vpop.permute.xlu0 %6872
  %6876 = vset.pattern.permute.xlu0 0
  %6877 = vperm.xlu0 %6876, %v6851
  %v6878 = vpop.permute.xlu0 %6877
  %6881 = vset.pattern.permute.xlu0 0
  %6882 = vperm.xlu0 %6881, %v6852
  %v6883 = vpop.permute.xlu0 %6882
  %6886 = vset.pattern.permute.xlu0 0
  %6887 = vperm.xlu0 %6886, %v6853
  %v6888 = vpop.permute.xlu0 %6887
  %6891 = vset.pattern.permute.xlu0 0
  %6892 = vperm.xlu0 %6891, %v6854
  %v6893 = vpop.permute.xlu0 %6892
  %v6919 = vunpack.c.l.b16 %v6823
  %v6920 = vunpack.c.h.b16 %v6823
  %v6921 = vunpack.c.l.b16 %v6824
  %v6922 = vunpack.c.h.b16 %v6824
  %v6923 = vunpack.c.l.b16 %v6825
  %v6924 = vunpack.c.l.b16 %v6826
  %v6925 = vunpack.c.h.b16 %v6826
  %v6926 = vunpack.c.l.b16 %v6827
  %v6927 = vunpack.c.h.b16 %v6827
  %v6928 = vunpack.c.l.b16 %v6828
  %v6929 = vunpack.c.l.b16 %v6829
  %v6930 = vunpack.c.h.b16 %v6829
  %v6931 = vunpack.c.l.b16 %v6830
  %v6932 = vunpack.c.h.b16 %v6830
  %v6933 = vunpack.c.l.b16 %v6831
  %v6934 = vunpack.c.l.b16 %v6832
  %v6935 = vunpack.c.h.b16 %v6832
  %v6936 = vunpack.c.l.b16 %v6833
  %v6937 = vunpack.c.h.b16 %v6833
  %v6938 = vunpack.c.l.b16 %v6834
  %v6939 = vunpack.c.l.b16 %v6835
  %v6940 = vunpack.c.h.b16 %v6835
  %v6941 = vunpack.c.l.b16 %v6836
  %v6942 = vunpack.c.h.b16 %v6836
  %v6943 = vunpack.c.l.b16 %v6837
  %v6944 = vunpack.c.l.b16 %v6838
  %v6945 = vunpack.c.h.b16 %v6838
  %v6946 = vunpack.c.l.b16 %v6839
  %v6947 = vunpack.c.h.b16 %v6839
  %v6948 = vunpack.c.l.b16 %v6840
  %v6949 = vunpack.c.l.b16 %v6841
  %v6950 = vunpack.c.h.b16 %v6841
  %v6951 = vunpack.c.l.b16 %v6842
  %v6952 = vunpack.c.h.b16 %v6842
  %v6953 = vunpack.c.l.b16 %v6843
  %v6954 = vunpack.c.l.b16 %v6844
  %v6955 = vunpack.c.h.b16 %v6844
  %v6956 = vunpack.c.l.b16 %v6845
  %v6957 = vunpack.c.h.b16 %v6845
  %v6958 = vunpack.c.l.b16 %v6846
  %v6959 = vpack.c.b16 %v6924, %v6919
  %v6960 = vpack.c.b16 %v6925, %v6920
  %v6961 = vpack.c.b16 %v6926, %v6921
  %v6962 = vpack.c.b16 %v6927, %v6922
  %v6963 = vpack.c.b16 %v6928, %v6923
  %v6964 = vpack.c.b16 %v6934, %v6929
  %v6965 = vpack.c.b16 %v6935, %v6930
  %v6966 = vpack.c.b16 %v6936, %v6931
  %v6967 = vpack.c.b16 %v6937, %v6932
  %v6968 = vpack.c.b16 %v6938, %v6933
  %v6969 = vpack.c.b16 %v6944, %v6939
  %v6970 = vpack.c.b16 %v6945, %v6940
  %v6971 = vpack.c.b16 %v6946, %v6941
  %v6972 = vpack.c.b16 %v6947, %v6942
  %v6973 = vpack.c.b16 %v6948, %v6943
  %v6974 = vpack.c.b16 %v6954, %v6949
  %v6975 = vpack.c.b16 %v6955, %v6950
  %v6976 = vpack.c.b16 %v6956, %v6951
  %v6977 = vpack.c.b16 %v6957, %v6952
  %v6978 = vpack.c.b16 %v6958, %v6953
  %vm6995 = vcmask 523264
  %v6997 = vsel %vm6995, %v6963, 0
  %v7000 = vsel %vm6995, %v6968, 0
  %v7003 = vsel %vm6995, %v6973, 0
  %v7006 = vsel %vm6995, %v6978, 0
  %7008 = vmatprep.subr.bf16.mxu0 0
  %7009 = vmatpush1.bf16.msra.mxu0 %v6787
  %7010 = vmatprep.subr.bf16.mxu0 0
  %7011 = vmatpush1.bf16.msra.mxu0 %v6788
  %7012 = vmatprep.subr.bf16.mxu0 0
  %7013 = vmatpush1.bf16.msra.mxu0 %v6789
  %7014 = vmatprep.subr.bf16.mxu0 0
  %7015 = vmatpush1.bf16.msra.mxu0 %v6790
  %7016 = vmatprep.subr.bf16.mxu0 0
  %7017 = vmatpush1.bf16.msra.mxu0 %v6791
  %7018 = vmatprep.subr.bf16.mxu0 0
  %7019 = vmatpush1.bf16.msra.mxu0 %v6792
  %7020 = vmatprep.subr.bf16.mxu0 0
  %7021 = vmatpush1.bf16.msra.mxu0 %v6793
  %7022 = vmatprep.subr.bf16.mxu0 0
  %7023 = vmatpush1.bf16.msra.mxu0 %v6794
  %7024 = vmatprep.subr.bf16.mxu0 0
  %7025 = vmatpush1.bf16.msra.mxu0 %v6795
  %7026 = vmatprep.subr.bf16.mxu0 0
  %7027 = vmatpush1.bf16.msra.mxu0 %v6796
  %7028 = vmatprep.subr.bf16.mxu0 0
  %7029 = vmatpush1.bf16.msra.mxu0 %v6797
  %7030 = vmatprep.subr.bf16.mxu0 0
  %7031 = vmatpush1.bf16.msra.mxu0 %v6798
  %7032 = vmatprep.subr.bf16.mxu0 0
  %7033 = vmatpush1.bf16.msra.mxu0 %v6799
  %7034 = vmatprep.subr.bf16.mxu0 0
  %7035 = vmatpush1.bf16.msra.mxu0 %v6800
  %7036 = vmatprep.subr.bf16.mxu0 0
  %7037 = vmatpush1.bf16.msra.mxu0 %v6801
  %7038 = vmatprep.subr.bf16.mxu0 0
  %7039 = vmatpush1.bf16.msra.mxu0 %v6802
  %7040 = vmatprep.mubr.bf16.mxu0 %v6960
  %7041 = vmatmul.mubr.bf16.gmra.mrb[0].mxu0 %v6959
  %v7042 = vpop.f32.mrb[0].mxu0
  %v7043 = vadd.f32 %v6858, %v7042
  %v7044 = vpop.f32.mrb[0].mxu0
  %v7045 = vpop.f32.mrb[0].mxu0
  %v7046 = vadd.f32 %v6863, %v7045
  %v7047 = vpop.f32.mrb[0].mxu0
  %7048 = vmatprep.mubr.bf16.mxu0 %v6965
  %7049 = vmatmul.mubr.bf16.gmra.mrb[0].mxu0 %v6964
  %v7050 = vpop.f32.mrb[0].mxu0
  %v7051 = vadd.f32 %v6868, %v7050
  %v7052 = vpop.f32.mrb[0].mxu0
  %v7053 = vpop.f32.mrb[0].mxu0
  %v7054 = vadd.f32 %v6873, %v7053
  %v7055 = vpop.f32.mrb[0].mxu0
  %7056 = vmatprep.mubr.bf16.mxu0 %v6970
  %7057 = vmatmul.mubr.bf16.gmra.mrb[0].mxu0 %v6969
  %v7058 = vpop.f32.mrb[0].mxu0
  %v7059 = vadd.f32 %v6878, %v7058
  %v7060 = vpop.f32.mrb[0].mxu0
  %v7061 = vpop.f32.mrb[0].mxu0
  %v7062 = vadd.f32 %v6883, %v7061
  %v7063 = vpop.f32.mrb[0].mxu0
  %7064 = vmatprep.mubr.bf16.mxu0 %v6975
  %7065 = vmatmul.mubr.bf16.gmra.mrb[0].mxu0 %v6974
  %v7066 = vpop.f32.mrb[0].mxu0
  %v7067 = vadd.f32 %v6888, %v7066
  %v7068 = vpop.f32.mrb[0].mxu0
  %v7069 = vpop.f32.mrb[0].mxu0
  %v7070 = vadd.f32 %v6893, %v7069
  %v7071 = vpop.f32.mrb[0].mxu0
  %7072 = vdwg.mxu0
  %7073 = vmatprep.subr.bf16.mxu0 0
  %7074 = vmatpush1.bf16.msra.mxu0 %v6803
  %7075 = vmatprep.subr.bf16.mxu0 0
  %7076 = vmatpush1.bf16.msra.mxu0 %v6804
  %7077 = vmatprep.subr.bf16.mxu0 0
  %7078 = vmatpush1.bf16.msra.mxu0 %v6805
  %7079 = vmatprep.subr.bf16.mxu0 0
  %7080 = vmatpush1.bf16.msra.mxu0 %v6806
  %7081 = vmatprep.subr.bf16.mxu0 0
  %7082 = vmatpush1.bf16.msra.mxu0 %v6807
  %7083 = vmatprep.subr.bf16.mxu0 0
  %7084 = vmatpush1.bf16.msra.mxu0 %v6808
  %7085 = vmatprep.subr.bf16.mxu0 0
  %7086 = vmatpush1.bf16.msra.mxu0 %v6809
  %7087 = vmatprep.subr.bf16.mxu0 0
  %7088 = vmatpush1.bf16.msra.mxu0 %v6810
  %7089 = vmatprep.subr.bf16.mxu0 0
  %7090 = vmatpush1.bf16.msra.mxu0 %v6811
  %7091 = vmatprep.subr.bf16.mxu0 0
  %7092 = vmatpush1.bf16.msra.mxu0 %v6812
  %7093 = vmatprep.subr.bf16.mxu0 0
  %7094 = vmatpush1.bf16.msra.mxu0 %v6813
  %7095 = vmatprep.subr.bf16.mxu0 0
  %7096 = vmatpush1.bf16.msra.mxu0 %v6814
  %7097 = vmatprep.subr.bf16.mxu0 0
  %7098 = vmatpush1.bf16.msra.mxu0 %v6815
  %7099 = vmatprep.subr.bf16.mxu0 0
  %7100 = vmatpush1.bf16.msra.mxu0 %v6816
  %7101 = vmatprep.subr.bf16.mxu0 0
  %7102 = vmatpush1.bf16.msra.mxu0 %v6817
  %7103 = vmatprep.subr.bf16.mxu0 0
  %7104 = vmatpush1.bf16.msra.mxu0 %v6818
  %7105 = vmatprep.mubr.bf16.mxu0 %v6962
  %7106 = vmatmul.mubr.bf16.gmra.mrb[0].mxu0 %v6961
  %v7107 = vpop.f32.mrb[0].mxu0
  %v7108 = vadd.f32 %v7043, %v7107
  %v7109 = vpop.f32.mrb[0].mxu0
  %v7110 = vpop.f32.mrb[0].mxu0
  %v7111 = vadd.f32 %v7046, %v7110
  %v7112 = vpop.f32.mrb[0].mxu0
  %7113 = vmatprep.mubr.bf16.mxu0 %v6967
  %7114 = vmatmul.mubr.bf16.gmra.mrb[0].mxu0 %v6966
  %v7115 = vpop.f32.mrb[0].mxu0
  %v7116 = vadd.f32 %v7051, %v7115
  %v7117 = vpop.f32.mrb[0].mxu0
  %v7118 = vpop.f32.mrb[0].mxu0
  %v7119 = vadd.f32 %v7054, %v7118
  %v7120 = vpop.f32.mrb[0].mxu0
  %7121 = vmatprep.mubr.bf16.mxu0 %v6972
  %7122 = vmatmul.mubr.bf16.gmra.mrb[0].mxu0 %v6971
  %v7123 = vpop.f32.mrb[0].mxu0
  %v7124 = vadd.f32 %v7059, %v7123
  %v7125 = vpop.f32.mrb[0].mxu0
  %v7126 = vpop.f32.mrb[0].mxu0
  %v7127 = vadd.f32 %v7062, %v7126
  %v7128 = vpop.f32.mrb[0].mxu0
  %7129 = vmatprep.mubr.bf16.mxu0 %v6977
  %7130 = vmatmul.mubr.bf16.gmra.mrb[0].mxu0 %v6976
  %v7131 = vpop.f32.mrb[0].mxu0
  %v7132 = vadd.f32 %v7067, %v7131
  %v7133 = vpop.f32.mrb[0].mxu0
  %v7134 = vpop.f32.mrb[0].mxu0
  %v7135 = vadd.f32 %v7070, %v7134
  %v7136 = vpop.f32.mrb[0].mxu0
  %7137 = vdwg.mxu0
  %7138 = vmatprep.subr.bf16.mxu0 0
  %7139 = vmatpush1.bf16.msra.mxu0 %v6819
  %7140 = vmatprep.subr.bf16.mxu0 0
  %7141 = vmatpush1.bf16.msra.mxu0 %v6820
  %7142 = vmatprep.subr.bf16.mxu0 0
  %7143 = vmatpush1.bf16.msra.mxu0 %v6821
  %7144 = vmatprep.subr.bf16.mxu0 0
  %7145 = vmatpush1.bf16.msra.mxu0 %v6822
  %7146 = vmatprep.subr.bf16.mxu0 0
  %7147 = vmatpush1.bf16.msra.mxu0 0
  %7148 = vmatprep.subr.bf16.mxu0 0
  %7149 = vmatpush1.bf16.msra.mxu0 0
  %7150 = vmatprep.subr.bf16.mxu0 0
  %7151 = vmatpush1.bf16.msra.mxu0 0
  %7152 = vmatprep.subr.bf16.mxu0 0
  %7153 = vmatpush1.bf16.msra.mxu0 0
  %7154 = vmatprep.subr.bf16.mxu0 0
  %7155 = vmatpush1.bf16.msra.mxu0 0
  %7156 = vmatprep.subr.bf16.mxu0 0
  %7157 = vmatpush1.bf16.msra.mxu0 0
  %7158 = vmatprep.subr.bf16.mxu0 0
  %7159 = vmatpush1.bf16.msra.mxu0 0
  %7160 = vmatprep.subr.bf16.mxu0 0
  %7161 = vmatpush1.bf16.msra.mxu0 0
  %7162 = vmatprep.subr.bf16.mxu0 0
  %7163 = vmatpush1.bf16.msra.mxu0 0
  %7164 = vmatprep.subr.bf16.mxu0 0
  %7165 = vmatpush1.bf16.msra.mxu0 0
  %7166 = vmatprep.subr.bf16.mxu0 0
  %7167 = vmatpush1.bf16.msra.mxu0 0
  %7168 = vmatprep.subr.bf16.mxu0 0
  %7169 = vmatpush1.bf16.msra.mxu0 0
  %7170 = vmatprep.mubr.bf16.mxu0 0
  %7171 = vmatmul.mubr.bf16.gmra.mrb[0].mxu0 %v6997
  %v7172 = vpop.f32.mrb[0].mxu0
  %v7173 = vadd.f32 %v7108, %v7172
  %v7174 = vpop.f32.mrb[0].mxu0
  %v7175 = vpop.f32.mrb[0].mxu0
  %v7176 = vadd.f32 %v7111, %v7175
  %v7177 = vpop.f32.mrb[0].mxu0
  %7178 = vmatprep.mubr.bf16.mxu0 0
  %7179 = vmatmul.mubr.bf16.gmra.mrb[0].mxu0 %v7000
  %v7180 = vpop.f32.mrb[0].mxu0
  %v7181 = vadd.f32 %v7116, %v7180
  %v7182 = vpop.f32.mrb[0].mxu0
  %v7183 = vpop.f32.mrb[0].mxu0
  %v7184 = vadd.f32 %v7119, %v7183
  %v7185 = vpop.f32.mrb[0].mxu0
  %7186 = vmatprep.mubr.bf16.mxu0 0
  %7187 = vmatmul.mubr.bf16.gmra.mrb[0].mxu0 %v7003
  %v7188 = vpop.f32.mrb[0].mxu0
  %v7189 = vadd.f32 %v7124, %v7188
  %v7190 = vpop.f32.mrb[0].mxu0
  %v7191 = vpop.f32.mrb[0].mxu0
  %v7192 = vadd.f32 %v7127, %v7191
  %v7193 = vpop.f32.mrb[0].mxu0
  %7194 = vmatprep.mubr.bf16.mxu0 0
  %7195 = vmatmul.mubr.bf16.gmra.mrb[0].mxu0 %v7006
  %v7196 = vpop.f32.mrb[0].mxu0
  %v7197 = vadd.f32 %v7132, %v7196
  %v7198 = vpop.f32.mrb[0].mxu0
  %v7199 = vpop.f32.mrb[0].mxu0
  %v7200 = vadd.f32 %v7135, %v7199
  %v7201 = vpop.f32.mrb[0].mxu0
  %7202 = vdwg.mxu0
  %v7203 = vmax.f32 %v7173, 0.0
  %v7204 = vmax.f32 %v7176, 0.0
  %v7205 = vmax.f32 %v7181, 0.0
  %v7206 = vmax.f32 %v7184, 0.0
  %v7207 = vmax.f32 %v7189, 0.0
  %v7208 = vmax.f32 %v7192, 0.0
  %v7209 = vmax.f32 %v7197, 0.0
  %v7210 = vmax.f32 %v7200, 0.0
  %v7211 = vld [vmem:[%s73] sm:$0x1]
  %v7213 = vlaneseq
  %v7214 = vshrl.u32 %v7213, 7
  %v7215 = vsub.s32 0, %v7214
  %v7216 = vrot.slane %v7211, %v7215
  %v7218 = vmul.f32 %v7203, %v7216
  %v7219 = vmul.f32 %v7204, %v7216
  %v7220 = vmul.f32 %v7205, %v7216
  %v7221 = vmul.f32 %v7206, %v7216
  %v7222 = vmul.f32 %v7207, %v7216
  %v7223 = vmul.f32 %v7208, %v7216
  %v7224 = vmul.f32 %v7209, %v7216
  %v7225 = vmul.f32 %v7210, %v7216
  %7226 = vst.msk [vmem:[#allocation2] sm:$0xff] %vm6081, 0.0
  %7227 = vst.msk [vmem:[#allocation2 + $0x50] sm:$0xff] %vm6081, 0.0
  %7228 = vst.msk [vmem:[#allocation2 + $0xa0] sm:$0xff] %vm6081, 0.0
  %7229 = vst.msk [vmem:[#allocation2 + $0xf0] sm:$0xff] %vm6081, 0.0
  %7230 = vst.msk [vmem:[#allocation2 + $0x140] sm:$0xff] %vm6081, 0.0
  %7231 = vst.msk [vmem:[#allocation2 + $0x190] sm:$0xff] %vm6081, 0.0
  %7232 = vst.msk [vmem:[#allocation2 + $0x1e0] sm:$0xff] %vm6081, 0.0
  %7233 = vst.msk [vmem:[#allocation2 + $0x230] sm:$0xff] %vm6081, 0.0
  %7242 = vrot.lane.b32.xlu0 %v7218, 7
  %v7243 = vpop.permute.xlu0 %7242
  %7244 = vrot.lane.b32.xlu0 %v7219, 7
  %v7245 = vpop.permute.xlu0 %7244
  %7246 = vrot.lane.b32.xlu0 %v7220, 7
  %v7247 = vpop.permute.xlu0 %7246
  %7248 = vrot.lane.b32.xlu0 %v7221, 7
  %v7249 = vpop.permute.xlu0 %7248
  %7250 = vrot.lane.b32.xlu0 %v7222, 7
  %v7251 = vpop.permute.xlu0 %7250
  %7252 = vrot.lane.b32.xlu0 %v7223, 7
  %v7253 = vpop.permute.xlu0 %7252
  %7254 = vrot.lane.b32.xlu0 %v7224, 7
  %v7255 = vpop.permute.xlu0 %7254
  %7256 = vrot.lane.b32.xlu0 %v7225, 7
  %v7257 = vpop.permute.xlu0 %7256
  %7266 = vst.msk [vmem:[#allocation2] sm:$0xff] %vm6102, %v7243
  %7267 = vst.msk [vmem:[#allocation2 + $0x50] sm:$0xff] %vm6102, %v7245
  %7268 = vst.msk [vmem:[#allocation2 + $0xa0] sm:$0xff] %vm6102, %v7247
  %7269 = vst.msk [vmem:[#allocation2 + $0xf0] sm:$0xff] %vm6102, %v7249
  %7270 = vst.msk [vmem:[#allocation2 + $0x140] sm:$0xff] %vm6102, %v7251
  %7271 = vst.msk [vmem:[#allocation2 + $0x190] sm:$0xff] %vm6102, %v7253
  %7272 = vst.msk [vmem:[#allocation2 + $0x1e0] sm:$0xff] %vm6102, %v7255
  %7273 = vst.msk [vmem:[#allocation2 + $0x230] sm:$0xff] %vm6102, %v7257
  %7274 = vst.msk [vmem:[#allocation2] sm:$0xff] %vm6107, 0.0
  %7275 = vst.msk [vmem:[#allocation2 + $0x50] sm:$0xff] %vm6107, 0.0
  %7276 = vst.msk [vmem:[#allocation2 + $0xa0] sm:$0xff] %vm6107, 0.0
  %7277 = vst.msk [vmem:[#allocation2 + $0xf0] sm:$0xff] %vm6107, 0.0
  %7278 = vst.msk [vmem:[#allocation2 + $0x140] sm:$0xff] %vm6107, 0.0
  %7279 = vst.msk [vmem:[#allocation2 + $0x190] sm:$0xff] %vm6107, 0.0
  %7280 = vst.msk [vmem:[#allocation2 + $0x1e0] sm:$0xff] %vm6107, 0.0
  %7281 = vst.msk [vmem:[#allocation2 + $0x230] sm:$0xff] %vm6107, 0.0
  %v7282 = vld [vmem:[#allocation2] sm:$0xff]
  %v7283 = vld [vmem:[#allocation2 + $0x50] sm:$0xff]
  %v7284 = vld [vmem:[#allocation2 + $0xa0] sm:$0xff]
  %v7285 = vld [vmem:[#allocation2 + $0xf0] sm:$0xff]
  %v7286 = vld [vmem:[#allocation2 + $0x140] sm:$0xff]
  %v7287 = vld [vmem:[#allocation2 + $0x190] sm:$0xff]
  %v7288 = vld [vmem:[#allocation2 + $0x1e0] sm:$0xff]
  %v7289 = vld [vmem:[#allocation2 + $0x230] sm:$0xff]
  %7298 = vrot.lane.b32.xlu0 %v7282, 127
  %v7299 = vpop.permute.xlu0 %7298
  %7300 = vrot.lane.b32.xlu0 %v7283, 127
  %v7301 = vpop.permute.xlu0 %7300
  %7302 = vrot.lane.b32.xlu0 %v7284, 127
  %v7303 = vpop.permute.xlu0 %7302
  %7304 = vrot.lane.b32.xlu0 %v7285, 127
  %v7305 = vpop.permute.xlu0 %7304
  %7306 = vrot.lane.b32.xlu0 %v7286, 127
  %v7307 = vpop.permute.xlu0 %7306
  %7308 = vrot.lane.b32.xlu0 %v7287, 127
  %v7309 = vpop.permute.xlu0 %7308
  %7310 = vrot.lane.b32.xlu0 %v7288, 127
  %v7311 = vpop.permute.xlu0 %7310
  %7312 = vrot.lane.b32.xlu0 %v7289, 127
  %v7313 = vpop.permute.xlu0 %7312
  %7322 = vrot.lane.b32.xlu0 %v7282, 126
  %v7323 = vpop.permute.xlu0 %7322
  %7324 = vrot.lane.b32.xlu0 %v7283, 126
  %v7325 = vpop.permute.xlu0 %7324
  %7326 = vrot.lane.b32.xlu0 %v7284, 126
  %v7327 = vpop.permute.xlu0 %7326
  %7328 = vrot.lane.b32.xlu0 %v7285, 126
  %v7329 = vpop.permute.xlu0 %7328
  %7330 = vrot.lane.b32.xlu0 %v7286, 126
  %v7331 = vpop.permute.xlu0 %7330
  %7332 = vrot.lane.b32.xlu0 %v7287, 126
  %v7333 = vpop.permute.xlu0 %7332
  %7334 = vrot.lane.b32.xlu0 %v7288, 126
  %v7335 = vpop.permute.xlu0 %7334
  %7336 = vrot.lane.b32.xlu0 %v7289, 126
  %v7337 = vpop.permute.xlu0 %7336
  %7346 = vrot.lane.b32.xlu0 %v7282, 122
  %v7347 = vpop.permute.xlu0 %7346
  %7348 = vrot.lane.b32.xlu0 %v7283, 122
  %v7349 = vpop.permute.xlu0 %7348
  %7350 = vrot.lane.b32.xlu0 %v7284, 122
  %v7351 = vpop.permute.xlu0 %7350
  %7352 = vrot.lane.b32.xlu0 %v7285, 122
  %v7353 = vpop.permute.xlu0 %7352
  %7354 = vrot.lane.b32.xlu0 %v7286, 122
  %v7355 = vpop.permute.xlu0 %7354
  %7356 = vrot.lane.b32.xlu0 %v7287, 122
  %v7357 = vpop.permute.xlu0 %7356
  %7358 = vrot.lane.b32.xlu0 %v7288, 122
  %v7359 = vpop.permute.xlu0 %7358
  %7360 = vrot.lane.b32.xlu0 %v7289, 122
  %v7361 = vpop.permute.xlu0 %7360
  %7370 = vrot.lane.b32.xlu0 %v7282, 121
  %v7371 = vpop.permute.xlu0 %7370
  %7372 = vrot.lane.b32.xlu0 %v7283, 121
  %v7373 = vpop.permute.xlu0 %7372
  %7374 = vrot.lane.b32.xlu0 %v7284, 121
  %v7375 = vpop.permute.xlu0 %7374
  %7376 = vrot.lane.b32.xlu0 %v7285, 121
  %v7377 = vpop.permute.xlu0 %7376
  %7378 = vrot.lane.b32.xlu0 %v7286, 121
  %v7379 = vpop.permute.xlu0 %7378
  %7380 = vrot.lane.b32.xlu0 %v7287, 121
  %v7381 = vpop.permute.xlu0 %7380
  %7382 = vrot.lane.b32.xlu0 %v7288, 121
  %v7383 = vpop.permute.xlu0 %7382
  %7384 = vrot.lane.b32.xlu0 %v7289, 121
  %v7385 = vpop.permute.xlu0 %7384
  %7394 = vrot.lane.b32.xlu0 %v7282, 120
  %v7395 = vpop.permute.xlu0 %7394
  %7396 = vrot.lane.b32.xlu0 %v7283, 120
  %v7397 = vpop.permute.xlu0 %7396
  %7398 = vrot.lane.b32.xlu0 %v7284, 120
  %v7399 = vpop.permute.xlu0 %7398
  %7400 = vrot.lane.b32.xlu0 %v7285, 120
  %v7401 = vpop.permute.xlu0 %7400
  %7402 = vrot.lane.b32.xlu0 %v7286, 120
  %v7403 = vpop.permute.xlu0 %7402
  %7404 = vrot.lane.b32.xlu0 %v7287, 120
  %v7405 = vpop.permute.xlu0 %7404
  %7406 = vrot.lane.b32.xlu0 %v7288, 120
  %v7407 = vpop.permute.xlu0 %7406
  %7408 = vrot.lane.b32.xlu0 %v7289, 120
  %v7409 = vpop.permute.xlu0 %7408
  %7418 = vrot.lane.b32.xlu0 %v7282, 116
  %v7419 = vpop.permute.xlu0 %7418
  %7420 = vrot.lane.b32.xlu0 %v7283, 116
  %v7421 = vpop.permute.xlu0 %7420
  %7422 = vrot.lane.b32.xlu0 %v7284, 116
  %v7423 = vpop.permute.xlu0 %7422
  %7424 = vrot.lane.b32.xlu0 %v7285, 116
  %v7425 = vpop.permute.xlu0 %7424
  %7426 = vrot.lane.b32.xlu0 %v7286, 116
  %v7427 = vpop.permute.xlu0 %7426
  %7428 = vrot.lane.b32.xlu0 %v7287, 116
  %v7429 = vpop.permute.xlu0 %7428
  %7430 = vrot.lane.b32.xlu0 %v7288, 116
  %v7431 = vpop.permute.xlu0 %7430
  %7432 = vrot.lane.b32.xlu0 %v7289, 116
  %v7433 = vpop.permute.xlu0 %7432
  %7442 = vrot.lane.b32.xlu0 %v7282, 115
  %v7443 = vpop.permute.xlu0 %7442
  %7444 = vrot.lane.b32.xlu0 %v7283, 115
  %v7445 = vpop.permute.xlu0 %7444
  %7446 = vrot.lane.b32.xlu0 %v7284, 115
  %v7447 = vpop.permute.xlu0 %7446
  %7448 = vrot.lane.b32.xlu0 %v7285, 115
  %v7449 = vpop.permute.xlu0 %7448
  %7450 = vrot.lane.b32.xlu0 %v7286, 115
  %v7451 = vpop.permute.xlu0 %7450
  %7452 = vrot.lane.b32.xlu0 %v7287, 115
  %v7453 = vpop.permute.xlu0 %7452
  %7454 = vrot.lane.b32.xlu0 %v7288, 115
  %v7455 = vpop.permute.xlu0 %7454
  %7456 = vrot.lane.b32.xlu0 %v7289, 115
  %v7457 = vpop.permute.xlu0 %7456
  %7466 = vrot.lane.b32.xlu0 %v7282, 114
  %v7467 = vpop.permute.xlu0 %7466
  %7468 = vrot.lane.b32.xlu0 %v7283, 114
  %v7469 = vpop.permute.xlu0 %7468
  %7470 = vrot.lane.b32.xlu0 %v7284, 114
  %v7471 = vpop.permute.xlu0 %7470
  %7472 = vrot.lane.b32.xlu0 %v7285, 114
  %v7473 = vpop.permute.xlu0 %7472
  %7474 = vrot.lane.b32.xlu0 %v7286, 114
  %v7475 = vpop.permute.xlu0 %7474
  %7476 = vrot.lane.b32.xlu0 %v7287, 114
  %v7477 = vpop.permute.xlu0 %7476
  %7478 = vrot.lane.b32.xlu0 %v7288, 114
  %v7479 = vpop.permute.xlu0 %7478
  %7480 = vrot.lane.b32.xlu0 %v7289, 114
  %v7481 = vpop.permute.xlu0 %7480
  %v7490 = vpack.c.bf16 %v7283, %v7282
  %v7491 = vpack.c.bf16 %v7285, %v7284
  %v7492 = vpack.c.bf16 %v7287, %v7286
  %v7493 = vpack.c.bf16 %v7289, %v7288
  %v7494 = vpack.c.bf16 %v7301, %v7299
  %v7495 = vpack.c.bf16 %v7305, %v7303
  %v7496 = vpack.c.bf16 %v7309, %v7307
  %v7497 = vpack.c.bf16 %v7313, %v7311
  %v7498 = vpack.c.bf16 %v7325, %v7323
  %v7499 = vpack.c.bf16 %v7329, %v7327
  %v7500 = vpack.c.bf16 %v7333, %v7331
  %v7501 = vpack.c.bf16 %v7337, %v7335
  %v7502 = vpack.c.bf16 %v7349, %v7347
  %v7503 = vpack.c.bf16 %v7353, %v7351
  %v7504 = vpack.c.bf16 %v7357, %v7355
  %v7505 = vpack.c.bf16 %v7361, %v7359
  %v7506 = vpack.c.bf16 %v7373, %v7371
  %v7507 = vpack.c.bf16 %v7377, %v7375
  %v7508 = vpack.c.bf16 %v7381, %v7379
  %v7509 = vpack.c.bf16 %v7385, %v7383
  %v7510 = vpack.c.bf16 %v7397, %v7395
  %v7511 = vpack.c.bf16 %v7401, %v7399
  %v7512 = vpack.c.bf16 %v7405, %v7403
  %v7513 = vpack.c.bf16 %v7409, %v7407
  %v7514 = vpack.c.bf16 %v7421, %v7419
  %v7515 = vpack.c.bf16 %v7425, %v7423
  %v7516 = vpack.c.bf16 %v7429, %v7427
  %v7517 = vpack.c.bf16 %v7433, %v7431
  %v7518 = vpack.c.bf16 %v7445, %v7443
  %v7519 = vpack.c.bf16 %v7449, %v7447
  %v7520 = vpack.c.bf16 %v7453, %v7451
  %v7521 = vpack.c.bf16 %v7457, %v7455
  %v7522 = vpack.c.bf16 %v7469, %v7467
  %v7523 = vpack.c.bf16 %v7473, %v7471
  %v7524 = vpack.c.bf16 %v7477, %v7475
  %v7525 = vpack.c.bf16 %v7481, %v7479
  %v7526 = vld [vmem:[%s43] sm:$0xff]
  %v7527 = vld [vmem:[%s43 + $0x8] sm:$0xff]
  %v7528 = vld [vmem:[%s43 + $0x10] sm:$0xf]
  %v7529 = vld [vmem:[%s43 + $0x14] sm:$0xff]
  %v7530 = vld [vmem:[%s43 + $0x1c] sm:$0xff]
  %v7531 = vld [vmem:[%s43 + $0x24] sm:$0xf]
  %v7532 = vld [vmem:[%s43 + $0x28] sm:$0xff]
  %v7533 = vld [vmem:[%s43 + $0x30] sm:$0xff]
  %v7534 = vld [vmem:[%s43 + $0x38] sm:$0xf]
  %v7535 = vld [vmem:[%s43 + $0x3c] sm:$0xff]
  %v7536 = vld [vmem:[%s43 + $0x44] sm:$0xff]
  %v7537 = vld [vmem:[%s43 + $0x4c] sm:$0xf]
  %v7538 = vld [vmem:[%s43 + $0x50] sm:$0xff]
  %v7539 = vld [vmem:[%s43 + $0x58] sm:$0xff]
  %v7540 = vld [vmem:[%s43 + $0x60] sm:$0xf]
  %v7541 = vld [vmem:[%s43 + $0x64] sm:$0xff]
  %v7542 = vld [vmem:[%s43 + $0x6c] sm:$0xff]
  %v7543 = vld [vmem:[%s43 + $0x74] sm:$0xf]
  %v7544 = vld [vmem:[%s43 + $0x78] sm:$0xff]
  %v7545 = vld [vmem:[%s43 + $0x80] sm:$0xff]
  %v7546 = vld [vmem:[%s43 + $0x88] sm:$0xf]
  %v7547 = vld [vmem:[%s43 + $0x8c] sm:$0xff]
  %v7548 = vld [vmem:[%s43 + $0x94] sm:$0xff]
  %v7549 = vld [vmem:[%s43 + $0x9c] sm:$0xf]
  %v7550 = vld [vmem:[%s45] sm:$0xff]
  %v7551 = vld [vmem:[%s45 + $0x8] sm:$0xff]
  %v7552 = vld [vmem:[%s45 + $0x10] sm:$0xff]
  %v7553 = vld [vmem:[%s45 + $0x18] sm:$0xff]
  %v7554 = vld [vmem:[%s45 + $0x20] sm:$0xff]
  %v7555 = vld [vmem:[%s45 + $0x28] sm:$0xff]
  %v7556 = vld [vmem:[%s45 + $0x30] sm:$0xff]
  %v7557 = vld [vmem:[%s45 + $0x38] sm:$0xff]
  %7559 = vset.pattern.permute.xlu0 0
  %7560 = vperm.xlu0 %7559, %v7550
  %v7561 = vpop.permute.xlu0 %7560
  %7564 = vset.pattern.permute.xlu0 0
  %7565 = vperm.xlu0 %7564, %v7551
  %v7566 = vpop.permute.xlu0 %7565
  %7569 = vset.pattern.permute.xlu0 0
  %7570 = vperm.xlu0 %7569, %v7552
  %v7571 = vpop.permute.xlu0 %7570
  %7574 = vset.pattern.permute.xlu0 0
  %7575 = vperm.xlu0 %7574, %v7553
  %v7576 = vpop.permute.xlu0 %7575
  %7579 = vset.pattern.permute.xlu0 0
  %7580 = vperm.xlu0 %7579, %v7554
  %v7581 = vpop.permute.xlu0 %7580
  %7584 = vset.pattern.permute.xlu0 0
  %7585 = vperm.xlu0 %7584, %v7555
  %v7586 = vpop.permute.xlu0 %7585
  %7589 = vset.pattern.permute.xlu0 0
  %7590 = vperm.xlu0 %7589, %v7556
  %v7591 = vpop.permute.xlu0 %7590
  %7594 = vset.pattern.permute.xlu0 0
  %7595 = vperm.xlu0 %7594, %v7557
  %v7596 = vpop.permute.xlu0 %7595
  %v7622 = vunpack.c.l.b16 %v7526
  %v7623 = vunpack.c.h.b16 %v7526
  %v7624 = vunpack.c.l.b16 %v7527
  %v7625 = vunpack.c.h.b16 %v7527
  %v7626 = vunpack.c.l.b16 %v7528
  %v7627 = vunpack.c.l.b16 %v7529
  %v7628 = vunpack.c.h.b16 %v7529
  %v7629 = vunpack.c.l.b16 %v7530
  %v7630 = vunpack.c.h.b16 %v7530
  %v7631 = vunpack.c.l.b16 %v7531
  %v7632 = vunpack.c.l.b16 %v7532
  %v7633 = vunpack.c.h.b16 %v7532
  %v7634 = vunpack.c.l.b16 %v7533
  %v7635 = vunpack.c.h.b16 %v7533
  %v7636 = vunpack.c.l.b16 %v7534
  %v7637 = vunpack.c.l.b16 %v7535
  %v7638 = vunpack.c.h.b16 %v7535
  %v7639 = vunpack.c.l.b16 %v7536
  %v7640 = vunpack.c.h.b16 %v7536
  %v7641 = vunpack.c.l.b16 %v7537
  %v7642 = vunpack.c.l.b16 %v7538
  %v7643 = vunpack.c.h.b16 %v7538
  %v7644 = vunpack.c.l.b16 %v7539
  %v7645 = vunpack.c.h.b16 %v7539
  %v7646 = vunpack.c.l.b16 %v7540
  %v7647 = vunpack.c.l.b16 %v7541
  %v7648 = vunpack.c.h.b16 %v7541
  %v7649 = vunpack.c.l.b16 %v7542
  %v7650 = vunpack.c.h.b16 %v7542
  %v7651 = vunpack.c.l.b16 %v7543
  %v7652 = vunpack.c.l.b16 %v7544
  %v7653 = vunpack.c.h.b16 %v7544
  %v7654 = vunpack.c.l.b16 %v7545
  %v7655 = vunpack.c.h.b16 %v7545
  %v7656 = vunpack.c.l.b16 %v7546
  %v7657 = vunpack.c.l.b16 %v7547
  %v7658 = vunpack.c.h.b16 %v7547
  %v7659 = vunpack.c.l.b16 %v7548
  %v7660 = vunpack.c.h.b16 %v7548
  %v7661 = vunpack.c.l.b16 %v7549
  %v7662 = vpack.c.b16 %v7627, %v7622
  %v7663 = vpack.c.b16 %v7628, %v7623
  %v7664 = vpack.c.b16 %v7629, %v7624
  %v7665 = vpack.c.b16 %v7630, %v7625
  %v7666 = vpack.c.b16 %v7631, %v7626
  %v7667 = vpack.c.b16 %v7637, %v7632
  %v7668 = vpack.c.b16 %v7638, %v7633
  %v7669 = vpack.c.b16 %v7639, %v7634
  %v7670 = vpack.c.b16 %v7640, %v7635
  %v7671 = vpack.c.b16 %v7641, %v7636
  %v7672 = vpack.c.b16 %v7647, %v7642
  %v7673 = vpack.c.b16 %v7648, %v7643
  %v7674 = vpack.c.b16 %v7649, %v7644
  %v7675 = vpack.c.b16 %v7650, %v7645
  %v7676 = vpack.c.b16 %v7651, %v7646
  %v7677 = vpack.c.b16 %v7657, %v7652
  %v7678 = vpack.c.b16 %v7658, %v7653
  %v7679 = vpack.c.b16 %v7659, %v7654
  %v7680 = vpack.c.b16 %v7660, %v7655
  %v7681 = vpack.c.b16 %v7661, %v7656
  %v7699 = vsel %vm6995, %v7666, 0
  %v7702 = vsel %vm6995, %v7671, 0
  %v7705 = vsel %vm6995, %v7676, 0
  %v7708 = vsel %vm6995, %v7681, 0
  %7710 = vmatprep.subr.bf16.mxu0 0
  %7711 = vmatpush1.bf16.msra.mxu0 %v7490
  %7712 = vmatprep.subr.bf16.mxu0 0
  %7713 = vmatpush1.bf16.msra.mxu0 %v7491
  %7714 = vmatprep.subr.bf16.mxu0 0
  %7715 = vmatpush1.bf16.msra.mxu0 %v7492
  %7716 = vmatprep.subr.bf16.mxu0 0
  %7717 = vmatpush1.bf16.msra.mxu0 %v7493
  %7718 = vmatprep.subr.bf16.mxu0 0
  %7719 = vmatpush1.bf16.msra.mxu0 %v7494
  %7720 = vmatprep.subr.bf16.mxu0 0
  %7721 = vmatpush1.bf16.msra.mxu0 %v7495
  %7722 = vmatprep.subr.bf16.mxu0 0
  %7723 = vmatpush1.bf16.msra.mxu0 %v7496
  %7724 = vmatprep.subr.bf16.mxu0 0
  %7725 = vmatpush1.bf16.msra.mxu0 %v7497
  %7726 = vmatprep.subr.bf16.mxu0 0
  %7727 = vmatpush1.bf16.msra.mxu0 %v7498
  %7728 = vmatprep.subr.bf16.mxu0 0
  %7729 = vmatpush1.bf16.msra.mxu0 %v7499
  %7730 = vmatprep.subr.bf16.mxu0 0
  %7731 = vmatpush1.bf16.msra.mxu0 %v7500
  %7732 = vmatprep.subr.bf16.mxu0 0
  %7733 = vmatpush1.bf16.msra.mxu0 %v7501
  %7734 = vmatprep.subr.bf16.mxu0 0
  %7735 = vmatpush1.bf16.msra.mxu0 %v7502
  %7736 = vmatprep.subr.bf16.mxu0 0
  %7737 = vmatpush1.bf16.msra.mxu0 %v7503
  %7738 = vmatprep.subr.bf16.mxu0 0
  %7739 = vmatpush1.bf16.msra.mxu0 %v7504
  %7740 = vmatprep.subr.bf16.mxu0 0
  %7741 = vmatpush1.bf16.msra.mxu0 %v7505
  %7742 = vmatprep.mubr.bf16.mxu0 %v7663
  %7743 = vmatmul.mubr.bf16.gmra.mrb[0].mxu0 %v7662
  %v7744 = vpop.f32.mrb[0].mxu0
  %v7745 = vadd.f32 %v7561, %v7744
  %v7746 = vpop.f32.mrb[0].mxu0
  %v7747 = vpop.f32.mrb[0].mxu0
  %v7748 = vadd.f32 %v7566, %v7747
  %v7749 = vpop.f32.mrb[0].mxu0
  %7750 = vmatprep.mubr.bf16.mxu0 %v7668
  %7751 = vmatmul.mubr.bf16.gmra.mrb[0].mxu0 %v7667
  %v7752 = vpop.f32.mrb[0].mxu0
  %v7753 = vadd.f32 %v7571, %v7752
  %v7754 = vpop.f32.mrb[0].mxu0
  %v7755 = vpop.f32.mrb[0].mxu0
  %v7756 = vadd.f32 %v7576, %v7755
  %v7757 = vpop.f32.mrb[0].mxu0
  %7758 = vmatprep.mubr.bf16.mxu0 %v7673
  %7759 = vmatmul.mubr.bf16.gmra.mrb[0].mxu0 %v7672
  %v7760 = vpop.f32.mrb[0].mxu0
  %v7761 = vadd.f32 %v7581, %v7760
  %v7762 = vpop.f32.mrb[0].mxu0
  %v7763 = vpop.f32.mrb[0].mxu0
  %v7764 = vadd.f32 %v7586, %v7763
  %v7765 = vpop.f32.mrb[0].mxu0
  %7766 = vmatprep.mubr.bf16.mxu0 %v7678
  %7767 = vmatmul.mubr.bf16.gmra.mrb[0].mxu0 %v7677
  %v7768 = vpop.f32.mrb[0].mxu0
  %v7769 = vadd.f32 %v7591, %v7768
  %v7770 = vpop.f32.mrb[0].mxu0
  %v7771 = vpop.f32.mrb[0].mxu0
  %v7772 = vadd.f32 %v7596, %v7771
  %v7773 = vpop.f32.mrb[0].mxu0
  %7774 = vdwg.mxu0
  %7775 = vmatprep.subr.bf16.mxu0 0
  %7776 = vmatpush1.bf16.msra.mxu0 %v7506
  %7777 = vmatprep.subr.bf16.mxu0 0
  %7778 = vmatpush1.bf16.msra.mxu0 %v7507
  %7779 = vmatprep.subr.bf16.mxu0 0
  %7780 = vmatpush1.bf16.msra.mxu0 %v7508
  %7781 = vmatprep.subr.bf16.mxu0 0
  %7782 = vmatpush1.bf16.msra.mxu0 %v7509
  %7783 = vmatprep.subr.bf16.mxu0 0
  %7784 = vmatpush1.bf16.msra.mxu0 %v7510
  %7785 = vmatprep.subr.bf16.mxu0 0
  %7786 = vmatpush1.bf16.msra.mxu0 %v7511
  %7787 = vmatprep.subr.bf16.mxu0 0
  %7788 = vmatpush1.bf16.msra.mxu0 %v7512
  %7789 = vmatprep.subr.bf16.mxu0 0
  %7790 = vmatpush1.bf16.msra.mxu0 %v7513
  %7791 = vmatprep.subr.bf16.mxu0 0
  %7792 = vmatpush1.bf16.msra.mxu0 %v7514
  %7793 = vmatprep.subr.bf16.mxu0 0
  %7794 = vmatpush1.bf16.msra.mxu0 %v7515
  %7795 = vmatprep.subr.bf16.mxu0 0
  %7796 = vmatpush1.bf16.msra.mxu0 %v7516
  %7797 = vmatprep.subr.bf16.mxu0 0
  %7798 = vmatpush1.bf16.msra.mxu0 %v7517
  %7799 = vmatprep.subr.bf16.mxu0 0
  %7800 = vmatpush1.bf16.msra.mxu0 %v7518
  %7801 = vmatprep.subr.bf16.mxu0 0
  %7802 = vmatpush1.bf16.msra.mxu0 %v7519
  %7803 = vmatprep.subr.bf16.mxu0 0
  %7804 = vmatpush1.bf16.msra.mxu0 %v7520
  %7805 = vmatprep.subr.bf16.mxu0 0
  %7806 = vmatpush1.bf16.msra.mxu0 %v7521
  %7807 = vmatprep.mubr.bf16.mxu0 %v7665
  %7808 = vmatmul.mubr.bf16.gmra.mrb[0].mxu0 %v7664
  %v7809 = vpop.f32.mrb[0].mxu0
  %v7810 = vadd.f32 %v7745, %v7809
  %v7811 = vpop.f32.mrb[0].mxu0
  %v7812 = vpop.f32.mrb[0].mxu0
  %v7813 = vadd.f32 %v7748, %v7812
  %v7814 = vpop.f32.mrb[0].mxu0
  %7815 = vmatprep.mubr.bf16.mxu0 %v7670
  %7816 = vmatmul.mubr.bf16.gmra.mrb[0].mxu0 %v7669
  %v7817 = vpop.f32.mrb[0].mxu0
  %v7818 = vadd.f32 %v7753, %v7817
  %v7819 = vpop.f32.mrb[0].mxu0
  %v7820 = vpop.f32.mrb[0].mxu0
  %v7821 = vadd.f32 %v7756, %v7820
  %v7822 = vpop.f32.mrb[0].mxu0
  %7823 = vmatprep.mubr.bf16.mxu0 %v7675
  %7824 = vmatmul.mubr.bf16.gmra.mrb[0].mxu0 %v7674
  %v7825 = vpop.f32.mrb[0].mxu0
  %v7826 = vadd.f32 %v7761, %v7825
  %v7827 = vpop.f32.mrb[0].mxu0
  %v7828 = vpop.f32.mrb[0].mxu0
  %v7829 = vadd.f32 %v7764, %v7828
  %v7830 = vpop.f32.mrb[0].mxu0
  %7831 = vmatprep.mubr.bf16.mxu0 %v7680
  %7832 = vmatmul.mubr.bf16.gmra.mrb[0].mxu0 %v7679
  %v7833 = vpop.f32.mrb[0].mxu0
  %v7834 = vadd.f32 %v7769, %v7833
  %v7835 = vpop.f32.mrb[0].mxu0
  %v7836 = vpop.f32.mrb[0].mxu0
  %v7837 = vadd.f32 %v7772, %v7836
  %v7838 = vpop.f32.mrb[0].mxu0
  %7839 = vdwg.mxu0
  %7840 = vmatprep.subr.bf16.mxu0 0
  %7841 = vmatpush1.bf16.msra.mxu0 %v7522
  %7842 = vmatprep.subr.bf16.mxu0 0
  %7843 = vmatpush1.bf16.msra.mxu0 %v7523
  %7844 = vmatprep.subr.bf16.mxu0 0
  %7845 = vmatpush1.bf16.msra.mxu0 %v7524
  %7846 = vmatprep.subr.bf16.mxu0 0
  %7847 = vmatpush1.bf16.msra.mxu0 %v7525
  %7848 = vmatprep.subr.bf16.mxu0 0
  %7849 = vmatpush1.bf16.msra.mxu0 0
  %7850 = vmatprep.subr.bf16.mxu0 0
  %7851 = vmatpush1.bf16.msra.mxu0 0
  %7852 = vmatprep.subr.bf16.mxu0 0
  %7853 = vmatpush1.bf16.msra.mxu0 0
  %7854 = vmatprep.subr.bf16.mxu0 0
  %7855 = vmatpush1.bf16.msra.mxu0 0
  %7856 = vmatprep.subr.bf16.mxu0 0
  %7857 = vmatpush1.bf16.msra.mxu0 0
  %7858 = vmatprep.subr.bf16.mxu0 0
  %7859 = vmatpush1.bf16.msra.mxu0 0
  %7860 = vmatprep.subr.bf16.mxu0 0
  %7861 = vmatpush1.bf16.msra.mxu0 0
  %7862 = vmatprep.subr.bf16.mxu0 0
  %7863 = vmatpush1.bf16.msra.mxu0 0
  %7864 = vmatprep.subr.bf16.mxu0 0
  %7865 = vmatpush1.bf16.msra.mxu0 0
  %7866 = vmatprep.subr.bf16.mxu0 0
  %7867 = vmatpush1.bf16.msra.mxu0 0
  %7868 = vmatprep.subr.bf16.mxu0 0
  %7869 = vmatpush1.bf16.msra.mxu0 0
  %7870 = vmatprep.subr.bf16.mxu0 0
  %7871 = vmatpush1.bf16.msra.mxu0 0
  %7872 = vmatprep.mubr.bf16.mxu0 0
  %7873 = vmatmul.mubr.bf16.gmra.mrb[0].mxu0 %v7699
  %v7874 = vpop.f32.mrb[0].mxu0
  %v7875 = vadd.f32 %v7810, %v7874
  %v7876 = vpop.f32.mrb[0].mxu0
  %v7877 = vpop.f32.mrb[0].mxu0
  %v7878 = vadd.f32 %v7813, %v7877
  %v7879 = vpop.f32.mrb[0].mxu0
  %7880 = vmatprep.mubr.bf16.mxu0 0
  %7881 = vmatmul.mubr.bf16.gmra.mrb[0].mxu0 %v7702
  %v7882 = vpop.f32.mrb[0].mxu0
  %v7883 = vadd.f32 %v7818, %v7882
  %v7884 = vpop.f32.mrb[0].mxu0
  %v7885 = vpop.f32.mrb[0].mxu0
  %v7886 = vadd.f32 %v7821, %v7885
  %v7887 = vpop.f32.mrb[0].mxu0
  %7888 = vmatprep.mubr.bf16.mxu0 0
  %7889 = vmatmul.mubr.bf16.gmra.mrb[0].mxu0 %v7705
  %v7890 = vpop.f32.mrb[0].mxu0
  %v7891 = vadd.f32 %v7826, %v7890
  %v7892 = vpop.f32.mrb[0].mxu0
  %v7893 = vpop.f32.mrb[0].mxu0
  %v7894 = vadd.f32 %v7829, %v7893
  %v7895 = vpop.f32.mrb[0].mxu0
  %7896 = vmatprep.mubr.bf16.mxu0 0
  %7897 = vmatmul.mubr.bf16.gmra.mrb[0].mxu0 %v7708
  %v7898 = vpop.f32.mrb[0].mxu0
  %v7899 = vadd.f32 %v7834, %v7898
  %v7900 = vpop.f32.mrb[0].mxu0
  %v7901 = vpop.f32.mrb[0].mxu0
  %v7902 = vadd.f32 %v7837, %v7901
  %v7903 = vpop.f32.mrb[0].mxu0
  %7904 = vdwg.mxu0
  %v7905 = vmax.f32 %v7875, 0.0
  %v7906 = vmax.f32 %v7878, 0.0
  %v7907 = vmax.f32 %v7883, 0.0
  %v7908 = vmax.f32 %v7886, 0.0
  %v7909 = vmax.f32 %v7891, 0.0
  %v7910 = vmax.f32 %v7894, 0.0
  %v7911 = vmax.f32 %v7899, 0.0
  %v7912 = vmax.f32 %v7902, 0.0
  %v7913 = vld [vmem:[%s73] sm:$0x1]
  %v7915 = vlaneseq
  %v7916 = vshrl.u32 %v7915, 7
  %v7917 = vsub.s32 0, %v7916
  %v7918 = vrot.slane %v7913, %v7917
  %v7920 = vmul.f32 %v7905, %v7918
  %v7921 = vmul.f32 %v7906, %v7918
  %v7922 = vmul.f32 %v7907, %v7918
  %v7923 = vmul.f32 %v7908, %v7918
  %v7924 = vmul.f32 %v7909, %v7918
  %v7925 = vmul.f32 %v7910, %v7918
  %v7926 = vmul.f32 %v7911, %v7918
  %v7927 = vmul.f32 %v7912, %v7918
  %7928 = vst.msk [vmem:[#allocation2] sm:$0xff] %vm6081, 0.0
  %7929 = vst.msk [vmem:[#allocation2 + $0x50] sm:$0xff] %vm6081, 0.0
  %7930 = vst.msk [vmem:[#allocation2 + $0xa0] sm:$0xff] %vm6081, 0.0
  %7931 = vst.msk [vmem:[#allocation2 + $0xf0] sm:$0xff] %vm6081, 0.0
  %7932 = vst.msk [vmem:[#allocation2 + $0x140] sm:$0xff] %vm6081, 0.0
  %7933 = vst.msk [vmem:[#allocation2 + $0x190] sm:$0xff] %vm6081, 0.0
  %7934 = vst.msk [vmem:[#allocation2 + $0x1e0] sm:$0xff] %vm6081, 0.0
  %7935 = vst.msk [vmem:[#allocation2 + $0x230] sm:$0xff] %vm6081, 0.0
  %7944 = vrot.lane.b32.xlu0 %v7920, 7
  %v7945 = vpop.permute.xlu0 %7944
  %7946 = vrot.lane.b32.xlu0 %v7921, 7
  %v7947 = vpop.permute.xlu0 %7946
  %7948 = vrot.lane.b32.xlu0 %v7922, 7
  %v7949 = vpop.permute.xlu0 %7948
  %7950 = vrot.lane.b32.xlu0 %v7923, 7
  %v7951 = vpop.permute.xlu0 %7950
  %7952 = vrot.lane.b32.xlu0 %v7924, 7
  %v7953 = vpop.permute.xlu0 %7952
  %7954 = vrot.lane.b32.xlu0 %v7925, 7
  %v7955 = vpop.permute.xlu0 %7954
  %7956 = vrot.lane.b32.xlu0 %v7926, 7
  %v7957 = vpop.permute.xlu0 %7956
  %7958 = vrot.lane.b32.xlu0 %v7927, 7
  %v7959 = vpop.permute.xlu0 %7958
  %7968 = vst.msk [vmem:[#allocation2] sm:$0xff] %vm6102, %v7945
  %7969 = vst.msk [vmem:[#allocation2 + $0x50] sm:$0xff] %vm6102, %v7947
  %7970 = vst.msk [vmem:[#allocation2 + $0xa0] sm:$0xff] %vm6102, %v7949
  %7971 = vst.msk [vmem:[#allocation2 + $0xf0] sm:$0xff] %vm6102, %v7951
  %7972 = vst.msk [vmem:[#allocation2 + $0x140] sm:$0xff] %vm6102, %v7953
  %7973 = vst.msk [vmem:[#allocation2 + $0x190] sm:$0xff] %vm6102, %v7955
  %7974 = vst.msk [vmem:[#allocation2 + $0x1e0] sm:$0xff] %vm6102, %v7957
  %7975 = vst.msk [vmem:[#allocation2 + $0x230] sm:$0xff] %vm6102, %v7959
  %7976 = vst.msk [vmem:[#allocation2] sm:$0xff] %vm6107, 0.0
  %7977 = vst.msk [vmem:[#allocation2 + $0x50] sm:$0xff] %vm6107, 0.0
  %7978 = vst.msk [vmem:[#allocation2 + $0xa0] sm:$0xff] %vm6107, 0.0
  %7979 = vst.msk [vmem:[#allocation2 + $0xf0] sm:$0xff] %vm6107, 0.0
  %7980 = vst.msk [vmem:[#allocation2 + $0x140] sm:$0xff] %vm6107, 0.0
  %7981 = vst.msk [vmem:[#allocation2 + $0x190] sm:$0xff] %vm6107, 0.0
  %7982 = vst.msk [vmem:[#allocation2 + $0x1e0] sm:$0xff] %vm6107, 0.0
  %7983 = vst.msk [vmem:[#allocation2 + $0x230] sm:$0xff] %vm6107, 0.0
  %v7984 = vld [vmem:[#allocation2] sm:$0xff]
  %v7985 = vld [vmem:[#allocation2 + $0x50] sm:$0xff]
  %v7986 = vld [vmem:[#allocation2 + $0xa0] sm:$0xff]
  %v7987 = vld [vmem:[#allocation2 + $0xf0] sm:$0xff]
  %v7988 = vld [vmem:[#allocation2 + $0x140] sm:$0xff]
  %v7989 = vld [vmem:[#allocation2 + $0x190] sm:$0xff]
  %v7990 = vld [vmem:[#allocation2 + $0x1e0] sm:$0xff]
  %v7991 = vld [vmem:[#allocation2 + $0x230] sm:$0xff]
  %8000 = vrot.lane.b32.xlu0 %v7984, 127
  %v8001 = vpop.permute.xlu0 %8000
  %8002 = vrot.lane.b32.xlu0 %v7985, 127
  %v8003 = vpop.permute.xlu0 %8002
  %8004 = vrot.lane.b32.xlu0 %v7986, 127
  %v8005 = vpop.permute.xlu0 %8004
  %8006 = vrot.lane.b32.xlu0 %v7987, 127
  %v8007 = vpop.permute.xlu0 %8006
  %8008 = vrot.lane.b32.xlu0 %v7988, 127
  %v8009 = vpop.permute.xlu0 %8008
  %8010 = vrot.lane.b32.xlu0 %v7989, 127
  %v8011 = vpop.permute.xlu0 %8010
  %8012 = vrot.lane.b32.xlu0 %v7990, 127
  %v8013 = vpop.permute.xlu0 %8012
  %8014 = vrot.lane.b32.xlu0 %v7991, 127
  %v8015 = vpop.permute.xlu0 %8014
  %8024 = vrot.lane.b32.xlu0 %v7984, 126
  %v8025 = vpop.permute.xlu0 %8024
  %8026 = vrot.lane.b32.xlu0 %v7985, 126
  %v8027 = vpop.permute.xlu0 %8026
  %8028 = vrot.lane.b32.xlu0 %v7986, 126
  %v8029 = vpop.permute.xlu0 %8028
  %8030 = vrot.lane.b32.xlu0 %v7987, 126
  %v8031 = vpop.permute.xlu0 %8030
  %8032 = vrot.lane.b32.xlu0 %v7988, 126
  %v8033 = vpop.permute.xlu0 %8032
  %8034 = vrot.lane.b32.xlu0 %v7989, 126
  %v8035 = vpop.permute.xlu0 %8034
  %8036 = vrot.lane.b32.xlu0 %v7990, 126
  %v8037 = vpop.permute.xlu0 %8036
  %8038 = vrot.lane.b32.xlu0 %v7991, 126
  %v8039 = vpop.permute.xlu0 %8038
  %8048 = vrot.lane.b32.xlu0 %v7984, 122
  %v8049 = vpop.permute.xlu0 %8048
  %8050 = vrot.lane.b32.xlu0 %v7985, 122
  %v8051 = vpop.permute.xlu0 %8050
  %8052 = vrot.lane.b32.xlu0 %v7986, 122
  %v8053 = vpop.permute.xlu0 %8052
  %8054 = vrot.lane.b32.xlu0 %v7987, 122
  %v8055 = vpop.permute.xlu0 %8054
  %8056 = vrot.lane.b32.xlu0 %v7988, 122
  %v8057 = vpop.permute.xlu0 %8056
  %8058 = vrot.lane.b32.xlu0 %v7989, 122
  %v8059 = vpop.permute.xlu0 %8058
  %8060 = vrot.lane.b32.xlu0 %v7990, 122
  %v8061 = vpop.permute.xlu0 %8060
  %8062 = vrot.lane.b32.xlu0 %v7991, 122
  %v8063 = vpop.permute.xlu0 %8062
  %8072 = vrot.lane.b32.xlu0 %v7984, 121
  %v8073 = vpop.permute.xlu0 %8072
  %8074 = vrot.lane.b32.xlu0 %v7985, 121
  %v8075 = vpop.permute.xlu0 %8074
  %8076 = vrot.lane.b32.xlu0 %v7986, 121
  %v8077 = vpop.permute.xlu0 %8076
  %8078 = vrot.lane.b32.xlu0 %v7987, 121
  %v8079 = vpop.permute.xlu0 %8078
  %8080 = vrot.lane.b32.xlu0 %v7988, 121
  %v8081 = vpop.permute.xlu0 %8080
  %8082 = vrot.lane.b32.xlu0 %v7989, 121
  %v8083 = vpop.permute.xlu0 %8082
  %8084 = vrot.lane.b32.xlu0 %v7990, 121
  %v8085 = vpop.permute.xlu0 %8084
  %8086 = vrot.lane.b32.xlu0 %v7991, 121
  %v8087 = vpop.permute.xlu0 %8086
  %8096 = vrot.lane.b32.xlu0 %v7984, 120
  %v8097 = vpop.permute.xlu0 %8096
  %8098 = vrot.lane.b32.xlu0 %v7985, 120
  %v8099 = vpop.permute.xlu0 %8098
  %8100 = vrot.lane.b32.xlu0 %v7986, 120
  %v8101 = vpop.permute.xlu0 %8100
  %8102 = vrot.lane.b32.xlu0 %v7987, 120
  %v8103 = vpop.permute.xlu0 %8102
  %8104 = vrot.lane.b32.xlu0 %v7988, 120
  %v8105 = vpop.permute.xlu0 %8104
  %8106 = vrot.lane.b32.xlu0 %v7989, 120
  %v8107 = vpop.permute.xlu0 %8106
  %8108 = vrot.lane.b32.xlu0 %v7990, 120
  %v8109 = vpop.permute.xlu0 %8108
  %8110 = vrot.lane.b32.xlu0 %v7991, 120
  %v8111 = vpop.permute.xlu0 %8110
  %8120 = vrot.lane.b32.xlu0 %v7984, 116
  %v8121 = vpop.permute.xlu0 %8120
  %8122 = vrot.lane.b32.xlu0 %v7985, 116
  %v8123 = vpop.permute.xlu0 %8122
  %8124 = vrot.lane.b32.xlu0 %v7986, 116
  %v8125 = vpop.permute.xlu0 %8124
  %8126 = vrot.lane.b32.xlu0 %v7987, 116
  %v8127 = vpop.permute.xlu0 %8126
  %8128 = vrot.lane.b32.xlu0 %v7988, 116
  %v8129 = vpop.permute.xlu0 %8128
  %8130 = vrot.lane.b32.xlu0 %v7989, 116
  %v8131 = vpop.permute.xlu0 %8130
  %8132 = vrot.lane.b32.xlu0 %v7990, 116
  %v8133 = vpop.permute.xlu0 %8132
  %8134 = vrot.lane.b32.xlu0 %v7991, 116
  %v8135 = vpop.permute.xlu0 %8134
  %8144 = vrot.lane.b32.xlu0 %v7984, 115
  %v8145 = vpop.permute.xlu0 %8144
  %8146 = vrot.lane.b32.xlu0 %v7985, 115
  %v8147 = vpop.permute.xlu0 %8146
  %8148 = vrot.lane.b32.xlu0 %v7986, 115
  %v8149 = vpop.permute.xlu0 %8148
  %8150 = vrot.lane.b32.xlu0 %v7987, 115
  %v8151 = vpop.permute.xlu0 %8150
  %8152 = vrot.lane.b32.xlu0 %v7988, 115
  %v8153 = vpop.permute.xlu0 %8152
  %8154 = vrot.lane.b32.xlu0 %v7989, 115
  %v8155 = vpop.permute.xlu0 %8154
  %8156 = vrot.lane.b32.xlu0 %v7990, 115
  %v8157 = vpop.permute.xlu0 %8156
  %8158 = vrot.lane.b32.xlu0 %v7991, 115
  %v8159 = vpop.permute.xlu0 %8158
  %8168 = vrot.lane.b32.xlu0 %v7984, 114
  %v8169 = vpop.permute.xlu0 %8168
  %8170 = vrot.lane.b32.xlu0 %v7985, 114
  %v8171 = vpop.permute.xlu0 %8170
  %8172 = vrot.lane.b32.xlu0 %v7986, 114
  %v8173 = vpop.permute.xlu0 %8172
  %8174 = vrot.lane.b32.xlu0 %v7987, 114
  %v8175 = vpop.permute.xlu0 %8174
  %8176 = vrot.lane.b32.xlu0 %v7988, 114
  %v8177 = vpop.permute.xlu0 %8176
  %8178 = vrot.lane.b32.xlu0 %v7989, 114
  %v8179 = vpop.permute.xlu0 %8178
  %8180 = vrot.lane.b32.xlu0 %v7990, 114
  %v8181 = vpop.permute.xlu0 %8180
  %8182 = vrot.lane.b32.xlu0 %v7991, 114
  %v8183 = vpop.permute.xlu0 %8182
  %v8192 = vpack.c.bf16 %v7985, %v7984
  %v8193 = vpack.c.bf16 %v7987, %v7986
  %v8194 = vpack.c.bf16 %v7989, %v7988
  %v8195 = vpack.c.bf16 %v7991, %v7990
  %v8196 = vpack.c.bf16 %v8003, %v8001
  %v8197 = vpack.c.bf16 %v8007, %v8005
  %v8198 = vpack.c.bf16 %v8011, %v8009
  %v8199 = vpack.c.bf16 %v8015, %v8013
  %v8200 = vpack.c.bf16 %v8027, %v8025
  %v8201 = vpack.c.bf16 %v8031, %v8029
  %v8202 = vpack.c.bf16 %v8035, %v8033
  %v8203 = vpack.c.bf16 %v8039, %v8037
  %v8204 = vpack.c.bf16 %v8051, %v8049
  %v8205 = vpack.c.bf16 %v8055, %v8053
  %v8206 = vpack.c.bf16 %v8059, %v8057
  %v8207 = vpack.c.bf16 %v8063, %v8061
  %v8208 = vpack.c.bf16 %v8075, %v8073
  %v8209 = vpack.c.bf16 %v8079, %v8077
  %v8210 = vpack.c.bf16 %v8083, %v8081
  %v8211 = vpack.c.bf16 %v8087, %v8085
  %v8212 = vpack.c.bf16 %v8099, %v8097
  %v8213 = vpack.c.bf16 %v8103, %v8101
  %v8214 = vpack.c.bf16 %v8107, %v8105
  %v8215 = vpack.c.bf16 %v8111, %v8109
  %v8216 = vpack.c.bf16 %v8123, %v8121
  %v8217 = vpack.c.bf16 %v8127, %v8125
  %v8218 = vpack.c.bf16 %v8131, %v8129
  %v8219 = vpack.c.bf16 %v8135, %v8133
  %v8220 = vpack.c.bf16 %v8147, %v8145
  %v8221 = vpack.c.bf16 %v8151, %v8149
  %v8222 = vpack.c.bf16 %v8155, %v8153
  %v8223 = vpack.c.bf16 %v8159, %v8157
  %v8224 = vpack.c.bf16 %v8171, %v8169
  %v8225 = vpack.c.bf16 %v8175, %v8173
  %v8226 = vpack.c.bf16 %v8179, %v8177
  %v8227 = vpack.c.bf16 %v8183, %v8181
  %v8228 = vld [vmem:[%s47] sm:$0xff]
  %v8229 = vld [vmem:[%s47 + $0x8] sm:$0xff]
  %v8230 = vld [vmem:[%s47 + $0x10] sm:$0xf]
  %v8231 = vld [vmem:[%s47 + $0x14] sm:$0xff]
  %v8232 = vld [vmem:[%s47 + $0x1c] sm:$0xff]
  %v8233 = vld [vmem:[%s47 + $0x24] sm:$0xf]
  %v8234 = vld [vmem:[%s47 + $0x28] sm:$0xff]
  %v8235 = vld [vmem:[%s47 + $0x30] sm:$0xff]
  %v8236 = vld [vmem:[%s47 + $0x38] sm:$0xf]
  %v8237 = vld [vmem:[%s47 + $0x3c] sm:$0xff]
  %v8238 = vld [vmem:[%s47 + $0x44] sm:$0xff]
  %v8239 = vld [vmem:[%s47 + $0x4c] sm:$0xf]
  %v8240 = vld [vmem:[%s47 + $0x50] sm:$0xff]
  %v8241 = vld [vmem:[%s47 + $0x58] sm:$0xff]
  %v8242 = vld [vmem:[%s47 + $0x60] sm:$0xf]
  %v8243 = vld [vmem:[%s47 + $0x64] sm:$0xff]
  %v8244 = vld [vmem:[%s47 + $0x6c] sm:$0xff]
  %v8245 = vld [vmem:[%s47 + $0x74] sm:$0xf]
  %v8246 = vld [vmem:[%s47 + $0x78] sm:$0xff]
  %v8247 = vld [vmem:[%s47 + $0x80] sm:$0xff]
  %v8248 = vld [vmem:[%s47 + $0x88] sm:$0xf]
  %v8249 = vld [vmem:[%s47 + $0x8c] sm:$0xff]
  %v8250 = vld [vmem:[%s47 + $0x94] sm:$0xff]
  %v8251 = vld [vmem:[%s47 + $0x9c] sm:$0xf]
  %v8252 = vld [vmem:[%s49] sm:$0xff]
  %v8253 = vld [vmem:[%s49 + $0x8] sm:$0xff]
  %v8254 = vld [vmem:[%s49 + $0x10] sm:$0xff]
  %v8255 = vld [vmem:[%s49 + $0x18] sm:$0xff]
  %v8256 = vld [vmem:[%s49 + $0x20] sm:$0xff]
  %v8257 = vld [vmem:[%s49 + $0x28] sm:$0xff]
  %v8258 = vld [vmem:[%s49 + $0x30] sm:$0xff]
  %v8259 = vld [vmem:[%s49 + $0x38] sm:$0xff]
  %8261 = vset.pattern.permute.xlu0 0
  %8262 = vperm.xlu0 %8261, %v8252
  %v8263 = vpop.permute.xlu0 %8262
  %8266 = vset.pattern.permute.xlu0 0
  %8267 = vperm.xlu0 %8266, %v8253
  %v8268 = vpop.permute.xlu0 %8267
  %8271 = vset.pattern.permute.xlu0 0
  %8272 = vperm.xlu0 %8271, %v8254
  %v8273 = vpop.permute.xlu0 %8272
  %8276 = vset.pattern.permute.xlu0 0
  %8277 = vperm.xlu0 %8276, %v8255
  %v8278 = vpop.permute.xlu0 %8277
  %8281 = vset.pattern.permute.xlu0 0
  %8282 = vperm.xlu0 %8281, %v8256
  %v8283 = vpop.permute.xlu0 %8282
  %8286 = vset.pattern.permute.xlu0 0
  %8287 = vperm.xlu0 %8286, %v8257
  %v8288 = vpop.permute.xlu0 %8287
  %8291 = vset.pattern.permute.xlu0 0
  %8292 = vperm.xlu0 %8291, %v8258
  %v8293 = vpop.permute.xlu0 %8292
  %8296 = vset.pattern.permute.xlu0 0
  %8297 = vperm.xlu0 %8296, %v8259
  %v8298 = vpop.permute.xlu0 %8297
  %v8324 = vunpack.c.l.b16 %v8228
  %v8325 = vunpack.c.h.b16 %v8228
  %v8326 = vunpack.c.l.b16 %v8229
  %v8327 = vunpack.c.h.b16 %v8229
  %v8328 = vunpack.c.l.b16 %v8230
  %v8329 = vunpack.c.l.b16 %v8231
  %v8330 = vunpack.c.h.b16 %v8231
  %v8331 = vunpack.c.l.b16 %v8232
  %v8332 = vunpack.c.h.b16 %v8232
  %v8333 = vunpack.c.l.b16 %v8233
  %v8334 = vunpack.c.l.b16 %v8234
  %v8335 = vunpack.c.h.b16 %v8234
  %v8336 = vunpack.c.l.b16 %v8235
  %v8337 = vunpack.c.h.b16 %v8235
  %v8338 = vunpack.c.l.b16 %v8236
  %v8339 = vunpack.c.l.b16 %v8237
  %v8340 = vunpack.c.h.b16 %v8237
  %v8341 = vunpack.c.l.b16 %v8238
  %v8342 = vunpack.c.h.b16 %v8238
  %v8343 = vunpack.c.l.b16 %v8239
  %v8344 = vunpack.c.l.b16 %v8240
  %v8345 = vunpack.c.h.b16 %v8240
  %v8346 = vunpack.c.l.b16 %v8241
  %v8347 = vunpack.c.h.b16 %v8241
  %v8348 = vunpack.c.l.b16 %v8242
  %v8349 = vunpack.c.l.b16 %v8243
  %v8350 = vunpack.c.h.b16 %v8243
  %v8351 = vunpack.c.l.b16 %v8244
  %v8352 = vunpack.c.h.b16 %v8244
  %v8353 = vunpack.c.l.b16 %v8245
  %v8354 = vunpack.c.l.b16 %v8246
  %v8355 = vunpack.c.h.b16 %v8246
  %v8356 = vunpack.c.l.b16 %v8247
  %v8357 = vunpack.c.h.b16 %v8247
  %v8358 = vunpack.c.l.b16 %v8248
  %v8359 = vunpack.c.l.b16 %v8249
  %v8360 = vunpack.c.h.b16 %v8249
  %v8361 = vunpack.c.l.b16 %v8250
  %v8362 = vunpack.c.h.b16 %v8250
  %v8363 = vunpack.c.l.b16 %v8251
  %v8364 = vpack.c.b16 %v8329, %v8324
  %v8365 = vpack.c.b16 %v8330, %v8325
  %v8366 = vpack.c.b16 %v8331, %v8326
  %v8367 = vpack.c.b16 %v8332, %v8327
  %v8368 = vpack.c.b16 %v8333, %v8328
  %v8369 = vpack.c.b16 %v8339, %v8334
  %v8370 = vpack.c.b16 %v8340, %v8335
  %v8371 = vpack.c.b16 %v8341, %v8336
  %v8372 = vpack.c.b16 %v8342, %v8337
  %v8373 = vpack.c.b16 %v8343, %v8338
  %v8374 = vpack.c.b16 %v8349, %v8344
  %v8375 = vpack.c.b16 %v8350, %v8345
  %v8376 = vpack.c.b16 %v8351, %v8346
  %v8377 = vpack.c.b16 %v8352, %v8347
  %v8378 = vpack.c.b16 %v8353, %v8348
  %v8379 = vpack.c.b16 %v8359, %v8354
  %v8380 = vpack.c.b16 %v8360, %v8355
  %v8381 = vpack.c.b16 %v8361, %v8356
  %v8382 = vpack.c.b16 %v8362, %v8357
  %v8383 = vpack.c.b16 %v8363, %v8358
  %v8401 = vsel %vm6995, %v8368, 0
  %v8404 = vsel %vm6995, %v8373, 0
  %v8407 = vsel %vm6995, %v8378, 0
  %v8410 = vsel %vm6995, %v8383, 0
  %8412 = vmatprep.subr.bf16.mxu0 0
  %8413 = vmatpush1.bf16.msra.mxu0 %v8192
  %8414 = vmatprep.subr.bf16.mxu0 0
  %8415 = vmatpush1.bf16.msra.mxu0 %v8193
  %8416 = vmatprep.subr.bf16.mxu0 0
  %8417 = vmatpush1.bf16.msra.mxu0 %v8194
  %8418 = vmatprep.subr.bf16.mxu0 0
  %8419 = vmatpush1.bf16.msra.mxu0 %v8195
  %8420 = vmatprep.subr.bf16.mxu0 0
  %8421 = vmatpush1.bf16.msra.mxu0 %v8196
  %8422 = vmatprep.subr.bf16.mxu0 0
  %8423 = vmatpush1.bf16.msra.mxu0 %v8197
  %8424 = vmatprep.subr.bf16.mxu0 0
  %8425 = vmatpush1.bf16.msra.mxu0 %v8198
  %8426 = vmatprep.subr.bf16.mxu0 0
  %8427 = vmatpush1.bf16.msra.mxu0 %v8199
  %8428 = vmatprep.subr.bf16.mxu0 0
  %8429 = vmatpush1.bf16.msra.mxu0 %v8200
  %8430 = vmatprep.subr.bf16.mxu0 0
  %8431 = vmatpush1.bf16.msra.mxu0 %v8201
  %8432 = vmatprep.subr.bf16.mxu0 0
  %8433 = vmatpush1.bf16.msra.mxu0 %v8202
  %8434 = vmatprep.subr.bf16.mxu0 0
  %8435 = vmatpush1.bf16.msra.mxu0 %v8203
  %8436 = vmatprep.subr.bf16.mxu0 0
  %8437 = vmatpush1.bf16.msra.mxu0 %v8204
  %8438 = vmatprep.subr.bf16.mxu0 0
  %8439 = vmatpush1.bf16.msra.mxu0 %v8205
  %8440 = vmatprep.subr.bf16.mxu0 0
  %8441 = vmatpush1.bf16.msra.mxu0 %v8206
  %8442 = vmatprep.subr.bf16.mxu0 0
  %8443 = vmatpush1.bf16.msra.mxu0 %v8207
  %8444 = vmatprep.mubr.bf16.mxu0 %v8365
  %8445 = vmatmul.mubr.bf16.gmra.mrb[0].mxu0 %v8364
  %v8446 = vpop.f32.mrb[0].mxu0
  %v8447 = vadd.f32 %v8263, %v8446
  %v8448 = vpop.f32.mrb[0].mxu0
  %v8449 = vpop.f32.mrb[0].mxu0
  %v8450 = vadd.f32 %v8268, %v8449
  %v8451 = vpop.f32.mrb[0].mxu0
  %8452 = vmatprep.mubr.bf16.mxu0 %v8370
  %8453 = vmatmul.mubr.bf16.gmra.mrb[0].mxu0 %v8369
  %v8454 = vpop.f32.mrb[0].mxu0
  %v8455 = vadd.f32 %v8273, %v8454
  %v8456 = vpop.f32.mrb[0].mxu0
  %v8457 = vpop.f32.mrb[0].mxu0
  %v8458 = vadd.f32 %v8278, %v8457
  %v8459 = vpop.f32.mrb[0].mxu0
  %8460 = vmatprep.mubr.bf16.mxu0 %v8375
  %8461 = vmatmul.mubr.bf16.gmra.mrb[0].mxu0 %v8374
  %v8462 = vpop.f32.mrb[0].mxu0
  %v8463 = vadd.f32 %v8283, %v8462
  %v8464 = vpop.f32.mrb[0].mxu0
  %v8465 = vpop.f32.mrb[0].mxu0
  %v8466 = vadd.f32 %v8288, %v8465
  %v8467 = vpop.f32.mrb[0].mxu0
  %8468 = vmatprep.mubr.bf16.mxu0 %v8380
  %8469 = vmatmul.mubr.bf16.gmra.mrb[0].mxu0 %v8379
  %v8470 = vpop.f32.mrb[0].mxu0
  %v8471 = vadd.f32 %v8293, %v8470
  %v8472 = vpop.f32.mrb[0].mxu0
  %v8473 = vpop.f32.mrb[0].mxu0
  %v8474 = vadd.f32 %v8298, %v8473
  %v8475 = vpop.f32.mrb[0].mxu0
  %8476 = vdwg.mxu0
  %8477 = vmatprep.subr.bf16.mxu0 0
  %8478 = vmatpush1.bf16.msra.mxu0 %v8208
  %8479 = vmatprep.subr.bf16.mxu0 0
  %8480 = vmatpush1.bf16.msra.mxu0 %v8209
  %8481 = vmatprep.subr.bf16.mxu0 0
  %8482 = vmatpush1.bf16.msra.mxu0 %v8210
  %8483 = vmatprep.subr.bf16.mxu0 0
  %8484 = vmatpush1.bf16.msra.mxu0 %v8211
  %8485 = vmatprep.subr.bf16.mxu0 0
  %8486 = vmatpush1.bf16.msra.mxu0 %v8212
  %8487 = vmatprep.subr.bf16.mxu0 0
  %8488 = vmatpush1.bf16.msra.mxu0 %v8213
  %8489 = vmatprep.subr.bf16.mxu0 0
  %8490 = vmatpush1.bf16.msra.mxu0 %v8214
  %8491 = vmatprep.subr.bf16.mxu0 0
  %8492 = vmatpush1.bf16.msra.mxu0 %v8215
  %8493 = vmatprep.subr.bf16.mxu0 0
  %8494 = vmatpush1.bf16.msra.mxu0 %v8216
  %8495 = vmatprep.subr.bf16.mxu0 0
  %8496 = vmatpush1.bf16.msra.mxu0 %v8217
  %8497 = vmatprep.subr.bf16.mxu0 0
  %8498 = vmatpush1.bf16.msra.mxu0 %v8218
  %8499 = vmatprep.subr.bf16.mxu0 0
  %8500 = vmatpush1.bf16.msra.mxu0 %v8219
  %8501 = vmatprep.subr.bf16.mxu0 0
  %8502 = vmatpush1.bf16.msra.mxu0 %v8220
  %8503 = vmatprep.subr.bf16.mxu0 0
  %8504 = vmatpush1.bf16.msra.mxu0 %v8221
  %8505 = vmatprep.subr.bf16.mxu0 0
  %8506 = vmatpush1.bf16.msra.mxu0 %v8222
  %8507 = vmatprep.subr.bf16.mxu0 0
  %8508 = vmatpush1.bf16.msra.mxu0 %v8223
  %8509 = vmatprep.mubr.bf16.mxu0 %v8367
  %8510 = vmatmul.mubr.bf16.gmra.mrb[0].mxu0 %v8366
  %v8511 = vpop.f32.mrb[0].mxu0
  %v8512 = vadd.f32 %v8447, %v8511
  %v8513 = vpop.f32.mrb[0].mxu0
  %v8514 = vpop.f32.mrb[0].mxu0
  %v8515 = vadd.f32 %v8450, %v8514
  %v8516 = vpop.f32.mrb[0].mxu0
  %8517 = vmatprep.mubr.bf16.mxu0 %v8372
  %8518 = vmatmul.mubr.bf16.gmra.mrb[0].mxu0 %v8371
  %v8519 = vpop.f32.mrb[0].mxu0
  %v8520 = vadd.f32 %v8455, %v8519
  %v8521 = vpop.f32.mrb[0].mxu0
  %v8522 = vpop.f32.mrb[0].mxu0
  %v8523 = vadd.f32 %v8458, %v8522
  %v8524 = vpop.f32.mrb[0].mxu0
  %8525 = vmatprep.mubr.bf16.mxu0 %v8377
  %8526 = vmatmul.mubr.bf16.gmra.mrb[0].mxu0 %v8376
  %v8527 = vpop.f32.mrb[0].mxu0
  %v8528 = vadd.f32 %v8463, %v8527
  %v8529 = vpop.f32.mrb[0].mxu0
  %v8530 = vpop.f32.mrb[0].mxu0
  %v8531 = vadd.f32 %v8466, %v8530
  %v8532 = vpop.f32.mrb[0].mxu0
  %8533 = vmatprep.mubr.bf16.mxu0 %v8382
  %8534 = vmatmul.mubr.bf16.gmra.mrb[0].mxu0 %v8381
  %v8535 = vpop.f32.mrb[0].mxu0
  %v8536 = vadd.f32 %v8471, %v8535
  %v8537 = vpop.f32.mrb[0].mxu0
  %v8538 = vpop.f32.mrb[0].mxu0
  %v8539 = vadd.f32 %v8474, %v8538
  %v8540 = vpop.f32.mrb[0].mxu0
  %8541 = vdwg.mxu0
  %8542 = vmatprep.subr.bf16.mxu0 0
  %8543 = vmatpush1.bf16.msra.mxu0 %v8224
  %8544 = vmatprep.subr.bf16.mxu0 0
  %8545 = vmatpush1.bf16.msra.mxu0 %v8225
  %8546 = vmatprep.subr.bf16.mxu0 0
  %8547 = vmatpush1.bf16.msra.mxu0 %v8226
  %8548 = vmatprep.subr.bf16.mxu0 0
  %8549 = vmatpush1.bf16.msra.mxu0 %v8227
  %8550 = vmatprep.subr.bf16.mxu0 0
  %8551 = vmatpush1.bf16.msra.mxu0 0
  %8552 = vmatprep.subr.bf16.mxu0 0
  %8553 = vmatpush1.bf16.msra.mxu0 0
  %8554 = vmatprep.subr.bf16.mxu0 0
  %8555 = vmatpush1.bf16.msra.mxu0 0
  %8556 = vmatprep.subr.bf16.mxu0 0
  %8557 = vmatpush1.bf16.msra.mxu0 0
  %8558 = vmatprep.subr.bf16.mxu0 0
  %8559 = vmatpush1.bf16.msra.mxu0 0
  %8560 = vmatprep.subr.bf16.mxu0 0
  %8561 = vmatpush1.bf16.msra.mxu0 0
  %8562 = vmatprep.subr.bf16.mxu0 0
  %8563 = vmatpush1.bf16.msra.mxu0 0
  %8564 = vmatprep.subr.bf16.mxu0 0
  %8565 = vmatpush1.bf16.msra.mxu0 0
  %8566 = vmatprep.subr.bf16.mxu0 0
  %8567 = vmatpush1.bf16.msra.mxu0 0
  %8568 = vmatprep.subr.bf16.mxu0 0
  %8569 = vmatpush1.bf16.msra.mxu0 0
  %8570 = vmatprep.subr.bf16.mxu0 0
  %8571 = vmatpush1.bf16.msra.mxu0 0
  %8572 = vmatprep.subr.bf16.mxu0 0
  %8573 = vmatpush1.bf16.msra.mxu0 0
  %8574 = vmatprep.mubr.bf16.mxu0 0
  %8575 = vmatmul.mubr.bf16.gmra.mrb[0].mxu0 %v8401
  %v8576 = vpop.f32.mrb[0].mxu0
  %v8577 = vadd.f32 %v8512, %v8576
  %v8578 = vpop.f32.mrb[0].mxu0
  %v8579 = vpop.f32.mrb[0].mxu0
  %v8580 = vadd.f32 %v8515, %v8579
  %v8581 = vpop.f32.mrb[0].mxu0
  %8582 = vmatprep.mubr.bf16.mxu0 0
  %8583 = vmatmul.mubr.bf16.gmra.mrb[0].mxu0 %v8404
  %v8584 = vpop.f32.mrb[0].mxu0
  %v8585 = vadd.f32 %v8520, %v8584
  %v8586 = vpop.f32.mrb[0].mxu0
  %v8587 = vpop.f32.mrb[0].mxu0
  %v8588 = vadd.f32 %v8523, %v8587
  %v8589 = vpop.f32.mrb[0].mxu0
  %8590 = vmatprep.mubr.bf16.mxu0 0
  %8591 = vmatmul.mubr.bf16.gmra.mrb[0].mxu0 %v8407
  %v8592 = vpop.f32.mrb[0].mxu0
  %v8593 = vadd.f32 %v8528, %v8592
  %v8594 = vpop.f32.mrb[0].mxu0
  %v8595 = vpop.f32.mrb[0].mxu0
  %v8596 = vadd.f32 %v8531, %v8595
  %v8597 = vpop.f32.mrb[0].mxu0
  %8598 = vmatprep.mubr.bf16.mxu0 0
  %8599 = vmatmul.mubr.bf16.gmra.mrb[0].mxu0 %v8410
  %v8600 = vpop.f32.mrb[0].mxu0
  %v8601 = vadd.f32 %v8536, %v8600
  %v8602 = vpop.f32.mrb[0].mxu0
  %v8603 = vpop.f32.mrb[0].mxu0
  %v8604 = vadd.f32 %v8539, %v8603
  %v8605 = vpop.f32.mrb[0].mxu0
  %8606 = vdwg.mxu0
  %v8607 = vmax.f32 %v8577, 0.0
  %v8608 = vmax.f32 %v8580, 0.0
  %v8609 = vmax.f32 %v8585, 0.0
  %v8610 = vmax.f32 %v8588, 0.0
  %v8611 = vmax.f32 %v8593, 0.0
  %v8612 = vmax.f32 %v8596, 0.0
  %v8613 = vmax.f32 %v8601, 0.0
  %v8614 = vmax.f32 %v8604, 0.0
  %vm8615 = vcmask 293888
  %8616 = vst.msk [vmem:[#allocation2] sm:$0xff] %vm8615, %v8607
  %8617 = vst.msk [vmem:[#allocation2 + $0x50] sm:$0xff] %vm8615, %v8608
  %8618 = vst.msk [vmem:[#allocation2 + $0xa0] sm:$0xff] %vm8615, %v8609
  %8619 = vst.msk [vmem:[#allocation2 + $0xf0] sm:$0xff] %vm8615, %v8610
  %8620 = vst.msk [vmem:[#allocation2 + $0x140] sm:$0xff] %vm8615, %v8611
  %8621 = vst.msk [vmem:[#allocation2 + $0x190] sm:$0xff] %vm8615, %v8612
  %8622 = vst.msk [vmem:[#allocation2 + $0x1e0] sm:$0xff] %vm8615, %v8613
  %8623 = vst.msk [vmem:[#allocation2 + $0x230] sm:$0xff] %vm8615, %v8614
  %vm8624 = vcmask 351520
  %8625 = vst.msk [vmem:[#allocation2] sm:$0xff] %vm8624, 0.0
  %8626 = vst.msk [vmem:[#allocation2 + $0x50] sm:$0xff] %vm8624, 0.0
  %8627 = vst.msk [vmem:[#allocation2 + $0xa0] sm:$0xff] %vm8624, 0.0
  %8628 = vst.msk [vmem:[#allocation2 + $0xf0] sm:$0xff] %vm8624, 0.0
  %8629 = vst.msk [vmem:[#allocation2 + $0x140] sm:$0xff] %vm8624, 0.0
  %8630 = vst.msk [vmem:[#allocation2 + $0x190] sm:$0xff] %vm8624, 0.0
  %8631 = vst.msk [vmem:[#allocation2 + $0x1e0] sm:$0xff] %vm8624, 0.0
  %8632 = vst.msk [vmem:[#allocation2 + $0x230] sm:$0xff] %vm8624, 0.0
  %v8633 = vld [vmem:[#allocation2] sm:$0xff]
  %v8634 = vld [vmem:[#allocation2 + $0x50] sm:$0xff]
  %v8635 = vld [vmem:[#allocation2 + $0xa0] sm:$0xff]
  %v8636 = vld [vmem:[#allocation2 + $0xf0] sm:$0xff]
  %v8637 = vld [vmem:[#allocation2 + $0x140] sm:$0xff]
  %v8638 = vld [vmem:[#allocation2 + $0x190] sm:$0xff]
  %v8639 = vld [vmem:[#allocation2 + $0x1e0] sm:$0xff]
  %v8640 = vld [vmem:[#allocation2 + $0x230] sm:$0xff]
  %8649 = vrot.lane.b32.xlu0 %v8633, 127
  %v8650 = vpop.permute.xlu0 %8649
  %8651 = vrot.lane.b32.xlu0 %v8634, 127
  %v8652 = vpop.permute.xlu0 %8651
  %8653 = vrot.lane.b32.xlu0 %v8635, 127
  %v8654 = vpop.permute.xlu0 %8653
  %8655 = vrot.lane.b32.xlu0 %v8636, 127
  %v8656 = vpop.permute.xlu0 %8655
  %8657 = vrot.lane.b32.xlu0 %v8637, 127
  %v8658 = vpop.permute.xlu0 %8657
  %8659 = vrot.lane.b32.xlu0 %v8638, 127
  %v8660 = vpop.permute.xlu0 %8659
  %8661 = vrot.lane.b32.xlu0 %v8639, 127
  %v8662 = vpop.permute.xlu0 %8661
  %8663 = vrot.lane.b32.xlu0 %v8640, 127
  %v8664 = vpop.permute.xlu0 %8663
  %v8673 = vmax.f32 %v8633, %v8650
  %v8674 = vmax.f32 %v8634, %v8652
  %v8675 = vmax.f32 %v8635, %v8654
  %v8676 = vmax.f32 %v8636, %v8656
  %v8677 = vmax.f32 %v8637, %v8658
  %v8678 = vmax.f32 %v8638, %v8660
  %v8679 = vmax.f32 %v8639, %v8662
  %v8680 = vmax.f32 %v8640, %v8664
  %vm8681 = vcmask 343040
  %8682 = vst.msk [vmem:[#allocation2] sm:$0xff] %vm8681, %v8673
  %8683 = vst.msk [vmem:[#allocation2 + $0x50] sm:$0xff] %vm8681, %v8674
  %8684 = vst.msk [vmem:[#allocation2 + $0xa0] sm:$0xff] %vm8681, %v8675
  %8685 = vst.msk [vmem:[#allocation2 + $0xf0] sm:$0xff] %vm8681, %v8676
  %8686 = vst.msk [vmem:[#allocation2 + $0x140] sm:$0xff] %vm8681, %v8677
  %8687 = vst.msk [vmem:[#allocation2 + $0x190] sm:$0xff] %vm8681, %v8678
  %8688 = vst.msk [vmem:[#allocation2 + $0x1e0] sm:$0xff] %vm8681, %v8679
  %8689 = vst.msk [vmem:[#allocation2 + $0x230] sm:$0xff] %vm8681, %v8680
  %v8690 = vld [vmem:[#allocation2] sm:$0xff]
  %v8691 = vld [vmem:[#allocation2 + $0x50] sm:$0xff]
  %v8692 = vld [vmem:[#allocation2 + $0xa0] sm:$0xff]
  %v8693 = vld [vmem:[#allocation2 + $0xf0] sm:$0xff]
  %v8694 = vld [vmem:[#allocation2 + $0x140] sm:$0xff]
  %v8695 = vld [vmem:[#allocation2 + $0x190] sm:$0xff]
  %v8696 = vld [vmem:[#allocation2 + $0x1e0] sm:$0xff]
  %v8697 = vld [vmem:[#allocation2 + $0x230] sm:$0xff]
  %8706 = vrot.lane.b32.xlu0 %v8690, 122
  %v8707 = vpop.permute.xlu0 %8706
  %8708 = vrot.lane.b32.xlu0 %v8691, 122
  %v8709 = vpop.permute.xlu0 %8708
  %8710 = vrot.lane.b32.xlu0 %v8692, 122
  %v8711 = vpop.permute.xlu0 %8710
  %8712 = vrot.lane.b32.xlu0 %v8693, 122
  %v8713 = vpop.permute.xlu0 %8712
  %8714 = vrot.lane.b32.xlu0 %v8694, 122
  %v8715 = vpop.permute.xlu0 %8714
  %8716 = vrot.lane.b32.xlu0 %v8695, 122
  %v8717 = vpop.permute.xlu0 %8716
  %8718 = vrot.lane.b32.xlu0 %v8696, 122
  %v8719 = vpop.permute.xlu0 %8718
  %8720 = vrot.lane.b32.xlu0 %v8697, 122
  %v8721 = vpop.permute.xlu0 %8720
  %v8730 = vmax.f32 %v8690, %v8707
  %v8731 = vmax.f32 %v8691, %v8709
  %v8732 = vmax.f32 %v8692, %v8711
  %v8733 = vmax.f32 %v8693, %v8713
  %v8734 = vmax.f32 %v8694, %v8715
  %v8735 = vmax.f32 %v8695, %v8717
  %v8736 = vmax.f32 %v8696, %v8719
  %v8737 = vmax.f32 %v8697, %v8721
  %v8738 = vpack.c.bf16 %v8731, %v8730
  %v8739 = vpack.c.bf16 %v8733, %v8732
  %v8740 = vpack.c.bf16 %v8735, %v8734
  %v8741 = vpack.c.bf16 %v8737, %v8736
  %v8742 = vld [vmem:[%s83] sm:$0xf]
  %v8743 = vld [vmem:[%s83 + $0x4] sm:$0xf]
  %v8744 = vld [vmem:[%s83 + $0x8] sm:$0xf]
  %v8745 = vld [vmem:[%s83 + $0xc] sm:$0xf]
  %v8746 = vld [vmem:[%s83 + $0x10] sm:$0x3]
  %v8752 = vunpack.c.l.b16 %v8742
  %v8753 = vunpack.c.l.b16 %v8743
  %v8754 = vunpack.c.l.b16 %v8744
  %v8755 = vunpack.c.l.b16 %v8745
  %v8756 = vunpack.c.l.b16 %v8746
  %v8757 = vpack.c.b16 %v8753, %v8752
  %v8758 = vpack.c.b16 %v8755, %v8754
  %v8759 = vpack.c.b16 %v8756, %v8756
  %v8763 = vsel %vm8615, %v8738, 0
  %v8766 = vsel %vm8615, %v8739, 0
  %v8769 = vsel %vm8615, %v8740, 0
  %v8772 = vsel %vm8615, %v8741, 0
  %v8775 = vsel %vm3312, %v8759, 0
  %8777 = vmatprep.subr.bf16.mxu0 0
  %8778 = vmatpush1.bf16.msra.mxu0 %v8757
  %8779 = vmatprep.subr.bf16.mxu0 0
  %8780 = vmatpush1.bf16.msra.mxu0 %v8758
  %8781 = vmatprep.subr.bf16.mxu0 0
  %8782 = vmatpush1.bf16.msra.mxu0 %v8775
  %8783 = vmatprep.subr.bf16.mxu0 0
  %8784 = vmatpush1.bf16.msra.mxu0 0
  %8785 = vmatprep.subr.bf16.mxu0 0
  %8786 = vmatpush1.bf16.msra.mxu0 0
  %8787 = vmatprep.subr.bf16.mxu0 0
  %8788 = vmatpush1.bf16.msra.mxu0 0
  %8789 = vmatprep.subr.bf16.mxu0 0
  %8790 = vmatpush1.bf16.msra.mxu0 0
  %8791 = vmatprep.subr.bf16.mxu0 0
  %8792 = vmatpush1.bf16.msra.mxu0 0
  %8793 = vmatprep.subr.bf16.mxu0 0
  %8794 = vmatpush1.bf16.msra.mxu0 0
  %8795 = vmatprep.subr.bf16.mxu0 0
  %8796 = vmatpush1.bf16.msra.mxu0 0
  %8797 = vmatprep.subr.bf16.mxu0 0
  %8798 = vmatpush1.bf16.msra.mxu0 0
  %8799 = vmatprep.subr.bf16.mxu0 0
  %8800 = vmatpush1.bf16.msra.mxu0 0
  %8801 = vmatprep.subr.bf16.mxu0 0
  %8802 = vmatpush1.bf16.msra.mxu0 0
  %8803 = vmatprep.subr.bf16.mxu0 0
  %8804 = vmatpush1.bf16.msra.mxu0 0
  %8805 = vmatprep.subr.bf16.mxu0 0
  %8806 = vmatpush1.bf16.msra.mxu0 0
  %8807 = vmatprep.subr.bf16.mxu0 0
  %8808 = vmatpush1.bf16.msra.mxu0 0
  %8809 = vmatprep.mubr.bf16.mxu0 0
  %8810 = vmatmul.mubr.bf16.gmra.mrb[0].mxu0 %v8763
  %v8811 = vpop.f32.mrb[0].mxu0
  %v8812 = vadd.f32 0.0, %v8811
  %v8813 = vpop.f32.mrb[0].mxu0
  %v8814 = vpop.f32.mrb[0].mxu0
  %v8815 = vadd.f32 0.0, %v8814
  %v8816 = vpop.f32.mrb[0].mxu0
  %8817 = vmatprep.mubr.bf16.mxu0 0
  %8818 = vmatmul.mubr.bf16.gmra.mrb[0].mxu0 %v8766
  %v8819 = vpop.f32.mrb[0].mxu0
  %v8820 = vadd.f32 0.0, %v8819
  %v8821 = vpop.f32.mrb[0].mxu0
  %v8822 = vpop.f32.mrb[0].mxu0
  %v8823 = vadd.f32 0.0, %v8822
  %v8824 = vpop.f32.mrb[0].mxu0
  %8825 = vmatprep.mubr.bf16.mxu0 0
  %8826 = vmatmul.mubr.bf16.gmra.mrb[0].mxu0 %v8769
  %v8827 = vpop.f32.mrb[0].mxu0
  %v8828 = vadd.f32 0.0, %v8827
  %v8829 = vpop.f32.mrb[0].mxu0
  %v8830 = vpop.f32.mrb[0].mxu0
  %v8831 = vadd.f32 0.0, %v8830
  %v8832 = vpop.f32.mrb[0].mxu0
  %8833 = vmatprep.mubr.bf16.mxu0 0
  %8834 = vmatmul.mubr.bf16.gmra.mrb[0].mxu0 %v8772
  %v8835 = vpop.f32.mrb[0].mxu0
  %v8836 = vadd.f32 0.0, %v8835
  %v8837 = vpop.f32.mrb[0].mxu0
  %v8838 = vpop.f32.mrb[0].mxu0
  %v8839 = vadd.f32 0.0, %v8838
  %v8840 = vpop.f32.mrb[0].mxu0
  %8841 = vdwg.mxu0
  %vm8842 = vcmask 39936
  %8843 = vst.msk [vmem:[#allocation2] sm:$0xff] %vm8842, 0.0
  %8844 = vst.msk [vmem:[#allocation2 + $0x50] sm:$0xff] %vm8842, 0.0
  %8845 = vst.msk [vmem:[#allocation2 + $0xa0] sm:$0xff] %vm8842, 0.0
  %8846 = vst.msk [vmem:[#allocation2 + $0xf0] sm:$0xff] %vm8842, 0.0
  %8847 = vst.msk [vmem:[#allocation2 + $0x140] sm:$0xff] %vm8842, 0.0
  %8848 = vst.msk [vmem:[#allocation2 + $0x190] sm:$0xff] %vm8842, 0.0
  %8849 = vst.msk [vmem:[#allocation2 + $0x1e0] sm:$0xff] %vm8842, 0.0
  %8850 = vst.msk [vmem:[#allocation2 + $0x230] sm:$0xff] %vm8842, 0.0
  %8859 = vrot.lane.b32.xlu0 %v8812, 5
  %v8860 = vpop.permute.xlu0 %8859
  %8861 = vrot.lane.b32.xlu0 %v8815, 5
  %v8862 = vpop.permute.xlu0 %8861
  %8863 = vrot.lane.b32.xlu0 %v8820, 5
  %v8864 = vpop.permute.xlu0 %8863
  %8865 = vrot.lane.b32.xlu0 %v8823, 5
  %v8866 = vpop.permute.xlu0 %8865
  %8867 = vrot.lane.b32.xlu0 %v8828, 5
  %v8868 = vpop.permute.xlu0 %8867
  %8869 = vrot.lane.b32.xlu0 %v8831, 5
  %v8870 = vpop.permute.xlu0 %8869
  %8871 = vrot.lane.b32.xlu0 %v8836, 5
  %v8872 = vpop.permute.xlu0 %8871
  %8873 = vrot.lane.b32.xlu0 %v8839, 5
  %v8874 = vpop.permute.xlu0 %8873
  %vm8883 = vcmask 171048
  %8884 = vst.msk [vmem:[#allocation2] sm:$0xff] %vm8883, %v8860
  %8885 = vst.msk [vmem:[#allocation2 + $0x50] sm:$0xff] %vm8883, %v8862
  %8886 = vst.msk [vmem:[#allocation2 + $0xa0] sm:$0xff] %vm8883, %v8864
  %8887 = vst.msk [vmem:[#allocation2 + $0xf0] sm:$0xff] %vm8883, %v8866
  %8888 = vst.msk [vmem:[#allocation2 + $0x140] sm:$0xff] %vm8883, %v8868
  %8889 = vst.msk [vmem:[#allocation2 + $0x190] sm:$0xff] %vm8883, %v8870
  %8890 = vst.msk [vmem:[#allocation2 + $0x1e0] sm:$0xff] %vm8883, %v8872
  %8891 = vst.msk [vmem:[#allocation2 + $0x230] sm:$0xff] %vm8883, %v8874
  %vm8892 = vcmask 212136
  %8893 = vst.msk [vmem:[#allocation2] sm:$0xff] %vm8892, 0.0
  %8894 = vst.msk [vmem:[#allocation2 + $0x50] sm:$0xff] %vm8892, 0.0
  %8895 = vst.msk [vmem:[#allocation2 + $0xa0] sm:$0xff] %vm8892, 0.0
  %8896 = vst.msk [vmem:[#allocation2 + $0xf0] sm:$0xff] %vm8892, 0.0
  %8897 = vst.msk [vmem:[#allocation2 + $0x140] sm:$0xff] %vm8892, 0.0
  %8898 = vst.msk [vmem:[#allocation2 + $0x190] sm:$0xff] %vm8892, 0.0
  %8899 = vst.msk [vmem:[#allocation2 + $0x1e0] sm:$0xff] %vm8892, 0.0
  %8900 = vst.msk [vmem:[#allocation2 + $0x230] sm:$0xff] %vm8892, 0.0
  %v8901 = vld [vmem:[#allocation2] sm:$0xff]
  %v8902 = vld [vmem:[#allocation2 + $0x50] sm:$0xff]
  %v8903 = vld [vmem:[#allocation2 + $0xa0] sm:$0xff]
  %v8904 = vld [vmem:[#allocation2 + $0xf0] sm:$0xff]
  %v8905 = vld [vmem:[#allocation2 + $0x140] sm:$0xff]
  %v8906 = vld [vmem:[#allocation2 + $0x190] sm:$0xff]
  %v8907 = vld [vmem:[#allocation2 + $0x1e0] sm:$0xff]
  %v8908 = vld [vmem:[#allocation2 + $0x230] sm:$0xff]
  %8917 = vrot.lane.b32.xlu0 %v8901, 127
  %v8918 = vpop.permute.xlu0 %8917
  %8919 = vrot.lane.b32.xlu0 %v8902, 127
  %v8920 = vpop.permute.xlu0 %8919
  %8921 = vrot.lane.b32.xlu0 %v8903, 127
  %v8922 = vpop.permute.xlu0 %8921
  %8923 = vrot.lane.b32.xlu0 %v8904, 127
  %v8924 = vpop.permute.xlu0 %8923
  %8925 = vrot.lane.b32.xlu0 %v8905, 127
  %v8926 = vpop.permute.xlu0 %8925
  %8927 = vrot.lane.b32.xlu0 %v8906, 127
  %v8928 = vpop.permute.xlu0 %8927
  %8929 = vrot.lane.b32.xlu0 %v8907, 127
  %v8930 = vpop.permute.xlu0 %8929
  %8931 = vrot.lane.b32.xlu0 %v8908, 127
  %v8932 = vpop.permute.xlu0 %8931
  %8941 = vrot.lane.b32.xlu0 %v8901, 126
  %v8942 = vpop.permute.xlu0 %8941
  %8943 = vrot.lane.b32.xlu0 %v8902, 126
  %v8944 = vpop.permute.xlu0 %8943
  %8945 = vrot.lane.b32.xlu0 %v8903, 126
  %v8946 = vpop.permute.xlu0 %8945
  %8947 = vrot.lane.b32.xlu0 %v8904, 126
  %v8948 = vpop.permute.xlu0 %8947
  %8949 = vrot.lane.b32.xlu0 %v8905, 126
  %v8950 = vpop.permute.xlu0 %8949
  %8951 = vrot.lane.b32.xlu0 %v8906, 126
  %v8952 = vpop.permute.xlu0 %8951
  %8953 = vrot.lane.b32.xlu0 %v8907, 126
  %v8954 = vpop.permute.xlu0 %8953
  %8955 = vrot.lane.b32.xlu0 %v8908, 126
  %v8956 = vpop.permute.xlu0 %8955
  %8965 = vrot.lane.b32.xlu0 %v8901, 124
  %v8966 = vpop.permute.xlu0 %8965
  %8967 = vrot.lane.b32.xlu0 %v8902, 124
  %v8968 = vpop.permute.xlu0 %8967
  %8969 = vrot.lane.b32.xlu0 %v8903, 124
  %v8970 = vpop.permute.xlu0 %8969
  %8971 = vrot.lane.b32.xlu0 %v8904, 124
  %v8972 = vpop.permute.xlu0 %8971
  %8973 = vrot.lane.b32.xlu0 %v8905, 124
  %v8974 = vpop.permute.xlu0 %8973
  %8975 = vrot.lane.b32.xlu0 %v8906, 124
  %v8976 = vpop.permute.xlu0 %8975
  %8977 = vrot.lane.b32.xlu0 %v8907, 124
  %v8978 = vpop.permute.xlu0 %8977
  %8979 = vrot.lane.b32.xlu0 %v8908, 124
  %v8980 = vpop.permute.xlu0 %8979
  %8989 = vrot.lane.b32.xlu0 %v8901, 123
  %v8990 = vpop.permute.xlu0 %8989
  %8991 = vrot.lane.b32.xlu0 %v8902, 123
  %v8992 = vpop.permute.xlu0 %8991
  %8993 = vrot.lane.b32.xlu0 %v8903, 123
  %v8994 = vpop.permute.xlu0 %8993
  %8995 = vrot.lane.b32.xlu0 %v8904, 123
  %v8996 = vpop.permute.xlu0 %8995
  %8997 = vrot.lane.b32.xlu0 %v8905, 123
  %v8998 = vpop.permute.xlu0 %8997
  %8999 = vrot.lane.b32.xlu0 %v8906, 123
  %v9000 = vpop.permute.xlu0 %8999
  %9001 = vrot.lane.b32.xlu0 %v8907, 123
  %v9002 = vpop.permute.xlu0 %9001
  %9003 = vrot.lane.b32.xlu0 %v8908, 123
  %v9004 = vpop.permute.xlu0 %9003
  %9013 = vrot.lane.b32.xlu0 %v8901, 122
  %v9014 = vpop.permute.xlu0 %9013
  %9015 = vrot.lane.b32.xlu0 %v8902, 122
  %v9016 = vpop.permute.xlu0 %9015
  %9017 = vrot.lane.b32.xlu0 %v8903, 122
  %v9018 = vpop.permute.xlu0 %9017
  %9019 = vrot.lane.b32.xlu0 %v8904, 122
  %v9020 = vpop.permute.xlu0 %9019
  %9021 = vrot.lane.b32.xlu0 %v8905, 122
  %v9022 = vpop.permute.xlu0 %9021
  %9023 = vrot.lane.b32.xlu0 %v8906, 122
  %v9024 = vpop.permute.xlu0 %9023
  %9025 = vrot.lane.b32.xlu0 %v8907, 122
  %v9026 = vpop.permute.xlu0 %9025
  %9027 = vrot.lane.b32.xlu0 %v8908, 122
  %v9028 = vpop.permute.xlu0 %9027
  %9037 = vrot.lane.b32.xlu0 %v8901, 120
  %v9038 = vpop.permute.xlu0 %9037
  %9039 = vrot.lane.b32.xlu0 %v8902, 120
  %v9040 = vpop.permute.xlu0 %9039
  %9041 = vrot.lane.b32.xlu0 %v8903, 120
  %v9042 = vpop.permute.xlu0 %9041
  %9043 = vrot.lane.b32.xlu0 %v8904, 120
  %v9044 = vpop.permute.xlu0 %9043
  %9045 = vrot.lane.b32.xlu0 %v8905, 120
  %v9046 = vpop.permute.xlu0 %9045
  %9047 = vrot.lane.b32.xlu0 %v8906, 120
  %v9048 = vpop.permute.xlu0 %9047
  %9049 = vrot.lane.b32.xlu0 %v8907, 120
  %v9050 = vpop.permute.xlu0 %9049
  %9051 = vrot.lane.b32.xlu0 %v8908, 120
  %v9052 = vpop.permute.xlu0 %9051
  %9061 = vrot.lane.b32.xlu0 %v8901, 119
  %v9062 = vpop.permute.xlu0 %9061
  %9063 = vrot.lane.b32.xlu0 %v8902, 119
  %v9064 = vpop.permute.xlu0 %9063
  %9065 = vrot.lane.b32.xlu0 %v8903, 119
  %v9066 = vpop.permute.xlu0 %9065
  %9067 = vrot.lane.b32.xlu0 %v8904, 119
  %v9068 = vpop.permute.xlu0 %9067
  %9069 = vrot.lane.b32.xlu0 %v8905, 119
  %v9070 = vpop.permute.xlu0 %9069
  %9071 = vrot.lane.b32.xlu0 %v8906, 119
  %v9072 = vpop.permute.xlu0 %9071
  %9073 = vrot.lane.b32.xlu0 %v8907, 119
  %v9074 = vpop.permute.xlu0 %9073
  %9075 = vrot.lane.b32.xlu0 %v8908, 119
  %v9076 = vpop.permute.xlu0 %9075
  %9085 = vrot.lane.b32.xlu0 %v8901, 118
  %v9086 = vpop.permute.xlu0 %9085
  %9087 = vrot.lane.b32.xlu0 %v8902, 118
  %v9088 = vpop.permute.xlu0 %9087
  %9089 = vrot.lane.b32.xlu0 %v8903, 118
  %v9090 = vpop.permute.xlu0 %9089
  %9091 = vrot.lane.b32.xlu0 %v8904, 118
  %v9092 = vpop.permute.xlu0 %9091
  %9093 = vrot.lane.b32.xlu0 %v8905, 118
  %v9094 = vpop.permute.xlu0 %9093
  %9095 = vrot.lane.b32.xlu0 %v8906, 118
  %v9096 = vpop.permute.xlu0 %9095
  %9097 = vrot.lane.b32.xlu0 %v8907, 118
  %v9098 = vpop.permute.xlu0 %9097
  %9099 = vrot.lane.b32.xlu0 %v8908, 118
  %v9100 = vpop.permute.xlu0 %9099
  %v9109 = vpack.c.bf16 %v8902, %v8901
  %v9110 = vpack.c.bf16 %v8904, %v8903
  %v9111 = vpack.c.bf16 %v8906, %v8905
  %v9112 = vpack.c.bf16 %v8908, %v8907
  %v9113 = vpack.c.bf16 %v8920, %v8918
  %v9114 = vpack.c.bf16 %v8924, %v8922
  %v9115 = vpack.c.bf16 %v8928, %v8926
  %v9116 = vpack.c.bf16 %v8932, %v8930
  %v9117 = vpack.c.bf16 %v8944, %v8942
  %v9118 = vpack.c.bf16 %v8948, %v8946
  %v9119 = vpack.c.bf16 %v8952, %v8950
  %v9120 = vpack.c.bf16 %v8956, %v8954
  %v9121 = vpack.c.bf16 %v8968, %v8966
  %v9122 = vpack.c.bf16 %v8972, %v8970
  %v9123 = vpack.c.bf16 %v8976, %v8974
  %v9124 = vpack.c.bf16 %v8980, %v8978
  %v9125 = vpack.c.bf16 %v8992, %v8990
  %v9126 = vpack.c.bf16 %v8996, %v8994
  %v9127 = vpack.c.bf16 %v9000, %v8998
  %v9128 = vpack.c.bf16 %v9004, %v9002
  %v9129 = vpack.c.bf16 %v9016, %v9014
  %v9130 = vpack.c.bf16 %v9020, %v9018
  %v9131 = vpack.c.bf16 %v9024, %v9022
  %v9132 = vpack.c.bf16 %v9028, %v9026
  %v9133 = vpack.c.bf16 %v9040, %v9038
  %v9134 = vpack.c.bf16 %v9044, %v9042
  %v9135 = vpack.c.bf16 %v9048, %v9046
  %v9136 = vpack.c.bf16 %v9052, %v9050
  %v9137 = vpack.c.bf16 %v9064, %v9062
  %v9138 = vpack.c.bf16 %v9068, %v9066
  %v9139 = vpack.c.bf16 %v9072, %v9070
  %v9140 = vpack.c.bf16 %v9076, %v9074
  %v9141 = vpack.c.bf16 %v9088, %v9086
  %v9142 = vpack.c.bf16 %v9092, %v9090
  %v9143 = vpack.c.bf16 %v9096, %v9094
  %v9144 = vpack.c.bf16 %v9100, %v9098
  %v9145 = vld [vmem:[%s51] sm:$0xff]
  %v9146 = vld [vmem:[%s51 + $0x8] sm:$0xff]
  %v9147 = vld [vmem:[%s51 + $0x10] sm:$0xf]
  %v9148 = vld [vmem:[%s51 + $0x14] sm:$0xff]
  %v9149 = vld [vmem:[%s51 + $0x1c] sm:$0xff]
  %v9150 = vld [vmem:[%s51 + $0x24] sm:$0xf]
  %v9151 = vld [vmem:[%s51 + $0x28] sm:$0xff]
  %v9152 = vld [vmem:[%s51 + $0x30] sm:$0xff]
  %v9153 = vld [vmem:[%s51 + $0x38] sm:$0xf]
  %v9154 = vld [vmem:[%s51 + $0x3c] sm:$0xff]
  %v9155 = vld [vmem:[%s51 + $0x44] sm:$0xff]
  %v9156 = vld [vmem:[%s51 + $0x4c] sm:$0xf]
  %v9157 = vld [vmem:[%s51 + $0x50] sm:$0xff]
  %v9158 = vld [vmem:[%s51 + $0x58] sm:$0xff]
  %v9159 = vld [vmem:[%s51 + $0x60] sm:$0xf]
  %v9160 = vld [vmem:[%s51 + $0x64] sm:$0xff]
  %v9161 = vld [vmem:[%s51 + $0x6c] sm:$0xff]
  %v9162 = vld [vmem:[%s51 + $0x74] sm:$0xf]
  %v9163 = vld [vmem:[%s51 + $0x78] sm:$0xff]
  %v9164 = vld [vmem:[%s51 + $0x80] sm:$0xff]
  %v9165 = vld [vmem:[%s51 + $0x88] sm:$0xf]
  %v9166 = vld [vmem:[%s51 + $0x8c] sm:$0xff]
  %v9167 = vld [vmem:[%s51 + $0x94] sm:$0xff]
  %v9168 = vld [vmem:[%s51 + $0x9c] sm:$0xf]
  %v9169 = vld [vmem:[%s53] sm:$0xff]
  %v9170 = vld [vmem:[%s53 + $0x8] sm:$0xff]
  %v9171 = vld [vmem:[%s53 + $0x10] sm:$0xff]
  %v9172 = vld [vmem:[%s53 + $0x18] sm:$0xff]
  %v9173 = vld [vmem:[%s53 + $0x20] sm:$0xff]
  %v9174 = vld [vmem:[%s53 + $0x28] sm:$0xff]
  %v9175 = vld [vmem:[%s53 + $0x30] sm:$0xff]
  %v9176 = vld [vmem:[%s53 + $0x38] sm:$0xff]
  %9178 = vset.pattern.permute.xlu0 0
  %9179 = vperm.xlu0 %9178, %v9169
  %v9180 = vpop.permute.xlu0 %9179
  %9183 = vset.pattern.permute.xlu0 0
  %9184 = vperm.xlu0 %9183, %v9170
  %v9185 = vpop.permute.xlu0 %9184
  %9188 = vset.pattern.permute.xlu0 0
  %9189 = vperm.xlu0 %9188, %v9171
  %v9190 = vpop.permute.xlu0 %9189
  %9193 = vset.pattern.permute.xlu0 0
  %9194 = vperm.xlu0 %9193, %v9172
  %v9195 = vpop.permute.xlu0 %9194
  %9198 = vset.pattern.permute.xlu0 0
  %9199 = vperm.xlu0 %9198, %v9173
  %v9200 = vpop.permute.xlu0 %9199
  %9203 = vset.pattern.permute.xlu0 0
  %9204 = vperm.xlu0 %9203, %v9174
  %v9205 = vpop.permute.xlu0 %9204
  %9208 = vset.pattern.permute.xlu0 0
  %9209 = vperm.xlu0 %9208, %v9175
  %v9210 = vpop.permute.xlu0 %9209
  %9213 = vset.pattern.permute.xlu0 0
  %9214 = vperm.xlu0 %9213, %v9176
  %v9215 = vpop.permute.xlu0 %9214
  %v9241 = vunpack.c.l.b16 %v9145
  %v9242 = vunpack.c.h.b16 %v9145
  %v9243 = vunpack.c.l.b16 %v9146
  %v9244 = vunpack.c.h.b16 %v9146
  %v9245 = vunpack.c.l.b16 %v9147
  %v9246 = vunpack.c.l.b16 %v9148
  %v9247 = vunpack.c.h.b16 %v9148
  %v9248 = vunpack.c.l.b16 %v9149
  %v9249 = vunpack.c.h.b16 %v9149
  %v9250 = vunpack.c.l.b16 %v9150
  %v9251 = vunpack.c.l.b16 %v9151
  %v9252 = vunpack.c.h.b16 %v9151
  %v9253 = vunpack.c.l.b16 %v9152
  %v9254 = vunpack.c.h.b16 %v9152
  %v9255 = vunpack.c.l.b16 %v9153
  %v9256 = vunpack.c.l.b16 %v9154
  %v9257 = vunpack.c.h.b16 %v9154
  %v9258 = vunpack.c.l.b16 %v9155
  %v9259 = vunpack.c.h.b16 %v9155
  %v9260 = vunpack.c.l.b16 %v9156
  %v9261 = vunpack.c.l.b16 %v9157
  %v9262 = vunpack.c.h.b16 %v9157
  %v9263 = vunpack.c.l.b16 %v9158
  %v9264 = vunpack.c.h.b16 %v9158
  %v9265 = vunpack.c.l.b16 %v9159
  %v9266 = vunpack.c.l.b16 %v9160
  %v9267 = vunpack.c.h.b16 %v9160
  %v9268 = vunpack.c.l.b16 %v9161
  %v9269 = vunpack.c.h.b16 %v9161
  %v9270 = vunpack.c.l.b16 %v9162
  %v9271 = vunpack.c.l.b16 %v9163
  %v9272 = vunpack.c.h.b16 %v9163
  %v9273 = vunpack.c.l.b16 %v9164
  %v9274 = vunpack.c.h.b16 %v9164
  %v9275 = vunpack.c.l.b16 %v9165
  %v9276 = vunpack.c.l.b16 %v9166
  %v9277 = vunpack.c.h.b16 %v9166
  %v9278 = vunpack.c.l.b16 %v9167
  %v9279 = vunpack.c.h.b16 %v9167
  %v9280 = vunpack.c.l.b16 %v9168
  %v9281 = vpack.c.b16 %v9246, %v9241
  %v9282 = vpack.c.b16 %v9247, %v9242
  %v9283 = vpack.c.b16 %v9248, %v9243
  %v9284 = vpack.c.b16 %v9249, %v9244
  %v9285 = vpack.c.b16 %v9250, %v9245
  %v9286 = vpack.c.b16 %v9256, %v9251
  %v9287 = vpack.c.b16 %v9257, %v9252
  %v9288 = vpack.c.b16 %v9258, %v9253
  %v9289 = vpack.c.b16 %v9259, %v9254
  %v9290 = vpack.c.b16 %v9260, %v9255
  %v9291 = vpack.c.b16 %v9266, %v9261
  %v9292 = vpack.c.b16 %v9267, %v9262
  %v9293 = vpack.c.b16 %v9268, %v9263
  %v9294 = vpack.c.b16 %v9269, %v9264
  %v9295 = vpack.c.b16 %v9270, %v9265
  %v9296 = vpack.c.b16 %v9276, %v9271
  %v9297 = vpack.c.b16 %v9277, %v9272
  %v9298 = vpack.c.b16 %v9278, %v9273
  %v9299 = vpack.c.b16 %v9279, %v9274
  %v9300 = vpack.c.b16 %v9280, %v9275
  %v9318 = vsel %vm6995, %v9285, 0
  %v9321 = vsel %vm6995, %v9290, 0
  %v9324 = vsel %vm6995, %v9295, 0
  %v9327 = vsel %vm6995, %v9300, 0
  %9329 = vmatprep.subr.bf16.mxu0 0
  %9330 = vmatpush1.bf16.msra.mxu0 %v9109
  %9331 = vmatprep.subr.bf16.mxu0 0
  %9332 = vmatpush1.bf16.msra.mxu0 %v9110
  %9333 = vmatprep.subr.bf16.mxu0 0
  %9334 = vmatpush1.bf16.msra.mxu0 %v9111
  %9335 = vmatprep.subr.bf16.mxu0 0
  %9336 = vmatpush1.bf16.msra.mxu0 %v9112
  %9337 = vmatprep.subr.bf16.mxu0 0
  %9338 = vmatpush1.bf16.msra.mxu0 %v9113
  %9339 = vmatprep.subr.bf16.mxu0 0
  %9340 = vmatpush1.bf16.msra.mxu0 %v9114
  %9341 = vmatprep.subr.bf16.mxu0 0
  %9342 = vmatpush1.bf16.msra.mxu0 %v9115
  %9343 = vmatprep.subr.bf16.mxu0 0
  %9344 = vmatpush1.bf16.msra.mxu0 %v9116
  %9345 = vmatprep.subr.bf16.mxu0 0
  %9346 = vmatpush1.bf16.msra.mxu0 %v9117
  %9347 = vmatprep.subr.bf16.mxu0 0
  %9348 = vmatpush1.bf16.msra.mxu0 %v9118
  %9349 = vmatprep.subr.bf16.mxu0 0
  %9350 = vmatpush1.bf16.msra.mxu0 %v9119
  %9351 = vmatprep.subr.bf16.mxu0 0
  %9352 = vmatpush1.bf16.msra.mxu0 %v9120
  %9353 = vmatprep.subr.bf16.mxu0 0
  %9354 = vmatpush1.bf16.msra.mxu0 %v9121
  %9355 = vmatprep.subr.bf16.mxu0 0
  %9356 = vmatpush1.bf16.msra.mxu0 %v9122
  %9357 = vmatprep.subr.bf16.mxu0 0
  %9358 = vmatpush1.bf16.msra.mxu0 %v9123
  %9359 = vmatprep.subr.bf16.mxu0 0
  %9360 = vmatpush1.bf16.msra.mxu0 %v9124
  %9361 = vmatprep.mubr.bf16.mxu0 %v9282
  %9362 = vmatmul.mubr.bf16.gmra.mrb[0].mxu0 %v9281
  %v9363 = vpop.f32.mrb[0].mxu0
  %v9364 = vadd.f32 %v9180, %v9363
  %v9365 = vpop.f32.mrb[0].mxu0
  %v9366 = vpop.f32.mrb[0].mxu0
  %v9367 = vadd.f32 %v9185, %v9366
  %v9368 = vpop.f32.mrb[0].mxu0
  %9369 = vmatprep.mubr.bf16.mxu0 %v9287
  %9370 = vmatmul.mubr.bf16.gmra.mrb[0].mxu0 %v9286
  %v9371 = vpop.f32.mrb[0].mxu0
  %v9372 = vadd.f32 %v9190, %v9371
  %v9373 = vpop.f32.mrb[0].mxu0
  %v9374 = vpop.f32.mrb[0].mxu0
  %v9375 = vadd.f32 %v9195, %v9374
  %v9376 = vpop.f32.mrb[0].mxu0
  %9377 = vmatprep.mubr.bf16.mxu0 %v9292
  %9378 = vmatmul.mubr.bf16.gmra.mrb[0].mxu0 %v9291
  %v9379 = vpop.f32.mrb[0].mxu0
  %v9380 = vadd.f32 %v9200, %v9379
  %v9381 = vpop.f32.mrb[0].mxu0
  %v9382 = vpop.f32.mrb[0].mxu0
  %v9383 = vadd.f32 %v9205, %v9382
  %v9384 = vpop.f32.mrb[0].mxu0
  %9385 = vmatprep.mubr.bf16.mxu0 %v9297
  %9386 = vmatmul.mubr.bf16.gmra.mrb[0].mxu0 %v9296
  %v9387 = vpop.f32.mrb[0].mxu0
  %v9388 = vadd.f32 %v9210, %v9387
  %v9389 = vpop.f32.mrb[0].mxu0
  %v9390 = vpop.f32.mrb[0].mxu0
  %v9391 = vadd.f32 %v9215, %v9390
  %v9392 = vpop.f32.mrb[0].mxu0
  %9393 = vdwg.mxu0
  %9394 = vmatprep.subr.bf16.mxu0 0
  %9395 = vmatpush1.bf16.msra.mxu0 %v9125
  %9396 = vmatprep.subr.bf16.mxu0 0
  %9397 = vmatpush1.bf16.msra.mxu0 %v9126
  %9398 = vmatprep.subr.bf16.mxu0 0
  %9399 = vmatpush1.bf16.msra.mxu0 %v9127
  %9400 = vmatprep.subr.bf16.mxu0 0
  %9401 = vmatpush1.bf16.msra.mxu0 %v9128
  %9402 = vmatprep.subr.bf16.mxu0 0
  %9403 = vmatpush1.bf16.msra.mxu0 %v9129
  %9404 = vmatprep.subr.bf16.mxu0 0
  %9405 = vmatpush1.bf16.msra.mxu0 %v9130
  %9406 = vmatprep.subr.bf16.mxu0 0
  %9407 = vmatpush1.bf16.msra.mxu0 %v9131
  %9408 = vmatprep.subr.bf16.mxu0 0
  %9409 = vmatpush1.bf16.msra.mxu0 %v9132
  %9410 = vmatprep.subr.bf16.mxu0 0
  %9411 = vmatpush1.bf16.msra.mxu0 %v9133
  %9412 = vmatprep.subr.bf16.mxu0 0
  %9413 = vmatpush1.bf16.msra.mxu0 %v9134
  %9414 = vmatprep.subr.bf16.mxu0 0
  %9415 = vmatpush1.bf16.msra.mxu0 %v9135
  %9416 = vmatprep.subr.bf16.mxu0 0
  %9417 = vmatpush1.bf16.msra.mxu0 %v9136
  %9418 = vmatprep.subr.bf16.mxu0 0
  %9419 = vmatpush1.bf16.msra.mxu0 %v9137
  %9420 = vmatprep.subr.bf16.mxu0 0
  %9421 = vmatpush1.bf16.msra.mxu0 %v9138
  %9422 = vmatprep.subr.bf16.mxu0 0
  %9423 = vmatpush1.bf16.msra.mxu0 %v9139
  %9424 = vmatprep.subr.bf16.mxu0 0
  %9425 = vmatpush1.bf16.msra.mxu0 %v9140
  %9426 = vmatprep.mubr.bf16.mxu0 %v9284
  %9427 = vmatmul.mubr.bf16.gmra.mrb[0].mxu0 %v9283
  %v9428 = vpop.f32.mrb[0].mxu0
  %v9429 = vadd.f32 %v9364, %v9428
  %v9430 = vpop.f32.mrb[0].mxu0
  %v9431 = vpop.f32.mrb[0].mxu0
  %v9432 = vadd.f32 %v9367, %v9431
  %v9433 = vpop.f32.mrb[0].mxu0
  %9434 = vmatprep.mubr.bf16.mxu0 %v9289
  %9435 = vmatmul.mubr.bf16.gmra.mrb[0].mxu0 %v9288
  %v9436 = vpop.f32.mrb[0].mxu0
  %v9437 = vadd.f32 %v9372, %v9436
  %v9438 = vpop.f32.mrb[0].mxu0
  %v9439 = vpop.f32.mrb[0].mxu0
  %v9440 = vadd.f32 %v9375, %v9439
  %v9441 = vpop.f32.mrb[0].mxu0
  %9442 = vmatprep.mubr.bf16.mxu0 %v9294
  %9443 = vmatmul.mubr.bf16.gmra.mrb[0].mxu0 %v9293
  %v9444 = vpop.f32.mrb[0].mxu0
  %v9445 = vadd.f32 %v9380, %v9444
  %v9446 = vpop.f32.mrb[0].mxu0
  %v9447 = vpop.f32.mrb[0].mxu0
  %v9448 = vadd.f32 %v9383, %v9447
  %v9449 = vpop.f32.mrb[0].mxu0
  %9450 = vmatprep.mubr.bf16.mxu0 %v9299
  %9451 = vmatmul.mubr.bf16.gmra.mrb[0].mxu0 %v9298
  %v9452 = vpop.f32.mrb[0].mxu0
  %v9453 = vadd.f32 %v9388, %v9452
  %v9454 = vpop.f32.mrb[0].mxu0
  %v9455 = vpop.f32.mrb[0].mxu0
  %v9456 = vadd.f32 %v9391, %v9455
  %v9457 = vpop.f32.mrb[0].mxu0
  %9458 = vdwg.mxu0
  %9459 = vmatprep.subr.bf16.mxu0 0
  %9460 = vmatpush1.bf16.msra.mxu0 %v9141
  %9461 = vmatprep.subr.bf16.mxu0 0
  %9462 = vmatpush1.bf16.msra.mxu0 %v9142
  %9463 = vmatprep.subr.bf16.mxu0 0
  %9464 = vmatpush1.bf16.msra.mxu0 %v9143
  %9465 = vmatprep.subr.bf16.mxu0 0
  %9466 = vmatpush1.bf16.msra.mxu0 %v9144
  %9467 = vmatprep.subr.bf16.mxu0 0
  %9468 = vmatpush1.bf16.msra.mxu0 0
  %9469 = vmatprep.subr.bf16.mxu0 0
  %9470 = vmatpush1.bf16.msra.mxu0 0
  %9471 = vmatprep.subr.bf16.mxu0 0
  %9472 = vmatpush1.bf16.msra.mxu0 0
  %9473 = vmatprep.subr.bf16.mxu0 0
  %9474 = vmatpush1.bf16.msra.mxu0 0
  %9475 = vmatprep.subr.bf16.mxu0 0
  %9476 = vmatpush1.bf16.msra.mxu0 0
  %9477 = vmatprep.subr.bf16.mxu0 0
  %9478 = vmatpush1.bf16.msra.mxu0 0
  %9479 = vmatprep.subr.bf16.mxu0 0
  %9480 = vmatpush1.bf16.msra.mxu0 0
  %9481 = vmatprep.subr.bf16.mxu0 0
  %9482 = vmatpush1.bf16.msra.mxu0 0
  %9483 = vmatprep.subr.bf16.mxu0 0
  %9484 = vmatpush1.bf16.msra.mxu0 0
  %9485 = vmatprep.subr.bf16.mxu0 0
  %9486 = vmatpush1.bf16.msra.mxu0 0
  %9487 = vmatprep.subr.bf16.mxu0 0
  %9488 = vmatpush1.bf16.msra.mxu0 0
  %9489 = vmatprep.subr.bf16.mxu0 0
  %9490 = vmatpush1.bf16.msra.mxu0 0
  %9491 = vmatprep.mubr.bf16.mxu0 0
  %9492 = vmatmul.mubr.bf16.gmra.mrb[0].mxu0 %v9318
  %v9493 = vpop.f32.mrb[0].mxu0
  %v9494 = vadd.f32 %v9429, %v9493
  %v9495 = vpop.f32.mrb[0].mxu0
  %v9496 = vpop.f32.mrb[0].mxu0
  %v9497 = vadd.f32 %v9432, %v9496
  %v9498 = vpop.f32.mrb[0].mxu0
  %9499 = vmatprep.mubr.bf16.mxu0 0
  %9500 = vmatmul.mubr.bf16.gmra.mrb[0].mxu0 %v9321
  %v9501 = vpop.f32.mrb[0].mxu0
  %v9502 = vadd.f32 %v9437, %v9501
  %v9503 = vpop.f32.mrb[0].mxu0
  %v9504 = vpop.f32.mrb[0].mxu0
  %v9505 = vadd.f32 %v9440, %v9504
  %v9506 = vpop.f32.mrb[0].mxu0
  %9507 = vmatprep.mubr.bf16.mxu0 0
  %9508 = vmatmul.mubr.bf16.gmra.mrb[0].mxu0 %v9324
  %v9509 = vpop.f32.mrb[0].mxu0
  %v9510 = vadd.f32 %v9445, %v9509
  %v9511 = vpop.f32.mrb[0].mxu0
  %v9512 = vpop.f32.mrb[0].mxu0
  %v9513 = vadd.f32 %v9448, %v9512
  %v9514 = vpop.f32.mrb[0].mxu0
  %9515 = vmatprep.mubr.bf16.mxu0 0
  %9516 = vmatmul.mubr.bf16.gmra.mrb[0].mxu0 %v9327
  %v9517 = vpop.f32.mrb[0].mxu0
  %v9518 = vadd.f32 %v9453, %v9517
  %v9519 = vpop.f32.mrb[0].mxu0
  %v9520 = vpop.f32.mrb[0].mxu0
  %v9521 = vadd.f32 %v9456, %v9520
  %v9522 = vpop.f32.mrb[0].mxu0
  %9523 = vdwg.mxu0
  %v9524 = vmax.f32 %v9494, 0.0
  %v9525 = vmax.f32 %v9497, 0.0
  %v9526 = vmax.f32 %v9502, 0.0
  %v9527 = vmax.f32 %v9505, 0.0
  %v9528 = vmax.f32 %v9510, 0.0
  %v9529 = vmax.f32 %v9513, 0.0
  %v9530 = vmax.f32 %v9518, 0.0
  %v9531 = vmax.f32 %v9521, 0.0
  %v9532 = vld [vmem:[%s75] sm:$0x1]
  %v9534 = vlaneseq
  %v9535 = vshrl.u32 %v9534, 7
  %v9536 = vsub.s32 0, %v9535
  %v9537 = vrot.slane %v9532, %v9536
  %v9539 = vmul.f32 %v9524, %v9537
  %v9540 = vmul.f32 %v9525, %v9537
  %v9541 = vmul.f32 %v9526, %v9537
  %v9542 = vmul.f32 %v9527, %v9537
  %v9543 = vmul.f32 %v9528, %v9537
  %v9544 = vmul.f32 %v9529, %v9537
  %v9545 = vmul.f32 %v9530, %v9537
  %v9546 = vmul.f32 %v9531, %v9537
  %9547 = vst.msk [vmem:[#allocation2] sm:$0xff] %vm8842, 0.0
  %9548 = vst.msk [vmem:[#allocation2 + $0x50] sm:$0xff] %vm8842, 0.0
  %9549 = vst.msk [vmem:[#allocation2 + $0xa0] sm:$0xff] %vm8842, 0.0
  %9550 = vst.msk [vmem:[#allocation2 + $0xf0] sm:$0xff] %vm8842, 0.0
  %9551 = vst.msk [vmem:[#allocation2 + $0x140] sm:$0xff] %vm8842, 0.0
  %9552 = vst.msk [vmem:[#allocation2 + $0x190] sm:$0xff] %vm8842, 0.0
  %9553 = vst.msk [vmem:[#allocation2 + $0x1e0] sm:$0xff] %vm8842, 0.0
  %9554 = vst.msk [vmem:[#allocation2 + $0x230] sm:$0xff] %vm8842, 0.0
  %9563 = vrot.lane.b32.xlu0 %v9539, 5
  %v9564 = vpop.permute.xlu0 %9563
  %9565 = vrot.lane.b32.xlu0 %v9540, 5
  %v9566 = vpop.permute.xlu0 %9565
  %9567 = vrot.lane.b32.xlu0 %v9541, 5
  %v9568 = vpop.permute.xlu0 %9567
  %9569 = vrot.lane.b32.xlu0 %v9542, 5
  %v9570 = vpop.permute.xlu0 %9569
  %9571 = vrot.lane.b32.xlu0 %v9543, 5
  %v9572 = vpop.permute.xlu0 %9571
  %9573 = vrot.lane.b32.xlu0 %v9544, 5
  %v9574 = vpop.permute.xlu0 %9573
  %9575 = vrot.lane.b32.xlu0 %v9545, 5
  %v9576 = vpop.permute.xlu0 %9575
  %9577 = vrot.lane.b32.xlu0 %v9546, 5
  %v9578 = vpop.permute.xlu0 %9577
  %9587 = vst.msk [vmem:[#allocation2] sm:$0xff] %vm8883, %v9564
  %9588 = vst.msk [vmem:[#allocation2 + $0x50] sm:$0xff] %vm8883, %v9566
  %9589 = vst.msk [vmem:[#allocation2 + $0xa0] sm:$0xff] %vm8883, %v9568
  %9590 = vst.msk [vmem:[#allocation2 + $0xf0] sm:$0xff] %vm8883, %v9570
  %9591 = vst.msk [vmem:[#allocation2 + $0x140] sm:$0xff] %vm8883, %v9572
  %9592 = vst.msk [vmem:[#allocation2 + $0x190] sm:$0xff] %vm8883, %v9574
  %9593 = vst.msk [vmem:[#allocation2 + $0x1e0] sm:$0xff] %vm8883, %v9576
  %9594 = vst.msk [vmem:[#allocation2 + $0x230] sm:$0xff] %vm8883, %v9578
  %9595 = vst.msk [vmem:[#allocation2] sm:$0xff] %vm8892, 0.0
  %9596 = vst.msk [vmem:[#allocation2 + $0x50] sm:$0xff] %vm8892, 0.0
  %9597 = vst.msk [vmem:[#allocation2 + $0xa0] sm:$0xff] %vm8892, 0.0
  %9598 = vst.msk [vmem:[#allocation2 + $0xf0] sm:$0xff] %vm8892, 0.0
  %9599 = vst.msk [vmem:[#allocation2 + $0x140] sm:$0xff] %vm8892, 0.0
  %9600 = vst.msk [vmem:[#allocation2 + $0x190] sm:$0xff] %vm8892, 0.0
  %9601 = vst.msk [vmem:[#allocation2 + $0x1e0] sm:$0xff] %vm8892, 0.0
  %9602 = vst.msk [vmem:[#allocation2 + $0x230] sm:$0xff] %vm8892, 0.0
  %v9603 = vld [vmem:[#allocation2] sm:$0xff]
  %v9604 = vld [vmem:[#allocation2 + $0x50] sm:$0xff]
  %v9605 = vld [vmem:[#allocation2 + $0xa0] sm:$0xff]
  %v9606 = vld [vmem:[#allocation2 + $0xf0] sm:$0xff]
  %v9607 = vld [vmem:[#allocation2 + $0x140] sm:$0xff]
  %v9608 = vld [vmem:[#allocation2 + $0x190] sm:$0xff]
  %v9609 = vld [vmem:[#allocation2 + $0x1e0] sm:$0xff]
  %v9610 = vld [vmem:[#allocation2 + $0x230] sm:$0xff]
  %9619 = vrot.lane.b32.xlu0 %v9603, 127
  %v9620 = vpop.permute.xlu0 %9619
  %9621 = vrot.lane.b32.xlu0 %v9604, 127
  %v9622 = vpop.permute.xlu0 %9621
  %9623 = vrot.lane.b32.xlu0 %v9605, 127
  %v9624 = vpop.permute.xlu0 %9623
  %9625 = vrot.lane.b32.xlu0 %v9606, 127
  %v9626 = vpop.permute.xlu0 %9625
  %9627 = vrot.lane.b32.xlu0 %v9607, 127
  %v9628 = vpop.permute.xlu0 %9627
  %9629 = vrot.lane.b32.xlu0 %v9608, 127
  %v9630 = vpop.permute.xlu0 %9629
  %9631 = vrot.lane.b32.xlu0 %v9609, 127
  %v9632 = vpop.permute.xlu0 %9631
  %9633 = vrot.lane.b32.xlu0 %v9610, 127
  %v9634 = vpop.permute.xlu0 %9633
  %9643 = vrot.lane.b32.xlu0 %v9603, 126
  %v9644 = vpop.permute.xlu0 %9643
  %9645 = vrot.lane.b32.xlu0 %v9604, 126
  %v9646 = vpop.permute.xlu0 %9645
  %9647 = vrot.lane.b32.xlu0 %v9605, 126
  %v9648 = vpop.permute.xlu0 %9647
  %9649 = vrot.lane.b32.xlu0 %v9606, 126
  %v9650 = vpop.permute.xlu0 %9649
  %9651 = vrot.lane.b32.xlu0 %v9607, 126
  %v9652 = vpop.permute.xlu0 %9651
  %9653 = vrot.lane.b32.xlu0 %v9608, 126
  %v9654 = vpop.permute.xlu0 %9653
  %9655 = vrot.lane.b32.xlu0 %v9609, 126
  %v9656 = vpop.permute.xlu0 %9655
  %9657 = vrot.lane.b32.xlu0 %v9610, 126
  %v9658 = vpop.permute.xlu0 %9657
  %9667 = vrot.lane.b32.xlu0 %v9603, 124
  %v9668 = vpop.permute.xlu0 %9667
  %9669 = vrot.lane.b32.xlu0 %v9604, 124
  %v9670 = vpop.permute.xlu0 %9669
  %9671 = vrot.lane.b32.xlu0 %v9605, 124
  %v9672 = vpop.permute.xlu0 %9671
  %9673 = vrot.lane.b32.xlu0 %v9606, 124
  %v9674 = vpop.permute.xlu0 %9673
  %9675 = vrot.lane.b32.xlu0 %v9607, 124
  %v9676 = vpop.permute.xlu0 %9675
  %9677 = vrot.lane.b32.xlu0 %v9608, 124
  %v9678 = vpop.permute.xlu0 %9677
  %9679 = vrot.lane.b32.xlu0 %v9609, 124
  %v9680 = vpop.permute.xlu0 %9679
  %9681 = vrot.lane.b32.xlu0 %v9610, 124
  %v9682 = vpop.permute.xlu0 %9681
  %9691 = vrot.lane.b32.xlu0 %v9603, 123
  %v9692 = vpop.permute.xlu0 %9691
  %9693 = vrot.lane.b32.xlu0 %v9604, 123
  %v9694 = vpop.permute.xlu0 %9693
  %9695 = vrot.lane.b32.xlu0 %v9605, 123
  %v9696 = vpop.permute.xlu0 %9695
  %9697 = vrot.lane.b32.xlu0 %v9606, 123
  %v9698 = vpop.permute.xlu0 %9697
  %9699 = vrot.lane.b32.xlu0 %v9607, 123
  %v9700 = vpop.permute.xlu0 %9699
  %9701 = vrot.lane.b32.xlu0 %v9608, 123
  %v9702 = vpop.permute.xlu0 %9701
  %9703 = vrot.lane.b32.xlu0 %v9609, 123
  %v9704 = vpop.permute.xlu0 %9703
  %9705 = vrot.lane.b32.xlu0 %v9610, 123
  %v9706 = vpop.permute.xlu0 %9705
  %9715 = vrot.lane.b32.xlu0 %v9603, 122
  %v9716 = vpop.permute.xlu0 %9715
  %9717 = vrot.lane.b32.xlu0 %v9604, 122
  %v9718 = vpop.permute.xlu0 %9717
  %9719 = vrot.lane.b32.xlu0 %v9605, 122
  %v9720 = vpop.permute.xlu0 %9719
  %9721 = vrot.lane.b32.xlu0 %v9606, 122
  %v9722 = vpop.permute.xlu0 %9721
  %9723 = vrot.lane.b32.xlu0 %v9607, 122
  %v9724 = vpop.permute.xlu0 %9723
  %9725 = vrot.lane.b32.xlu0 %v9608, 122
  %v9726 = vpop.permute.xlu0 %9725
  %9727 = vrot.lane.b32.xlu0 %v9609, 122
  %v9728 = vpop.permute.xlu0 %9727
  %9729 = vrot.lane.b32.xlu0 %v9610, 122
  %v9730 = vpop.permute.xlu0 %9729
  %9739 = vrot.lane.b32.xlu0 %v9603, 120
  %v9740 = vpop.permute.xlu0 %9739
  %9741 = vrot.lane.b32.xlu0 %v9604, 120
  %v9742 = vpop.permute.xlu0 %9741
  %9743 = vrot.lane.b32.xlu0 %v9605, 120
  %v9744 = vpop.permute.xlu0 %9743
  %9745 = vrot.lane.b32.xlu0 %v9606, 120
  %v9746 = vpop.permute.xlu0 %9745
  %9747 = vrot.lane.b32.xlu0 %v9607, 120
  %v9748 = vpop.permute.xlu0 %9747
  %9749 = vrot.lane.b32.xlu0 %v9608, 120
  %v9750 = vpop.permute.xlu0 %9749
  %9751 = vrot.lane.b32.xlu0 %v9609, 120
  %v9752 = vpop.permute.xlu0 %9751
  %9753 = vrot.lane.b32.xlu0 %v9610, 120
  %v9754 = vpop.permute.xlu0 %9753
  %9763 = vrot.lane.b32.xlu0 %v9603, 119
  %v9764 = vpop.permute.xlu0 %9763
  %9765 = vrot.lane.b32.xlu0 %v9604, 119
  %v9766 = vpop.permute.xlu0 %9765
  %9767 = vrot.lane.b32.xlu0 %v9605, 119
  %v9768 = vpop.permute.xlu0 %9767
  %9769 = vrot.lane.b32.xlu0 %v9606, 119
  %v9770 = vpop.permute.xlu0 %9769
  %9771 = vrot.lane.b32.xlu0 %v9607, 119
  %v9772 = vpop.permute.xlu0 %9771
  %9773 = vrot.lane.b32.xlu0 %v9608, 119
  %v9774 = vpop.permute.xlu0 %9773
  %9775 = vrot.lane.b32.xlu0 %v9609, 119
  %v9776 = vpop.permute.xlu0 %9775
  %9777 = vrot.lane.b32.xlu0 %v9610, 119
  %v9778 = vpop.permute.xlu0 %9777
  %9787 = vrot.lane.b32.xlu0 %v9603, 118
  %v9788 = vpop.permute.xlu0 %9787
  %9789 = vrot.lane.b32.xlu0 %v9604, 118
  %v9790 = vpop.permute.xlu0 %9789
  %9791 = vrot.lane.b32.xlu0 %v9605, 118
  %v9792 = vpop.permute.xlu0 %9791
  %9793 = vrot.lane.b32.xlu0 %v9606, 118
  %v9794 = vpop.permute.xlu0 %9793
  %9795 = vrot.lane.b32.xlu0 %v9607, 118
  %v9796 = vpop.permute.xlu0 %9795
  %9797 = vrot.lane.b32.xlu0 %v9608, 118
  %v9798 = vpop.permute.xlu0 %9797
  %9799 = vrot.lane.b32.xlu0 %v9609, 118
  %v9800 = vpop.permute.xlu0 %9799
  %9801 = vrot.lane.b32.xlu0 %v9610, 118
  %v9802 = vpop.permute.xlu0 %9801
  %v9811 = vpack.c.bf16 %v9604, %v9603
  %v9812 = vpack.c.bf16 %v9606, %v9605
  %v9813 = vpack.c.bf16 %v9608, %v9607
  %v9814 = vpack.c.bf16 %v9610, %v9609
  %v9815 = vpack.c.bf16 %v9622, %v9620
  %v9816 = vpack.c.bf16 %v9626, %v9624
  %v9817 = vpack.c.bf16 %v9630, %v9628
  %v9818 = vpack.c.bf16 %v9634, %v9632
  %v9819 = vpack.c.bf16 %v9646, %v9644
  %v9820 = vpack.c.bf16 %v9650, %v9648
  %v9821 = vpack.c.bf16 %v9654, %v9652
  %v9822 = vpack.c.bf16 %v9658, %v9656
  %v9823 = vpack.c.bf16 %v9670, %v9668
  %v9824 = vpack.c.bf16 %v9674, %v9672
  %v9825 = vpack.c.bf16 %v9678, %v9676
  %v9826 = vpack.c.bf16 %v9682, %v9680
  %v9827 = vpack.c.bf16 %v9694, %v9692
  %v9828 = vpack.c.bf16 %v9698, %v9696
  %v9829 = vpack.c.bf16 %v9702, %v9700
  %v9830 = vpack.c.bf16 %v9706, %v9704
  %v9831 = vpack.c.bf16 %v9718, %v9716
  %v9832 = vpack.c.bf16 %v9722, %v9720
  %v9833 = vpack.c.bf16 %v9726, %v9724
  %v9834 = vpack.c.bf16 %v9730, %v9728
  %v9835 = vpack.c.bf16 %v9742, %v9740
  %v9836 = vpack.c.bf16 %v9746, %v9744
  %v9837 = vpack.c.bf16 %v9750, %v9748
  %v9838 = vpack.c.bf16 %v9754, %v9752
  %v9839 = vpack.c.bf16 %v9766, %v9764
  %v9840 = vpack.c.bf16 %v9770, %v9768
  %v9841 = vpack.c.bf16 %v9774, %v9772
  %v9842 = vpack.c.bf16 %v9778, %v9776
  %v9843 = vpack.c.bf16 %v9790, %v9788
  %v9844 = vpack.c.bf16 %v9794, %v9792
  %v9845 = vpack.c.bf16 %v9798, %v9796
  %v9846 = vpack.c.bf16 %v9802, %v9800
  %v9847 = vld [vmem:[%s55] sm:$0xff]
  %v9848 = vld [vmem:[%s55 + $0x8] sm:$0xff]
  %v9849 = vld [vmem:[%s55 + $0x10] sm:$0xf]
  %v9850 = vld [vmem:[%s55 + $0x14] sm:$0xff]
  %v9851 = vld [vmem:[%s55 + $0x1c] sm:$0xff]
  %v9852 = vld [vmem:[%s55 + $0x24] sm:$0xf]
  %v9853 = vld [vmem:[%s55 + $0x28] sm:$0xff]
  %v9854 = vld [vmem:[%s55 + $0x30] sm:$0xff]
  %v9855 = vld [vmem:[%s55 + $0x38] sm:$0xf]
  %v9856 = vld [vmem:[%s55 + $0x3c] sm:$0xff]
  %v9857 = vld [vmem:[%s55 + $0x44] sm:$0xff]
  %v9858 = vld [vmem:[%s55 + $0x4c] sm:$0xf]
  %v9859 = vld [vmem:[%s55 + $0x50] sm:$0xff]
  %v9860 = vld [vmem:[%s55 + $0x58] sm:$0xff]
  %v9861 = vld [vmem:[%s55 + $0x60] sm:$0xf]
  %v9862 = vld [vmem:[%s55 + $0x64] sm:$0xff]
  %v9863 = vld [vmem:[%s55 + $0x6c] sm:$0xff]
  %v9864 = vld [vmem:[%s55 + $0x74] sm:$0xf]
  %v9865 = vld [vmem:[%s55 + $0x78] sm:$0xff]
  %v9866 = vld [vmem:[%s55 + $0x80] sm:$0xff]
  %v9867 = vld [vmem:[%s55 + $0x88] sm:$0xf]
  %v9868 = vld [vmem:[%s55 + $0x8c] sm:$0xff]
  %v9869 = vld [vmem:[%s55 + $0x94] sm:$0xff]
  %v9870 = vld [vmem:[%s55 + $0x9c] sm:$0xf]
  %v9871 = vld [vmem:[%s57] sm:$0xff]
  %v9872 = vld [vmem:[%s57 + $0x8] sm:$0xff]
  %v9873 = vld [vmem:[%s57 + $0x10] sm:$0xff]
  %v9874 = vld [vmem:[%s57 + $0x18] sm:$0xff]
  %v9875 = vld [vmem:[%s57 + $0x20] sm:$0xff]
  %v9876 = vld [vmem:[%s57 + $0x28] sm:$0xff]
  %v9877 = vld [vmem:[%s57 + $0x30] sm:$0xff]
  %v9878 = vld [vmem:[%s57 + $0x38] sm:$0xff]
  %9880 = vset.pattern.permute.xlu0 0
  %9881 = vperm.xlu0 %9880, %v9871
  %v9882 = vpop.permute.xlu0 %9881
  %9885 = vset.pattern.permute.xlu0 0
  %9886 = vperm.xlu0 %9885, %v9872
  %v9887 = vpop.permute.xlu0 %9886
  %9890 = vset.pattern.permute.xlu0 0
  %9891 = vperm.xlu0 %9890, %v9873
  %v9892 = vpop.permute.xlu0 %9891
  %9895 = vset.pattern.permute.xlu0 0
  %9896 = vperm.xlu0 %9895, %v9874
  %v9897 = vpop.permute.xlu0 %9896
  %9900 = vset.pattern.permute.xlu0 0
  %9901 = vperm.xlu0 %9900, %v9875
  %v9902 = vpop.permute.xlu0 %9901
  %9905 = vset.pattern.permute.xlu0 0
  %9906 = vperm.xlu0 %9905, %v9876
  %v9907 = vpop.permute.xlu0 %9906
  %9910 = vset.pattern.permute.xlu0 0
  %9911 = vperm.xlu0 %9910, %v9877
  %v9912 = vpop.permute.xlu0 %9911
  %9915 = vset.pattern.permute.xlu0 0
  %9916 = vperm.xlu0 %9915, %v9878
  %v9917 = vpop.permute.xlu0 %9916
  %v9943 = vunpack.c.l.b16 %v9847
  %v9944 = vunpack.c.h.b16 %v9847
  %v9945 = vunpack.c.l.b16 %v9848
  %v9946 = vunpack.c.h.b16 %v9848
  %v9947 = vunpack.c.l.b16 %v9849
  %v9948 = vunpack.c.l.b16 %v9850
  %v9949 = vunpack.c.h.b16 %v9850
  %v9950 = vunpack.c.l.b16 %v9851
  %v9951 = vunpack.c.h.b16 %v9851
  %v9952 = vunpack.c.l.b16 %v9852
  %v9953 = vunpack.c.l.b16 %v9853
  %v9954 = vunpack.c.h.b16 %v9853
  %v9955 = vunpack.c.l.b16 %v9854
  %v9956 = vunpack.c.h.b16 %v9854
  %v9957 = vunpack.c.l.b16 %v9855
  %v9958 = vunpack.c.l.b16 %v9856
  %v9959 = vunpack.c.h.b16 %v9856
  %v9960 = vunpack.c.l.b16 %v9857
  %v9961 = vunpack.c.h.b16 %v9857
  %v9962 = vunpack.c.l.b16 %v9858
  %v9963 = vunpack.c.l.b16 %v9859
  %v9964 = vunpack.c.h.b16 %v9859
  %v9965 = vunpack.c.l.b16 %v9860
  %v9966 = vunpack.c.h.b16 %v9860
  %v9967 = vunpack.c.l.b16 %v9861
  %v9968 = vunpack.c.l.b16 %v9862
  %v9969 = vunpack.c.h.b16 %v9862
  %v9970 = vunpack.c.l.b16 %v9863
  %v9971 = vunpack.c.h.b16 %v9863
  %v9972 = vunpack.c.l.b16 %v9864
  %v9973 = vunpack.c.l.b16 %v9865
  %v9974 = vunpack.c.h.b16 %v9865
  %v9975 = vunpack.c.l.b16 %v9866
  %v9976 = vunpack.c.h.b16 %v9866
  %v9977 = vunpack.c.l.b16 %v9867
  %v9978 = vunpack.c.l.b16 %v9868
  %v9979 = vunpack.c.h.b16 %v9868
  %v9980 = vunpack.c.l.b16 %v9869
  %v9981 = vunpack.c.h.b16 %v9869
  %v9982 = vunpack.c.l.b16 %v9870
  %v9983 = vpack.c.b16 %v9948, %v9943
  %v9984 = vpack.c.b16 %v9949, %v9944
  %v9985 = vpack.c.b16 %v9950, %v9945
  %v9986 = vpack.c.b16 %v9951, %v9946
  %v9987 = vpack.c.b16 %v9952, %v9947
  %v9988 = vpack.c.b16 %v9958, %v9953
  %v9989 = vpack.c.b16 %v9959, %v9954
  %v9990 = vpack.c.b16 %v9960, %v9955
  %v9991 = vpack.c.b16 %v9961, %v9956
  %v9992 = vpack.c.b16 %v9962, %v9957
  %v9993 = vpack.c.b16 %v9968, %v9963
  %v9994 = vpack.c.b16 %v9969, %v9964
  %v9995 = vpack.c.b16 %v9970, %v9965
  %v9996 = vpack.c.b16 %v9971, %v9966
  %v9997 = vpack.c.b16 %v9972, %v9967
  %v9998 = vpack.c.b16 %v9978, %v9973
  %v9999 = vpack.c.b16 %v9979, %v9974
  %v10000 = vpack.c.b16 %v9980, %v9975
  %v10001 = vpack.c.b16 %v9981, %v9976
  %v10002 = vpack.c.b16 %v9982, %v9977
  %v10020 = vsel %vm6995, %v9987, 0
  %v10023 = vsel %vm6995, %v9992, 0
  %v10026 = vsel %vm6995, %v9997, 0
  %v10029 = vsel %vm6995, %v10002, 0
  %10031 = vmatprep.subr.bf16.mxu0 0
  %10032 = vmatpush1.bf16.msra.mxu0 %v9811
  %10033 = vmatprep.subr.bf16.mxu0 0
  %10034 = vmatpush1.bf16.msra.mxu0 %v9812
  %10035 = vmatprep.subr.bf16.mxu0 0
  %10036 = vmatpush1.bf16.msra.mxu0 %v9813
  %10037 = vmatprep.subr.bf16.mxu0 0
  %10038 = vmatpush1.bf16.msra.mxu0 %v9814
  %10039 = vmatprep.subr.bf16.mxu0 0
  %10040 = vmatpush1.bf16.msra.mxu0 %v9815
  %10041 = vmatprep.subr.bf16.mxu0 0
  %10042 = vmatpush1.bf16.msra.mxu0 %v9816
  %10043 = vmatprep.subr.bf16.mxu0 0
  %10044 = vmatpush1.bf16.msra.mxu0 %v9817
  %10045 = vmatprep.subr.bf16.mxu0 0
  %10046 = vmatpush1.bf16.msra.mxu0 %v9818
  %10047 = vmatprep.subr.bf16.mxu0 0
  %10048 = vmatpush1.bf16.msra.mxu0 %v9819
  %10049 = vmatprep.subr.bf16.mxu0 0
  %10050 = vmatpush1.bf16.msra.mxu0 %v9820
  %10051 = vmatprep.subr.bf16.mxu0 0
  %10052 = vmatpush1.bf16.msra.mxu0 %v9821
  %10053 = vmatprep.subr.bf16.mxu0 0
  %10054 = vmatpush1.bf16.msra.mxu0 %v9822
  %10055 = vmatprep.subr.bf16.mxu0 0
  %10056 = vmatpush1.bf16.msra.mxu0 %v9823
  %10057 = vmatprep.subr.bf16.mxu0 0
  %10058 = vmatpush1.bf16.msra.mxu0 %v9824
  %10059 = vmatprep.subr.bf16.mxu0 0
  %10060 = vmatpush1.bf16.msra.mxu0 %v9825
  %10061 = vmatprep.subr.bf16.mxu0 0
  %10062 = vmatpush1.bf16.msra.mxu0 %v9826
  %10063 = vmatprep.mubr.bf16.mxu0 %v9984
  %10064 = vmatmul.mubr.bf16.gmra.mrb[0].mxu0 %v9983
  %v10065 = vpop.f32.mrb[0].mxu0
  %v10066 = vadd.f32 %v9882, %v10065
  %v10067 = vpop.f32.mrb[0].mxu0
  %v10068 = vpop.f32.mrb[0].mxu0
  %v10069 = vadd.f32 %v9887, %v10068
  %v10070 = vpop.f32.mrb[0].mxu0
  %10071 = vmatprep.mubr.bf16.mxu0 %v9989
  %10072 = vmatmul.mubr.bf16.gmra.mrb[0].mxu0 %v9988
  %v10073 = vpop.f32.mrb[0].mxu0
  %v10074 = vadd.f32 %v9892, %v10073
  %v10075 = vpop.f32.mrb[0].mxu0
  %v10076 = vpop.f32.mrb[0].mxu0
  %v10077 = vadd.f32 %v9897, %v10076
  %v10078 = vpop.f32.mrb[0].mxu0
  %10079 = vmatprep.mubr.bf16.mxu0 %v9994
  %10080 = vmatmul.mubr.bf16.gmra.mrb[0].mxu0 %v9993
  %v10081 = vpop.f32.mrb[0].mxu0
  %v10082 = vadd.f32 %v9902, %v10081
  %v10083 = vpop.f32.mrb[0].mxu0
  %v10084 = vpop.f32.mrb[0].mxu0
  %v10085 = vadd.f32 %v9907, %v10084
  %v10086 = vpop.f32.mrb[0].mxu0
  %10087 = vmatprep.mubr.bf16.mxu0 %v9999
  %10088 = vmatmul.mubr.bf16.gmra.mrb[0].mxu0 %v9998
  %v10089 = vpop.f32.mrb[0].mxu0
  %v10090 = vadd.f32 %v9912, %v10089
  %v10091 = vpop.f32.mrb[0].mxu0
  %v10092 = vpop.f32.mrb[0].mxu0
  %v10093 = vadd.f32 %v9917, %v10092
  %v10094 = vpop.f32.mrb[0].mxu0
  %10095 = vdwg.mxu0
  %10096 = vmatprep.subr.bf16.mxu0 0
  %10097 = vmatpush1.bf16.msra.mxu0 %v9827
  %10098 = vmatprep.subr.bf16.mxu0 0
  %10099 = vmatpush1.bf16.msra.mxu0 %v9828
  %10100 = vmatprep.subr.bf16.mxu0 0
  %10101 = vmatpush1.bf16.msra.mxu0 %v9829
  %10102 = vmatprep.subr.bf16.mxu0 0
  %10103 = vmatpush1.bf16.msra.mxu0 %v9830
  %10104 = vmatprep.subr.bf16.mxu0 0
  %10105 = vmatpush1.bf16.msra.mxu0 %v9831
  %10106 = vmatprep.subr.bf16.mxu0 0
  %10107 = vmatpush1.bf16.msra.mxu0 %v9832
  %10108 = vmatprep.subr.bf16.mxu0 0
  %10109 = vmatpush1.bf16.msra.mxu0 %v9833
  %10110 = vmatprep.subr.bf16.mxu0 0
  %10111 = vmatpush1.bf16.msra.mxu0 %v9834
  %10112 = vmatprep.subr.bf16.mxu0 0
  %10113 = vmatpush1.bf16.msra.mxu0 %v9835
  %10114 = vmatprep.subr.bf16.mxu0 0
  %10115 = vmatpush1.bf16.msra.mxu0 %v9836
  %10116 = vmatprep.subr.bf16.mxu0 0
  %10117 = vmatpush1.bf16.msra.mxu0 %v9837
  %10118 = vmatprep.subr.bf16.mxu0 0
  %10119 = vmatpush1.bf16.msra.mxu0 %v9838
  %10120 = vmatprep.subr.bf16.mxu0 0
  %10121 = vmatpush1.bf16.msra.mxu0 %v9839
  %10122 = vmatprep.subr.bf16.mxu0 0
  %10123 = vmatpush1.bf16.msra.mxu0 %v9840
  %10124 = vmatprep.subr.bf16.mxu0 0
  %10125 = vmatpush1.bf16.msra.mxu0 %v9841
  %10126 = vmatprep.subr.bf16.mxu0 0
  %10127 = vmatpush1.bf16.msra.mxu0 %v9842
  %10128 = vmatprep.mubr.bf16.mxu0 %v9986
  %10129 = vmatmul.mubr.bf16.gmra.mrb[0].mxu0 %v9985
  %v10130 = vpop.f32.mrb[0].mxu0
  %v10131 = vadd.f32 %v10066, %v10130
  %v10132 = vpop.f32.mrb[0].mxu0
  %v10133 = vpop.f32.mrb[0].mxu0
  %v10134 = vadd.f32 %v10069, %v10133
  %v10135 = vpop.f32.mrb[0].mxu0
  %10136 = vmatprep.mubr.bf16.mxu0 %v9991
  %10137 = vmatmul.mubr.bf16.gmra.mrb[0].mxu0 %v9990
  %v10138 = vpop.f32.mrb[0].mxu0
  %v10139 = vadd.f32 %v10074, %v10138
  %v10140 = vpop.f32.mrb[0].mxu0
  %v10141 = vpop.f32.mrb[0].mxu0
  %v10142 = vadd.f32 %v10077, %v10141
  %v10143 = vpop.f32.mrb[0].mxu0
  %10144 = vmatprep.mubr.bf16.mxu0 %v9996
  %10145 = vmatmul.mubr.bf16.gmra.mrb[0].mxu0 %v9995
  %v10146 = vpop.f32.mrb[0].mxu0
  %v10147 = vadd.f32 %v10082, %v10146
  %v10148 = vpop.f32.mrb[0].mxu0
  %v10149 = vpop.f32.mrb[0].mxu0
  %v10150 = vadd.f32 %v10085, %v10149
  %v10151 = vpop.f32.mrb[0].mxu0
  %10152 = vmatprep.mubr.bf16.mxu0 %v10001
  %10153 = vmatmul.mubr.bf16.gmra.mrb[0].mxu0 %v10000
  %v10154 = vpop.f32.mrb[0].mxu0
  %v10155 = vadd.f32 %v10090, %v10154
  %v10156 = vpop.f32.mrb[0].mxu0
  %v10157 = vpop.f32.mrb[0].mxu0
  %v10158 = vadd.f32 %v10093, %v10157
  %v10159 = vpop.f32.mrb[0].mxu0
  %10160 = vdwg.mxu0
  %10161 = vmatprep.subr.bf16.mxu0 0
  %10162 = vmatpush1.bf16.msra.mxu0 %v9843
  %10163 = vmatprep.subr.bf16.mxu0 0
  %10164 = vmatpush1.bf16.msra.mxu0 %v9844
  %10165 = vmatprep.subr.bf16.mxu0 0
  %10166 = vmatpush1.bf16.msra.mxu0 %v9845
  %10167 = vmatprep.subr.bf16.mxu0 0
  %10168 = vmatpush1.bf16.msra.mxu0 %v9846
  %10169 = vmatprep.subr.bf16.mxu0 0
  %10170 = vmatpush1.bf16.msra.mxu0 0
  %10171 = vmatprep.subr.bf16.mxu0 0
  %10172 = vmatpush1.bf16.msra.mxu0 0
  %10173 = vmatprep.subr.bf16.mxu0 0
  %10174 = vmatpush1.bf16.msra.mxu0 0
  %10175 = vmatprep.subr.bf16.mxu0 0
  %10176 = vmatpush1.bf16.msra.mxu0 0
  %10177 = vmatprep.subr.bf16.mxu0 0
  %10178 = vmatpush1.bf16.msra.mxu0 0
  %10179 = vmatprep.subr.bf16.mxu0 0
  %10180 = vmatpush1.bf16.msra.mxu0 0
  %10181 = vmatprep.subr.bf16.mxu0 0
  %10182 = vmatpush1.bf16.msra.mxu0 0
  %10183 = vmatprep.subr.bf16.mxu0 0
  %10184 = vmatpush1.bf16.msra.mxu0 0
  %10185 = vmatprep.subr.bf16.mxu0 0
  %10186 = vmatpush1.bf16.msra.mxu0 0
  %10187 = vmatprep.subr.bf16.mxu0 0
  %10188 = vmatpush1.bf16.msra.mxu0 0
  %10189 = vmatprep.subr.bf16.mxu0 0
  %10190 = vmatpush1.bf16.msra.mxu0 0
  %10191 = vmatprep.subr.bf16.mxu0 0
  %10192 = vmatpush1.bf16.msra.mxu0 0
  %10193 = vmatprep.mubr.bf16.mxu0 0
  %10194 = vmatmul.mubr.bf16.gmra.mrb[0].mxu0 %v10020
  %v10195 = vpop.f32.mrb[0].mxu0
  %v10196 = vadd.f32 %v10131, %v10195
  %v10197 = vpop.f32.mrb[0].mxu0
  %v10198 = vpop.f32.mrb[0].mxu0
  %v10199 = vadd.f32 %v10134, %v10198
  %v10200 = vpop.f32.mrb[0].mxu0
  %10201 = vmatprep.mubr.bf16.mxu0 0
  %10202 = vmatmul.mubr.bf16.gmra.mrb[0].mxu0 %v10023
  %v10203 = vpop.f32.mrb[0].mxu0
  %v10204 = vadd.f32 %v10139, %v10203
  %v10205 = vpop.f32.mrb[0].mxu0
  %v10206 = vpop.f32.mrb[0].mxu0
  %v10207 = vadd.f32 %v10142, %v10206
  %v10208 = vpop.f32.mrb[0].mxu0
  %10209 = vmatprep.mubr.bf16.mxu0 0
  %10210 = vmatmul.mubr.bf16.gmra.mrb[0].mxu0 %v10026
  %v10211 = vpop.f32.mrb[0].mxu0
  %v10212 = vadd.f32 %v10147, %v10211
  %v10213 = vpop.f32.mrb[0].mxu0
  %v10214 = vpop.f32.mrb[0].mxu0
  %v10215 = vadd.f32 %v10150, %v10214
  %v10216 = vpop.f32.mrb[0].mxu0
  %10217 = vmatprep.mubr.bf16.mxu0 0
  %10218 = vmatmul.mubr.bf16.gmra.mrb[0].mxu0 %v10029
  %v10219 = vpop.f32.mrb[0].mxu0
  %v10220 = vadd.f32 %v10155, %v10219
  %v10221 = vpop.f32.mrb[0].mxu0
  %v10222 = vpop.f32.mrb[0].mxu0
  %v10223 = vadd.f32 %v10158, %v10222
  %v10224 = vpop.f32.mrb[0].mxu0
  %10225 = vdwg.mxu0
  %v10226 = vmax.f32 %v10196, 0.0
  %v10227 = vmax.f32 %v10199, 0.0
  %v10228 = vmax.f32 %v10204, 0.0
  %v10229 = vmax.f32 %v10207, 0.0
  %v10230 = vmax.f32 %v10212, 0.0
  %v10231 = vmax.f32 %v10215, 0.0
  %v10232 = vmax.f32 %v10220, 0.0
  %v10233 = vmax.f32 %v10223, 0.0
  %v10234 = vld [vmem:[%s75] sm:$0x1]
  %v10236 = vlaneseq
  %v10237 = vshrl.u32 %v10236, 7
  %v10238 = vsub.s32 0, %v10237
  %v10239 = vrot.slane %v10234, %v10238
  %v10241 = vmul.f32 %v10226, %v10239
  %v10242 = vmul.f32 %v10227, %v10239
  %v10243 = vmul.f32 %v10228, %v10239
  %v10244 = vmul.f32 %v10229, %v10239
  %v10245 = vmul.f32 %v10230, %v10239
  %v10246 = vmul.f32 %v10231, %v10239
  %v10247 = vmul.f32 %v10232, %v10239
  %v10248 = vmul.f32 %v10233, %v10239
  %10249 = vst.msk [vmem:[#allocation2] sm:$0xff] %vm8842, 0.0
  %10250 = vst.msk [vmem:[#allocation2 + $0x50] sm:$0xff] %vm8842, 0.0
  %10251 = vst.msk [vmem:[#allocation2 + $0xa0] sm:$0xff] %vm8842, 0.0
  %10252 = vst.msk [vmem:[#allocation2 + $0xf0] sm:$0xff] %vm8842, 0.0
  %10253 = vst.msk [vmem:[#allocation2 + $0x140] sm:$0xff] %vm8842, 0.0
  %10254 = vst.msk [vmem:[#allocation2 + $0x190] sm:$0xff] %vm8842, 0.0
  %10255 = vst.msk [vmem:[#allocation2 + $0x1e0] sm:$0xff] %vm8842, 0.0
  %10256 = vst.msk [vmem:[#allocation2 + $0x230] sm:$0xff] %vm8842, 0.0
  %10265 = vrot.lane.b32.xlu0 %v10241, 5
  %v10266 = vpop.permute.xlu0 %10265
  %10267 = vrot.lane.b32.xlu0 %v10242, 5
  %v10268 = vpop.permute.xlu0 %10267
  %10269 = vrot.lane.b32.xlu0 %v10243, 5
  %v10270 = vpop.permute.xlu0 %10269
  %10271 = vrot.lane.b32.xlu0 %v10244, 5
  %v10272 = vpop.permute.xlu0 %10271
  %10273 = vrot.lane.b32.xlu0 %v10245, 5
  %v10274 = vpop.permute.xlu0 %10273
  %10275 = vrot.lane.b32.xlu0 %v10246, 5
  %v10276 = vpop.permute.xlu0 %10275
  %10277 = vrot.lane.b32.xlu0 %v10247, 5
  %v10278 = vpop.permute.xlu0 %10277
  %10279 = vrot.lane.b32.xlu0 %v10248, 5
  %v10280 = vpop.permute.xlu0 %10279
  %10289 = vst.msk [vmem:[#allocation2] sm:$0xff] %vm8883, %v10266
  %10290 = vst.msk [vmem:[#allocation2 + $0x50] sm:$0xff] %vm8883, %v10268
  %10291 = vst.msk [vmem:[#allocation2 + $0xa0] sm:$0xff] %vm8883, %v10270
  %10292 = vst.msk [vmem:[#allocation2 + $0xf0] sm:$0xff] %vm8883, %v10272
  %10293 = vst.msk [vmem:[#allocation2 + $0x140] sm:$0xff] %vm8883, %v10274
  %10294 = vst.msk [vmem:[#allocation2 + $0x190] sm:$0xff] %vm8883, %v10276
  %10295 = vst.msk [vmem:[#allocation2 + $0x1e0] sm:$0xff] %vm8883, %v10278
  %10296 = vst.msk [vmem:[#allocation2 + $0x230] sm:$0xff] %vm8883, %v10280
  %10297 = vst.msk [vmem:[#allocation2] sm:$0xff] %vm8892, 0.0
  %10298 = vst.msk [vmem:[#allocation2 + $0x50] sm:$0xff] %vm8892, 0.0
  %10299 = vst.msk [vmem:[#allocation2 + $0xa0] sm:$0xff] %vm8892, 0.0
  %10300 = vst.msk [vmem:[#allocation2 + $0xf0] sm:$0xff] %vm8892, 0.0
  %10301 = vst.msk [vmem:[#allocation2 + $0x140] sm:$0xff] %vm8892, 0.0
  %10302 = vst.msk [vmem:[#allocation2 + $0x190] sm:$0xff] %vm8892, 0.0
  %10303 = vst.msk [vmem:[#allocation2 + $0x1e0] sm:$0xff] %vm8892, 0.0
  %10304 = vst.msk [vmem:[#allocation2 + $0x230] sm:$0xff] %vm8892, 0.0
  %v10305 = vld [vmem:[#allocation2] sm:$0xff]
  %v10306 = vld [vmem:[#allocation2 + $0x50] sm:$0xff]
  %v10307 = vld [vmem:[#allocation2 + $0xa0] sm:$0xff]
  %v10308 = vld [vmem:[#allocation2 + $0xf0] sm:$0xff]
  %v10309 = vld [vmem:[#allocation2 + $0x140] sm:$0xff]
  %v10310 = vld [vmem:[#allocation2 + $0x190] sm:$0xff]
  %v10311 = vld [vmem:[#allocation2 + $0x1e0] sm:$0xff]
  %v10312 = vld [vmem:[#allocation2 + $0x230] sm:$0xff]
  %10321 = vrot.lane.b32.xlu0 %v10305, 127
  %v10322 = vpop.permute.xlu0 %10321
  %10323 = vrot.lane.b32.xlu0 %v10306, 127
  %v10324 = vpop.permute.xlu0 %10323
  %10325 = vrot.lane.b32.xlu0 %v10307, 127
  %v10326 = vpop.permute.xlu0 %10325
  %10327 = vrot.lane.b32.xlu0 %v10308, 127
  %v10328 = vpop.permute.xlu0 %10327
  %10329 = vrot.lane.b32.xlu0 %v10309, 127
  %v10330 = vpop.permute.xlu0 %10329
  %10331 = vrot.lane.b32.xlu0 %v10310, 127
  %v10332 = vpop.permute.xlu0 %10331
  %10333 = vrot.lane.b32.xlu0 %v10311, 127
  %v10334 = vpop.permute.xlu0 %10333
  %10335 = vrot.lane.b32.xlu0 %v10312, 127
  %v10336 = vpop.permute.xlu0 %10335
  %10345 = vrot.lane.b32.xlu0 %v10305, 126
  %v10346 = vpop.permute.xlu0 %10345
  %10347 = vrot.lane.b32.xlu0 %v10306, 126
  %v10348 = vpop.permute.xlu0 %10347
  %10349 = vrot.lane.b32.xlu0 %v10307, 126
  %v10350 = vpop.permute.xlu0 %10349
  %10351 = vrot.lane.b32.xlu0 %v10308, 126
  %v10352 = vpop.permute.xlu0 %10351
  %10353 = vrot.lane.b32.xlu0 %v10309, 126
  %v10354 = vpop.permute.xlu0 %10353
  %10355 = vrot.lane.b32.xlu0 %v10310, 126
  %v10356 = vpop.permute.xlu0 %10355
  %10357 = vrot.lane.b32.xlu0 %v10311, 126
  %v10358 = vpop.permute.xlu0 %10357
  %10359 = vrot.lane.b32.xlu0 %v10312, 126
  %v10360 = vpop.permute.xlu0 %10359
  %10369 = vrot.lane.b32.xlu0 %v10305, 124
  %v10370 = vpop.permute.xlu0 %10369
  %10371 = vrot.lane.b32.xlu0 %v10306, 124
  %v10372 = vpop.permute.xlu0 %10371
  %10373 = vrot.lane.b32.xlu0 %v10307, 124
  %v10374 = vpop.permute.xlu0 %10373
  %10375 = vrot.lane.b32.xlu0 %v10308, 124
  %v10376 = vpop.permute.xlu0 %10375
  %10377 = vrot.lane.b32.xlu0 %v10309, 124
  %v10378 = vpop.permute.xlu0 %10377
  %10379 = vrot.lane.b32.xlu0 %v10310, 124
  %v10380 = vpop.permute.xlu0 %10379
  %10381 = vrot.lane.b32.xlu0 %v10311, 124
  %v10382 = vpop.permute.xlu0 %10381
  %10383 = vrot.lane.b32.xlu0 %v10312, 124
  %v10384 = vpop.permute.xlu0 %10383
  %10393 = vrot.lane.b32.xlu0 %v10305, 123
  %v10394 = vpop.permute.xlu0 %10393
  %10395 = vrot.lane.b32.xlu0 %v10306, 123
  %v10396 = vpop.permute.xlu0 %10395
  %10397 = vrot.lane.b32.xlu0 %v10307, 123
  %v10398 = vpop.permute.xlu0 %10397
  %10399 = vrot.lane.b32.xlu0 %v10308, 123
  %v10400 = vpop.permute.xlu0 %10399
  %10401 = vrot.lane.b32.xlu0 %v10309, 123
  %v10402 = vpop.permute.xlu0 %10401
  %10403 = vrot.lane.b32.xlu0 %v10310, 123
  %v10404 = vpop.permute.xlu0 %10403
  %10405 = vrot.lane.b32.xlu0 %v10311, 123
  %v10406 = vpop.permute.xlu0 %10405
  %10407 = vrot.lane.b32.xlu0 %v10312, 123
  %v10408 = vpop.permute.xlu0 %10407
  %10417 = vrot.lane.b32.xlu0 %v10305, 122
  %v10418 = vpop.permute.xlu0 %10417
  %10419 = vrot.lane.b32.xlu0 %v10306, 122
  %v10420 = vpop.permute.xlu0 %10419
  %10421 = vrot.lane.b32.xlu0 %v10307, 122
  %v10422 = vpop.permute.xlu0 %10421
  %10423 = vrot.lane.b32.xlu0 %v10308, 122
  %v10424 = vpop.permute.xlu0 %10423
  %10425 = vrot.lane.b32.xlu0 %v10309, 122
  %v10426 = vpop.permute.xlu0 %10425
  %10427 = vrot.lane.b32.xlu0 %v10310, 122
  %v10428 = vpop.permute.xlu0 %10427
  %10429 = vrot.lane.b32.xlu0 %v10311, 122
  %v10430 = vpop.permute.xlu0 %10429
  %10431 = vrot.lane.b32.xlu0 %v10312, 122
  %v10432 = vpop.permute.xlu0 %10431
  %10441 = vrot.lane.b32.xlu0 %v10305, 120
  %v10442 = vpop.permute.xlu0 %10441
  %10443 = vrot.lane.b32.xlu0 %v10306, 120
  %v10444 = vpop.permute.xlu0 %10443
  %10445 = vrot.lane.b32.xlu0 %v10307, 120
  %v10446 = vpop.permute.xlu0 %10445
  %10447 = vrot.lane.b32.xlu0 %v10308, 120
  %v10448 = vpop.permute.xlu0 %10447
  %10449 = vrot.lane.b32.xlu0 %v10309, 120
  %v10450 = vpop.permute.xlu0 %10449
  %10451 = vrot.lane.b32.xlu0 %v10310, 120
  %v10452 = vpop.permute.xlu0 %10451
  %10453 = vrot.lane.b32.xlu0 %v10311, 120
  %v10454 = vpop.permute.xlu0 %10453
  %10455 = vrot.lane.b32.xlu0 %v10312, 120
  %v10456 = vpop.permute.xlu0 %10455
  %10465 = vrot.lane.b32.xlu0 %v10305, 119
  %v10466 = vpop.permute.xlu0 %10465
  %10467 = vrot.lane.b32.xlu0 %v10306, 119
  %v10468 = vpop.permute.xlu0 %10467
  %10469 = vrot.lane.b32.xlu0 %v10307, 119
  %v10470 = vpop.permute.xlu0 %10469
  %10471 = vrot.lane.b32.xlu0 %v10308, 119
  %v10472 = vpop.permute.xlu0 %10471
  %10473 = vrot.lane.b32.xlu0 %v10309, 119
  %v10474 = vpop.permute.xlu0 %10473
  %10475 = vrot.lane.b32.xlu0 %v10310, 119
  %v10476 = vpop.permute.xlu0 %10475
  %10477 = vrot.lane.b32.xlu0 %v10311, 119
  %v10478 = vpop.permute.xlu0 %10477
  %10479 = vrot.lane.b32.xlu0 %v10312, 119
  %v10480 = vpop.permute.xlu0 %10479
  %10489 = vrot.lane.b32.xlu0 %v10305, 118
  %v10490 = vpop.permute.xlu0 %10489
  %10491 = vrot.lane.b32.xlu0 %v10306, 118
  %v10492 = vpop.permute.xlu0 %10491
  %10493 = vrot.lane.b32.xlu0 %v10307, 118
  %v10494 = vpop.permute.xlu0 %10493
  %10495 = vrot.lane.b32.xlu0 %v10308, 118
  %v10496 = vpop.permute.xlu0 %10495
  %10497 = vrot.lane.b32.xlu0 %v10309, 118
  %v10498 = vpop.permute.xlu0 %10497
  %10499 = vrot.lane.b32.xlu0 %v10310, 118
  %v10500 = vpop.permute.xlu0 %10499
  %10501 = vrot.lane.b32.xlu0 %v10311, 118
  %v10502 = vpop.permute.xlu0 %10501
  %10503 = vrot.lane.b32.xlu0 %v10312, 118
  %v10504 = vpop.permute.xlu0 %10503
  %v10513 = vpack.c.bf16 %v10306, %v10305
  %v10514 = vpack.c.bf16 %v10308, %v10307
  %v10515 = vpack.c.bf16 %v10310, %v10309
  %v10516 = vpack.c.bf16 %v10312, %v10311
  %v10517 = vpack.c.bf16 %v10324, %v10322
  %v10518 = vpack.c.bf16 %v10328, %v10326
  %v10519 = vpack.c.bf16 %v10332, %v10330
  %v10520 = vpack.c.bf16 %v10336, %v10334
  %v10521 = vpack.c.bf16 %v10348, %v10346
  %v10522 = vpack.c.bf16 %v10352, %v10350
  %v10523 = vpack.c.bf16 %v10356, %v10354
  %v10524 = vpack.c.bf16 %v10360, %v10358
  %v10525 = vpack.c.bf16 %v10372, %v10370
  %v10526 = vpack.c.bf16 %v10376, %v10374
  %v10527 = vpack.c.bf16 %v10380, %v10378
  %v10528 = vpack.c.bf16 %v10384, %v10382
  %v10529 = vpack.c.bf16 %v10396, %v10394
  %v10530 = vpack.c.bf16 %v10400, %v10398
  %v10531 = vpack.c.bf16 %v10404, %v10402
  %v10532 = vpack.c.bf16 %v10408, %v10406
  %v10533 = vpack.c.bf16 %v10420, %v10418
  %v10534 = vpack.c.bf16 %v10424, %v10422
  %v10535 = vpack.c.bf16 %v10428, %v10426
  %v10536 = vpack.c.bf16 %v10432, %v10430
  %v10537 = vpack.c.bf16 %v10444, %v10442
  %v10538 = vpack.c.bf16 %v10448, %v10446
  %v10539 = vpack.c.bf16 %v10452, %v10450
  %v10540 = vpack.c.bf16 %v10456, %v10454
  %v10541 = vpack.c.bf16 %v10468, %v10466
  %v10542 = vpack.c.bf16 %v10472, %v10470
  %v10543 = vpack.c.bf16 %v10476, %v10474
  %v10544 = vpack.c.bf16 %v10480, %v10478
  %v10545 = vpack.c.bf16 %v10492, %v10490
  %v10546 = vpack.c.bf16 %v10496, %v10494
  %v10547 = vpack.c.bf16 %v10500, %v10498
  %v10548 = vpack.c.bf16 %v10504, %v10502
  %v10549 = vld [vmem:[%s59] sm:$0xff]
  %v10550 = vld [vmem:[%s59 + $0x8] sm:$0xff]
  %v10551 = vld [vmem:[%s59 + $0x10] sm:$0xf]
  %v10552 = vld [vmem:[%s59 + $0x14] sm:$0xff]
  %v10553 = vld [vmem:[%s59 + $0x1c] sm:$0xff]
  %v10554 = vld [vmem:[%s59 + $0x24] sm:$0xf]
  %v10555 = vld [vmem:[%s59 + $0x28] sm:$0xff]
  %v10556 = vld [vmem:[%s59 + $0x30] sm:$0xff]
  %v10557 = vld [vmem:[%s59 + $0x38] sm:$0xf]
  %v10558 = vld [vmem:[%s59 + $0x3c] sm:$0xff]
  %v10559 = vld [vmem:[%s59 + $0x44] sm:$0xff]
  %v10560 = vld [vmem:[%s59 + $0x4c] sm:$0xf]
  %v10561 = vld [vmem:[%s59 + $0x50] sm:$0xff]
  %v10562 = vld [vmem:[%s59 + $0x58] sm:$0xff]
  %v10563 = vld [vmem:[%s59 + $0x60] sm:$0xf]
  %v10564 = vld [vmem:[%s59 + $0x64] sm:$0xff]
  %v10565 = vld [vmem:[%s59 + $0x6c] sm:$0xff]
  %v10566 = vld [vmem:[%s59 + $0x74] sm:$0xf]
  %v10567 = vld [vmem:[%s59 + $0x78] sm:$0xff]
  %v10568 = vld [vmem:[%s59 + $0x80] sm:$0xff]
  %v10569 = vld [vmem:[%s59 + $0x88] sm:$0xf]
  %v10570 = vld [vmem:[%s59 + $0x8c] sm:$0xff]
  %v10571 = vld [vmem:[%s59 + $0x94] sm:$0xff]
  %v10572 = vld [vmem:[%s59 + $0x9c] sm:$0xf]
  %v10573 = vld [vmem:[%s61] sm:$0xff]
  %v10574 = vld [vmem:[%s61 + $0x8] sm:$0xff]
  %v10575 = vld [vmem:[%s61 + $0x10] sm:$0xff]
  %v10576 = vld [vmem:[%s61 + $0x18] sm:$0xff]
  %v10577 = vld [vmem:[%s61 + $0x20] sm:$0xff]
  %v10578 = vld [vmem:[%s61 + $0x28] sm:$0xff]
  %v10579 = vld [vmem:[%s61 + $0x30] sm:$0xff]
  %v10580 = vld [vmem:[%s61 + $0x38] sm:$0xff]
  %10582 = vset.pattern.permute.xlu0 0
  %10583 = vperm.xlu0 %10582, %v10573
  %v10584 = vpop.permute.xlu0 %10583
  %10587 = vset.pattern.permute.xlu0 0
  %10588 = vperm.xlu0 %10587, %v10574
  %v10589 = vpop.permute.xlu0 %10588
  %10592 = vset.pattern.permute.xlu0 0
  %10593 = vperm.xlu0 %10592, %v10575
  %v10594 = vpop.permute.xlu0 %10593
  %10597 = vset.pattern.permute.xlu0 0
  %10598 = vperm.xlu0 %10597, %v10576
  %v10599 = vpop.permute.xlu0 %10598
  %10602 = vset.pattern.permute.xlu0 0
  %10603 = vperm.xlu0 %10602, %v10577
  %v10604 = vpop.permute.xlu0 %10603
  %10607 = vset.pattern.permute.xlu0 0
  %10608 = vperm.xlu0 %10607, %v10578
  %v10609 = vpop.permute.xlu0 %10608
  %10612 = vset.pattern.permute.xlu0 0
  %10613 = vperm.xlu0 %10612, %v10579
  %v10614 = vpop.permute.xlu0 %10613
  %10617 = vset.pattern.permute.xlu0 0
  %10618 = vperm.xlu0 %10617, %v10580
  %v10619 = vpop.permute.xlu0 %10618
  %v10645 = vunpack.c.l.b16 %v10549
  %v10646 = vunpack.c.h.b16 %v10549
  %v10647 = vunpack.c.l.b16 %v10550
  %v10648 = vunpack.c.h.b16 %v10550
  %v10649 = vunpack.c.l.b16 %v10551
  %v10650 = vunpack.c.l.b16 %v10552
  %v10651 = vunpack.c.h.b16 %v10552
  %v10652 = vunpack.c.l.b16 %v10553
  %v10653 = vunpack.c.h.b16 %v10553
  %v10654 = vunpack.c.l.b16 %v10554
  %v10655 = vunpack.c.l.b16 %v10555
  %v10656 = vunpack.c.h.b16 %v10555
  %v10657 = vunpack.c.l.b16 %v10556
  %v10658 = vunpack.c.h.b16 %v10556
  %v10659 = vunpack.c.l.b16 %v10557
  %v10660 = vunpack.c.l.b16 %v10558
  %v10661 = vunpack.c.h.b16 %v10558
  %v10662 = vunpack.c.l.b16 %v10559
  %v10663 = vunpack.c.h.b16 %v10559
  %v10664 = vunpack.c.l.b16 %v10560
  %v10665 = vunpack.c.l.b16 %v10561
  %v10666 = vunpack.c.h.b16 %v10561
  %v10667 = vunpack.c.l.b16 %v10562
  %v10668 = vunpack.c.h.b16 %v10562
  %v10669 = vunpack.c.l.b16 %v10563
  %v10670 = vunpack.c.l.b16 %v10564
  %v10671 = vunpack.c.h.b16 %v10564
  %v10672 = vunpack.c.l.b16 %v10565
  %v10673 = vunpack.c.h.b16 %v10565
  %v10674 = vunpack.c.l.b16 %v10566
  %v10675 = vunpack.c.l.b16 %v10567
  %v10676 = vunpack.c.h.b16 %v10567
  %v10677 = vunpack.c.l.b16 %v10568
  %v10678 = vunpack.c.h.b16 %v10568
  %v10679 = vunpack.c.l.b16 %v10569
  %v10680 = vunpack.c.l.b16 %v10570
  %v10681 = vunpack.c.h.b16 %v10570
  %v10682 = vunpack.c.l.b16 %v10571
  %v10683 = vunpack.c.h.b16 %v10571
  %v10684 = vunpack.c.l.b16 %v10572
  %v10685 = vpack.c.b16 %v10650, %v10645
  %v10686 = vpack.c.b16 %v10651, %v10646
  %v10687 = vpack.c.b16 %v10652, %v10647
  %v10688 = vpack.c.b16 %v10653, %v10648
  %v10689 = vpack.c.b16 %v10654, %v10649
  %v10690 = vpack.c.b16 %v10660, %v10655
  %v10691 = vpack.c.b16 %v10661, %v10656
  %v10692 = vpack.c.b16 %v10662, %v10657
  %v10693 = vpack.c.b16 %v10663, %v10658
  %v10694 = vpack.c.b16 %v10664, %v10659
  %v10695 = vpack.c.b16 %v10670, %v10665
  %v10696 = vpack.c.b16 %v10671, %v10666
  %v10697 = vpack.c.b16 %v10672, %v10667
  %v10698 = vpack.c.b16 %v10673, %v10668
  %v10699 = vpack.c.b16 %v10674, %v10669
  %v10700 = vpack.c.b16 %v10680, %v10675
  %v10701 = vpack.c.b16 %v10681, %v10676
  %v10702 = vpack.c.b16 %v10682, %v10677
  %v10703 = vpack.c.b16 %v10683, %v10678
  %v10704 = vpack.c.b16 %v10684, %v10679
  %v10722 = vsel %vm6995, %v10689, 0
  %v10725 = vsel %vm6995, %v10694, 0
  %v10728 = vsel %vm6995, %v10699, 0
  %v10731 = vsel %vm6995, %v10704, 0
  %10733 = vmatprep.subr.bf16.mxu0 0
  %10734 = vmatpush1.bf16.msra.mxu0 %v10513
  %10735 = vmatprep.subr.bf16.mxu0 0
  %10736 = vmatpush1.bf16.msra.mxu0 %v10514
  %10737 = vmatprep.subr.bf16.mxu0 0
  %10738 = vmatpush1.bf16.msra.mxu0 %v10515
  %10739 = vmatprep.subr.bf16.mxu0 0
  %10740 = vmatpush1.bf16.msra.mxu0 %v10516
  %10741 = vmatprep.subr.bf16.mxu0 0
  %10742 = vmatpush1.bf16.msra.mxu0 %v10517
  %10743 = vmatprep.subr.bf16.mxu0 0
  %10744 = vmatpush1.bf16.msra.mxu0 %v10518
  %10745 = vmatprep.subr.bf16.mxu0 0
  %10746 = vmatpush1.bf16.msra.mxu0 %v10519
  %10747 = vmatprep.subr.bf16.mxu0 0
  %10748 = vmatpush1.bf16.msra.mxu0 %v10520
  %10749 = vmatprep.subr.bf16.mxu0 0
  %10750 = vmatpush1.bf16.msra.mxu0 %v10521
  %10751 = vmatprep.subr.bf16.mxu0 0
  %10752 = vmatpush1.bf16.msra.mxu0 %v10522
  %10753 = vmatprep.subr.bf16.mxu0 0
  %10754 = vmatpush1.bf16.msra.mxu0 %v10523
  %10755 = vmatprep.subr.bf16.mxu0 0
  %10756 = vmatpush1.bf16.msra.mxu0 %v10524
  %10757 = vmatprep.subr.bf16.mxu0 0
  %10758 = vmatpush1.bf16.msra.mxu0 %v10525
  %10759 = vmatprep.subr.bf16.mxu0 0
  %10760 = vmatpush1.bf16.msra.mxu0 %v10526
  %10761 = vmatprep.subr.bf16.mxu0 0
  %10762 = vmatpush1.bf16.msra.mxu0 %v10527
  %10763 = vmatprep.subr.bf16.mxu0 0
  %10764 = vmatpush1.bf16.msra.mxu0 %v10528
  %10765 = vmatprep.mubr.bf16.mxu0 %v10686
  %10766 = vmatmul.mubr.bf16.gmra.mrb[0].mxu0 %v10685
  %v10767 = vpop.f32.mrb[0].mxu0
  %v10768 = vadd.f32 %v10584, %v10767
  %v10769 = vpop.f32.mrb[0].mxu0
  %v10770 = vpop.f32.mrb[0].mxu0
  %v10771 = vadd.f32 %v10589, %v10770
  %v10772 = vpop.f32.mrb[0].mxu0
  %10773 = vmatprep.mubr.bf16.mxu0 %v10691
  %10774 = vmatmul.mubr.bf16.gmra.mrb[0].mxu0 %v10690
  %v10775 = vpop.f32.mrb[0].mxu0
  %v10776 = vadd.f32 %v10594, %v10775
  %v10777 = vpop.f32.mrb[0].mxu0
  %v10778 = vpop.f32.mrb[0].mxu0
  %v10779 = vadd.f32 %v10599, %v10778
  %v10780 = vpop.f32.mrb[0].mxu0
  %10781 = vmatprep.mubr.bf16.mxu0 %v10696
  %10782 = vmatmul.mubr.bf16.gmra.mrb[0].mxu0 %v10695
  %v10783 = vpop.f32.mrb[0].mxu0
  %v10784 = vadd.f32 %v10604, %v10783
  %v10785 = vpop.f32.mrb[0].mxu0
  %v10786 = vpop.f32.mrb[0].mxu0
  %v10787 = vadd.f32 %v10609, %v10786
  %v10788 = vpop.f32.mrb[0].mxu0
  %10789 = vmatprep.mubr.bf16.mxu0 %v10701
  %10790 = vmatmul.mubr.bf16.gmra.mrb[0].mxu0 %v10700
  %v10791 = vpop.f32.mrb[0].mxu0
  %v10792 = vadd.f32 %v10614, %v10791
  %v10793 = vpop.f32.mrb[0].mxu0
  %v10794 = vpop.f32.mrb[0].mxu0
  %v10795 = vadd.f32 %v10619, %v10794
  %v10796 = vpop.f32.mrb[0].mxu0
  %10797 = vdwg.mxu0
  %10798 = vmatprep.subr.bf16.mxu0 0
  %10799 = vmatpush1.bf16.msra.mxu0 %v10529
  %10800 = vmatprep.subr.bf16.mxu0 0
  %10801 = vmatpush1.bf16.msra.mxu0 %v10530
  %10802 = vmatprep.subr.bf16.mxu0 0
  %10803 = vmatpush1.bf16.msra.mxu0 %v10531
  %10804 = vmatprep.subr.bf16.mxu0 0
  %10805 = vmatpush1.bf16.msra.mxu0 %v10532
  %10806 = vmatprep.subr.bf16.mxu0 0
  %10807 = vmatpush1.bf16.msra.mxu0 %v10533
  %10808 = vmatprep.subr.bf16.mxu0 0
  %10809 = vmatpush1.bf16.msra.mxu0 %v10534
  %10810 = vmatprep.subr.bf16.mxu0 0
  %10811 = vmatpush1.bf16.msra.mxu0 %v10535
  %10812 = vmatprep.subr.bf16.mxu0 0
  %10813 = vmatpush1.bf16.msra.mxu0 %v10536
  %10814 = vmatprep.subr.bf16.mxu0 0
  %10815 = vmatpush1.bf16.msra.mxu0 %v10537
  %10816 = vmatprep.subr.bf16.mxu0 0
  %10817 = vmatpush1.bf16.msra.mxu0 %v10538
  %10818 = vmatprep.subr.bf16.mxu0 0
  %10819 = vmatpush1.bf16.msra.mxu0 %v10539
  %10820 = vmatprep.subr.bf16.mxu0 0
  %10821 = vmatpush1.bf16.msra.mxu0 %v10540
  %10822 = vmatprep.subr.bf16.mxu0 0
  %10823 = vmatpush1.bf16.msra.mxu0 %v10541
  %10824 = vmatprep.subr.bf16.mxu0 0
  %10825 = vmatpush1.bf16.msra.mxu0 %v10542
  %10826 = vmatprep.subr.bf16.mxu0 0
  %10827 = vmatpush1.bf16.msra.mxu0 %v10543
  %10828 = vmatprep.subr.bf16.mxu0 0
  %10829 = vmatpush1.bf16.msra.mxu0 %v10544
  %10830 = vmatprep.mubr.bf16.mxu0 %v10688
  %10831 = vmatmul.mubr.bf16.gmra.mrb[0].mxu0 %v10687
  %v10832 = vpop.f32.mrb[0].mxu0
  %v10833 = vadd.f32 %v10768, %v10832
  %v10834 = vpop.f32.mrb[0].mxu0
  %v10835 = vpop.f32.mrb[0].mxu0
  %v10836 = vadd.f32 %v10771, %v10835
  %v10837 = vpop.f32.mrb[0].mxu0
  %10838 = vmatprep.mubr.bf16.mxu0 %v10693
  %10839 = vmatmul.mubr.bf16.gmra.mrb[0].mxu0 %v10692
  %v10840 = vpop.f32.mrb[0].mxu0
  %v10841 = vadd.f32 %v10776, %v10840
  %v10842 = vpop.f32.mrb[0].mxu0
  %v10843 = vpop.f32.mrb[0].mxu0
  %v10844 = vadd.f32 %v10779, %v10843
  %v10845 = vpop.f32.mrb[0].mxu0
  %10846 = vmatprep.mubr.bf16.mxu0 %v10698
  %10847 = vmatmul.mubr.bf16.gmra.mrb[0].mxu0 %v10697
  %v10848 = vpop.f32.mrb[0].mxu0
  %v10849 = vadd.f32 %v10784, %v10848
  %v10850 = vpop.f32.mrb[0].mxu0
  %v10851 = vpop.f32.mrb[0].mxu0
  %v10852 = vadd.f32 %v10787, %v10851
  %v10853 = vpop.f32.mrb[0].mxu0
  %10854 = vmatprep.mubr.bf16.mxu0 %v10703
  %10855 = vmatmul.mubr.bf16.gmra.mrb[0].mxu0 %v10702
  %v10856 = vpop.f32.mrb[0].mxu0
  %v10857 = vadd.f32 %v10792, %v10856
  %v10858 = vpop.f32.mrb[0].mxu0
  %v10859 = vpop.f32.mrb[0].mxu0
  %v10860 = vadd.f32 %v10795, %v10859
  %v10861 = vpop.f32.mrb[0].mxu0
  %10862 = vdwg.mxu0
  %10863 = vmatprep.subr.bf16.mxu0 0
  %10864 = vmatpush1.bf16.msra.mxu0 %v10545
  %10865 = vmatprep.subr.bf16.mxu0 0
  %10866 = vmatpush1.bf16.msra.mxu0 %v10546
  %10867 = vmatprep.subr.bf16.mxu0 0
  %10868 = vmatpush1.bf16.msra.mxu0 %v10547
  %10869 = vmatprep.subr.bf16.mxu0 0
  %10870 = vmatpush1.bf16.msra.mxu0 %v10548
  %10871 = vmatprep.subr.bf16.mxu0 0
  %10872 = vmatpush1.bf16.msra.mxu0 0
  %10873 = vmatprep.subr.bf16.mxu0 0
  %10874 = vmatpush1.bf16.msra.mxu0 0
  %10875 = vmatprep.subr.bf16.mxu0 0
  %10876 = vmatpush1.bf16.msra.mxu0 0
  %10877 = vmatprep.subr.bf16.mxu0 0
  %10878 = vmatpush1.bf16.msra.mxu0 0
  %10879 = vmatprep.subr.bf16.mxu0 0
  %10880 = vmatpush1.bf16.msra.mxu0 0
  %10881 = vmatprep.subr.bf16.mxu0 0
  %10882 = vmatpush1.bf16.msra.mxu0 0
  %10883 = vmatprep.subr.bf16.mxu0 0
  %10884 = vmatpush1.bf16.msra.mxu0 0
  %10885 = vmatprep.subr.bf16.mxu0 0
  %10886 = vmatpush1.bf16.msra.mxu0 0
  %10887 = vmatprep.subr.bf16.mxu0 0
  %10888 = vmatpush1.bf16.msra.mxu0 0
  %10889 = vmatprep.subr.bf16.mxu0 0
  %10890 = vmatpush1.bf16.msra.mxu0 0
  %10891 = vmatprep.subr.bf16.mxu0 0
  %10892 = vmatpush1.bf16.msra.mxu0 0
  %10893 = vmatprep.subr.bf16.mxu0 0
  %10894 = vmatpush1.bf16.msra.mxu0 0
  %10895 = vmatprep.mubr.bf16.mxu0 0
  %10896 = vmatmul.mubr.bf16.gmra.mrb[0].mxu0 %v10722
  %v10897 = vpop.f32.mrb[0].mxu0
  %v10898 = vadd.f32 %v10833, %v10897
  %v10899 = vpop.f32.mrb[0].mxu0
  %v10900 = vpop.f32.mrb[0].mxu0
  %v10901 = vadd.f32 %v10836, %v10900
  %v10902 = vpop.f32.mrb[0].mxu0
  %10903 = vmatprep.mubr.bf16.mxu0 0
  %10904 = vmatmul.mubr.bf16.gmra.mrb[0].mxu0 %v10725
  %v10905 = vpop.f32.mrb[0].mxu0
  %v10906 = vadd.f32 %v10841, %v10905
  %v10907 = vpop.f32.mrb[0].mxu0
  %v10908 = vpop.f32.mrb[0].mxu0
  %v10909 = vadd.f32 %v10844, %v10908
  %v10910 = vpop.f32.mrb[0].mxu0
  %10911 = vmatprep.mubr.bf16.mxu0 0
  %10912 = vmatmul.mubr.bf16.gmra.mrb[0].mxu0 %v10728
  %v10913 = vpop.f32.mrb[0].mxu0
  %v10914 = vadd.f32 %v10849, %v10913
  %v10915 = vpop.f32.mrb[0].mxu0
  %v10916 = vpop.f32.mrb[0].mxu0
  %v10917 = vadd.f32 %v10852, %v10916
  %v10918 = vpop.f32.mrb[0].mxu0
  %10919 = vmatprep.mubr.bf16.mxu0 0
  %10920 = vmatmul.mubr.bf16.gmra.mrb[0].mxu0 %v10731
  %v10921 = vpop.f32.mrb[0].mxu0
  %v10922 = vadd.f32 %v10857, %v10921
  %v10923 = vpop.f32.mrb[0].mxu0
  %v10924 = vpop.f32.mrb[0].mxu0
  %v10925 = vadd.f32 %v10860, %v10924
  %v10926 = vpop.f32.mrb[0].mxu0
  %10927 = vdwg.mxu0
  %v10928 = vmax.f32 %v10898, 0.0
  %v10929 = vmax.f32 %v10901, 0.0
  %v10930 = vmax.f32 %v10906, 0.0
  %v10931 = vmax.f32 %v10909, 0.0
  %v10932 = vmax.f32 %v10914, 0.0
  %v10933 = vmax.f32 %v10917, 0.0
  %v10934 = vmax.f32 %v10922, 0.0
  %v10935 = vmax.f32 %v10925, 0.0
  %v10936 = vld [vmem:[%s75] sm:$0x1]
  %v10938 = vlaneseq
  %v10939 = vshrl.u32 %v10938, 7
  %v10940 = vsub.s32 0, %v10939
  %v10941 = vrot.slane %v10936, %v10940
  %v10943 = vmul.f32 %v10928, %v10941
  %v10944 = vmul.f32 %v10929, %v10941
  %v10945 = vmul.f32 %v10930, %v10941
  %v10946 = vmul.f32 %v10931, %v10941
  %v10947 = vmul.f32 %v10932, %v10941
  %v10948 = vmul.f32 %v10933, %v10941
  %v10949 = vmul.f32 %v10934, %v10941
  %v10950 = vmul.f32 %v10935, %v10941
  %10951 = vst.msk [vmem:[#allocation2] sm:$0xff] %vm8842, 0.0
  %10952 = vst.msk [vmem:[#allocation2 + $0x50] sm:$0xff] %vm8842, 0.0
  %10953 = vst.msk [vmem:[#allocation2 + $0xa0] sm:$0xff] %vm8842, 0.0
  %10954 = vst.msk [vmem:[#allocation2 + $0xf0] sm:$0xff] %vm8842, 0.0
  %10955 = vst.msk [vmem:[#allocation2 + $0x140] sm:$0xff] %vm8842, 0.0
  %10956 = vst.msk [vmem:[#allocation2 + $0x190] sm:$0xff] %vm8842, 0.0
  %10957 = vst.msk [vmem:[#allocation2 + $0x1e0] sm:$0xff] %vm8842, 0.0
  %10958 = vst.msk [vmem:[#allocation2 + $0x230] sm:$0xff] %vm8842, 0.0
  %10967 = vrot.lane.b32.xlu0 %v10943, 5
  %v10968 = vpop.permute.xlu0 %10967
  %10969 = vrot.lane.b32.xlu0 %v10944, 5
  %v10970 = vpop.permute.xlu0 %10969
  %10971 = vrot.lane.b32.xlu0 %v10945, 5
  %v10972 = vpop.permute.xlu0 %10971
  %10973 = vrot.lane.b32.xlu0 %v10946, 5
  %v10974 = vpop.permute.xlu0 %10973
  %10975 = vrot.lane.b32.xlu0 %v10947, 5
  %v10976 = vpop.permute.xlu0 %10975
  %10977 = vrot.lane.b32.xlu0 %v10948, 5
  %v10978 = vpop.permute.xlu0 %10977
  %10979 = vrot.lane.b32.xlu0 %v10949, 5
  %v10980 = vpop.permute.xlu0 %10979
  %10981 = vrot.lane.b32.xlu0 %v10950, 5
  %v10982 = vpop.permute.xlu0 %10981
  %10991 = vst.msk [vmem:[#allocation2] sm:$0xff] %vm8883, %v10968
  %10992 = vst.msk [vmem:[#allocation2 + $0x50] sm:$0xff] %vm8883, %v10970
  %10993 = vst.msk [vmem:[#allocation2 + $0xa0] sm:$0xff] %vm8883, %v10972
  %10994 = vst.msk [vmem:[#allocation2 + $0xf0] sm:$0xff] %vm8883, %v10974
  %10995 = vst.msk [vmem:[#allocation2 + $0x140] sm:$0xff] %vm8883, %v10976
  %10996 = vst.msk [vmem:[#allocation2 + $0x190] sm:$0xff] %vm8883, %v10978
  %10997 = vst.msk [vmem:[#allocation2 + $0x1e0] sm:$0xff] %vm8883, %v10980
  %10998 = vst.msk [vmem:[#allocation2 + $0x230] sm:$0xff] %vm8883, %v10982
  %10999 = vst.msk [vmem:[#allocation2] sm:$0xff] %vm8892, 0.0
  %11000 = vst.msk [vmem:[#allocation2 + $0x50] sm:$0xff] %vm8892, 0.0
  %11001 = vst.msk [vmem:[#allocation2 + $0xa0] sm:$0xff] %vm8892, 0.0
  %11002 = vst.msk [vmem:[#allocation2 + $0xf0] sm:$0xff] %vm8892, 0.0
  %11003 = vst.msk [vmem:[#allocation2 + $0x140] sm:$0xff] %vm8892, 0.0
  %11004 = vst.msk [vmem:[#allocation2 + $0x190] sm:$0xff] %vm8892, 0.0
  %11005 = vst.msk [vmem:[#allocation2 + $0x1e0] sm:$0xff] %vm8892, 0.0
  %11006 = vst.msk [vmem:[#allocation2 + $0x230] sm:$0xff] %vm8892, 0.0
  %v11007 = vld [vmem:[#allocation2] sm:$0xff]
  %v11008 = vld [vmem:[#allocation2 + $0x50] sm:$0xff]
  %v11009 = vld [vmem:[#allocation2 + $0xa0] sm:$0xff]
  %v11010 = vld [vmem:[#allocation2 + $0xf0] sm:$0xff]
  %v11011 = vld [vmem:[#allocation2 + $0x140] sm:$0xff]
  %v11012 = vld [vmem:[#allocation2 + $0x190] sm:$0xff]
  %v11013 = vld [vmem:[#allocation2 + $0x1e0] sm:$0xff]
  %v11014 = vld [vmem:[#allocation2 + $0x230] sm:$0xff]
  %11023 = vrot.lane.b32.xlu0 %v11007, 127
  %v11024 = vpop.permute.xlu0 %11023
  %11025 = vrot.lane.b32.xlu0 %v11008, 127
  %v11026 = vpop.permute.xlu0 %11025
  %11027 = vrot.lane.b32.xlu0 %v11009, 127
  %v11028 = vpop.permute.xlu0 %11027
  %11029 = vrot.lane.b32.xlu0 %v11010, 127
  %v11030 = vpop.permute.xlu0 %11029
  %11031 = vrot.lane.b32.xlu0 %v11011, 127
  %v11032 = vpop.permute.xlu0 %11031
  %11033 = vrot.lane.b32.xlu0 %v11012, 127
  %v11034 = vpop.permute.xlu0 %11033
  %11035 = vrot.lane.b32.xlu0 %v11013, 127
  %v11036 = vpop.permute.xlu0 %11035
  %11037 = vrot.lane.b32.xlu0 %v11014, 127
  %v11038 = vpop.permute.xlu0 %11037
  %11047 = vrot.lane.b32.xlu0 %v11007, 126
  %v11048 = vpop.permute.xlu0 %11047
  %11049 = vrot.lane.b32.xlu0 %v11008, 126
  %v11050 = vpop.permute.xlu0 %11049
  %11051 = vrot.lane.b32.xlu0 %v11009, 126
  %v11052 = vpop.permute.xlu0 %11051
  %11053 = vrot.lane.b32.xlu0 %v11010, 126
  %v11054 = vpop.permute.xlu0 %11053
  %11055 = vrot.lane.b32.xlu0 %v11011, 126
  %v11056 = vpop.permute.xlu0 %11055
  %11057 = vrot.lane.b32.xlu0 %v11012, 126
  %v11058 = vpop.permute.xlu0 %11057
  %11059 = vrot.lane.b32.xlu0 %v11013, 126
  %v11060 = vpop.permute.xlu0 %11059
  %11061 = vrot.lane.b32.xlu0 %v11014, 126
  %v11062 = vpop.permute.xlu0 %11061
  %11071 = vrot.lane.b32.xlu0 %v11007, 124
  %v11072 = vpop.permute.xlu0 %11071
  %11073 = vrot.lane.b32.xlu0 %v11008, 124
  %v11074 = vpop.permute.xlu0 %11073
  %11075 = vrot.lane.b32.xlu0 %v11009, 124
  %v11076 = vpop.permute.xlu0 %11075
  %11077 = vrot.lane.b32.xlu0 %v11010, 124
  %v11078 = vpop.permute.xlu0 %11077
  %11079 = vrot.lane.b32.xlu0 %v11011, 124
  %v11080 = vpop.permute.xlu0 %11079
  %11081 = vrot.lane.b32.xlu0 %v11012, 124
  %v11082 = vpop.permute.xlu0 %11081
  %11083 = vrot.lane.b32.xlu0 %v11013, 124
  %v11084 = vpop.permute.xlu0 %11083
  %11085 = vrot.lane.b32.xlu0 %v11014, 124
  %v11086 = vpop.permute.xlu0 %11085
  %11095 = vrot.lane.b32.xlu0 %v11007, 123
  %v11096 = vpop.permute.xlu0 %11095
  %11097 = vrot.lane.b32.xlu0 %v11008, 123
  %v11098 = vpop.permute.xlu0 %11097
  %11099 = vrot.lane.b32.xlu0 %v11009, 123
  %v11100 = vpop.permute.xlu0 %11099
  %11101 = vrot.lane.b32.xlu0 %v11010, 123
  %v11102 = vpop.permute.xlu0 %11101
  %11103 = vrot.lane.b32.xlu0 %v11011, 123
  %v11104 = vpop.permute.xlu0 %11103
  %11105 = vrot.lane.b32.xlu0 %v11012, 123
  %v11106 = vpop.permute.xlu0 %11105
  %11107 = vrot.lane.b32.xlu0 %v11013, 123
  %v11108 = vpop.permute.xlu0 %11107
  %11109 = vrot.lane.b32.xlu0 %v11014, 123
  %v11110 = vpop.permute.xlu0 %11109
  %11119 = vrot.lane.b32.xlu0 %v11007, 122
  %v11120 = vpop.permute.xlu0 %11119
  %11121 = vrot.lane.b32.xlu0 %v11008, 122
  %v11122 = vpop.permute.xlu0 %11121
  %11123 = vrot.lane.b32.xlu0 %v11009, 122
  %v11124 = vpop.permute.xlu0 %11123
  %11125 = vrot.lane.b32.xlu0 %v11010, 122
  %v11126 = vpop.permute.xlu0 %11125
  %11127 = vrot.lane.b32.xlu0 %v11011, 122
  %v11128 = vpop.permute.xlu0 %11127
  %11129 = vrot.lane.b32.xlu0 %v11012, 122
  %v11130 = vpop.permute.xlu0 %11129
  %11131 = vrot.lane.b32.xlu0 %v11013, 122
  %v11132 = vpop.permute.xlu0 %11131
  %11133 = vrot.lane.b32.xlu0 %v11014, 122
  %v11134 = vpop.permute.xlu0 %11133
  %11143 = vrot.lane.b32.xlu0 %v11007, 120
  %v11144 = vpop.permute.xlu0 %11143
  %11145 = vrot.lane.b32.xlu0 %v11008, 120
  %v11146 = vpop.permute.xlu0 %11145
  %11147 = vrot.lane.b32.xlu0 %v11009, 120
  %v11148 = vpop.permute.xlu0 %11147
  %11149 = vrot.lane.b32.xlu0 %v11010, 120
  %v11150 = vpop.permute.xlu0 %11149
  %11151 = vrot.lane.b32.xlu0 %v11011, 120
  %v11152 = vpop.permute.xlu0 %11151
  %11153 = vrot.lane.b32.xlu0 %v11012, 120
  %v11154 = vpop.permute.xlu0 %11153
  %11155 = vrot.lane.b32.xlu0 %v11013, 120
  %v11156 = vpop.permute.xlu0 %11155
  %11157 = vrot.lane.b32.xlu0 %v11014, 120
  %v11158 = vpop.permute.xlu0 %11157
  %11167 = vrot.lane.b32.xlu0 %v11007, 119
  %v11168 = vpop.permute.xlu0 %11167
  %11169 = vrot.lane.b32.xlu0 %v11008, 119
  %v11170 = vpop.permute.xlu0 %11169
  %11171 = vrot.lane.b32.xlu0 %v11009, 119
  %v11172 = vpop.permute.xlu0 %11171
  %11173 = vrot.lane.b32.xlu0 %v11010, 119
  %v11174 = vpop.permute.xlu0 %11173
  %11175 = vrot.lane.b32.xlu0 %v11011, 119
  %v11176 = vpop.permute.xlu0 %11175
  %11177 = vrot.lane.b32.xlu0 %v11012, 119
  %v11178 = vpop.permute.xlu0 %11177
  %11179 = vrot.lane.b32.xlu0 %v11013, 119
  %v11180 = vpop.permute.xlu0 %11179
  %11181 = vrot.lane.b32.xlu0 %v11014, 119
  %v11182 = vpop.permute.xlu0 %11181
  %11191 = vrot.lane.b32.xlu0 %v11007, 118
  %v11192 = vpop.permute.xlu0 %11191
  %11193 = vrot.lane.b32.xlu0 %v11008, 118
  %v11194 = vpop.permute.xlu0 %11193
  %11195 = vrot.lane.b32.xlu0 %v11009, 118
  %v11196 = vpop.permute.xlu0 %11195
  %11197 = vrot.lane.b32.xlu0 %v11010, 118
  %v11198 = vpop.permute.xlu0 %11197
  %11199 = vrot.lane.b32.xlu0 %v11011, 118
  %v11200 = vpop.permute.xlu0 %11199
  %11201 = vrot.lane.b32.xlu0 %v11012, 118
  %v11202 = vpop.permute.xlu0 %11201
  %11203 = vrot.lane.b32.xlu0 %v11013, 118
  %v11204 = vpop.permute.xlu0 %11203
  %11205 = vrot.lane.b32.xlu0 %v11014, 118
  %v11206 = vpop.permute.xlu0 %11205
  %v11215 = vpack.c.bf16 %v11008, %v11007
  %v11216 = vpack.c.bf16 %v11010, %v11009
  %v11217 = vpack.c.bf16 %v11012, %v11011
  %v11218 = vpack.c.bf16 %v11014, %v11013
  %v11219 = vpack.c.bf16 %v11026, %v11024
  %v11220 = vpack.c.bf16 %v11030, %v11028
  %v11221 = vpack.c.bf16 %v11034, %v11032
  %v11222 = vpack.c.bf16 %v11038, %v11036
  %v11223 = vpack.c.bf16 %v11050, %v11048
  %v11224 = vpack.c.bf16 %v11054, %v11052
  %v11225 = vpack.c.bf16 %v11058, %v11056
  %v11226 = vpack.c.bf16 %v11062, %v11060
  %v11227 = vpack.c.bf16 %v11074, %v11072
  %v11228 = vpack.c.bf16 %v11078, %v11076
  %v11229 = vpack.c.bf16 %v11082, %v11080
  %v11230 = vpack.c.bf16 %v11086, %v11084
  %v11231 = vpack.c.bf16 %v11098, %v11096
  %v11232 = vpack.c.bf16 %v11102, %v11100
  %v11233 = vpack.c.bf16 %v11106, %v11104
  %v11234 = vpack.c.bf16 %v11110, %v11108
  %v11235 = vpack.c.bf16 %v11122, %v11120
  %v11236 = vpack.c.bf16 %v11126, %v11124
  %v11237 = vpack.c.bf16 %v11130, %v11128
  %v11238 = vpack.c.bf16 %v11134, %v11132
  %v11239 = vpack.c.bf16 %v11146, %v11144
  %v11240 = vpack.c.bf16 %v11150, %v11148
  %v11241 = vpack.c.bf16 %v11154, %v11152
  %v11242 = vpack.c.bf16 %v11158, %v11156
  %v11243 = vpack.c.bf16 %v11170, %v11168
  %v11244 = vpack.c.bf16 %v11174, %v11172
  %v11245 = vpack.c.bf16 %v11178, %v11176
  %v11246 = vpack.c.bf16 %v11182, %v11180
  %v11247 = vpack.c.bf16 %v11194, %v11192
  %v11248 = vpack.c.bf16 %v11198, %v11196
  %v11249 = vpack.c.bf16 %v11202, %v11200
  %v11250 = vpack.c.bf16 %v11206, %v11204
  %v11251 = vld [vmem:[%s63] sm:$0xff]
  %v11252 = vld [vmem:[%s63 + $0x8] sm:$0xff]
  %v11253 = vld [vmem:[%s63 + $0x10] sm:$0xf]
  %v11254 = vld [vmem:[%s63 + $0x14] sm:$0xff]
  %v11255 = vld [vmem:[%s63 + $0x1c] sm:$0xff]
  %v11256 = vld [vmem:[%s63 + $0x24] sm:$0xf]
  %v11257 = vld [vmem:[%s63 + $0x28] sm:$0xff]
  %v11258 = vld [vmem:[%s63 + $0x30] sm:$0xff]
  %v11259 = vld [vmem:[%s63 + $0x38] sm:$0xf]
  %v11260 = vld [vmem:[%s63 + $0x3c] sm:$0xff]
  %v11261 = vld [vmem:[%s63 + $0x44] sm:$0xff]
  %v11262 = vld [vmem:[%s63 + $0x4c] sm:$0xf]
  %v11263 = vld [vmem:[%s63 + $0x50] sm:$0xff]
  %v11264 = vld [vmem:[%s63 + $0x58] sm:$0xff]
  %v11265 = vld [vmem:[%s63 + $0x60] sm:$0xf]
  %v11266 = vld [vmem:[%s63 + $0x64] sm:$0xff]
  %v11267 = vld [vmem:[%s63 + $0x6c] sm:$0xff]
  %v11268 = vld [vmem:[%s63 + $0x74] sm:$0xf]
  %v11269 = vld [vmem:[%s63 + $0x78] sm:$0xff]
  %v11270 = vld [vmem:[%s63 + $0x80] sm:$0xff]
  %v11271 = vld [vmem:[%s63 + $0x88] sm:$0xf]
  %v11272 = vld [vmem:[%s63 + $0x8c] sm:$0xff]
  %v11273 = vld [vmem:[%s63 + $0x94] sm:$0xff]
  %v11274 = vld [vmem:[%s63 + $0x9c] sm:$0xf]
  %v11275 = vld [vmem:[%s65] sm:$0xff]
  %v11276 = vld [vmem:[%s65 + $0x8] sm:$0xff]
  %v11277 = vld [vmem:[%s65 + $0x10] sm:$0xff]
  %v11278 = vld [vmem:[%s65 + $0x18] sm:$0xff]
  %v11279 = vld [vmem:[%s65 + $0x20] sm:$0xff]
  %v11280 = vld [vmem:[%s65 + $0x28] sm:$0xff]
  %v11281 = vld [vmem:[%s65 + $0x30] sm:$0xff]
  %v11282 = vld [vmem:[%s65 + $0x38] sm:$0xff]
  %11284 = vset.pattern.permute.xlu0 0
  %11285 = vperm.xlu0 %11284, %v11275
  %v11286 = vpop.permute.xlu0 %11285
  %11289 = vset.pattern.permute.xlu0 0
  %11290 = vperm.xlu0 %11289, %v11276
  %v11291 = vpop.permute.xlu0 %11290
  %11294 = vset.pattern.permute.xlu0 0
  %11295 = vperm.xlu0 %11294, %v11277
  %v11296 = vpop.permute.xlu0 %11295
  %11299 = vset.pattern.permute.xlu0 0
  %11300 = vperm.xlu0 %11299, %v11278
  %v11301 = vpop.permute.xlu0 %11300
  %11304 = vset.pattern.permute.xlu0 0
  %11305 = vperm.xlu0 %11304, %v11279
  %v11306 = vpop.permute.xlu0 %11305
  %11309 = vset.pattern.permute.xlu0 0
  %11310 = vperm.xlu0 %11309, %v11280
  %v11311 = vpop.permute.xlu0 %11310
  %11314 = vset.pattern.permute.xlu0 0
  %11315 = vperm.xlu0 %11314, %v11281
  %v11316 = vpop.permute.xlu0 %11315
  %11319 = vset.pattern.permute.xlu0 0
  %11320 = vperm.xlu0 %11319, %v11282
  %v11321 = vpop.permute.xlu0 %11320
  %v11347 = vunpack.c.l.b16 %v11251
  %v11348 = vunpack.c.h.b16 %v11251
  %v11349 = vunpack.c.l.b16 %v11252
  %v11350 = vunpack.c.h.b16 %v11252
  %v11351 = vunpack.c.l.b16 %v11253
  %v11352 = vunpack.c.l.b16 %v11254
  %v11353 = vunpack.c.h.b16 %v11254
  %v11354 = vunpack.c.l.b16 %v11255
  %v11355 = vunpack.c.h.b16 %v11255
  %v11356 = vunpack.c.l.b16 %v11256
  %v11357 = vunpack.c.l.b16 %v11257
  %v11358 = vunpack.c.h.b16 %v11257
  %v11359 = vunpack.c.l.b16 %v11258
  %v11360 = vunpack.c.h.b16 %v11258
  %v11361 = vunpack.c.l.b16 %v11259
  %v11362 = vunpack.c.l.b16 %v11260
  %v11363 = vunpack.c.h.b16 %v11260
  %v11364 = vunpack.c.l.b16 %v11261
  %v11365 = vunpack.c.h.b16 %v11261
  %v11366 = vunpack.c.l.b16 %v11262
  %v11367 = vunpack.c.l.b16 %v11263
  %v11368 = vunpack.c.h.b16 %v11263
  %v11369 = vunpack.c.l.b16 %v11264
  %v11370 = vunpack.c.h.b16 %v11264
  %v11371 = vunpack.c.l.b16 %v11265
  %v11372 = vunpack.c.l.b16 %v11266
  %v11373 = vunpack.c.h.b16 %v11266
  %v11374 = vunpack.c.l.b16 %v11267
  %v11375 = vunpack.c.h.b16 %v11267
  %v11376 = vunpack.c.l.b16 %v11268
  %v11377 = vunpack.c.l.b16 %v11269
  %v11378 = vunpack.c.h.b16 %v11269
  %v11379 = vunpack.c.l.b16 %v11270
  %v11380 = vunpack.c.h.b16 %v11270
  %v11381 = vunpack.c.l.b16 %v11271
  %v11382 = vunpack.c.l.b16 %v11272
  %v11383 = vunpack.c.h.b16 %v11272
  %v11384 = vunpack.c.l.b16 %v11273
  %v11385 = vunpack.c.h.b16 %v11273
  %v11386 = vunpack.c.l.b16 %v11274
  %v11387 = vpack.c.b16 %v11352, %v11347
  %v11388 = vpack.c.b16 %v11353, %v11348
  %v11389 = vpack.c.b16 %v11354, %v11349
  %v11390 = vpack.c.b16 %v11355, %v11350
  %v11391 = vpack.c.b16 %v11356, %v11351
  %v11392 = vpack.c.b16 %v11362, %v11357
  %v11393 = vpack.c.b16 %v11363, %v11358
  %v11394 = vpack.c.b16 %v11364, %v11359
  %v11395 = vpack.c.b16 %v11365, %v11360
  %v11396 = vpack.c.b16 %v11366, %v11361
  %v11397 = vpack.c.b16 %v11372, %v11367
  %v11398 = vpack.c.b16 %v11373, %v11368
  %v11399 = vpack.c.b16 %v11374, %v11369
  %v11400 = vpack.c.b16 %v11375, %v11370
  %v11401 = vpack.c.b16 %v11376, %v11371
  %v11402 = vpack.c.b16 %v11382, %v11377
  %v11403 = vpack.c.b16 %v11383, %v11378
  %v11404 = vpack.c.b16 %v11384, %v11379
  %v11405 = vpack.c.b16 %v11385, %v11380
  %v11406 = vpack.c.b16 %v11386, %v11381
  %v11424 = vsel %vm6995, %v11391, 0
  %v11427 = vsel %vm6995, %v11396, 0
  %v11430 = vsel %vm6995, %v11401, 0
  %v11433 = vsel %vm6995, %v11406, 0
  %11435 = vmatprep.subr.bf16.mxu0 0
  %11436 = vmatpush1.bf16.msra.mxu0 %v11215
  %11437 = vmatprep.subr.bf16.mxu0 0
  %11438 = vmatpush1.bf16.msra.mxu0 %v11216
  %11439 = vmatprep.subr.bf16.mxu0 0
  %11440 = vmatpush1.bf16.msra.mxu0 %v11217
  %11441 = vmatprep.subr.bf16.mxu0 0
  %11442 = vmatpush1.bf16.msra.mxu0 %v11218
  %11443 = vmatprep.subr.bf16.mxu0 0
  %11444 = vmatpush1.bf16.msra.mxu0 %v11219
  %11445 = vmatprep.subr.bf16.mxu0 0
  %11446 = vmatpush1.bf16.msra.mxu0 %v11220
  %11447 = vmatprep.subr.bf16.mxu0 0
  %11448 = vmatpush1.bf16.msra.mxu0 %v11221
  %11449 = vmatprep.subr.bf16.mxu0 0
  %11450 = vmatpush1.bf16.msra.mxu0 %v11222
  %11451 = vmatprep.subr.bf16.mxu0 0
  %11452 = vmatpush1.bf16.msra.mxu0 %v11223
  %11453 = vmatprep.subr.bf16.mxu0 0
  %11454 = vmatpush1.bf16.msra.mxu0 %v11224
  %11455 = vmatprep.subr.bf16.mxu0 0
  %11456 = vmatpush1.bf16.msra.mxu0 %v11225
  %11457 = vmatprep.subr.bf16.mxu0 0
  %11458 = vmatpush1.bf16.msra.mxu0 %v11226
  %11459 = vmatprep.subr.bf16.mxu0 0
  %11460 = vmatpush1.bf16.msra.mxu0 %v11227
  %11461 = vmatprep.subr.bf16.mxu0 0
  %11462 = vmatpush1.bf16.msra.mxu0 %v11228
  %11463 = vmatprep.subr.bf16.mxu0 0
  %11464 = vmatpush1.bf16.msra.mxu0 %v11229
  %11465 = vmatprep.subr.bf16.mxu0 0
  %11466 = vmatpush1.bf16.msra.mxu0 %v11230
  %11467 = vmatprep.mubr.bf16.mxu0 %v11388
  %11468 = vmatmul.mubr.bf16.gmra.mrb[0].mxu0 %v11387
  %v11469 = vpop.f32.mrb[0].mxu0
  %v11470 = vadd.f32 %v11286, %v11469
  %v11471 = vpop.f32.mrb[0].mxu0
  %v11472 = vpop.f32.mrb[0].mxu0
  %v11473 = vadd.f32 %v11291, %v11472
  %v11474 = vpop.f32.mrb[0].mxu0
  %11475 = vmatprep.mubr.bf16.mxu0 %v11393
  %11476 = vmatmul.mubr.bf16.gmra.mrb[0].mxu0 %v11392
  %v11477 = vpop.f32.mrb[0].mxu0
  %v11478 = vadd.f32 %v11296, %v11477
  %v11479 = vpop.f32.mrb[0].mxu0
  %v11480 = vpop.f32.mrb[0].mxu0
  %v11481 = vadd.f32 %v11301, %v11480
  %v11482 = vpop.f32.mrb[0].mxu0
  %11483 = vmatprep.mubr.bf16.mxu0 %v11398
  %11484 = vmatmul.mubr.bf16.gmra.mrb[0].mxu0 %v11397
  %v11485 = vpop.f32.mrb[0].mxu0
  %v11486 = vadd.f32 %v11306, %v11485
  %v11487 = vpop.f32.mrb[0].mxu0
  %v11488 = vpop.f32.mrb[0].mxu0
  %v11489 = vadd.f32 %v11311, %v11488
  %v11490 = vpop.f32.mrb[0].mxu0
  %11491 = vmatprep.mubr.bf16.mxu0 %v11403
  %11492 = vmatmul.mubr.bf16.gmra.mrb[0].mxu0 %v11402
  %v11493 = vpop.f32.mrb[0].mxu0
  %v11494 = vadd.f32 %v11316, %v11493
  %v11495 = vpop.f32.mrb[0].mxu0
  %v11496 = vpop.f32.mrb[0].mxu0
  %v11497 = vadd.f32 %v11321, %v11496
  %v11498 = vpop.f32.mrb[0].mxu0
  %11499 = vdwg.mxu0
  %11500 = vmatprep.subr.bf16.mxu0 0
  %11501 = vmatpush1.bf16.msra.mxu0 %v11231
  %11502 = vmatprep.subr.bf16.mxu0 0
  %11503 = vmatpush1.bf16.msra.mxu0 %v11232
  %11504 = vmatprep.subr.bf16.mxu0 0
  %11505 = vmatpush1.bf16.msra.mxu0 %v11233
  %11506 = vmatprep.subr.bf16.mxu0 0
  %11507 = vmatpush1.bf16.msra.mxu0 %v11234
  %11508 = vmatprep.subr.bf16.mxu0 0
  %11509 = vmatpush1.bf16.msra.mxu0 %v11235
  %11510 = vmatprep.subr.bf16.mxu0 0
  %11511 = vmatpush1.bf16.msra.mxu0 %v11236
  %11512 = vmatprep.subr.bf16.mxu0 0
  %11513 = vmatpush1.bf16.msra.mxu0 %v11237
  %11514 = vmatprep.subr.bf16.mxu0 0
  %11515 = vmatpush1.bf16.msra.mxu0 %v11238
  %11516 = vmatprep.subr.bf16.mxu0 0
  %11517 = vmatpush1.bf16.msra.mxu0 %v11239
  %11518 = vmatprep.subr.bf16.mxu0 0
  %11519 = vmatpush1.bf16.msra.mxu0 %v11240
  %11520 = vmatprep.subr.bf16.mxu0 0
  %11521 = vmatpush1.bf16.msra.mxu0 %v11241
  %11522 = vmatprep.subr.bf16.mxu0 0
  %11523 = vmatpush1.bf16.msra.mxu0 %v11242
  %11524 = vmatprep.subr.bf16.mxu0 0
  %11525 = vmatpush1.bf16.msra.mxu0 %v11243
  %11526 = vmatprep.subr.bf16.mxu0 0
  %11527 = vmatpush1.bf16.msra.mxu0 %v11244
  %11528 = vmatprep.subr.bf16.mxu0 0
  %11529 = vmatpush1.bf16.msra.mxu0 %v11245
  %11530 = vmatprep.subr.bf16.mxu0 0
  %11531 = vmatpush1.bf16.msra.mxu0 %v11246
  %11532 = vmatprep.mubr.bf16.mxu0 %v11390
  %11533 = vmatmul.mubr.bf16.gmra.mrb[0].mxu0 %v11389
  %v11534 = vpop.f32.mrb[0].mxu0
  %v11535 = vadd.f32 %v11470, %v11534
  %v11536 = vpop.f32.mrb[0].mxu0
  %v11537 = vpop.f32.mrb[0].mxu0
  %v11538 = vadd.f32 %v11473, %v11537
  %v11539 = vpop.f32.mrb[0].mxu0
  %11540 = vmatprep.mubr.bf16.mxu0 %v11395
  %11541 = vmatmul.mubr.bf16.gmra.mrb[0].mxu0 %v11394
  %v11542 = vpop.f32.mrb[0].mxu0
  %v11543 = vadd.f32 %v11478, %v11542
  %v11544 = vpop.f32.mrb[0].mxu0
  %v11545 = vpop.f32.mrb[0].mxu0
  %v11546 = vadd.f32 %v11481, %v11545
  %v11547 = vpop.f32.mrb[0].mxu0
  %11548 = vmatprep.mubr.bf16.mxu0 %v11400
  %11549 = vmatmul.mubr.bf16.gmra.mrb[0].mxu0 %v11399
  %v11550 = vpop.f32.mrb[0].mxu0
  %v11551 = vadd.f32 %v11486, %v11550
  %v11552 = vpop.f32.mrb[0].mxu0
  %v11553 = vpop.f32.mrb[0].mxu0
  %v11554 = vadd.f32 %v11489, %v11553
  %v11555 = vpop.f32.mrb[0].mxu0
  %11556 = vmatprep.mubr.bf16.mxu0 %v11405
  %11557 = vmatmul.mubr.bf16.gmra.mrb[0].mxu0 %v11404
  %v11558 = vpop.f32.mrb[0].mxu0
  %v11559 = vadd.f32 %v11494, %v11558
  %v11560 = vpop.f32.mrb[0].mxu0
  %v11561 = vpop.f32.mrb[0].mxu0
  %v11562 = vadd.f32 %v11497, %v11561
  %v11563 = vpop.f32.mrb[0].mxu0
  %11564 = vdwg.mxu0
  %11565 = vmatprep.subr.bf16.mxu0 0
  %11566 = vmatpush1.bf16.msra.mxu0 %v11247
  %11567 = vmatprep.subr.bf16.mxu0 0
  %11568 = vmatpush1.bf16.msra.mxu0 %v11248
  %11569 = vmatprep.subr.bf16.mxu0 0
  %11570 = vmatpush1.bf16.msra.mxu0 %v11249
  %11571 = vmatprep.subr.bf16.mxu0 0
  %11572 = vmatpush1.bf16.msra.mxu0 %v11250
  %11573 = vmatprep.subr.bf16.mxu0 0
  %11574 = vmatpush1.bf16.msra.mxu0 0
  %11575 = vmatprep.subr.bf16.mxu0 0
  %11576 = vmatpush1.bf16.msra.mxu0 0
  %11577 = vmatprep.subr.bf16.mxu0 0
  %11578 = vmatpush1.bf16.msra.mxu0 0
  %11579 = vmatprep.subr.bf16.mxu0 0
  %11580 = vmatpush1.bf16.msra.mxu0 0
  %11581 = vmatprep.subr.bf16.mxu0 0
  %11582 = vmatpush1.bf16.msra.mxu0 0
  %11583 = vmatprep.subr.bf16.mxu0 0
  %11584 = vmatpush1.bf16.msra.mxu0 0
  %11585 = vmatprep.subr.bf16.mxu0 0
  %11586 = vmatpush1.bf16.msra.mxu0 0
  %11587 = vmatprep.subr.bf16.mxu0 0
  %11588 = vmatpush1.bf16.msra.mxu0 0
  %11589 = vmatprep.subr.bf16.mxu0 0
  %11590 = vmatpush1.bf16.msra.mxu0 0
  %11591 = vmatprep.subr.bf16.mxu0 0
  %11592 = vmatpush1.bf16.msra.mxu0 0
  %11593 = vmatprep.subr.bf16.mxu0 0
  %11594 = vmatpush1.bf16.msra.mxu0 0
  %11595 = vmatprep.subr.bf16.mxu0 0
  %11596 = vmatpush1.bf16.msra.mxu0 0
  %11597 = vmatprep.mubr.bf16.mxu0 0
  %11598 = vmatmul.mubr.bf16.gmra.mrb[0].mxu0 %v11424
  %v11599 = vpop.f32.mrb[0].mxu0
  %v11600 = vadd.f32 %v11535, %v11599
  %v11601 = vpop.f32.mrb[0].mxu0
  %v11602 = vpop.f32.mrb[0].mxu0
  %v11603 = vadd.f32 %v11538, %v11602
  %v11604 = vpop.f32.mrb[0].mxu0
  %11605 = vmatprep.mubr.bf16.mxu0 0
  %11606 = vmatmul.mubr.bf16.gmra.mrb[0].mxu0 %v11427
  %v11607 = vpop.f32.mrb[0].mxu0
  %v11608 = vadd.f32 %v11543, %v11607
  %v11609 = vpop.f32.mrb[0].mxu0
  %v11610 = vpop.f32.mrb[0].mxu0
  %v11611 = vadd.f32 %v11546, %v11610
  %v11612 = vpop.f32.mrb[0].mxu0
  %11613 = vmatprep.mubr.bf16.mxu0 0
  %11614 = vmatmul.mubr.bf16.gmra.mrb[0].mxu0 %v11430
  %v11615 = vpop.f32.mrb[0].mxu0
  %v11616 = vadd.f32 %v11551, %v11615
  %v11617 = vpop.f32.mrb[0].mxu0
  %v11618 = vpop.f32.mrb[0].mxu0
  %v11619 = vadd.f32 %v11554, %v11618
  %v11620 = vpop.f32.mrb[0].mxu0
  %11621 = vmatprep.mubr.bf16.mxu0 0
  %11622 = vmatmul.mubr.bf16.gmra.mrb[0].mxu0 %v11433
  %v11623 = vpop.f32.mrb[0].mxu0
  %v11624 = vadd.f32 %v11559, %v11623
  %v11625 = vpop.f32.mrb[0].mxu0
  %v11626 = vpop.f32.mrb[0].mxu0
  %v11627 = vadd.f32 %v11562, %v11626
  %v11628 = vpop.f32.mrb[0].mxu0
  %11629 = vdwg.mxu0
  %v11630 = vmax.f32 %v11600, 0.0
  %v11631 = vmax.f32 %v11603, 0.0
  %v11632 = vmax.f32 %v11608, 0.0
  %v11633 = vmax.f32 %v11611, 0.0
  %v11634 = vmax.f32 %v11616, 0.0
  %v11635 = vmax.f32 %v11619, 0.0
  %v11636 = vmax.f32 %v11624, 0.0
  %v11637 = vmax.f32 %v11627, 0.0
  %11638 = vst.msk [vmem:[#allocation2] sm:$0xff] %vm4284, %v11630
  %11639 = vst.msk [vmem:[#allocation2 + $0x50] sm:$0xff] %vm4284, %v11631
  %11640 = vst.msk [vmem:[#allocation2 + $0xa0] sm:$0xff] %vm4284, %v11632
  %11641 = vst.msk [vmem:[#allocation2 + $0xf0] sm:$0xff] %vm4284, %v11633
  %11642 = vst.msk [vmem:[#allocation2 + $0x140] sm:$0xff] %vm4284, %v11634
  %11643 = vst.msk [vmem:[#allocation2 + $0x190] sm:$0xff] %vm4284, %v11635
  %11644 = vst.msk [vmem:[#allocation2 + $0x1e0] sm:$0xff] %vm4284, %v11636
  %11645 = vst.msk [vmem:[#allocation2 + $0x230] sm:$0xff] %vm4284, %v11637
  %vm11646 = vcmask 171136
  %11647 = vst.msk [vmem:[#allocation2] sm:$0xff] %vm11646, 0.0
  %11648 = vst.msk [vmem:[#allocation2 + $0x50] sm:$0xff] %vm11646, 0.0
  %11649 = vst.msk [vmem:[#allocation2 + $0xa0] sm:$0xff] %vm11646, 0.0
  %11650 = vst.msk [vmem:[#allocation2 + $0xf0] sm:$0xff] %vm11646, 0.0
  %11651 = vst.msk [vmem:[#allocation2 + $0x140] sm:$0xff] %vm11646, 0.0
  %11652 = vst.msk [vmem:[#allocation2 + $0x190] sm:$0xff] %vm11646, 0.0
  %11653 = vst.msk [vmem:[#allocation2 + $0x1e0] sm:$0xff] %vm11646, 0.0
  %11654 = vst.msk [vmem:[#allocation2 + $0x230] sm:$0xff] %vm11646, 0.0
  %v11655 = vld [vmem:[#allocation2] sm:$0xff]
  %v11656 = vld [vmem:[#allocation2 + $0x50] sm:$0xff]
  %v11657 = vld [vmem:[#allocation2 + $0xa0] sm:$0xff]
  %v11658 = vld [vmem:[#allocation2 + $0xf0] sm:$0xff]
  %v11659 = vld [vmem:[#allocation2 + $0x140] sm:$0xff]
  %v11660 = vld [vmem:[#allocation2 + $0x190] sm:$0xff]
  %v11661 = vld [vmem:[#allocation2 + $0x1e0] sm:$0xff]
  %v11662 = vld [vmem:[#allocation2 + $0x230] sm:$0xff]
  %11671 = vrot.lane.b32.xlu0 %v11655, 127
  %v11672 = vpop.permute.xlu0 %11671
  %11673 = vrot.lane.b32.xlu0 %v11656, 127
  %v11674 = vpop.permute.xlu0 %11673
  %11675 = vrot.lane.b32.xlu0 %v11657, 127
  %v11676 = vpop.permute.xlu0 %11675
  %11677 = vrot.lane.b32.xlu0 %v11658, 127
  %v11678 = vpop.permute.xlu0 %11677
  %11679 = vrot.lane.b32.xlu0 %v11659, 127
  %v11680 = vpop.permute.xlu0 %11679
  %11681 = vrot.lane.b32.xlu0 %v11660, 127
  %v11682 = vpop.permute.xlu0 %11681
  %11683 = vrot.lane.b32.xlu0 %v11661, 127
  %v11684 = vpop.permute.xlu0 %11683
  %11685 = vrot.lane.b32.xlu0 %v11662, 127
  %v11686 = vpop.permute.xlu0 %11685
  %v11695 = vmax.f32 %v11655, %v11672
  %v11696 = vmax.f32 %v11656, %v11674
  %v11697 = vmax.f32 %v11657, %v11676
  %v11698 = vmax.f32 %v11658, %v11678
  %v11699 = vmax.f32 %v11659, %v11680
  %v11700 = vmax.f32 %v11660, %v11682
  %v11701 = vmax.f32 %v11661, %v11684
  %v11702 = vmax.f32 %v11662, %v11686
  %vm11703 = vcmask 162816
  %11704 = vst.msk [vmem:[#allocation2] sm:$0xff] %vm11703, %v11695
  %11705 = vst.msk [vmem:[#allocation2 + $0x50] sm:$0xff] %vm11703, %v11696
  %11706 = vst.msk [vmem:[#allocation2 + $0xa0] sm:$0xff] %vm11703, %v11697
  %11707 = vst.msk [vmem:[#allocation2 + $0xf0] sm:$0xff] %vm11703, %v11698
  %11708 = vst.msk [vmem:[#allocation2 + $0x140] sm:$0xff] %vm11703, %v11699
  %11709 = vst.msk [vmem:[#allocation2 + $0x190] sm:$0xff] %vm11703, %v11700
  %11710 = vst.msk [vmem:[#allocation2 + $0x1e0] sm:$0xff] %vm11703, %v11701
  %11711 = vst.msk [vmem:[#allocation2 + $0x230] sm:$0xff] %vm11703, %v11702
  %v11712 = vld [vmem:[#allocation2] sm:$0xff]
  %v11713 = vld [vmem:[#allocation2 + $0x50] sm:$0xff]
  %v11714 = vld [vmem:[#allocation2 + $0xa0] sm:$0xff]
  %v11715 = vld [vmem:[#allocation2 + $0xf0] sm:$0xff]
  %v11716 = vld [vmem:[#allocation2 + $0x140] sm:$0xff]
  %v11717 = vld [vmem:[#allocation2 + $0x190] sm:$0xff]
  %v11718 = vld [vmem:[#allocation2 + $0x1e0] sm:$0xff]
  %v11719 = vld [vmem:[#allocation2 + $0x230] sm:$0xff]
  %11728 = vrot.lane.b32.xlu0 %v11712, 124
  %v11729 = vpop.permute.xlu0 %11728
  %11730 = vrot.lane.b32.xlu0 %v11713, 124
  %v11731 = vpop.permute.xlu0 %11730
  %11732 = vrot.lane.b32.xlu0 %v11714, 124
  %v11733 = vpop.permute.xlu0 %11732
  %11734 = vrot.lane.b32.xlu0 %v11715, 124
  %v11735 = vpop.permute.xlu0 %11734
  %11736 = vrot.lane.b32.xlu0 %v11716, 124
  %v11737 = vpop.permute.xlu0 %11736
  %11738 = vrot.lane.b32.xlu0 %v11717, 124
  %v11739 = vpop.permute.xlu0 %11738
  %11740 = vrot.lane.b32.xlu0 %v11718, 124
  %v11741 = vpop.permute.xlu0 %11740
  %11742 = vrot.lane.b32.xlu0 %v11719, 124
  %v11743 = vpop.permute.xlu0 %11742
  %v11752 = vmax.f32 %v11712, %v11729
  %v11753 = vmax.f32 %v11713, %v11731
  %v11754 = vmax.f32 %v11714, %v11733
  %v11755 = vmax.f32 %v11715, %v11735
  %v11756 = vmax.f32 %v11716, %v11737
  %v11757 = vmax.f32 %v11717, %v11739
  %v11758 = vmax.f32 %v11718, %v11741
  %v11759 = vmax.f32 %v11719, %v11743
  %v11760 = vpack.c.bf16 %v11753, %v11752
  %v11761 = vpack.c.bf16 %v11755, %v11754
  %v11762 = vpack.c.bf16 %v11757, %v11756
  %v11763 = vpack.c.bf16 %v11759, %v11758
  %v11764 = vld [vmem:[%s85] sm:$0xf]
  %v11765 = vld [vmem:[%s85 + $0x4] sm:$0xf]
  %v11768 = vunpack.c.l.b16 %v11764
  %v11769 = vunpack.c.l.b16 %v11765
  %v11770 = vpack.c.b16 %v11769, %v11768
  %v11773 = vsel %vm4284, %v11760, 0
  %v11776 = vsel %vm4284, %v11761, 0
  %v11779 = vsel %vm4284, %v11762, 0
  %v11782 = vsel %vm4284, %v11763, 0
  %11784 = vmatprep.subr.bf16.mxu0 0
  %11785 = vmatpush1.bf16.msra.mxu0 %v11770
  %11786 = vmatprep.subr.bf16.mxu0 0
  %11787 = vmatpush1.bf16.msra.mxu0 0
  %11788 = vmatprep.subr.bf16.mxu0 0
  %11789 = vmatpush1.bf16.msra.mxu0 0
  %11790 = vmatprep.subr.bf16.mxu0 0
  %11791 = vmatpush1.bf16.msra.mxu0 0
  %11792 = vmatprep.subr.bf16.mxu0 0
  %11793 = vmatpush1.bf16.msra.mxu0 0
  %11794 = vmatprep.subr.bf16.mxu0 0
  %11795 = vmatpush1.bf16.msra.mxu0 0
  %11796 = vmatprep.subr.bf16.mxu0 0
  %11797 = vmatpush1.bf16.msra.mxu0 0
  %11798 = vmatprep.subr.bf16.mxu0 0
  %11799 = vmatpush1.bf16.msra.mxu0 0
  %11800 = vmatprep.subr.bf16.mxu0 0
  %11801 = vmatpush1.bf16.msra.mxu0 0
  %11802 = vmatprep.subr.bf16.mxu0 0
  %11803 = vmatpush1.bf16.msra.mxu0 0
  %11804 = vmatprep.subr.bf16.mxu0 0
  %11805 = vmatpush1.bf16.msra.mxu0 0
  %11806 = vmatprep.subr.bf16.mxu0 0
  %11807 = vmatpush1.bf16.msra.mxu0 0
  %11808 = vmatprep.subr.bf16.mxu0 0
  %11809 = vmatpush1.bf16.msra.mxu0 0
  %11810 = vmatprep.subr.bf16.mxu0 0
  %11811 = vmatpush1.bf16.msra.mxu0 0
  %11812 = vmatprep.subr.bf16.mxu0 0
  %11813 = vmatpush1.bf16.msra.mxu0 0
  %11814 = vmatprep.subr.bf16.mxu0 0
  %11815 = vmatpush1.bf16.msra.mxu0 0
  %11816 = vmatprep.mubr.bf16.mxu0 0
  %11817 = vmatmul.mubr.bf16.gmra.mrb[0].mxu0 %v11773
  %v11818 = vpop.f32.mrb[0].mxu0
  %v11819 = vadd.f32 0.0, %v11818
  %v11820 = vpop.f32.mrb[0].mxu0
  %v11821 = vpop.f32.mrb[0].mxu0
  %v11822 = vadd.f32 0.0, %v11821
  %v11823 = vpop.f32.mrb[0].mxu0
  %11824 = vmatprep.mubr.bf16.mxu0 0
  %11825 = vmatmul.mubr.bf16.gmra.mrb[0].mxu0 %v11776
  %v11826 = vpop.f32.mrb[0].mxu0
  %v11827 = vadd.f32 0.0, %v11826
  %v11828 = vpop.f32.mrb[0].mxu0
  %v11829 = vpop.f32.mrb[0].mxu0
  %v11830 = vadd.f32 0.0, %v11829
  %v11831 = vpop.f32.mrb[0].mxu0
  %11832 = vmatprep.mubr.bf16.mxu0 0
  %11833 = vmatmul.mubr.bf16.gmra.mrb[0].mxu0 %v11779
  %v11834 = vpop.f32.mrb[0].mxu0
  %v11835 = vadd.f32 0.0, %v11834
  %v11836 = vpop.f32.mrb[0].mxu0
  %v11837 = vpop.f32.mrb[0].mxu0
  %v11838 = vadd.f32 0.0, %v11837
  %v11839 = vpop.f32.mrb[0].mxu0
  %11840 = vmatprep.mubr.bf16.mxu0 0
  %11841 = vmatmul.mubr.bf16.gmra.mrb[0].mxu0 %v11782
  %v11842 = vpop.f32.mrb[0].mxu0
  %v11843 = vadd.f32 0.0, %v11842
  %v11844 = vpop.f32.mrb[0].mxu0
  %v11845 = vpop.f32.mrb[0].mxu0
  %v11846 = vadd.f32 0.0, %v11845
  %v11847 = vpop.f32.mrb[0].mxu0
  %11848 = vdwg.mxu0
  %v11849 = vld [vmem:[%s87] sm:$0xff]
  %v11850 = vld [vmem:[%s87 + $0x8] sm:$0xff]
  %v11851 = vld [vmem:[%s87 + $0x10] sm:$0xff]
  %v11852 = vld [vmem:[%s87 + $0x18] sm:$0xff]
  %v11853 = vld [vmem:[%s87 + $0x20] sm:$0xff]
  %v11854 = vld [vmem:[%s87 + $0x28] sm:$0xff]
  %v11855 = vld [vmem:[%s87 + $0x30] sm:$0xff]
  %v11856 = vld [vmem:[%s87 + $0x38] sm:$0xff]
  %v11857 = vld [vmem:[%s87 + $0x40] sm:$0xff]
  %v11858 = vld [vmem:[%s87 + $0x48] sm:$0xff]
  %v11859 = vld [vmem:[%s87 + $0x50] sm:$0xff]
  %v11860 = vld [vmem:[%s87 + $0x58] sm:$0xff]
  %v11861 = vld [vmem:[%s87 + $0x60] sm:$0xff]
  %v11862 = vld [vmem:[%s87 + $0x68] sm:$0xff]
  %v11863 = vld [vmem:[%s87 + $0x70] sm:$0xff]
  %v11864 = vld [vmem:[%s87 + $0x78] sm:$0xff]
  %v11865 = vld [vmem:[%s89] sm:$0xff]
  %v11866 = vld [vmem:[%s89 + $0x8] sm:$0xff]
  %v11867 = vld [vmem:[%s89 + $0x10] sm:$0xff]
  %v11868 = vld [vmem:[%s89 + $0x18] sm:$0xff]
  %v11869 = vld [vmem:[%s89 + $0x20] sm:$0xff]
  %v11870 = vld [vmem:[%s89 + $0x28] sm:$0xff]
  %v11871 = vld [vmem:[%s89 + $0x30] sm:$0xff]
  %v11872 = vld [vmem:[%s89 + $0x38] sm:$0xff]
  %v11873 = vld [vmem:[%s89 + $0x40] sm:$0xff]
  %v11874 = vld [vmem:[%s89 + $0x48] sm:$0xff]
  %v11875 = vld [vmem:[%s89 + $0x50] sm:$0xff]
  %v11876 = vld [vmem:[%s89 + $0x58] sm:$0xff]
  %v11877 = vld [vmem:[%s89 + $0x60] sm:$0xff]
  %v11878 = vld [vmem:[%s89 + $0x68] sm:$0xff]
  %v11879 = vld [vmem:[%s89 + $0x70] sm:$0xff]
  %v11880 = vld [vmem:[%s89 + $0x78] sm:$0xff]
  %v11881 = vld [vmem:[%s91] sm:$0xff]
  %v11882 = vld [vmem:[%s91 + $0x8] sm:$0xff]
  %v11883 = vld [vmem:[%s91 + $0x10] sm:$0xff]
  %v11884 = vld [vmem:[%s91 + $0x18] sm:$0xff]
  %v11885 = vld [vmem:[%s91 + $0x20] sm:$0xff]
  %v11886 = vld [vmem:[%s91 + $0x28] sm:$0xff]
  %v11887 = vld [vmem:[%s91 + $0x30] sm:$0xff]
  %v11888 = vld [vmem:[%s91 + $0x38] sm:$0xff]
  %v11889 = vld [vmem:[%s91 + $0x40] sm:$0xff]
  %v11890 = vld [vmem:[%s91 + $0x48] sm:$0xff]
  %v11891 = vld [vmem:[%s91 + $0x50] sm:$0xff]
  %v11892 = vld [vmem:[%s91 + $0x58] sm:$0xff]
  %v11893 = vld [vmem:[%s91 + $0x60] sm:$0xff]
  %v11894 = vld [vmem:[%s91 + $0x68] sm:$0xff]
  %v11895 = vld [vmem:[%s91 + $0x70] sm:$0xff]
  %v11896 = vld [vmem:[%s91 + $0x78] sm:$0xff]
  %v11897 = vld [vmem:[%s93] sm:$0xff]
  %v11898 = vld [vmem:[%s93 + $0x8] sm:$0xff]
  %v11899 = vld [vmem:[%s93 + $0x10] sm:$0xff]
  %v11900 = vld [vmem:[%s93 + $0x18] sm:$0xff]
  %v11901 = vld [vmem:[%s93 + $0x20] sm:$0xff]
  %v11902 = vld [vmem:[%s93 + $0x28] sm:$0xff]
  %v11903 = vld [vmem:[%s93 + $0x30] sm:$0xff]
  %v11904 = vld [vmem:[%s93 + $0x38] sm:$0xff]
  %v11905 = vld [vmem:[%s93 + $0x40] sm:$0xff]
  %v11906 = vld [vmem:[%s93 + $0x48] sm:$0xff]
  %v11907 = vld [vmem:[%s93 + $0x50] sm:$0xff]
  %v11908 = vld [vmem:[%s93 + $0x58] sm:$0xff]
  %v11909 = vld [vmem:[%s93 + $0x60] sm:$0xff]
  %v11910 = vld [vmem:[%s93 + $0x68] sm:$0xff]
  %v11911 = vld [vmem:[%s93 + $0x70] sm:$0xff]
  %v11912 = vld [vmem:[%s93 + $0x78] sm:$0xff]
  %v11913 = vld [vmem:[%s95] sm:$0xff]
  %v11914 = vld [vmem:[%s95 + $0x8] sm:$0x3]
  %v11915 = vld [vmem:[%s97] sm:$0xff]
  %v11916 = vld [vmem:[%s97 + $0x8] sm:$0x3]
  %v11918 = vsel %vm6995, %v11849, 0
  %v11921 = vsel %vm6995, %v11850, 0
  %v11924 = vsel %vm6995, %v11851, 0
  %v11927 = vsel %vm6995, %v11852, 0
  %v11930 = vsel %vm6995, %v11853, 0
  %v11933 = vsel %vm6995, %v11854, 0
  %v11936 = vsel %vm6995, %v11855, 0
  %v11939 = vsel %vm6995, %v11856, 0
  %v11942 = vsel %vm6995, %v11857, 0
  %v11945 = vsel %vm6995, %v11858, 0
  %v11948 = vsel %vm6995, %v11859, 0
  %v11951 = vsel %vm6995, %v11860, 0
  %v11954 = vsel %vm6995, %v11861, 0
  %v11957 = vsel %vm6995, %v11862, 0
  %v11960 = vsel %vm6995, %v11863, 0
  %v11963 = vsel %vm6995, %v11864, 0
  %11965 = vmatprep.subr.mxu0 0.0
  %11966 = vmatpush1.msra.mxu0 %v11819
  %11967 = vmatprep.subr.mxu0 0.0
  %11968 = vmatpush1.msra.mxu0 %v11822
  %11969 = vmatprep.subr.mxu0 0.0
  %11970 = vmatpush1.msra.mxu0 %v11827
  %11971 = vmatprep.subr.mxu0 0.0
  %11972 = vmatpush1.msra.mxu0 %v11830
  %11973 = vmatprep.subr.mxu0 0.0
  %11974 = vmatpush1.msra.mxu0 %v11835
  %11975 = vmatprep.subr.mxu0 0.0
  %11976 = vmatpush1.msra.mxu0 %v11838
  %11977 = vmatprep.subr.mxu0 0.0
  %11978 = vmatpush1.msra.mxu0 %v11843
  %11979 = vmatprep.subr.mxu0 0.0
  %11980 = vmatpush1.msra.mxu0 %v11846
  %11981 = vmatprep.subr.mxu0 0.0
  %11982 = vmatpush1.msra.mxu0 0.0
  %11983 = vmatprep.subr.mxu0 0.0
  %11984 = vmatpush1.msra.mxu0 0.0
  %11985 = vmatprep.subr.mxu0 0.0
  %11986 = vmatpush1.msra.mxu0 0.0
  %11987 = vmatprep.subr.mxu0 0.0
  %11988 = vmatpush1.msra.mxu0 0.0
  %11989 = vmatprep.subr.mxu0 0.0
  %11990 = vmatpush1.msra.mxu0 0.0
  %11991 = vmatprep.subr.mxu0 0.0
  %11992 = vmatpush1.msra.mxu0 0.0
  %11993 = vmatprep.subr.mxu0 0.0
  %11994 = vmatpush1.msra.mxu0 0.0
  %11995 = vmatprep.subr.mxu0 0.0
  %11996 = vmatpush1.msra.mxu0 0.0
  %11997 = vmatprep.subr.mxu0 0.0
  %11998 = vmatpush1.msra.mxu0 0.0
  %11999 = vmatprep.subr.mxu0 0.0
  %12000 = vmatpush1.msra.mxu0 0.0
  %12001 = vmatprep.subr.mxu0 0.0
  %12002 = vmatpush1.msra.mxu0 0.0
  %12003 = vmatprep.subr.mxu0 0.0
  %12004 = vmatpush1.msra.mxu0 0.0
  %12005 = vmatprep.subr.mxu0 0.0
  %12006 = vmatpush1.msra.mxu0 0.0
  %12007 = vmatprep.subr.mxu0 0.0
  %12008 = vmatpush1.msra.mxu0 0.0
  %12009 = vmatprep.subr.mxu0 0.0
  %12010 = vmatpush1.msra.mxu0 0.0
  %12011 = vmatprep.subr.mxu0 0.0
  %12012 = vmatpush1.msra.mxu0 0.0
  %12013 = vmatprep.subr.mxu0 0.0
  %12014 = vmatpush1.msra.mxu0 0.0
  %12015 = vmatprep.subr.mxu0 0.0
  %12016 = vmatpush1.msra.mxu0 0.0
  %12017 = vmatprep.subr.mxu0 0.0
  %12018 = vmatpush1.msra.mxu0 0.0
  %12019 = vmatprep.subr.mxu0 0.0
  %12020 = vmatpush1.msra.mxu0 0.0
  %12021 = vmatprep.subr.mxu0 0.0
  %12022 = vmatpush1.msra.mxu0 0.0
  %12023 = vmatprep.subr.mxu0 0.0
  %12024 = vmatpush1.msra.mxu0 0.0
  %12025 = vmatprep.subr.mxu0 0.0
  %12026 = vmatpush1.msra.mxu0 0.0
  %12027 = vmatprep.subr.mxu0 0.0
  %12028 = vmatpush1.msra.mxu0 0.0
  %12029 = vmatprep.mubr.f32.mxu0 0.0
  %12030 = vmatmul.mubr.f32.gmra.mrb[0].mxu0 %v11918
  %v12031 = vpop.f32.mrb[0].mxu0
  %v12032 = vadd.f32 %v11865, %v12031
  %v12033 = vpop.f32.mrb[0].mxu0
  %12034 = vmatprep.mubr.f32.mxu0 0.0
  %12035 = vmatmul.mubr.f32.gmra.mrb[0].mxu0 %v11921
  %v12036 = vpop.f32.mrb[0].mxu0
  %v12037 = vadd.f32 %v11866, %v12036
  %v12038 = vpop.f32.mrb[0].mxu0
  %12039 = vmatprep.mubr.f32.mxu0 0.0
  %12040 = vmatmul.mubr.f32.gmra.mrb[0].mxu0 %v11924
  %v12041 = vpop.f32.mrb[0].mxu0
  %v12042 = vadd.f32 %v11867, %v12041
  %v12043 = vpop.f32.mrb[0].mxu0
  %12044 = vmatprep.mubr.f32.mxu0 0.0
  %12045 = vmatmul.mubr.f32.gmra.mrb[0].mxu0 %v11927
  %v12046 = vpop.f32.mrb[0].mxu0
  %v12047 = vadd.f32 %v11868, %v12046
  %v12048 = vpop.f32.mrb[0].mxu0
  %12049 = vmatprep.mubr.f32.mxu0 0.0
  %12050 = vmatmul.mubr.f32.gmra.mrb[0].mxu0 %v11930
  %v12051 = vpop.f32.mrb[0].mxu0
  %v12052 = vadd.f32 %v11869, %v12051
  %v12053 = vpop.f32.mrb[0].mxu0
  %12054 = vmatprep.mubr.f32.mxu0 0.0
  %12055 = vmatmul.mubr.f32.gmra.mrb[0].mxu0 %v11933
  %v12056 = vpop.f32.mrb[0].mxu0
  %v12057 = vadd.f32 %v11870, %v12056
  %v12058 = vpop.f32.mrb[0].mxu0
  %12059 = vmatprep.mubr.f32.mxu0 0.0
  %12060 = vmatmul.mubr.f32.gmra.mrb[0].mxu0 %v11936
  %v12061 = vpop.f32.mrb[0].mxu0
  %v12062 = vadd.f32 %v11871, %v12061
  %v12063 = vpop.f32.mrb[0].mxu0
  %12064 = vmatprep.mubr.f32.mxu0 0.0
  %12065 = vmatmul.mubr.f32.gmra.mrb[0].mxu0 %v11939
  %v12066 = vpop.f32.mrb[0].mxu0
  %v12067 = vadd.f32 %v11872, %v12066
  %v12068 = vpop.f32.mrb[0].mxu0
  %12069 = vmatprep.mubr.f32.mxu0 0.0
  %12070 = vmatmul.mubr.f32.gmra.mrb[0].mxu0 %v11942
  %v12071 = vpop.f32.mrb[0].mxu0
  %v12072 = vadd.f32 %v11873, %v12071
  %v12073 = vpop.f32.mrb[0].mxu0
  %12074 = vmatprep.mubr.f32.mxu0 0.0
  %12075 = vmatmul.mubr.f32.gmra.mrb[0].mxu0 %v11945
  %v12076 = vpop.f32.mrb[0].mxu0
  %v12077 = vadd.f32 %v11874, %v12076
  %v12078 = vpop.f32.mrb[0].mxu0
  %12079 = vmatprep.mubr.f32.mxu0 0.0
  %12080 = vmatmul.mubr.f32.gmra.mrb[0].mxu0 %v11948
  %v12081 = vpop.f32.mrb[0].mxu0
  %v12082 = vadd.f32 %v11875, %v12081
  %v12083 = vpop.f32.mrb[0].mxu0
  %12084 = vmatprep.mubr.f32.mxu0 0.0
  %12085 = vmatmul.mubr.f32.gmra.mrb[0].mxu0 %v11951
  %v12086 = vpop.f32.mrb[0].mxu0
  %v12087 = vadd.f32 %v11876, %v12086
  %v12088 = vpop.f32.mrb[0].mxu0
  %12089 = vmatprep.mubr.f32.mxu0 0.0
  %12090 = vmatmul.mubr.f32.gmra.mrb[0].mxu0 %v11954
  %v12091 = vpop.f32.mrb[0].mxu0
  %v12092 = vadd.f32 %v11877, %v12091
  %v12093 = vpop.f32.mrb[0].mxu0
  %12094 = vmatprep.mubr.f32.mxu0 0.0
  %12095 = vmatmul.mubr.f32.gmra.mrb[0].mxu0 %v11957
  %v12096 = vpop.f32.mrb[0].mxu0
  %v12097 = vadd.f32 %v11878, %v12096
  %v12098 = vpop.f32.mrb[0].mxu0
  %12099 = vmatprep.mubr.f32.mxu0 0.0
  %12100 = vmatmul.mubr.f32.gmra.mrb[0].mxu0 %v11960
  %v12101 = vpop.f32.mrb[0].mxu0
  %v12102 = vadd.f32 %v11879, %v12101
  %v12103 = vpop.f32.mrb[0].mxu0
  %12104 = vmatprep.mubr.f32.mxu0 0.0
  %12105 = vmatmul.mubr.f32.gmra.mrb[0].mxu0 %v11963
  %v12106 = vpop.f32.mrb[0].mxu0
  %v12107 = vadd.f32 %v11880, %v12106
  %v12108 = vpop.f32.mrb[0].mxu0
  %12109 = vdwg.mxu0
  %v12110 = vmax.f32 %v12032, 0.0
  %v12111 = vmax.f32 %v12037, 0.0
  %v12112 = vmax.f32 %v12042, 0.0
  %v12113 = vmax.f32 %v12047, 0.0
  %v12114 = vmax.f32 %v12052, 0.0
  %v12115 = vmax.f32 %v12057, 0.0
  %v12116 = vmax.f32 %v12062, 0.0
  %v12117 = vmax.f32 %v12067, 0.0
  %v12118 = vmax.f32 %v12072, 0.0
  %v12119 = vmax.f32 %v12077, 0.0
  %v12120 = vmax.f32 %v12082, 0.0
  %v12121 = vmax.f32 %v12087, 0.0
  %v12122 = vmax.f32 %v12092, 0.0
  %v12123 = vmax.f32 %v12097, 0.0
  %v12124 = vmax.f32 %v12102, 0.0
  %v12125 = vmax.f32 %v12107, 0.0
  %12126 = vmatprep.subr.mxu0 0.0
  %12127 = vmatpush1.msra.mxu0 %v12110
  %12128 = vmatprep.subr.mxu0 0.0
  %12129 = vmatpush1.msra.mxu0 %v12111
  %12130 = vmatprep.subr.mxu0 0.0
  %12131 = vmatpush1.msra.mxu0 %v12112
  %12132 = vmatprep.subr.mxu0 0.0
  %12133 = vmatpush1.msra.mxu0 %v12113
  %12134 = vmatprep.subr.mxu0 0.0
  %12135 = vmatpush1.msra.mxu0 %v12114
  %12136 = vmatprep.subr.mxu0 0.0
  %12137 = vmatpush1.msra.mxu0 %v12115
  %12138 = vmatprep.subr.mxu0 0.0
  %12139 = vmatpush1.msra.mxu0 %v12116
  %12140 = vmatprep.subr.mxu0 0.0
  %12141 = vmatpush1.msra.mxu0 %v12117
  %12142 = vmatprep.subr.mxu0 0.0
  %12143 = vmatpush1.msra.mxu0 %v12118
  %12144 = vmatprep.subr.mxu0 0.0
  %12145 = vmatpush1.msra.mxu0 %v12119
  %12146 = vmatprep.subr.mxu0 0.0
  %12147 = vmatpush1.msra.mxu0 %v12120
  %12148 = vmatprep.subr.mxu0 0.0
  %12149 = vmatpush1.msra.mxu0 %v12121
  %12150 = vmatprep.subr.mxu0 0.0
  %12151 = vmatpush1.msra.mxu0 %v12122
  %12152 = vmatprep.subr.mxu0 0.0
  %12153 = vmatpush1.msra.mxu0 %v12123
  %12154 = vmatprep.subr.mxu0 0.0
  %12155 = vmatpush1.msra.mxu0 %v12124
  %12156 = vmatprep.subr.mxu0 0.0
  %12157 = vmatpush1.msra.mxu0 %v12125
  %12158 = vmatprep.subr.mxu0 0.0
  %12159 = vmatpush1.msra.mxu0 0.0
  %12160 = vmatprep.subr.mxu0 0.0
  %12161 = vmatpush1.msra.mxu0 0.0
  %12162 = vmatprep.subr.mxu0 0.0
  %12163 = vmatpush1.msra.mxu0 0.0
  %12164 = vmatprep.subr.mxu0 0.0
  %12165 = vmatpush1.msra.mxu0 0.0
  %12166 = vmatprep.subr.mxu0 0.0
  %12167 = vmatpush1.msra.mxu0 0.0
  %12168 = vmatprep.subr.mxu0 0.0
  %12169 = vmatpush1.msra.mxu0 0.0
  %12170 = vmatprep.subr.mxu0 0.0
  %12171 = vmatpush1.msra.mxu0 0.0
  %12172 = vmatprep.subr.mxu0 0.0
  %12173 = vmatpush1.msra.mxu0 0.0
  %12174 = vmatprep.subr.mxu0 0.0
  %12175 = vmatpush1.msra.mxu0 0.0
  %12176 = vmatprep.subr.mxu0 0.0
  %12177 = vmatpush1.msra.mxu0 0.0
  %12178 = vmatprep.subr.mxu0 0.0
  %12179 = vmatpush1.msra.mxu0 0.0
  %12180 = vmatprep.subr.mxu0 0.0
  %12181 = vmatpush1.msra.mxu0 0.0
  %12182 = vmatprep.subr.mxu0 0.0
  %12183 = vmatpush1.msra.mxu0 0.0
  %12184 = vmatprep.subr.mxu0 0.0
  %12185 = vmatpush1.msra.mxu0 0.0
  %12186 = vmatprep.subr.mxu0 0.0
  %12187 = vmatpush1.msra.mxu0 0.0
  %12188 = vmatprep.subr.mxu0 0.0
  %12189 = vmatpush1.msra.mxu0 0.0
  %12190 = vmatprep.mubr.f32.mxu0 0.0
  %12191 = vmatmul.mubr.f32.gmra.mrb[0].mxu0 %v11881
  %v12192 = vpop.f32.mrb[0].mxu0
  %v12193 = vadd.f32 %v11897, %v12192
  %v12194 = vpop.f32.mrb[0].mxu0
  %12195 = vmatprep.mubr.f32.mxu0 0.0
  %12196 = vmatmul.mubr.f32.gmra.mrb[0].mxu0 %v11882
  %v12197 = vpop.f32.mrb[0].mxu0
  %v12198 = vadd.f32 %v11898, %v12197
  %v12199 = vpop.f32.mrb[0].mxu0
  %12200 = vmatprep.mubr.f32.mxu0 0.0
  %12201 = vmatmul.mubr.f32.gmra.mrb[0].mxu0 %v11883
  %v12202 = vpop.f32.mrb[0].mxu0
  %v12203 = vadd.f32 %v11899, %v12202
  %v12204 = vpop.f32.mrb[0].mxu0
  %12205 = vmatprep.mubr.f32.mxu0 0.0
  %12206 = vmatmul.mubr.f32.gmra.mrb[0].mxu0 %v11884
  %v12207 = vpop.f32.mrb[0].mxu0
  %v12208 = vadd.f32 %v11900, %v12207
  %v12209 = vpop.f32.mrb[0].mxu0
  %12210 = vmatprep.mubr.f32.mxu0 0.0
  %12211 = vmatmul.mubr.f32.gmra.mrb[0].mxu0 %v11885
  %v12212 = vpop.f32.mrb[0].mxu0
  %v12213 = vadd.f32 %v11901, %v12212
  %v12214 = vpop.f32.mrb[0].mxu0
  %12215 = vmatprep.mubr.f32.mxu0 0.0
  %12216 = vmatmul.mubr.f32.gmra.mrb[0].mxu0 %v11886
  %v12217 = vpop.f32.mrb[0].mxu0
  %v12218 = vadd.f32 %v11902, %v12217
  %v12219 = vpop.f32.mrb[0].mxu0
  %12220 = vmatprep.mubr.f32.mxu0 0.0
  %12221 = vmatmul.mubr.f32.gmra.mrb[0].mxu0 %v11887
  %v12222 = vpop.f32.mrb[0].mxu0
  %v12223 = vadd.f32 %v11903, %v12222
  %v12224 = vpop.f32.mrb[0].mxu0
  %12225 = vmatprep.mubr.f32.mxu0 0.0
  %12226 = vmatmul.mubr.f32.gmra.mrb[0].mxu0 %v11888
  %v12227 = vpop.f32.mrb[0].mxu0
  %v12228 = vadd.f32 %v11904, %v12227
  %v12229 = vpop.f32.mrb[0].mxu0
  %12230 = vmatprep.mubr.f32.mxu0 0.0
  %12231 = vmatmul.mubr.f32.gmra.mrb[0].mxu0 %v11889
  %v12232 = vpop.f32.mrb[0].mxu0
  %v12233 = vadd.f32 %v11905, %v12232
  %v12234 = vpop.f32.mrb[0].mxu0
  %12235 = vmatprep.mubr.f32.mxu0 0.0
  %12236 = vmatmul.mubr.f32.gmra.mrb[0].mxu0 %v11890
  %v12237 = vpop.f32.mrb[0].mxu0
  %v12238 = vadd.f32 %v11906, %v12237
  %v12239 = vpop.f32.mrb[0].mxu0
  %12240 = vmatprep.mubr.f32.mxu0 0.0
  %12241 = vmatmul.mubr.f32.gmra.mrb[0].mxu0 %v11891
  %v12242 = vpop.f32.mrb[0].mxu0
  %v12243 = vadd.f32 %v11907, %v12242
  %v12244 = vpop.f32.mrb[0].mxu0
  %12245 = vmatprep.mubr.f32.mxu0 0.0
  %12246 = vmatmul.mubr.f32.gmra.mrb[0].mxu0 %v11892
  %v12247 = vpop.f32.mrb[0].mxu0
  %v12248 = vadd.f32 %v11908, %v12247
  %v12249 = vpop.f32.mrb[0].mxu0
  %12250 = vmatprep.mubr.f32.mxu0 0.0
  %12251 = vmatmul.mubr.f32.gmra.mrb[0].mxu0 %v11893
  %v12252 = vpop.f32.mrb[0].mxu0
  %v12253 = vadd.f32 %v11909, %v12252
  %v12254 = vpop.f32.mrb[0].mxu0
  %12255 = vmatprep.mubr.f32.mxu0 0.0
  %12256 = vmatmul.mubr.f32.gmra.mrb[0].mxu0 %v11894
  %v12257 = vpop.f32.mrb[0].mxu0
  %v12258 = vadd.f32 %v11910, %v12257
  %v12259 = vpop.f32.mrb[0].mxu0
  %12260 = vmatprep.mubr.f32.mxu0 0.0
  %12261 = vmatmul.mubr.f32.gmra.mrb[0].mxu0 %v11895
  %v12262 = vpop.f32.mrb[0].mxu0
  %v12263 = vadd.f32 %v11911, %v12262
  %v12264 = vpop.f32.mrb[0].mxu0
  %12265 = vmatprep.mubr.f32.mxu0 0.0
  %12266 = vmatmul.mubr.f32.gmra.mrb[0].mxu0 %v11896
  %v12267 = vpop.f32.mrb[0].mxu0
  %v12268 = vadd.f32 %v11912, %v12267
  %v12269 = vpop.f32.mrb[0].mxu0
  %12270 = vdwg.mxu0
  %v12271 = vmax.f32 %v12193, 0.0
  %v12272 = vmax.f32 %v12198, 0.0
  %v12273 = vmax.f32 %v12203, 0.0
  %v12274 = vmax.f32 %v12208, 0.0
  %v12275 = vmax.f32 %v12213, 0.0
  %v12276 = vmax.f32 %v12218, 0.0
  %v12277 = vmax.f32 %v12223, 0.0
  %v12278 = vmax.f32 %v12228, 0.0
  %v12279 = vmax.f32 %v12233, 0.0
  %v12280 = vmax.f32 %v12238, 0.0
  %v12281 = vmax.f32 %v12243, 0.0
  %v12282 = vmax.f32 %v12248, 0.0
  %v12283 = vmax.f32 %v12253, 0.0
  %v12284 = vmax.f32 %v12258, 0.0
  %v12285 = vmax.f32 %v12263, 0.0
  %v12286 = vmax.f32 %v12268, 0.0
  %12287 = vmatprep.subr.mxu0 0.0
  %12288 = vmatpush1.msra.mxu0 %v12271
  %12289 = vmatprep.subr.mxu0 0.0
  %12290 = vmatpush1.msra.mxu0 %v12272
  %12291 = vmatprep.subr.mxu0 0.0
  %12292 = vmatpush1.msra.mxu0 %v12273
  %12293 = vmatprep.subr.mxu0 0.0
  %12294 = vmatpush1.msra.mxu0 %v12274
  %12295 = vmatprep.subr.mxu0 0.0
  %12296 = vmatpush1.msra.mxu0 %v12275
  %12297 = vmatprep.subr.mxu0 0.0
  %12298 = vmatpush1.msra.mxu0 %v12276
  %12299 = vmatprep.subr.mxu0 0.0
  %12300 = vmatpush1.msra.mxu0 %v12277
  %12301 = vmatprep.subr.mxu0 0.0
  %12302 = vmatpush1.msra.mxu0 %v12278
  %12303 = vmatprep.subr.mxu0 0.0
  %12304 = vmatpush1.msra.mxu0 %v12279
  %12305 = vmatprep.subr.mxu0 0.0
  %12306 = vmatpush1.msra.mxu0 %v12280
  %12307 = vmatprep.subr.mxu0 0.0
  %12308 = vmatpush1.msra.mxu0 %v12281
  %12309 = vmatprep.subr.mxu0 0.0
  %12310 = vmatpush1.msra.mxu0 %v12282
  %12311 = vmatprep.subr.mxu0 0.0
  %12312 = vmatpush1.msra.mxu0 %v12283
  %12313 = vmatprep.subr.mxu0 0.0
  %12314 = vmatpush1.msra.mxu0 %v12284
  %12315 = vmatprep.subr.mxu0 0.0
  %12316 = vmatpush1.msra.mxu0 %v12285
  %12317 = vmatprep.subr.mxu0 0.0
  %12318 = vmatpush1.msra.mxu0 %v12286
  %12319 = vmatprep.subr.mxu0 0.0
  %12320 = vmatpush1.msra.mxu0 0.0
  %12321 = vmatprep.subr.mxu0 0.0
  %12322 = vmatpush1.msra.mxu0 0.0
  %12323 = vmatprep.subr.mxu0 0.0
  %12324 = vmatpush1.msra.mxu0 0.0
  %12325 = vmatprep.subr.mxu0 0.0
  %12326 = vmatpush1.msra.mxu0 0.0
  %12327 = vmatprep.subr.mxu0 0.0
  %12328 = vmatpush1.msra.mxu0 0.0
  %12329 = vmatprep.subr.mxu0 0.0
  %12330 = vmatpush1.msra.mxu0 0.0
  %12331 = vmatprep.subr.mxu0 0.0
  %12332 = vmatpush1.msra.mxu0 0.0
  %12333 = vmatprep.subr.mxu0 0.0
  %12334 = vmatpush1.msra.mxu0 0.0
  %12335 = vmatprep.subr.mxu0 0.0
  %12336 = vmatpush1.msra.mxu0 0.0
  %12337 = vmatprep.subr.mxu0 0.0
  %12338 = vmatpush1.msra.mxu0 0.0
  %12339 = vmatprep.subr.mxu0 0.0
  %12340 = vmatpush1.msra.mxu0 0.0
  %12341 = vmatprep.subr.mxu0 0.0
  %12342 = vmatpush1.msra.mxu0 0.0
  %12343 = vmatprep.subr.mxu0 0.0
  %12344 = vmatpush1.msra.mxu0 0.0
  %12345 = vmatprep.subr.mxu0 0.0
  %12346 = vmatpush1.msra.mxu0 0.0
  %12347 = vmatprep.subr.mxu0 0.0
  %12348 = vmatpush1.msra.mxu0 0.0
  %12349 = vmatprep.subr.mxu0 0.0
  %12350 = vmatpush1.msra.mxu0 0.0
  %12351 = vmatprep.mubr.f32.mxu0 0.0
  %12352 = vmatmul.mubr.f32.gmra.mrb[0].mxu0 %v11913
  %v12353 = vpop.f32.mrb[0].mxu0
  %v12354 = vadd.f32 %v11915, %v12353
  %v12355 = vpop.f32.mrb[0].mxu0
  %12356 = vmatprep.mubr.f32.mxu0 0.0
  %12357 = vmatmul.mubr.f32.gmra.mrb[0].mxu0 %v11914
  %v12358 = vpop.f32.mrb[0].mxu0
  %v12359 = vadd.f32 %v11916, %v12358
  %v12360 = vpop.f32.mrb[0].mxu0
  %12361 = vdwg.mxu0
  %vm12362 = vcmask 7168
  %12363 = vst.msk [vmem:[%s99] sm:$0xff] %vm12362, %v12354
  %vm12364 = vcmask 1024
  %12365 = vst.msk [vmem:[%s99 + $0x8] sm:$0x3] %vm12364, %v12359
  // Predicated region
  $region198: #{mod_vgg_forward.1} parent=0 // pred_check
    _
  $region199: #{mod_vgg_forward.1} parent=0 // pred_check_branch
    %12367 = sbr.rel (0) target = $region201
  $region200: #{mod_vgg_forward.1} parent=0 // pred_region
    _
  $region201: #{mod_vgg_forward.1} parent=0 // pred_fallthru
    _
  // Predicated region
  $region202: #{mod_vgg_forward.1} parent=0 // pred_check
    _
  $region203: #{mod_vgg_forward.1} parent=0 // pred_check_branch
    %12369 = sbr.rel (0) target = $region205
  $region204: #{mod_vgg_forward.1} parent=0 // pred_region
    _
  $region205: #{mod_vgg_forward.1} parent=0 // pred_fallthru
    _

</llo_original>
